<compile_context>
chip_gen: v7x
topology: tpu7x:2x2x1
jax: 0.10.0
libtpu: 0.0.40
codegen_flags: <defaults>
</compile_context>

<pallas_src>
import functools

import jax
import jax.numpy as jnp
from jax.experimental import pallas as pl
from jax.experimental.pallas import tpu as pltpu


def _round_up(x, m):
    return (x + m - 1) // m * m


def _elu(x):
    # ELU(alpha=1): x if x > 0 else exp(x) - 1
    return jnp.where(x > 0, x, jnp.exp(jnp.minimum(x, 0.0)) - 1.0)


def _sigmoid(x):
    return 1.0 / (1.0 + jnp.exp(-x))


# --------------------------------- kernels -----------------------------------

def _conv1x1_kernel(x_ref, w_ref, b_ref, o_ref):
    # conv1: 1x1x1 channel projection + bias (bf16 MXU, f32 accumulate).
    y = jnp.dot(x_ref[0, 0], w_ref[...], preferred_element_type=jnp.float32)
    o_ref[0, 0] = (y + b_ref[...]).astype(o_ref.dtype)


def _conv3x3_stats_kernel(x0_ref, x1_ref, x2_ref, w_ref, y_ref, st_ref, *, H, W):
    # 3x3x3 conv for one (n, d) output slab: 27 accumulated MXU matmuls over shifted
    # row-windows of the padded, row-flattened input slabs (one ref per kd).
    # Also emits per-slab channel sum / sum-of-squares for the two-pass GroupNorm.
    Wp = W + 2                       # padded row width (each row carries 2 slop cols)
    S = H * Wp                       # rows processed per tap
    Cp = y_ref.shape[-1]
    refs = (x0_ref, x1_ref, x2_ref)
    acc = jnp.zeros((S, Cp), jnp.float32)
    for kd in range(3):
        for kh in range(3):
            for kw in range(3):
                off = kh * Wp + kw
                patch = refs[kd][0, 0, off:off + S, :]            # (S, Cp) bf16
                acc = acc + jnp.dot(patch, w_ref[kd * 9 + kh * 3 + kw],
                                    preferred_element_type=jnp.float32)
    # GroupNorm partial stats (mask out the 2 slop columns of every row).
    r = jax.lax.broadcasted_iota(jnp.int32, (S, 1), 0)
    accm = jnp.where((r % Wp) < W, acc, 0.0)
    st_ref[0, 0, 0:1, :] = jnp.sum(accm, axis=0, keepdims=True)
    st_ref[0, 0, 1:2, :] = jnp.sum(accm * accm, axis=0, keepdims=True)
    # Compact store (drop slop columns) -> tight (H*W, Cp) layout, bf16.
    for h in range(H):
        y_ref[0, 0, h * W:(h + 1) * W, :] = (
            acc[h * Wp:h * Wp + W, :].astype(y_ref.dtype))


def _norm_elu_kernel(y_ref, sc_ref, sh_ref, o_ref):
    # GroupNorm apply (stats already folded into a per-channel affine) + ELU.
    y = y_ref[0, 0].astype(jnp.float32)
    o_ref[0, 0] = _elu(y * sc_ref[0] + sh_ref[0]).astype(o_ref.dtype)


def _res_elu_sum_kernel(y_ref, r_ref, sc_ref, sh_ref, o_ref):
    # a = ELU(GN(conv3) + residual); emit per-(n, d) channel sums for the cSE pool.
    y = (y_ref[0, 0].astype(jnp.float32) * sc_ref[0] + sh_ref[0]
         + r_ref[0, 0].astype(jnp.float32))
    o_ref[0, 0] = jnp.sum(_elu(y), axis=0, keepdims=True)


def _res_elu_se_kernel(y_ref, r_ref, sc_ref, sh_ref, z_ref,
                       w1_ref, b1_ref, w2_ref, b2_ref, sw_ref, sb_ref, o_ref):
    # Recompute a = ELU(GN(conv3) + residual) and apply scSE:
    #   cSE: channel gate from the pooled vector z (tiny MLP on a (1, Cp) vector),
    #   sSE: spatial gate via a VPU lane-reduction (no (P,C)x(C,1) MXU matmul).
    y = (y_ref[0, 0].astype(jnp.float32) * sc_ref[0] + sh_ref[0]
         + r_ref[0, 0].astype(jnp.float32))
    a = _elu(y)                                                     # (HW, Cp) f32
    h = jnp.maximum(
        jnp.dot(z_ref[0], w1_ref[...], preferred_element_type=jnp.float32)
        + b1_ref[...], 0.0)
    s = _sigmoid(
        jnp.dot(h, w2_ref[...], preferred_element_type=jnp.float32) + b2_ref[...])
    q = _sigmoid(jnp.sum(a * sw_ref[...], axis=-1, keepdims=True) + sb_ref[...])
    o_ref[0, 0] = jnp.maximum(a * s, a * q).astype(o_ref.dtype)


# ------------------------------- parameter prep -------------------------------

def prepare_params(params, in_channels, out_channels):
    """One-time (outside jit) weight re-layout: transpose / channel-pad / bf16 cast."""
    C = out_channels
    Cp = _round_up(C, 128)
    pc = Cp - C
    p = {}
    if in_channels != out_channels:
        w1 = jnp.transpose(params["w1"].reshape(C, in_channels))         # (Cin, C)
        p["w1"] = jnp.pad(w1, ((0, 0), (0, pc))).astype(jnp.bfloat16)
        p["b1"] = jnp.pad(params["b1"], (0, pc)).reshape(1, Cp).astype(jnp.float32)
    for k in ("w2", "w3"):
        # torch layout (cout, cin, kd, kh, kw) -> tap-major (27, cin, cout)
        w = jnp.transpose(params[k], (2, 3, 4, 1, 0)).reshape(27, C, C)
        p[k] = jnp.pad(w, ((0, 0), (0, pc), (0, pc))).astype(jnp.bfloat16)
    for k in ("gamma2", "beta2", "gamma3", "beta3"):
        p[k] = params[k].astype(jnp.float32)
    p["fc1_w"] = jnp.pad(jnp.transpose(params["fc1_w"]),
                         ((0, pc), (0, pc))).astype(jnp.float32)
    p["fc1_b"] = jnp.pad(params["fc1_b"], (0, pc)).reshape(1, Cp).astype(jnp.float32)
    p["fc2_w"] = jnp.pad(jnp.transpose(params["fc2_w"]),
                         ((0, pc), (0, pc))).astype(jnp.float32)
    p["fc2_b"] = jnp.pad(params["fc2_b"], (0, pc)).reshape(1, Cp).astype(jnp.float32)
    p["sse_w"] = jnp.pad(params["sse_w"].reshape(1, C),
                         ((0, 0), (0, pc))).astype(jnp.float32)
    p["sse_b"] = params["sse_b"].reshape(1, 1).astype(jnp.float32)
    return p


# --------------------------------- forward ------------------------------------

def resnet_block_se_forward(x, prep, *, num_groups=8, eps=1e-5):
    N, Cin, D, H, W = x.shape
    C = prep["gamma2"].shape[0]
    Cp = prep["w2"].shape[-1]
    G = num_groups if C >= num_groups else 1
    assert C % G == 0
    HW = H * W
    P = D * HW
    Sp = (H + 3) * (W + 2)           # rows of a padded, row-flattened depth slab

    cparams = pltpu.CompilerParams(
        dimension_semantics=("parallel", "parallel"),
        # v7x has only 64 MiB physical VMEM; keep the scoped budget well below it.
        vmem_limit_bytes=48 * 1024 * 1024)

    def act_spec():
        return pl.BlockSpec((1, 1, HW, Cp), lambda n, d: (n, d, 0, 0))

    def vec_spec():
        return pl.BlockSpec((1, 1, Cp), lambda n, d: (n, 0, 0))

    def const_spec(shape):
        nd = len(shape)
        return pl.BlockSpec(shape, lambda n, d, nd=nd: (0,) * nd)

    # ----- layout: NCDHW -> (N, D, H*W, Cin), bf16 ----------------------------
    x_flat = (jnp.transpose(x, (0, 2, 3, 4, 1))
              .reshape(N, D, HW, Cin).astype(jnp.bfloat16))

    # ----- conv1: 1x1x1 projection -> residual (channels padded to Cp) --------
    if Cin != C:
        residual = pl.pallas_call(
            _conv1x1_kernel,
            out_shape=jax.ShapeDtypeStruct((N, D, HW, Cp), jnp.bfloat16),
            grid=(N, D),
            in_specs=[pl.BlockSpec((1, 1, HW, Cin), lambda n, d: (n, d, 0, 0)),
                      const_spec((Cin, Cp)),
                      const_spec((1, Cp))],
            out_specs=act_spec(),
            compiler_params=cparams,
        )(x_flat, prep["w1"], prep["b1"])
    else:
        residual = jnp.pad(x_flat, ((0, 0), (0, 0), (0, 0), (0, Cp - Cin)))

    # ----- 3x3x3 conv (no bias) + per-slab GroupNorm partial stats ------------
    def conv3x3_stats(inp_flat, w):
        xp = jnp.pad(inp_flat.reshape(N, D, H, W, Cp),
                     ((0, 0), (1, 1), (1, 2), (1, 1), (0, 0)))
        xp = xp.reshape(N, D + 2, Sp, Cp)

        def slab_spec(kd):
            return pl.BlockSpec((1, 1, Sp, Cp),
                                lambda n, d, kd=kd: (n, d + kd, 0, 0))

        return pl.pallas_call(
            functools.partial(_conv3x3_stats_kernel, H=H, W=W),
            out_shape=(jax.ShapeDtypeStruct((N, D, HW, Cp), jnp.bfloat16),
                       jax.ShapeDtypeStruct((N, D, 2, Cp), jnp.float32)),
            grid=(N, D),
            in_specs=[slab_spec(0), slab_spec(1), slab_spec(2),
                      const_spec((27, Cp, Cp))],
            out_specs=(act_spec(),
                       pl.BlockSpec((1, 1, 2, Cp), lambda n, d: (n, d, 0, 0))),
            compiler_params=cparams,
        )(xp, xp, xp, w)

    # ----- tiny O(N*C) GroupNorm finalization (plain JAX, f32) ----------------
    def gn_affine(stats, gamma, beta):
        cpg = C // G
        s = jnp.sum(stats[:, :, 0, :C], axis=1)                      # (N, C)
        ss = jnp.sum(stats[:, :, 1, :C], axis=1)
        sg = s.reshape(N, G, cpg).sum(-1)                            # (N, G)
        ssg = ss.reshape(N, G, cpg).sum(-1)
        cnt = float(P * cpg)
        mean = sg / cnt
        # TODO(synk): E[x^2]-E[x]^2 in f32 can cancel for very large volumes; a
        # centered second pass (Welford-style) would track torch even tighter.
        var = jnp.maximum(ssg / cnt - mean * mean, 0.0)
        inv = jax.lax.rsqrt(var + eps)
        mean_c = jnp.repeat(mean, cpg, axis=1)                       # (N, C)
        inv_c = jnp.repeat(inv, cpg, axis=1)
        scale = inv_c * gamma[None, :]
        shift = beta[None, :] - mean_c * scale
        scale = jnp.pad(scale, ((0, 0), (0, Cp - C))).reshape(N, 1, Cp)
        shift = jnp.pad(shift, ((0, 0), (0, Cp - C))).reshape(N, 1, Cp)
        return scale, shift

    # ----- conv2 = SingleConv('cge'): conv + GroupNorm + ELU -------------------
    y2, st2 = conv3x3_stats(residual, prep["w2"])
    sc2, sh2 = gn_affine(st2, prep["gamma2"], prep["beta2"])
    out2 = pl.pallas_call(
        _norm_elu_kernel,
        out_shape=jax.ShapeDtypeStruct((N, D, HW, Cp), jnp.bfloat16),
        grid=(N, D),
        in_specs=[act_spec(), vec_spec(), vec_spec()],
        out_specs=act_spec(),
        compiler_params=cparams,
    )(y2, sc2, sh2)

    # ----- conv3 = SingleConv('cg'): conv + GroupNorm (no non-linearity) -------
    y3, st3 = conv3x3_stats(out2, prep["w3"])
    sc3, sh3 = gn_affine(st3, prep["gamma3"], prep["beta3"])

    # ----- residual add + ELU, pass 1: partial channel sums for the cSE pool ---
    part = pl.pallas_call(
        _res_elu_sum_kernel,
        out_shape=jax.ShapeDtypeStruct((N, D, 1, Cp), jnp.float32),
        grid=(N, D),
        in_specs=[act_spec(), act_spec(), vec_spec(), vec_spec()],
        out_specs=pl.BlockSpec((1, 1, 1, Cp), lambda n, d: (n, d, 0, 0)),
        compiler_params=cparams,
    )(y3, residual, sc3, sh3)
    z = (jnp.sum(part, axis=(1, 2)) / float(P)).reshape(N, 1, Cp)    # cSE squeeze

    # ----- residual add + ELU, pass 2: apply scSE and write the output --------
    out = pl.pallas_call(
        _res_elu_se_kernel,
        out_shape=jax.ShapeDtypeStruct((N, D, HW, Cp), jnp.float32),
        grid=(N, D),
        in_specs=[act_spec(), act_spec(), vec_spec(), vec_spec(), vec_spec(),
                  const_spec((Cp, Cp)), const_spec((1, Cp)),
                  const_spec((Cp, Cp)), const_spec((1, Cp)),
                  const_spec((1, Cp)), const_spec((1, 1))],
        out_specs=act_spec(),
        compiler_params=cparams,
    )(y3, residual, sc3, sh3, z,
      prep["fc1_w"], prep["fc1_b"], prep["fc2_w"], prep["fc2_b"],
      prep["sse_w"], prep["sse_b"])

    # back to PyTorch NCDHW layout, real channels only
    out = out[..., :C].reshape(N, D, H, W, C)
    return jnp.transpose(out, (0, 4, 1, 2, 3))


# --------------------------------- driver -------------------------------------

if __name__ == "__main__":
    key = jax.random.PRNGKey(0)
    ks = jax.random.split(key, 12)
    N, Cin, Cout, D, H, W = 2, 4, 8, 8, 8, 8

    params = {
        # conv1: Conv3d(Cin, Cout, 1, bias=True)
        "w1": 0.1 * jax.random.normal(ks[0], (Cout, Cin, 1, 1, 1), jnp.float32),
        "b1": 0.1 * jax.random.normal(ks[1], (Cout,), jnp.float32),
        # conv2: Conv3d(Cout, Cout, 3, padding=1, bias=False) + GroupNorm(8, Cout)
        "w2": 0.1 * jax.random.normal(ks[2], (Cout, Cout, 3, 3, 3), jnp.float32),
        "gamma2": jnp.ones((Cout,), jnp.float32),
        "beta2": jnp.zeros((Cout,), jnp.float32),
        # conv3: Conv3d(Cout, Cout, 3, padding=1, bias=False) + GroupNorm(8, Cout)
        "w3": 0.1 * jax.random.normal(ks[3], (Cout, Cout, 3, 3, 3), jnp.float32),
        "gamma3": jnp.ones((Cout,), jnp.float32),
        "beta3": jnp.zeros((Cout,), jnp.float32),
        # scSE: cSE Linear(Cout, Cout) / Linear(Cout, Cout) (reduction_ratio=1)
        "fc1_w": 0.1 * jax.random.normal(ks[4], (Cout, Cout), jnp.float32),
        "fc1_b": 0.1 * jax.random.normal(ks[5], (Cout,), jnp.float32),
        "fc2_w": 0.1 * jax.random.normal(ks[6], (Cout, Cout), jnp.float32),
        "fc2_b": 0.1 * jax.random.normal(ks[7], (Cout,), jnp.float32),
        # scSE: sSE Conv3d(Cout, 1, 1, bias=True)
        "sse_w": 0.1 * jax.random.normal(ks[8], (1, Cout, 1, 1, 1), jnp.float32),
        "sse_b": 0.1 * jax.random.normal(ks[9], (1,), jnp.float32),
    }

    x = jax.random.normal(ks[10], (N, Cin, D, H, W), jnp.float32)

    prep = prepare_params(params, Cin, Cout)        # one-time weight re-layout
    fwd = jax.jit(functools.partial(resnet_block_se_forward, num_groups=8))
    y = fwd(x, prep)
    jax.block_until_ready(y)
    assert y.shape == (N, Cout, D, H, W)
    assert bool(jnp.all(jnp.isfinite(y)))
    print("KERNEL_OK")
</pallas_src>

<mosaic_0001>
module attributes {stable_mosaic.version = 11 : i64} {
  func.func @_conv1x1_kernel(%arg0: i32, %arg1: i32, %arg2: memref<1x1x64x4xbf16, #tpu.memory_space<vmem>>, %arg3: memref<4x128xbf16, #tpu.memory_space<vmem>>, %arg4: memref<1x128xf32, #tpu.memory_space<vmem>>, %arg5: memref<1x1x64x128xbf16, #tpu.memory_space<vmem>>) attributes {dimension_semantics = [#tpu.dimension_semantics<parallel>, #tpu.dimension_semantics<parallel>], iteration_bounds = array<i64: 2, 8>, scalar_prefetch = 0 : i64, scratch_operands = 0 : i64, tpu.core_type = #tpu.core_type<tc>, window_params = [{transform_indices = @transform_0, window_bounds = array<i64: 1, 1, 64, 4>}, {pipeline_mode = #tpu.pipeline_mode<synchronous>, transform_indices = @transform_1, window_bounds = array<i64: 4, 128>}, {pipeline_mode = #tpu.pipeline_mode<synchronous>, transform_indices = @transform_2, window_bounds = array<i64: 1, 128>}, {transform_indices = @transform_3, window_bounds = array<i64: 1, 1, 64, 128>}]} {
    %c0 = arith.constant 0 : index
    %c0_0 = arith.constant 0 : index
    %c0_1 = arith.constant 0 : index
    %c0_2 = arith.constant 0 : index
    %0 = vector.load %arg2[%c0, %c0_0, %c0_1, %c0_2] : memref<1x1x64x4xbf16, #tpu.memory_space<vmem>>, vector<1x1x64x4xbf16>
    %1 = vector.shape_cast %0 : vector<1x1x64x4xbf16> to vector<64x4xbf16>
    %c0_3 = arith.constant 0 : index
    %c0_4 = arith.constant 0 : index
    %2 = vector.load %arg3[%c0_3, %c0_4] : memref<4x128xbf16, #tpu.memory_space<vmem>>, vector<4x128xbf16>
    %cst = arith.constant dense<0.000000e+00> : vector<64x128xf32>
    %3 = tpu.matmul %1, %2, %cst {dimension_numbers = #tpu.dot_dimension_numbers<[1], [0], [0], [1], [0, 0, 1, 1], [], []>} : vector<64x4xbf16>, vector<4x128xbf16>, vector<64x128xf32> -> vector<64x128xf32>
    %c0_5 = arith.constant 0 : index
    %c0_6 = arith.constant 0 : index
    %4 = vector.load %arg4[%c0_5, %c0_6] : memref<1x128xf32, #tpu.memory_space<vmem>>, vector<1x128xf32>
    %5 = vector.broadcast %4 : vector<1x128xf32> to vector<64x128xf32>
    %6 = arith.addf %3, %5 : vector<64x128xf32>
    %7 = arith.truncf %6 : vector<64x128xf32> to vector<64x128xbf16>
    %c0_7 = arith.constant 0 : index
    %c0_8 = arith.constant 0 : index
    %c0_9 = arith.constant 0 : index
    %c0_10 = arith.constant 0 : index
    %8 = vector.load %arg5[%c0_7, %c0_8, %c0_9, %c0_10] : memref<1x1x64x128xbf16, #tpu.memory_space<vmem>>, vector<1x1x64x128xbf16>
    %9 = vector.shape_cast %8 : vector<1x1x64x128xbf16> to vector<64x128xbf16>
    %10 = vector.shape_cast %7 : vector<64x128xbf16> to vector<1x1x64x128xbf16>
    tpu.vector_store %arg5[%c0_7, %c0_8, %c0_9, %c0_10], %10 {strides = array<i32>} : memref<1x1x64x128xbf16, #tpu.memory_space<vmem>>, vector<1x1x64x128xbf16>,
    return
  }
  func.func @transform_0(%arg0: i32, %arg1: i32) -> (i32, i32, i32, i32) {
    %c0_i32 = arith.constant 0 : i32
    %c0_i32_0 = arith.constant 0 : i32
    %c0_i32_1 = arith.constant 0 : i32
    return %arg0, %arg1, %c0_i32, %c0_i32_0 : i32, i32, i32, i32
  }
  func.func @transform_1(%arg0: i32, %arg1: i32) -> (i32, i32) {
    %c0_i32 = arith.constant 0 : i32
    %c0_i32_0 = arith.constant 0 : i32
    %c0_i32_1 = arith.constant 0 : i32
    return %c0_i32, %c0_i32_0 : i32, i32
  }
  func.func @transform_2(%arg0: i32, %arg1: i32) -> (i32, i32) {
    %c0_i32 = arith.constant 0 : i32
    %c0_i32_0 = arith.constant 0 : i32
    %c0_i32_1 = arith.constant 0 : i32
    return %c0_i32, %c0_i32_0 : i32, i32
  }
  func.func @transform_3(%arg0: i32, %arg1: i32) -> (i32, i32, i32, i32) {
    %c0_i32 = arith.constant 0 : i32
    %c0_i32_0 = arith.constant 0 : i32
    %c0_i32_1 = arith.constant 0 : i32
    return %arg0, %arg1, %c0_i32, %c0_i32_0 : i32, i32, i32, i32
  }
}

module attributes {stable_mosaic.version = 11 : i64} {
  func.func @_conv3x3_stats_kernel(%arg0: i32, %arg1: i32, %arg2: memref<1x1x110x128xbf16, #tpu.memory_space<vmem>>, %arg3: memref<1x1x110x128xbf16, #tpu.memory_space<vmem>>, %arg4: memref<1x1x110x128xbf16, #tpu.memory_space<vmem>>, %arg5: memref<27x128x128xbf16, #tpu.memory_space<vmem>>, %arg6: memref<1x1x64x128xbf16, #tpu.memory_space<vmem>>, %arg7: memref<1x1x2x128xf32, #tpu.memory_space<vmem>>) attributes {dimension_semantics = [#tpu.dimension_semantics<parallel>, #tpu.dimension_semantics<parallel>], iteration_bounds = array<i64: 2, 8>, scalar_prefetch = 0 : i64, scratch_operands = 0 : i64, tpu.core_type = #tpu.core_type<tc>, window_params = [{transform_indices = @transform_0, window_bounds = array<i64: 1, 1, 110, 128>}, {transform_indices = @transform_1, window_bounds = array<i64: 1, 1, 110, 128>}, {transform_indices = @transform_2, window_bounds = array<i64: 1, 1, 110, 128>}, {pipeline_mode = #tpu.pipeline_mode<synchronous>, transform_indices = @transform_3, window_bounds = array<i64: 27, 128, 128>}, {transform_indices = @transform_4, window_bounds = array<i64: 1, 1, 64, 128>}, {transform_indices = @transform_5, window_bounds = array<i64: 1, 1, 2, 128>}]} {
    %cst = arith.constant 0.000000e+00 : f32
    %0 = vector.broadcast %cst : f32 to vector<80x128xf32>
    %c0 = arith.constant 0 : index
    %c0_0 = arith.constant 0 : index
    %c0_1 = arith.constant 0 : index
    %c0_2 = arith.constant 0 : index
    %1 = vector.load %arg2[%c0, %c0_0, %c0_1, %c0_2] : memref<1x1x110x128xbf16, #tpu.memory_space<vmem>>, vector<1x1x80x128xbf16>
    %2 = vector.shape_cast %1 : vector<1x1x80x128xbf16> to vector<80x128xbf16>
    %c0_3 = arith.constant 0 : index
    %c0_4 = arith.constant 0 : index
    %c0_5 = arith.constant 0 : index
    %3 = vector.load %arg5[%c0_3, %c0_4, %c0_5] : memref<27x128x128xbf16, #tpu.memory_space<vmem>>, vector<1x128x128xbf16>
    %4 = vector.shape_cast %3 : vector<1x128x128xbf16> to vector<128x128xbf16>
    %cst_6 = arith.constant dense<0.000000e+00> : vector<80x128xf32>
    %5 = tpu.matmul %2, %4, %cst_6 {dimension_numbers = #tpu.dot_dimension_numbers<[1], [0], [0], [1], [0, 0, 1, 1], [], []>} : vector<80x128xbf16>, vector<128x128xbf16>, vector<80x128xf32> -> vector<80x128xf32>
    %6 = arith.addf %0, %5 : vector<80x128xf32>
    %c0_7 = arith.constant 0 : index
    %c0_8 = arith.constant 0 : index
    %c1 = arith.constant 1 : index
    %c0_9 = arith.constant 0 : index
    %7 = vector.load %arg2[%c0_7, %c0_8, %c1, %c0_9] : memref<1x1x110x128xbf16, #tpu.memory_space<vmem>>, vector<1x1x80x128xbf16>
    %8 = vector.shape_cast %7 : vector<1x1x80x128xbf16> to vector<80x128xbf16>
    %c1_10 = arith.constant 1 : index
    %c0_11 = arith.constant 0 : index
    %c0_12 = arith.constant 0 : index
    %9 = vector.load %arg5[%c1_10, %c0_11, %c0_12] : memref<27x128x128xbf16, #tpu.memory_space<vmem>>, vector<1x128x128xbf16>
    %10 = vector.shape_cast %9 : vector<1x128x128xbf16> to vector<128x128xbf16>
    %cst_13 = arith.constant dense<0.000000e+00> : vector<80x128xf32>
    %11 = tpu.matmul %8, %10, %cst_13 {dimension_numbers = #tpu.dot_dimension_numbers<[1], [0], [0], [1], [0, 0, 1, 1], [], []>} : vector<80x128xbf16>, vector<128x128xbf16>, vector<80x128xf32> -> vector<80x128xf32>
    %12 = arith.addf %6, %11 : vector<80x128xf32>
    %c0_14 = arith.constant 0 : index
    %c0_15 = arith.constant 0 : index
    %c2 = arith.constant 2 : index
    %c0_16 = arith.constant 0 : index
    %13 = vector.load %arg2[%c0_14, %c0_15, %c2, %c0_16] : memref<1x1x110x128xbf16, #tpu.memory_space<vmem>>, vector<1x1x80x128xbf16>
    %14 = vector.shape_cast %13 : vector<1x1x80x128xbf16> to vector<80x128xbf16>
    %c2_17 = arith.constant 2 : index
    %c0_18 = arith.constant 0 : index
    %c0_19 = arith.constant 0 : index
    %15 = vector.load %arg5[%c2_17, %c0_18, %c0_19] : memref<27x128x128xbf16, #tpu.memory_space<vmem>>, vector<1x128x128xbf16>
    %16 = vector.shape_cast %15 : vector<1x128x128xbf16> to vector<128x128xbf16>
    %cst_20 = arith.constant dense<0.000000e+00> : vector<80x128xf32>
    %17 = tpu.matmul %14, %16, %cst_20 {dimension_numbers = #tpu.dot_dimension_numbers<[1], [0], [0], [1], [0, 0, 1, 1], [], []>} : vector<80x128xbf16>, vector<128x128xbf16>, vector<80x128xf32> -> vector<80x128xf32>
    %18 = arith.addf %12, %17 : vector<80x128xf32>
    %c0_21 = arith.constant 0 : index
    %c0_22 = arith.constant 0 : index
    %c10 = arith.constant 10 : index
    %c0_23 = arith.constant 0 : index
    %19 = vector.load %arg2[%c0_21, %c0_22, %c10, %c0_23] : memref<1x1x110x128xbf16, #tpu.memory_space<vmem>>, vector<1x1x80x128xbf16>
    %20 = vector.shape_cast %19 : vector<1x1x80x128xbf16> to vector<80x128xbf16>
    %c3 = arith.constant 3 : index
    %c0_24 = arith.constant 0 : index
    %c0_25 = arith.constant 0 : index
    %21 = vector.load %arg5[%c3, %c0_24, %c0_25] : memref<27x128x128xbf16, #tpu.memory_space<vmem>>, vector<1x128x128xbf16>
    %22 = vector.shape_cast %21 : vector<1x128x128xbf16> to vector<128x128xbf16>
    %cst_26 = arith.constant dense<0.000000e+00> : vector<80x128xf32>
    %23 = tpu.matmul %20, %22, %cst_26 {dimension_numbers = #tpu.dot_dimension_numbers<[1], [0], [0], [1], [0, 0, 1, 1], [], []>} : vector<80x128xbf16>, vector<128x128xbf16>, vector<80x128xf32> -> vector<80x128xf32>
    %24 = arith.addf %18, %23 : vector<80x128xf32>
    %c0_27 = arith.constant 0 : index
    %c0_28 = arith.constant 0 : index
    %c11 = arith.constant 11 : index
    %c0_29 = arith.constant 0 : index
    %25 = vector.load %arg2[%c0_27, %c0_28, %c11, %c0_29] : memref<1x1x110x128xbf16, #tpu.memory_space<vmem>>, vector<1x1x80x128xbf16>
    %26 = vector.shape_cast %25 : vector<1x1x80x128xbf16> to vector<80x128xbf16>
    %c4 = arith.constant 4 : index
    %c0_30 = arith.constant 0 : index
    %c0_31 = arith.constant 0 : index
    %27 = vector.load %arg5[%c4, %c0_30, %c0_31] : memref<27x128x128xbf16, #tpu.memory_space<vmem>>, vector<1x128x128xbf16>
    %28 = vector.shape_cast %27 : vector<1x128x128xbf16> to vector<128x128xbf16>
    %cst_32 = arith.constant dense<0.000000e+00> : vector<80x128xf32>
    %29 = tpu.matmul %26, %28, %cst_32 {dimension_numbers = #tpu.dot_dimension_numbers<[1], [0], [0], [1], [0, 0, 1, 1], [], []>} : vector<80x128xbf16>, vector<128x128xbf16>, vector<80x128xf32> -> vector<80x128xf32>
    %30 = arith.addf %24, %29 : vector<80x128xf32>
    %c0_33 = arith.constant 0 : index
    %c0_34 = arith.constant 0 : index
    %c12 = arith.constant 12 : index
    %c0_35 = arith.constant 0 : index
    %31 = vector.load %arg2[%c0_33, %c0_34, %c12, %c0_35] : memref<1x1x110x128xbf16, #tpu.memory_space<vmem>>, vector<1x1x80x128xbf16>
    %32 = vector.shape_cast %31 : vector<1x1x80x128xbf16> to vector<80x128xbf16>
    %c5 = arith.constant 5 : index
    %c0_36 = arith.constant 0 : index
    %c0_37 = arith.constant 0 : index
    %33 = vector.load %arg5[%c5, %c0_36, %c0_37] : memref<27x128x128xbf16, #tpu.memory_space<vmem>>, vector<1x128x128xbf16>
    %34 = vector.shape_cast %33 : vector<1x128x128xbf16> to vector<128x128xbf16>
    %cst_38 = arith.constant dense<0.000000e+00> : vector<80x128xf32>
    %35 = tpu.matmul %32, %34, %cst_38 {dimension_numbers = #tpu.dot_dimension_numbers<[1], [0], [0], [1], [0, 0, 1, 1], [], []>} : vector<80x128xbf16>, vector<128x128xbf16>, vector<80x128xf32> -> vector<80x128xf32>
    %36 = arith.addf %30, %35 : vector<80x128xf32>
    %c0_39 = arith.constant 0 : index
    %c0_40 = arith.constant 0 : index
    %c20 = arith.constant 20 : index
    %c0_41 = arith.constant 0 : index
    %37 = vector.load %arg2[%c0_39, %c0_40, %c20, %c0_41] : memref<1x1x110x128xbf16, #tpu.memory_space<vmem>>, vector<1x1x80x128xbf16>
    %38 = vector.shape_cast %37 : vector<1x1x80x128xbf16> to vector<80x128xbf16>
    %c6 = arith.constant 6 : index
    %c0_42 = arith.constant 0 : index
    %c0_43 = arith.constant 0 : index
    %39 = vector.load %arg5[%c6, %c0_42, %c0_43] : memref<27x128x128xbf16, #tpu.memory_space<vmem>>, vector<1x128x128xbf16>
    %40 = vector.shape_cast %39 : vector<1x128x128xbf16> to vector<128x128xbf16>
    %cst_44 = arith.constant dense<0.000000e+00> : vector<80x128xf32>
    %41 = tpu.matmul %38, %40, %cst_44 {dimension_numbers = #tpu.dot_dimension_numbers<[1], [0], [0], [1], [0, 0, 1, 1], [], []>} : vector<80x128xbf16>, vector<128x128xbf16>, vector<80x128xf32> -> vector<80x128xf32>
    %42 = arith.addf %36, %41 : vector<80x128xf32>
    %c0_45 = arith.constant 0 : index
    %c0_46 = arith.constant 0 : index
    %c21 = arith.constant 21 : index
    %c0_47 = arith.constant 0 : index
    %43 = vector.load %arg2[%c0_45, %c0_46, %c21, %c0_47] : memref<1x1x110x128xbf16, #tpu.memory_space<vmem>>, vector<1x1x80x128xbf16>
    %44 = vector.shape_cast %43 : vector<1x1x80x128xbf16> to vector<80x128xbf16>
    %c7 = arith.constant 7 : index
    %c0_48 = arith.constant 0 : index
    %c0_49 = arith.constant 0 : index
    %45 = vector.load %arg5[%c7, %c0_48, %c0_49] : memref<27x128x128xbf16, #tpu.memory_space<vmem>>, vector<1x128x128xbf16>
    %46 = vector.shape_cast %45 : vector<1x128x128xbf16> to vector<128x128xbf16>
    %cst_50 = arith.constant dense<0.000000e+00> : vector<80x128xf32>
    %47 = tpu.matmul %44, %46, %cst_50 {dimension_numbers = #tpu.dot_dimension_numbers<[1], [0], [0], [1], [0, 0, 1, 1], [], []>} : vector<80x128xbf16>, vector<128x128xbf16>, vector<80x128xf32> -> vector<80x128xf32>
    %48 = arith.addf %42, %47 : vector<80x128xf32>
    %c0_51 = arith.constant 0 : index
    %c0_52 = arith.constant 0 : index
    %c22 = arith.constant 22 : index
    %c0_53 = arith.constant 0 : index
    %49 = vector.load %arg2[%c0_51, %c0_52, %c22, %c0_53] : memref<1x1x110x128xbf16, #tpu.memory_space<vmem>>, vector<1x1x80x128xbf16>
    %50 = vector.shape_cast %49 : vector<1x1x80x128xbf16> to vector<80x128xbf16>
    %c8 = arith.constant 8 : index
    %c0_54 = arith.constant 0 : index
    %c0_55 = arith.constant 0 : index
    %51 = vector.load %arg5[%c8, %c0_54, %c0_55] : memref<27x128x128xbf16, #tpu.memory_space<vmem>>, vector<1x128x128xbf16>
    %52 = vector.shape_cast %51 : vector<1x128x128xbf16> to vector<128x128xbf16>
    %cst_56 = arith.constant dense<0.000000e+00> : vector<80x128xf32>
    %53 = tpu.matmul %50, %52, %cst_56 {dimension_numbers = #tpu.dot_dimension_numbers<[1], [0], [0], [1], [0, 0, 1, 1], [], []>} : vector<80x128xbf16>, vector<128x128xbf16>, vector<80x128xf32> -> vector<80x128xf32>
    %54 = arith.addf %48, %53 : vector<80x128xf32>
    %c0_57 = arith.constant 0 : index
    %c0_58 = arith.constant 0 : index
    %c0_59 = arith.constant 0 : index
    %c0_60 = arith.constant 0 : index
    %55 = vector.load %arg3[%c0_57, %c0_58, %c0_59, %c0_60] : memref<1x1x110x128xbf16, #tpu.memory_space<vmem>>, vector<1x1x80x128xbf16>
    %56 = vector.shape_cast %55 : vector<1x1x80x128xbf16> to vector<80x128xbf16>
    %c9 = arith.constant 9 : index
    %c0_61 = arith.constant 0 : index
    %c0_62 = arith.constant 0 : index
    %57 = vector.load %arg5[%c9, %c0_61, %c0_62] : memref<27x128x128xbf16, #tpu.memory_space<vmem>>, vector<1x128x128xbf16>
    %58 = vector.shape_cast %57 : vector<1x128x128xbf16> to vector<128x128xbf16>
    %cst_63 = arith.constant dense<0.000000e+00> : vector<80x128xf32>
    %59 = tpu.matmul %56, %58, %cst_63 {dimension_numbers = #tpu.dot_dimension_numbers<[1], [0], [0], [1], [0, 0, 1, 1], [], []>} : vector<80x128xbf16>, vector<128x128xbf16>, vector<80x128xf32> -> vector<80x128xf32>
    %60 = arith.addf %54, %59 : vector<80x128xf32>
    %c0_64 = arith.constant 0 : index
    %c0_65 = arith.constant 0 : index
    %c1_66 = arith.constant 1 : index
    %c0_67 = arith.constant 0 : index
    %61 = vector.load %arg3[%c0_64, %c0_65, %c1_66, %c0_67] : memref<1x1x110x128xbf16, #tpu.memory_space<vmem>>, vector<1x1x80x128xbf16>
    %62 = vector.shape_cast %61 : vector<1x1x80x128xbf16> to vector<80x128xbf16>
    %c10_68 = arith.constant 10 : index
    %c0_69 = arith.constant 0 : index
    %c0_70 = arith.constant 0 : index
    %63 = vector.load %arg5[%c10_68, %c0_69, %c0_70] : memref<27x128x128xbf16, #tpu.memory_space<vmem>>, vector<1x128x128xbf16>
    %64 = vector.shape_cast %63 : vector<1x128x128xbf16> to vector<128x128xbf16>
    %cst_71 = arith.constant dense<0.000000e+00> : vector<80x128xf32>
    %65 = tpu.matmul %62, %64, %cst_71 {dimension_numbers = #tpu.dot_dimension_numbers<[1], [0], [0], [1], [0, 0, 1, 1], [], []>} : vector<80x128xbf16>, vector<128x128xbf16>, vector<80x128xf32> -> vector<80x128xf32>
    %66 = arith.addf %60, %65 : vector<80x128xf32>
    %c0_72 = arith.constant 0 : index
    %c0_73 = arith.constant 0 : index
    %c2_74 = arith.constant 2 : index
    %c0_75 = arith.constant 0 : index
    %67 = vector.load %arg3[%c0_72, %c0_73, %c2_74, %c0_75] : memref<1x1x110x128xbf16, #tpu.memory_space<vmem>>, vector<1x1x80x128xbf16>
    %68 = vector.shape_cast %67 : vector<1x1x80x128xbf16> to vector<80x128xbf16>
    %c11_76 = arith.constant 11 : index
    %c0_77 = arith.constant 0 : index
    %c0_78 = arith.constant 0 : index
    %69 = vector.load %arg5[%c11_76, %c0_77, %c0_78] : memref<27x128x128xbf16, #tpu.memory_space<vmem>>, vector<1x128x128xbf16>
    %70 = vector.shape_cast %69 : vector<1x128x128xbf16> to vector<128x128xbf16>
    %cst_79 = arith.constant dense<0.000000e+00> : vector<80x128xf32>
    %71 = tpu.matmul %68, %70, %cst_79 {dimension_numbers = #tpu.dot_dimension_numbers<[1], [0], [0], [1], [0, 0, 1, 1], [], []>} : vector<80x128xbf16>, vector<128x128xbf16>, vector<80x128xf32> -> vector<80x128xf32>
    %72 = arith.addf %66, %71 : vector<80x128xf32>
    %c0_80 = arith.constant 0 : index
    %c0_81 = arith.constant 0 : index
    %c10_82 = arith.constant 10 : index
    %c0_83 = arith.constant 0 : index
    %73 = vector.load %arg3[%c0_80, %c0_81, %c10_82, %c0_83] : memref<1x1x110x128xbf16, #tpu.memory_space<vmem>>, vector<1x1x80x128xbf16>
    %74 = vector.shape_cast %73 : vector<1x1x80x128xbf16> to vector<80x128xbf16>
    %c12_84 = arith.constant 12 : index
    %c0_85 = arith.constant 0 : index
    %c0_86 = arith.constant 0 : index
    %75 = vector.load %arg5[%c12_84, %c0_85, %c0_86] : memref<27x128x128xbf16, #tpu.memory_space<vmem>>, vector<1x128x128xbf16>
    %76 = vector.shape_cast %75 : vector<1x128x128xbf16> to vector<128x128xbf16>
    %cst_87 = arith.constant dense<0.000000e+00> : vector<80x128xf32>
    %77 = tpu.matmul %74, %76, %cst_87 {dimension_numbers = #tpu.dot_dimension_numbers<[1], [0], [0], [1], [0, 0, 1, 1], [], []>} : vector<80x128xbf16>, vector<128x128xbf16>, vector<80x128xf32> -> vector<80x128xf32>
    %78 = arith.addf %72, %77 : vector<80x128xf32>
    %c0_88 = arith.constant 0 : index
    %c0_89 = arith.constant 0 : index
    %c11_90 = arith.constant 11 : index
    %c0_91 = arith.constant 0 : index
    %79 = vector.load %arg3[%c0_88, %c0_89, %c11_90, %c0_91] : memref<1x1x110x128xbf16, #tpu.memory_space<vmem>>, vector<1x1x80x128xbf16>
    %80 = vector.shape_cast %79 : vector<1x1x80x128xbf16> to vector<80x128xbf16>
    %c13 = arith.constant 13 : index
    %c0_92 = arith.constant 0 : index
    %c0_93 = arith.constant 0 : index
    %81 = vector.load %arg5[%c13, %c0_92, %c0_93] : memref<27x128x128xbf16, #tpu.memory_space<vmem>>, vector<1x128x128xbf16>
    %82 = vector.shape_cast %81 : vector<1x128x128xbf16> to vector<128x128xbf16>
    %cst_94 = arith.constant dense<0.000000e+00> : vector<80x128xf32>
    %83 = tpu.matmul %80, %82, %cst_94 {dimension_numbers = #tpu.dot_dimension_numbers<[1], [0], [0], [1], [0, 0, 1, 1], [], []>} : vector<80x128xbf16>, vector<128x128xbf16>, vector<80x128xf32> -> vector<80x128xf32>
    %84 = arith.addf %78, %83 : vector<80x128xf32>
    %c0_95 = arith.constant 0 : index
    %c0_96 = arith.constant 0 : index
    %c12_97 = arith.constant 12 : index
    %c0_98 = arith.constant 0 : index
    %85 = vector.load %arg3[%c0_95, %c0_96, %c12_97, %c0_98] : memref<1x1x110x128xbf16, #tpu.memory_space<vmem>>, vector<1x1x80x128xbf16>
    %86 = vector.shape_cast %85 : vector<1x1x80x128xbf16> to vector<80x128xbf16>
    %c14 = arith.constant 14 : index
    %c0_99 = arith.constant 0 : index
    %c0_100 = arith.constant 0 : index
    %87 = vector.load %arg5[%c14, %c0_99, %c0_100] : memref<27x128x128xbf16, #tpu.memory_space<vmem>>, vector<1x128x128xbf16>
    %88 = vector.shape_cast %87 : vector<1x128x128xbf16> to vector<128x128xbf16>
    %cst_101 = arith.constant dense<0.000000e+00> : vector<80x128xf32>
    %89 = tpu.matmul %86, %88, %cst_101 {dimension_numbers = #tpu.dot_dimension_numbers<[1], [0], [0], [1], [0, 0, 1, 1], [], []>} : vector<80x128xbf16>, vector<128x128xbf16>, vector<80x128xf32> -> vector<80x128xf32>
    %90 = arith.addf %84, %89 : vector<80x128xf32>
    %c0_102 = arith.constant 0 : index
    %c0_103 = arith.constant 0 : index
    %c20_104 = arith.constant 20 : index
    %c0_105 = arith.constant 0 : index
    %91 = vector.load %arg3[%c0_102, %c0_103, %c20_104, %c0_105] : memref<1x1x110x128xbf16, #tpu.memory_space<vmem>>, vector<1x1x80x128xbf16>
    %92 = vector.shape_cast %91 : vector<1x1x80x128xbf16> to vector<80x128xbf16>
    %c15 = arith.constant 15 : index
    %c0_106 = arith.constant 0 : index
    %c0_107 = arith.constant 0 : index
    %93 = vector.load %arg5[%c15, %c0_106, %c0_107] : memref<27x128x128xbf16, #tpu.memory_space<vmem>>, vector<1x128x128xbf16>
    %94 = vector.shape_cast %93 : vector<1x128x128xbf16> to vector<128x128xbf16>
    %cst_108 = arith.constant dense<0.000000e+00> : vector<80x128xf32>
    %95 = tpu.matmul %92, %94, %cst_108 {dimension_numbers = #tpu.dot_dimension_numbers<[1], [0], [0], [1], [0, 0, 1, 1], [], []>} : vector<80x128xbf16>, vector<128x128xbf16>, vector<80x128xf32> -> vector<80x128xf32>
    %96 = arith.addf %90, %95 : vector<80x128xf32>
    %c0_109 = arith.constant 0 : index
    %c0_110 = arith.constant 0 : index
    %c21_111 = arith.constant 21 : index
    %c0_112 = arith.constant 0 : index
    %97 = vector.load %arg3[%c0_109, %c0_110, %c21_111, %c0_112] : memref<1x1x110x128xbf16, #tpu.memory_space<vmem>>, vector<1x1x80x128xbf16>
    %98 = vector.shape_cast %97 : vector<1x1x80x128xbf16> to vector<80x128xbf16>
    %c16 = arith.constant 16 : index
    %c0_113 = arith.constant 0 : index
    %c0_114 = arith.constant 0 : index
    %99 = vector.load %arg5[%c16, %c0_113, %c0_114] : memref<27x128x128xbf16, #tpu.memory_space<vmem>>, vector<1x128x128xbf16>
    %100 = vector.shape_cast %99 : vector<1x128x128xbf16> to vector<128x128xbf16>
    %cst_115 = arith.constant dense<0.000000e+00> : vector<80x128xf32>
    %101 = tpu.matmul %98, %100, %cst_115 {dimension_numbers = #tpu.dot_dimension_numbers<[1], [0], [0], [1], [0, 0, 1, 1], [], []>} : vector<80x128xbf16>, vector<128x128xbf16>, vector<80x128xf32> -> vector<80x128xf32>
    %102 = arith.addf %96, %101 : vector<80x128xf32>
    %c0_116 = arith.constant 0 : index
    %c0_117 = arith.constant 0 : index
    %c22_118 = arith.constant 22 : index
    %c0_119 = arith.constant 0 : index
    %103 = vector.load %arg3[%c0_116, %c0_117, %c22_118, %c0_119] : memref<1x1x110x128xbf16, #tpu.memory_space<vmem>>, vector<1x1x80x128xbf16>
    %104 = vector.shape_cast %103 : vector<1x1x80x128xbf16> to vector<80x128xbf16>
    %c17 = arith.constant 17 : index
    %c0_120 = arith.constant 0 : index
    %c0_121 = arith.constant 0 : index
    %105 = vector.load %arg5[%c17, %c0_120, %c0_121] : memref<27x128x128xbf16, #tpu.memory_space<vmem>>, vector<1x128x128xbf16>
    %106 = vector.shape_cast %105 : vector<1x128x128xbf16> to vector<128x128xbf16>
    %cst_122 = arith.constant dense<0.000000e+00> : vector<80x128xf32>
    %107 = tpu.matmul %104, %106, %cst_122 {dimension_numbers = #tpu.dot_dimension_numbers<[1], [0], [0], [1], [0, 0, 1, 1], [], []>} : vector<80x128xbf16>, vector<128x128xbf16>, vector<80x128xf32> -> vector<80x128xf32>
    %108 = arith.addf %102, %107 : vector<80x128xf32>
    %c0_123 = arith.constant 0 : index
    %c0_124 = arith.constant 0 : index
    %c0_125 = arith.constant 0 : index
    %c0_126 = arith.constant 0 : index
    %109 = vector.load %arg4[%c0_123, %c0_124, %c0_125, %c0_126] : memref<1x1x110x128xbf16, #tpu.memory_space<vmem>>, vector<1x1x80x128xbf16>
    %110 = vector.shape_cast %109 : vector<1x1x80x128xbf16> to vector<80x128xbf16>
    %c18 = arith.constant 18 : index
    %c0_127 = arith.constant 0 : index
    %c0_128 = arith.constant 0 : index
    %111 = vector.load %arg5[%c18, %c0_127, %c0_128] : memref<27x128x128xbf16, #tpu.memory_space<vmem>>, vector<1x128x128xbf16>
    %112 = vector.shape_cast %111 : vector<1x128x128xbf16> to vector<128x128xbf16>
    %cst_129 = arith.constant dense<0.000000e+00> : vector<80x128xf32>
    %113 = tpu.matmul %110, %112, %cst_129 {dimension_numbers = #tpu.dot_dimension_numbers<[1], [0], [0], [1], [0, 0, 1, 1], [], []>} : vector<80x128xbf16>, vector<128x128xbf16>, vector<80x128xf32> -> vector<80x128xf32>
    %114 = arith.addf %108, %113 : vector<80x128xf32>
    %c0_130 = arith.constant 0 : index
    %c0_131 = arith.constant 0 : index
    %c1_132 = arith.constant 1 : index
    %c0_133 = arith.constant 0 : index
    %115 = vector.load %arg4[%c0_130, %c0_131, %c1_132, %c0_133] : memref<1x1x110x128xbf16, #tpu.memory_space<vmem>>, vector<1x1x80x128xbf16>
    %116 = vector.shape_cast %115 : vector<1x1x80x128xbf16> to vector<80x128xbf16>
    %c19 = arith.constant 19 : index
    %c0_134 = arith.constant 0 : index
    %c0_135 = arith.constant 0 : index
    %117 = vector.load %arg5[%c19, %c0_134, %c0_135] : memref<27x128x128xbf16, #tpu.memory_space<vmem>>, vector<1x128x128xbf16>
    %118 = vector.shape_cast %117 : vector<1x128x128xbf16> to vector<128x128xbf16>
    %cst_136 = arith.constant dense<0.000000e+00> : vector<80x128xf32>
    %119 = tpu.matmul %116, %118, %cst_136 {dimension_numbers = #tpu.dot_dimension_numbers<[1], [0], [0], [1], [0, 0, 1, 1], [], []>} : vector<80x128xbf16>, vector<128x128xbf16>, vector<80x128xf32> -> vector<80x128xf32>
    %120 = arith.addf %114, %119 : vector<80x128xf32>
    %c0_137 = arith.constant 0 : index
    %c0_138 = arith.constant 0 : index
    %c2_139 = arith.constant 2 : index
    %c0_140 = arith.constant 0 : index
    %121 = vector.load %arg4[%c0_137, %c0_138, %c2_139, %c0_140] : memref<1x1x110x128xbf16, #tpu.memory_space<vmem>>, vector<1x1x80x128xbf16>
    %122 = vector.shape_cast %121 : vector<1x1x80x128xbf16> to vector<80x128xbf16>
    %c20_141 = arith.constant 20 : index
    %c0_142 = arith.constant 0 : index
    %c0_143 = arith.constant 0 : index
    %123 = vector.load %arg5[%c20_141, %c0_142, %c0_143] : memref<27x128x128xbf16, #tpu.memory_space<vmem>>, vector<1x128x128xbf16>
    %124 = vector.shape_cast %123 : vector<1x128x128xbf16> to vector<128x128xbf16>
    %cst_144 = arith.constant dense<0.000000e+00> : vector<80x128xf32>
    %125 = tpu.matmul %122, %124, %cst_144 {dimension_numbers = #tpu.dot_dimension_numbers<[1], [0], [0], [1], [0, 0, 1, 1], [], []>} : vector<80x128xbf16>, vector<128x128xbf16>, vector<80x128xf32> -> vector<80x128xf32>
    %126 = arith.addf %120, %125 : vector<80x128xf32>
    %c0_145 = arith.constant 0 : index
    %c0_146 = arith.constant 0 : index
    %c10_147 = arith.constant 10 : index
    %c0_148 = arith.constant 0 : index
    %127 = vector.load %arg4[%c0_145, %c0_146, %c10_147, %c0_148] : memref<1x1x110x128xbf16, #tpu.memory_space<vmem>>, vector<1x1x80x128xbf16>
    %128 = vector.shape_cast %127 : vector<1x1x80x128xbf16> to vector<80x128xbf16>
    %c21_149 = arith.constant 21 : index
    %c0_150 = arith.constant 0 : index
    %c0_151 = arith.constant 0 : index
    %129 = vector.load %arg5[%c21_149, %c0_150, %c0_151] : memref<27x128x128xbf16, #tpu.memory_space<vmem>>, vector<1x128x128xbf16>
    %130 = vector.shape_cast %129 : vector<1x128x128xbf16> to vector<128x128xbf16>
    %cst_152 = arith.constant dense<0.000000e+00> : vector<80x128xf32>
    %131 = tpu.matmul %128, %130, %cst_152 {dimension_numbers = #tpu.dot_dimension_numbers<[1], [0], [0], [1], [0, 0, 1, 1], [], []>} : vector<80x128xbf16>, vector<128x128xbf16>, vector<80x128xf32> -> vector<80x128xf32>
    %132 = arith.addf %126, %131 : vector<80x128xf32>
    %c0_153 = arith.constant 0 : index
    %c0_154 = arith.constant 0 : index
    %c11_155 = arith.constant 11 : index
    %c0_156 = arith.constant 0 : index
    %133 = vector.load %arg4[%c0_153, %c0_154, %c11_155, %c0_156] : memref<1x1x110x128xbf16, #tpu.memory_space<vmem>>, vector<1x1x80x128xbf16>
    %134 = vector.shape_cast %133 : vector<1x1x80x128xbf16> to vector<80x128xbf16>
    %c22_157 = arith.constant 22 : index
    %c0_158 = arith.constant 0 : index
    %c0_159 = arith.constant 0 : index
    %135 = vector.load %arg5[%c22_157, %c0_158, %c0_159] : memref<27x128x128xbf16, #tpu.memory_space<vmem>>, vector<1x128x128xbf16>
    %136 = vector.shape_cast %135 : vector<1x128x128xbf16> to vector<128x128xbf16>
    %cst_160 = arith.constant dense<0.000000e+00> : vector<80x128xf32>
    %137 = tpu.matmul %134, %136, %cst_160 {dimension_numbers = #tpu.dot_dimension_numbers<[1], [0], [0], [1], [0, 0, 1, 1], [], []>} : vector<80x128xbf16>, vector<128x128xbf16>, vector<80x128xf32> -> vector<80x128xf32>
    %138 = arith.addf %132, %137 : vector<80x128xf32>
    %c0_161 = arith.constant 0 : index
    %c0_162 = arith.constant 0 : index
    %c12_163 = arith.constant 12 : index
    %c0_164 = arith.constant 0 : index
    %139 = vector.load %arg4[%c0_161, %c0_162, %c12_163, %c0_164] : memref<1x1x110x128xbf16, #tpu.memory_space<vmem>>, vector<1x1x80x128xbf16>
    %140 = vector.shape_cast %139 : vector<1x1x80x128xbf16> to vector<80x128xbf16>
    %c23 = arith.constant 23 : index
    %c0_165 = arith.constant 0 : index
    %c0_166 = arith.constant 0 : index
    %141 = vector.load %arg5[%c23, %c0_165, %c0_166] : memref<27x128x128xbf16, #tpu.memory_space<vmem>>, vector<1x128x128xbf16>
    %142 = vector.shape_cast %141 : vector<1x128x128xbf16> to vector<128x128xbf16>
    %cst_167 = arith.constant dense<0.000000e+00> : vector<80x128xf32>
    %143 = tpu.matmul %140, %142, %cst_167 {dimension_numbers = #tpu.dot_dimension_numbers<[1], [0], [0], [1], [0, 0, 1, 1], [], []>} : vector<80x128xbf16>, vector<128x128xbf16>, vector<80x128xf32> -> vector<80x128xf32>
    %144 = arith.addf %138, %143 : vector<80x128xf32>
    %c0_168 = arith.constant 0 : index
    %c0_169 = arith.constant 0 : index
    %c20_170 = arith.constant 20 : index
    %c0_171 = arith.constant 0 : index
    %145 = vector.load %arg4[%c0_168, %c0_169, %c20_170, %c0_171] : memref<1x1x110x128xbf16, #tpu.memory_space<vmem>>, vector<1x1x80x128xbf16>
    %146 = vector.shape_cast %145 : vector<1x1x80x128xbf16> to vector<80x128xbf16>
    %c24 = arith.constant 24 : index
    %c0_172 = arith.constant 0 : index
    %c0_173 = arith.constant 0 : index
    %147 = vector.load %arg5[%c24, %c0_172, %c0_173] : memref<27x128x128xbf16, #tpu.memory_space<vmem>>, vector<1x128x128xbf16>
    %148 = vector.shape_cast %147 : vector<1x128x128xbf16> to vector<128x128xbf16>
    %cst_174 = arith.constant dense<0.000000e+00> : vector<80x128xf32>
    %149 = tpu.matmul %146, %148, %cst_174 {dimension_numbers = #tpu.dot_dimension_numbers<[1], [0], [0], [1], [0, 0, 1, 1], [], []>} : vector<80x128xbf16>, vector<128x128xbf16>, vector<80x128xf32> -> vector<80x128xf32>
    %150 = arith.addf %144, %149 : vector<80x128xf32>
    %c0_175 = arith.constant 0 : index
    %c0_176 = arith.constant 0 : index
    %c21_177 = arith.constant 21 : index
    %c0_178 = arith.constant 0 : index
    %151 = vector.load %arg4[%c0_175, %c0_176, %c21_177, %c0_178] : memref<1x1x110x128xbf16, #tpu.memory_space<vmem>>, vector<1x1x80x128xbf16>
    %152 = vector.shape_cast %151 : vector<1x1x80x128xbf16> to vector<80x128xbf16>
    %c25 = arith.constant 25 : index
    %c0_179 = arith.constant 0 : index
    %c0_180 = arith.constant 0 : index
    %153 = vector.load %arg5[%c25, %c0_179, %c0_180] : memref<27x128x128xbf16, #tpu.memory_space<vmem>>, vector<1x128x128xbf16>
    %154 = vector.shape_cast %153 : vector<1x128x128xbf16> to vector<128x128xbf16>
    %cst_181 = arith.constant dense<0.000000e+00> : vector<80x128xf32>
    %155 = tpu.matmul %152, %154, %cst_181 {dimension_numbers = #tpu.dot_dimension_numbers<[1], [0], [0], [1], [0, 0, 1, 1], [], []>} : vector<80x128xbf16>, vector<128x128xbf16>, vector<80x128xf32> -> vector<80x128xf32>
    %156 = arith.addf %150, %155 : vector<80x128xf32>
    %c0_182 = arith.constant 0 : index
    %c0_183 = arith.constant 0 : index
    %c22_184 = arith.constant 22 : index
    %c0_185 = arith.constant 0 : index
    %157 = vector.load %arg4[%c0_182, %c0_183, %c22_184, %c0_185] : memref<1x1x110x128xbf16, #tpu.memory_space<vmem>>, vector<1x1x80x128xbf16>
    %158 = vector.shape_cast %157 : vector<1x1x80x128xbf16> to vector<80x128xbf16>
    %c26 = arith.constant 26 : index
    %c0_186 = arith.constant 0 : index
    %c0_187 = arith.constant 0 : index
    %159 = vector.load %arg5[%c26, %c0_186, %c0_187] : memref<27x128x128xbf16, #tpu.memory_space<vmem>>, vector<1x128x128xbf16>
    %160 = vector.shape_cast %159 : vector<1x128x128xbf16> to vector<128x128xbf16>
    %cst_188 = arith.constant dense<0.000000e+00> : vector<80x128xf32>
    %161 = tpu.matmul %158, %160, %cst_188 {dimension_numbers = #tpu.dot_dimension_numbers<[1], [0], [0], [1], [0, 0, 1, 1], [], []>} : vector<80x128xbf16>, vector<128x128xbf16>, vector<80x128xf32> -> vector<80x128xf32>
    %162 = arith.addf %156, %161 : vector<80x128xf32>
    %163 = tpu.iota {dimensions = array<i32: 0>} : vector<80x1xi32>
    %c10_i32 = arith.constant 10 : i32
    %c0_i32 = arith.constant 0 : i32
    %164 = arith.cmpi eq, %c10_i32, %c0_i32 : i32
    %c1_i32 = arith.constant 1 : i32
    %165 = arith.select %164, %c1_i32, %c10_i32 : i32
    %166 = vector.broadcast %165 : i32 to vector<80x1xi32>
    %167 = arith.remsi %163, %166 : vector<80x1xi32>
    %c0_i32_189 = arith.constant 0 : i32
    %168 = vector.broadcast %c0_i32_189 : i32 to vector<80x1xi32>
    %169 = arith.cmpi ne, %167, %168 : vector<80x1xi32>
    %c0_i32_190 = arith.constant 0 : i32
    %170 = vector.broadcast %c0_i32_190 : i32 to vector<80x1xi32>
    %171 = arith.cmpi slt, %167, %170 : vector<80x1xi32>
    %c0_i32_191 = arith.constant 0 : i32
    %172 = arith.cmpi slt, %165, %c0_i32_191 : i32
    %173 = vector.broadcast %172 : i1 to vector<80x1xi1>
    %174 = vector.broadcast %173 : vector<80x1xi1> to vector<80x1xi1>
    %175 = arith.xori %171, %174 : vector<80x1xi1>
    %176 = arith.andi %175, %169 : vector<80x1xi1>
    %177 = vector.broadcast %165 : i32 to vector<80x1xi32>
    %178 = arith.addi %167, %177 : vector<80x1xi32>
    %179 = arith.select %176, %178, %167 : vector<80x1xi1>, vector<80x1xi32>
    %c8_i32 = arith.constant 8 : i32
    %180 = vector.broadcast %c8_i32 : i32 to vector<80x1xi32>
    %181 = arith.cmpi slt, %179, %180 : vector<80x1xi32>
    %cst_192 = arith.constant 0.000000e+00 : f32
    %182 = vector.shape_cast %181 : vector<80x1xi1> to vector<80x1xi1>
    %183 = vector.broadcast %182 : vector<80x1xi1> to vector<80x128xi1>
    %184 = vector.broadcast %cst_192 : f32 to vector<80x128xf32>
    %185 = arith.select %183, %162, %184 : vector<80x128xi1>, vector<80x128xf32>
    %cst_193 = arith.constant dense<0.000000e+00> : vector<128xf32>
    %186 = vector.multi_reduction <add>, %185, %cst_193 [0] : vector<80x128xf32> to vector<128xf32>
    %187 = vector.shape_cast %186 : vector<128xf32> to vector<1x128xf32>
    %c0_194 = arith.constant 0 : index
    %c0_195 = arith.constant 0 : index
    %c0_196 = arith.constant 0 : index
    %c0_197 = arith.constant 0 : index
    %188 = vector.load %arg7[%c0_194, %c0_195, %c0_196, %c0_197] : memref<1x1x2x128xf32, #tpu.memory_space<vmem>>, vector<1x1x1x128xf32>
    %189 = vector.shape_cast %188 : vector<1x1x1x128xf32> to vector<1x128xf32>
    %190 = vector.shape_cast %187 : vector<1x128xf32> to vector<1x1x1x128xf32>
    tpu.vector_store %arg7[%c0_194, %c0_195, %c0_196, %c0_197], %190 {strides = array<i32>} : memref<1x1x2x128xf32, #tpu.memory_space<vmem>>, vector<1x1x1x128xf32>,
    %191 = arith.mulf %185, %185 : vector<80x128xf32>
    %cst_198 = arith.constant dense<0.000000e+00> : vector<128xf32>
    %192 = vector.multi_reduction <add>, %191, %cst_198 [0] : vector<80x128xf32> to vector<128xf32>
    %193 = vector.shape_cast %192 : vector<128xf32> to vector<1x128xf32>
    %c0_199 = arith.constant 0 : index
    %c0_200 = arith.constant 0 : index
    %c1_201 = arith.constant 1 : index
    %c0_202 = arith.constant 0 : index
    %194 = vector.load %arg7[%c0_199, %c0_200, %c1_201, %c0_202] : memref<1x1x2x128xf32, #tpu.memory_space<vmem>>, vector<1x1x1x128xf32>
    %195 = vector.shape_cast %194 : vector<1x1x1x128xf32> to vector<1x128xf32>
    %196 = vector.shape_cast %193 : vector<1x128xf32> to vector<1x1x1x128xf32>
    tpu.vector_store %arg7[%c0_199, %c0_200, %c1_201, %c0_202], %196 {strides = array<i32>} : memref<1x1x2x128xf32, #tpu.memory_space<vmem>>, vector<1x1x1x128xf32>,
    %197 = vector.extract_strided_slice %162 {offsets = [0, 0], sizes = [8, 128], strides = [1, 1]} : vector<80x128xf32> to vector<8x128xf32>
    %198 = arith.truncf %197 : vector<8x128xf32> to vector<8x128xbf16>
    %c0_203 = arith.constant 0 : index
    %c0_204 = arith.constant 0 : index
    %c0_205 = arith.constant 0 : index
    %c0_206 = arith.constant 0 : index
    %199 = vector.load %arg6[%c0_203, %c0_204, %c0_205, %c0_206] : memref<1x1x64x128xbf16, #tpu.memory_space<vmem>>, vector<1x1x8x128xbf16>
    %200 = vector.shape_cast %199 : vector<1x1x8x128xbf16> to vector<8x128xbf16>
    %201 = vector.shape_cast %198 : vector<8x128xbf16> to vector<1x1x8x128xbf16>
    tpu.vector_store %arg6[%c0_203, %c0_204, %c0_205, %c0_206], %201 {strides = array<i32>} : memref<1x1x64x128xbf16, #tpu.memory_space<vmem>>, vector<1x1x8x128xbf16>,
    %202 = vector.extract_strided_slice %162 {offsets = [10, 0], sizes = [8, 128], strides = [1, 1]} : vector<80x128xf32> to vector<8x128xf32>
    %203 = arith.truncf %202 : vector<8x128xf32> to vector<8x128xbf16>
    %c0_207 = arith.constant 0 : index
    %c0_208 = arith.constant 0 : index
    %c8_209 = arith.constant 8 : index
    %c0_210 = arith.constant 0 : index
    %204 = vector.load %arg6[%c0_207, %c0_208, %c8_209, %c0_210] : memref<1x1x64x128xbf16, #tpu.memory_space<vmem>>, vector<1x1x8x128xbf16>
    %205 = vector.shape_cast %204 : vector<1x1x8x128xbf16> to vector<8x128xbf16>
    %206 = vector.shape_cast %203 : vector<8x128xbf16> to vector<1x1x8x128xbf16>
    tpu.vector_store %arg6[%c0_207, %c0_208, %c8_209, %c0_210], %206 {strides = array<i32>} : memref<1x1x64x128xbf16, #tpu.memory_space<vmem>>, vector<1x1x8x128xbf16>,
    %207 = vector.extract_strided_slice %162 {offsets = [20, 0], sizes = [8, 128], strides = [1, 1]} : vector<80x128xf32> to vector<8x128xf32>
    %208 = arith.truncf %207 : vector<8x128xf32> to vector<8x128xbf16>
    %c0_211 = arith.constant 0 : index
    %c0_212 = arith.constant 0 : index
    %c16_213 = arith.constant 16 : index
    %c0_214 = arith.constant 0 : index
    %209 = vector.load %arg6[%c0_211, %c0_212, %c16_213, %c0_214] : memref<1x1x64x128xbf16, #tpu.memory_space<vmem>>, vector<1x1x8x128xbf16>
    %210 = vector.shape_cast %209 : vector<1x1x8x128xbf16> to vector<8x128xbf16>
    %211 = vector.shape_cast %208 : vector<8x128xbf16> to vector<1x1x8x128xbf16>
    tpu.vector_store %arg6[%c0_211, %c0_212, %c16_213, %c0_214], %211 {strides = array<i32>} : memref<1x1x64x128xbf16, #tpu.memory_space<vmem>>, vector<1x1x8x128xbf16>,
    %212 = vector.extract_strided_slice %162 {offsets = [30, 0], sizes = [8, 128], strides = [1, 1]} : vector<80x128xf32> to vector<8x128xf32>
    %213 = arith.truncf %212 : vector<8x128xf32> to vector<8x128xbf16>
    %c0_215 = arith.constant 0 : index
    %c0_216 = arith.constant 0 : index
    %c24_217 = arith.constant 24 : index
    %c0_218 = arith.constant 0 : index
    %214 = vector.load %arg6[%c0_215, %c0_216, %c24_217, %c0_218] : memref<1x1x64x128xbf16, #tpu.memory_space<vmem>>, vector<1x1x8x128xbf16>
    %215 = vector.shape_cast %214 : vector<1x1x8x128xbf16> to vector<8x128xbf16>
    %216 = vector.shape_cast %213 : vector<8x128xbf16> to vector<1x1x8x128xbf16>
    tpu.vector_store %arg6[%c0_215, %c0_216, %c24_217, %c0_218], %216 {strides = array<i32>} : memref<1x1x64x128xbf16, #tpu.memory_space<vmem>>, vector<1x1x8x128xbf16>,
    %217 = vector.extract_strided_slice %162 {offsets = [40, 0], sizes = [8, 128], strides = [1, 1]} : vector<80x128xf32> to vector<8x128xf32>
    %218 = arith.truncf %217 : vector<8x128xf32> to vector<8x128xbf16>
    %c0_219 = arith.constant 0 : index
    %c0_220 = arith.constant 0 : index
    %c32 = arith.constant 32 : index
    %c0_221 = arith.constant 0 : index
    %219 = vector.load %arg6[%c0_219, %c0_220, %c32, %c0_221] : memref<1x1x64x128xbf16, #tpu.memory_space<vmem>>, vector<1x1x8x128xbf16>
    %220 = vector.shape_cast %219 : vector<1x1x8x128xbf16> to vector<8x128xbf16>
    %221 = vector.shape_cast %218 : vector<8x128xbf16> to vector<1x1x8x128xbf16>
    tpu.vector_store %arg6[%c0_219, %c0_220, %c32, %c0_221], %221 {strides = array<i32>} : memref<1x1x64x128xbf16, #tpu.memory_space<vmem>>, vector<1x1x8x128xbf16>,
    %222 = vector.extract_strided_slice %162 {offsets = [50, 0], sizes = [8, 128], strides = [1, 1]} : vector<80x128xf32> to vector<8x128xf32>
    %223 = arith.truncf %222 : vector<8x128xf32> to vector<8x128xbf16>
    %c0_222 = arith.constant 0 : index
    %c0_223 = arith.constant 0 : index
    %c40 = arith.constant 40 : index
    %c0_224 = arith.constant 0 : index
    %224 = vector.load %arg6[%c0_222, %c0_223, %c40, %c0_224] : memref<1x1x64x128xbf16, #tpu.memory_space<vmem>>, vector<1x1x8x128xbf16>
    %225 = vector.shape_cast %224 : vector<1x1x8x128xbf16> to vector<8x128xbf16>
    %226 = vector.shape_cast %223 : vector<8x128xbf16> to vector<1x1x8x128xbf16>
    tpu.vector_store %arg6[%c0_222, %c0_223, %c40, %c0_224], %226 {strides = array<i32>} : memref<1x1x64x128xbf16, #tpu.memory_space<vmem>>, vector<1x1x8x128xbf16>,
    %227 = vector.extract_strided_slice %162 {offsets = [60, 0], sizes = [8, 128], strides = [1, 1]} : vector<80x128xf32> to vector<8x128xf32>
    %228 = arith.truncf %227 : vector<8x128xf32> to vector<8x128xbf16>
    %c0_225 = arith.constant 0 : index
    %c0_226 = arith.constant 0 : index
    %c48 = arith.constant 48 : index
    %c0_227 = arith.constant 0 : index
    %229 = vector.load %arg6[%c0_225, %c0_226, %c48, %c0_227] : memref<1x1x64x128xbf16, #tpu.memory_space<vmem>>, vector<1x1x8x128xbf16>
    %230 = vector.shape_cast %229 : vector<1x1x8x128xbf16> to vector<8x128xbf16>
    %231 = vector.shape_cast %228 : vector<8x128xbf16> to vector<1x1x8x128xbf16>
    tpu.vector_store %arg6[%c0_225, %c0_226, %c48, %c0_227], %231 {strides = array<i32>} : memref<1x1x64x128xbf16, #tpu.memory_space<vmem>>, vector<1x1x8x128xbf16>,
    %232 = vector.extract_strided_slice %162 {offsets = [70, 0], sizes = [8, 128], strides = [1, 1]} : vector<80x128xf32> to vector<8x128xf32>
    %233 = arith.truncf %232 : vector<8x128xf32> to vector<8x128xbf16>
    %c0_228 = arith.constant 0 : index
    %c0_229 = arith.constant 0 : index
    %c56 = arith.constant 56 : index
    %c0_230 = arith.constant 0 : index
    %234 = vector.load %arg6[%c0_228, %c0_229, %c56, %c0_230] : memref<1x1x64x128xbf16, #tpu.memory_space<vmem>>, vector<1x1x8x128xbf16>
    %235 = vector.shape_cast %234 : vector<1x1x8x128xbf16> to vector<8x128xbf16>
    %236 = vector.shape_cast %233 : vector<8x128xbf16> to vector<1x1x8x128xbf16>
    tpu.vector_store %arg6[%c0_228, %c0_229, %c56, %c0_230], %236 {strides = array<i32>} : memref<1x1x64x128xbf16, #tpu.memory_space<vmem>>, vector<1x1x8x128xbf16>,
    return
  }
  func.func @transform_0(%arg0: i32, %arg1: i32) -> (i32, i32, i32, i32) {
    %c0_i32 = arith.constant 0 : i32
    %0 = arith.addi %arg1, %c0_i32 : i32
    %c0_i32_0 = arith.constant 0 : i32
    %c0_i32_1 = arith.constant 0 : i32
    %c0_i32_2 = arith.constant 0 : i32
    return %arg0, %0, %c0_i32_0, %c0_i32_1 : i32, i32, i32, i32
  }
  func.func @transform_1(%arg0: i32, %arg1: i32) -> (i32, i32, i32, i32) {
    %c1_i32 = arith.constant 1 : i32
    %0 = arith.addi %arg1, %c1_i32 : i32
    %c0_i32 = arith.constant 0 : i32
    %c0_i32_0 = arith.constant 0 : i32
    %c0_i32_1 = arith.constant 0 : i32
    return %arg0, %0, %c0_i32, %c0_i32_0 : i32, i32, i32, i32
  }
  func.func @transform_2(%arg0: i32, %arg1: i32) -> (i32, i32, i32, i32) {
    %c2_i32 = arith.constant 2 : i32
    %0 = arith.addi %arg1, %c2_i32 : i32
    %c0_i32 = arith.constant 0 : i32
    %c0_i32_0 = arith.constant 0 : i32
    %c0_i32_1 = arith.constant 0 : i32
    return %arg0, %0, %c0_i32, %c0_i32_0 : i32, i32, i32, i32
  }
  func.func @transform_3(%arg0: i32, %arg1: i32) -> (i32, i32, i32) {
    %c0_i32 = arith.constant 0 : i32
    %c0_i32_0 = arith.constant 0 : i32
    %c0_i32_1 = arith.constant 0 : i32
    %c0_i32_2 = arith.constant 0 : i32
    return %c0_i32, %c0_i32_0, %c0_i32_1 : i32, i32, i32
  }
  func.func @transform_4(%arg0: i32, %arg1: i32) -> (i32, i32, i32, i32) {
    %c0_i32 = arith.constant 0 : i32
    %c0_i32_0 = arith.constant 0 : i32
    %c0_i32_1 = arith.constant 0 : i32
    return %arg0, %arg1, %c0_i32, %c0_i32_0 : i32, i32, i32, i32
  }
  func.func @transform_5(%arg0: i32, %arg1: i32) -> (i32, i32, i32, i32) {
    %c0_i32 = arith.constant 0 : i32
    %c0_i32_0 = arith.constant 0 : i32
    %c0_i32_1 = arith.constant 0 : i32
    return %arg0, %arg1, %c0_i32, %c0_i32_0 : i32, i32, i32, i32
  }
}

module attributes {stable_mosaic.version = 11 : i64} {
  func.func @_norm_elu_kernel(%arg0: i32, %arg1: i32, %arg2: memref<1x1x64x128xbf16, #tpu.memory_space<vmem>>, %arg3: memref<1x1x128xf32, #tpu.memory_space<vmem>>, %arg4: memref<1x1x128xf32, #tpu.memory_space<vmem>>, %arg5: memref<1x1x64x128xbf16, #tpu.memory_space<vmem>>) attributes {dimension_semantics = [#tpu.dimension_semantics<parallel>, #tpu.dimension_semantics<parallel>], iteration_bounds = array<i64: 2, 8>, scalar_prefetch = 0 : i64, scratch_operands = 0 : i64, tpu.core_type = #tpu.core_type<tc>, window_params = [{transform_indices = @transform_0, window_bounds = array<i64: 1, 1, 64, 128>}, {transform_indices = @transform_1, window_bounds = array<i64: 1, 1, 128>}, {transform_indices = @transform_2, window_bounds = array<i64: 1, 1, 128>}, {transform_indices = @transform_3, window_bounds = array<i64: 1, 1, 64, 128>}]} {
    %c0 = arith.constant 0 : index
    %c0_0 = arith.constant 0 : index
    %c0_1 = arith.constant 0 : index
    %c0_2 = arith.constant 0 : index
    %0 = vector.load %arg2[%c0, %c0_0, %c0_1, %c0_2] : memref<1x1x64x128xbf16, #tpu.memory_space<vmem>>, vector<1x1x64x128xbf16>
    %1 = vector.shape_cast %0 : vector<1x1x64x128xbf16> to vector<64x128xbf16>
    %2 = arith.extf %1 : vector<64x128xbf16> to vector<64x128xf32>
    %c0_3 = arith.constant 0 : index
    %c0_4 = arith.constant 0 : index
    %c0_5 = arith.constant 0 : index
    %3 = vector.load %arg3[%c0_3, %c0_4, %c0_5] : memref<1x1x128xf32, #tpu.memory_space<vmem>>, vector<1x1x128xf32>
    %4 = vector.shape_cast %3 : vector<1x1x128xf32> to vector<1x128xf32>
    %5 = vector.broadcast %4 : vector<1x128xf32> to vector<64x128xf32>
    %6 = arith.mulf %2, %5 : vector<64x128xf32>
    %c0_6 = arith.constant 0 : index
    %c0_7 = arith.constant 0 : index
    %c0_8 = arith.constant 0 : index
    %7 = vector.load %arg4[%c0_6, %c0_7, %c0_8] : memref<1x1x128xf32, #tpu.memory_space<vmem>>, vector<1x1x128xf32>
    %8 = vector.shape_cast %7 : vector<1x1x128xf32> to vector<1x128xf32>
    %9 = vector.broadcast %8 : vector<1x128xf32> to vector<64x128xf32>
    %10 = arith.addf %6, %9 : vector<64x128xf32>
    %cst = arith.constant 0.000000e+00 : f32
    %11 = vector.broadcast %cst : f32 to vector<64x128xf32>
    %12 = arith.cmpf ogt, %10, %11 : vector<64x128xf32>
    %cst_9 = arith.constant 0.000000e+00 : f32
    %13 = vector.broadcast %cst_9 : f32 to vector<64x128xf32>
    %14 = arith.minimumf %10, %13 : vector<64x128xf32>
    %15 = math.exp %14 : vector<64x128xf32>
    %cst_10 = arith.constant 1.000000e+00 : f32
    %16 = vector.broadcast %cst_10 : f32 to vector<64x128xf32>
    %17 = arith.subf %15, %16 : vector<64x128xf32>
    %18 = arith.select %12, %10, %17 : vector<64x128xi1>, vector<64x128xf32>
    %19 = arith.truncf %18 : vector<64x128xf32> to vector<64x128xbf16>
    %c0_11 = arith.constant 0 : index
    %c0_12 = arith.constant 0 : index
    %c0_13 = arith.constant 0 : index
    %c0_14 = arith.constant 0 : index
    %20 = vector.load %arg5[%c0_11, %c0_12, %c0_13, %c0_14] : memref<1x1x64x128xbf16, #tpu.memory_space<vmem>>, vector<1x1x64x128xbf16>
    %21 = vector.shape_cast %20 : vector<1x1x64x128xbf16> to vector<64x128xbf16>
    %22 = vector.shape_cast %19 : vector<64x128xbf16> to vector<1x1x64x128xbf16>
    tpu.vector_store %arg5[%c0_11, %c0_12, %c0_13, %c0_14], %22 {strides = array<i32>} : memref<1x1x64x128xbf16, #tpu.memory_space<vmem>>, vector<1x1x64x128xbf16>,
    return
  }
  func.func @transform_0(%arg0: i32, %arg1: i32) -> (i32, i32, i32, i32) {
    %c0_i32 = arith.constant 0 : i32
    %c0_i32_0 = arith.constant 0 : i32
    %c0_i32_1 = arith.constant 0 : i32
    return %arg0, %arg1, %c0_i32, %c0_i32_0 : i32, i32, i32, i32
  }
  func.func @transform_1(%arg0: i32, %arg1: i32) -> (i32, i32, i32) {
    %c0_i32 = arith.constant 0 : i32
    %c0_i32_0 = arith.constant 0 : i32
    %c0_i32_1 = arith.constant 0 : i32
    return %arg0, %c0_i32, %c0_i32_0 : i32, i32, i32
  }
  func.func @transform_2(%arg0: i32, %arg1: i32) -> (i32, i32, i32) {
    %c0_i32 = arith.constant 0 : i32
    %c0_i32_0 = arith.constant 0 : i32
    %c0_i32_1 = arith.constant 0 : i32
    return %arg0, %c0_i32, %c0_i32_0 : i32, i32, i32
  }
  func.func @transform_3(%arg0: i32, %arg1: i32) -> (i32, i32, i32, i32) {
    %c0_i32 = arith.constant 0 : i32
    %c0_i32_0 = arith.constant 0 : i32
    %c0_i32_1 = arith.constant 0 : i32
    return %arg0, %arg1, %c0_i32, %c0_i32_0 : i32, i32, i32, i32
  }
}

module attributes {stable_mosaic.version = 11 : i64} {
  func.func @_res_elu_sum_kernel(%arg0: i32, %arg1: i32, %arg2: memref<1x1x64x128xbf16, #tpu.memory_space<vmem>>, %arg3: memref<1x1x64x128xbf16, #tpu.memory_space<vmem>>, %arg4: memref<1x1x128xf32, #tpu.memory_space<vmem>>, %arg5: memref<1x1x128xf32, #tpu.memory_space<vmem>>, %arg6: memref<1x1x1x128xf32, #tpu.memory_space<vmem>>) attributes {dimension_semantics = [#tpu.dimension_semantics<parallel>, #tpu.dimension_semantics<parallel>], iteration_bounds = array<i64: 2, 8>, scalar_prefetch = 0 : i64, scratch_operands = 0 : i64, tpu.core_type = #tpu.core_type<tc>, window_params = [{transform_indices = @transform_0, window_bounds = array<i64: 1, 1, 64, 128>}, {transform_indices = @transform_1, window_bounds = array<i64: 1, 1, 64, 128>}, {transform_indices = @transform_2, window_bounds = array<i64: 1, 1, 128>}, {transform_indices = @transform_3, window_bounds = array<i64: 1, 1, 128>}, {transform_indices = @transform_4, window_bounds = array<i64: 1, 1, 1, 128>}]} {
    %c0 = arith.constant 0 : index
    %c0_0 = arith.constant 0 : index
    %c0_1 = arith.constant 0 : index
    %c0_2 = arith.constant 0 : index
    %0 = vector.load %arg2[%c0, %c0_0, %c0_1, %c0_2] : memref<1x1x64x128xbf16, #tpu.memory_space<vmem>>, vector<1x1x64x128xbf16>
    %1 = vector.shape_cast %0 : vector<1x1x64x128xbf16> to vector<64x128xbf16>
    %2 = arith.extf %1 : vector<64x128xbf16> to vector<64x128xf32>
    %c0_3 = arith.constant 0 : index
    %c0_4 = arith.constant 0 : index
    %c0_5 = arith.constant 0 : index
    %3 = vector.load %arg4[%c0_3, %c0_4, %c0_5] : memref<1x1x128xf32, #tpu.memory_space<vmem>>, vector<1x1x128xf32>
    %4 = vector.shape_cast %3 : vector<1x1x128xf32> to vector<1x128xf32>
    %5 = vector.broadcast %4 : vector<1x128xf32> to vector<64x128xf32>
    %6 = arith.mulf %2, %5 : vector<64x128xf32>
    %c0_6 = arith.constant 0 : index
    %c0_7 = arith.constant 0 : index
    %c0_8 = arith.constant 0 : index
    %7 = vector.load %arg5[%c0_6, %c0_7, %c0_8] : memref<1x1x128xf32, #tpu.memory_space<vmem>>, vector<1x1x128xf32>
    %8 = vector.shape_cast %7 : vector<1x1x128xf32> to vector<1x128xf32>
    %9 = vector.broadcast %8 : vector<1x128xf32> to vector<64x128xf32>
    %10 = arith.addf %6, %9 : vector<64x128xf32>
    %c0_9 = arith.constant 0 : index
    %c0_10 = arith.constant 0 : index
    %c0_11 = arith.constant 0 : index
    %c0_12 = arith.constant 0 : index
    %11 = vector.load %arg3[%c0_9, %c0_10, %c0_11, %c0_12] : memref<1x1x64x128xbf16, #tpu.memory_space<vmem>>, vector<1x1x64x128xbf16>
    %12 = vector.shape_cast %11 : vector<1x1x64x128xbf16> to vector<64x128xbf16>
    %13 = arith.extf %12 : vector<64x128xbf16> to vector<64x128xf32>
    %14 = arith.addf %10, %13 : vector<64x128xf32>
    %cst = arith.constant 0.000000e+00 : f32
    %15 = vector.broadcast %cst : f32 to vector<64x128xf32>
    %16 = arith.cmpf ogt, %14, %15 : vector<64x128xf32>
    %cst_13 = arith.constant 0.000000e+00 : f32
    %17 = vector.broadcast %cst_13 : f32 to vector<64x128xf32>
    %18 = arith.minimumf %14, %17 : vector<64x128xf32>
    %19 = math.exp %18 : vector<64x128xf32>
    %cst_14 = arith.constant 1.000000e+00 : f32
    %20 = vector.broadcast %cst_14 : f32 to vector<64x128xf32>
    %21 = arith.subf %19, %20 : vector<64x128xf32>
    %22 = arith.select %16, %14, %21 : vector<64x128xi1>, vector<64x128xf32>
    %cst_15 = arith.constant dense<0.000000e+00> : vector<128xf32>
    %23 = vector.multi_reduction <add>, %22, %cst_15 [0] : vector<64x128xf32> to vector<128xf32>
    %24 = vector.shape_cast %23 : vector<128xf32> to vector<1x128xf32>
    %c0_16 = arith.constant 0 : index
    %c0_17 = arith.constant 0 : index
    %c0_18 = arith.constant 0 : index
    %c0_19 = arith.constant 0 : index
    %25 = vector.load %arg6[%c0_16, %c0_17, %c0_18, %c0_19] : memref<1x1x1x128xf32, #tpu.memory_space<vmem>>, vector<1x1x1x128xf32>
    %26 = vector.shape_cast %25 : vector<1x1x1x128xf32> to vector<1x128xf32>
    %27 = vector.shape_cast %24 : vector<1x128xf32> to vector<1x1x1x128xf32>
    tpu.vector_store %arg6[%c0_16, %c0_17, %c0_18, %c0_19], %27 {strides = array<i32>} : memref<1x1x1x128xf32, #tpu.memory_space<vmem>>, vector<1x1x1x128xf32>,
    return
  }
  func.func @transform_0(%arg0: i32, %arg1: i32) -> (i32, i32, i32, i32) {
    %c0_i32 = arith.constant 0 : i32
    %c0_i32_0 = arith.constant 0 : i32
    %c0_i32_1 = arith.constant 0 : i32
    return %arg0, %arg1, %c0_i32, %c0_i32_0 : i32, i32, i32, i32
  }
  func.func @transform_1(%arg0: i32, %arg1: i32) -> (i32, i32, i32, i32) {
    %c0_i32 = arith.constant 0 : i32
    %c0_i32_0 = arith.constant 0 : i32
    %c0_i32_1 = arith.constant 0 : i32
    return %arg0, %arg1, %c0_i32, %c0_i32_0 : i32, i32, i32, i32
  }
  func.func @transform_2(%arg0: i32, %arg1: i32) -> (i32, i32, i32) {
    %c0_i32 = arith.constant 0 : i32
    %c0_i32_0 = arith.constant 0 : i32
    %c0_i32_1 = arith.constant 0 : i32
    return %arg0, %c0_i32, %c0_i32_0 : i32, i32, i32
  }
  func.func @transform_3(%arg0: i32, %arg1: i32) -> (i32, i32, i32) {
    %c0_i32 = arith.constant 0 : i32
    %c0_i32_0 = arith.constant 0 : i32
    %c0_i32_1 = arith.constant 0 : i32
    return %arg0, %c0_i32, %c0_i32_0 : i32, i32, i32
  }
  func.func @transform_4(%arg0: i32, %arg1: i32) -> (i32, i32, i32, i32) {
    %c0_i32 = arith.constant 0 : i32
    %c0_i32_0 = arith.constant 0 : i32
    %c0_i32_1 = arith.constant 0 : i32
    return %arg0, %arg1, %c0_i32, %c0_i32_0 : i32, i32, i32, i32
  }
}

module attributes {stable_mosaic.version = 11 : i64} {
  func.func @_res_elu_se_kernel(%arg0: i32, %arg1: i32, %arg2: memref<1x1x64x128xbf16, #tpu.memory_space<vmem>>, %arg3: memref<1x1x64x128xbf16, #tpu.memory_space<vmem>>, %arg4: memref<1x1x128xf32, #tpu.memory_space<vmem>>, %arg5: memref<1x1x128xf32, #tpu.memory_space<vmem>>, %arg6: memref<1x1x128xf32, #tpu.memory_space<vmem>>, %arg7: memref<128x128xf32, #tpu.memory_space<vmem>>, %arg8: memref<1x128xf32, #tpu.memory_space<vmem>>, %arg9: memref<128x128xf32, #tpu.memory_space<vmem>>, %arg10: memref<1x128xf32, #tpu.memory_space<vmem>>, %arg11: memref<1x128xf32, #tpu.memory_space<vmem>>, %arg12: memref<1x1xf32, #tpu.memory_space<vmem>>, %arg13: memref<1x1x64x128xf32, #tpu.memory_space<vmem>>) attributes {dimension_semantics = [#tpu.dimension_semantics<parallel>, #tpu.dimension_semantics<parallel>], iteration_bounds = array<i64: 2, 8>, scalar_prefetch = 0 : i64, scratch_operands = 0 : i64, tpu.core_type = #tpu.core_type<tc>, window_params = [{transform_indices = @transform_0, window_bounds = array<i64: 1, 1, 64, 128>}, {transform_indices = @transform_1, window_bounds = array<i64: 1, 1, 64, 128>}, {transform_indices = @transform_2, window_bounds = array<i64: 1, 1, 128>}, {transform_indices = @transform_3, window_bounds = array<i64: 1, 1, 128>}, {transform_indices = @transform_4, window_bounds = array<i64: 1, 1, 128>}, {pipeline_mode = #tpu.pipeline_mode<synchronous>, transform_indices = @transform_5, window_bounds = array<i64: 128, 128>}, {pipeline_mode = #tpu.pipeline_mode<synchronous>, transform_indices = @transform_6, window_bounds = array<i64: 1, 128>}, {pipeline_mode = #tpu.pipeline_mode<synchronous>, transform_indices = @transform_7, window_bounds = array<i64: 128, 128>}, {pipeline_mode = #tpu.pipeline_mode<synchronous>, transform_indices = @transform_8, window_bounds = array<i64: 1, 128>}, {pipeline_mode = #tpu.pipeline_mode<synchronous>, transform_indices = @transform_9, window_bounds = array<i64: 1, 128>}, {pipeline_mode = #tpu.pipeline_mode<synchronous>, transform_indices = @transform_10, window_bounds = array<i64: 1, 1>}, {transform_indices = @transform_11, window_bounds = array<i64: 1, 1, 64, 128>}]} {
    %c0 = arith.constant 0 : index
    %c0_0 = arith.constant 0 : index
    %c0_1 = arith.constant 0 : index
    %c0_2 = arith.constant 0 : index
    %0 = vector.load %arg2[%c0, %c0_0, %c0_1, %c0_2] : memref<1x1x64x128xbf16, #tpu.memory_space<vmem>>, vector<1x1x64x128xbf16>
    %1 = vector.shape_cast %0 : vector<1x1x64x128xbf16> to vector<64x128xbf16>
    %2 = arith.extf %1 : vector<64x128xbf16> to vector<64x128xf32>
    %c0_3 = arith.constant 0 : index
    %c0_4 = arith.constant 0 : index
    %c0_5 = arith.constant 0 : index
    %3 = vector.load %arg4[%c0_3, %c0_4, %c0_5] : memref<1x1x128xf32, #tpu.memory_space<vmem>>, vector<1x1x128xf32>
    %4 = vector.shape_cast %3 : vector<1x1x128xf32> to vector<1x128xf32>
    %5 = vector.broadcast %4 : vector<1x128xf32> to vector<64x128xf32>
    %6 = arith.mulf %2, %5 : vector<64x128xf32>
    %c0_6 = arith.constant 0 : index
    %c0_7 = arith.constant 0 : index
    %c0_8 = arith.constant 0 : index
    %7 = vector.load %arg5[%c0_6, %c0_7, %c0_8] : memref<1x1x128xf32, #tpu.memory_space<vmem>>, vector<1x1x128xf32>
    %8 = vector.shape_cast %7 : vector<1x1x128xf32> to vector<1x128xf32>
    %9 = vector.broadcast %8 : vector<1x128xf32> to vector<64x128xf32>
    %10 = arith.addf %6, %9 : vector<64x128xf32>
    %c0_9 = arith.constant 0 : index
    %c0_10 = arith.constant 0 : index
    %c0_11 = arith.constant 0 : index
    %c0_12 = arith.constant 0 : index
    %11 = vector.load %arg3[%c0_9, %c0_10, %c0_11, %c0_12] : memref<1x1x64x128xbf16, #tpu.memory_space<vmem>>, vector<1x1x64x128xbf16>
    %12 = vector.shape_cast %11 : vector<1x1x64x128xbf16> to vector<64x128xbf16>
    %13 = arith.extf %12 : vector<64x128xbf16> to vector<64x128xf32>
    %14 = arith.addf %10, %13 : vector<64x128xf32>
    %cst = arith.constant 0.000000e+00 : f32
    %15 = vector.broadcast %cst : f32 to vector<64x128xf32>
    %16 = arith.cmpf ogt, %14, %15 : vector<64x128xf32>
    %cst_13 = arith.constant 0.000000e+00 : f32
    %17 = vector.broadcast %cst_13 : f32 to vector<64x128xf32>
    %18 = arith.minimumf %14, %17 : vector<64x128xf32>
    %19 = math.exp %18 : vector<64x128xf32>
    %cst_14 = arith.constant 1.000000e+00 : f32
    %20 = vector.broadcast %cst_14 : f32 to vector<64x128xf32>
    %21 = arith.subf %19, %20 : vector<64x128xf32>
    %22 = arith.select %16, %14, %21 : vector<64x128xi1>, vector<64x128xf32>
    %c0_15 = arith.constant 0 : index
    %c0_16 = arith.constant 0 : index
    %c0_17 = arith.constant 0 : index
    %23 = vector.load %arg6[%c0_15, %c0_16, %c0_17] : memref<1x1x128xf32, #tpu.memory_space<vmem>>, vector<1x1x128xf32>
    %24 = vector.shape_cast %23 : vector<1x1x128xf32> to vector<1x128xf32>
    %c0_18 = arith.constant 0 : index
    %c0_19 = arith.constant 0 : index
    %25 = vector.load %arg7[%c0_18, %c0_19] : memref<128x128xf32, #tpu.memory_space<vmem>>, vector<128x128xf32>
    %cst_20 = arith.constant dense<0.000000e+00> : vector<1x128xf32>
    %26 = tpu.matmul %24, %25, %cst_20 {dimension_numbers = #tpu.dot_dimension_numbers<[1], [0], [0], [1], [0, 0, 1, 1], [], []>} : vector<1x128xf32>, vector<128x128xf32>, vector<1x128xf32> -> vector<1x128xf32>
    %c0_21 = arith.constant 0 : index
    %c0_22 = arith.constant 0 : index
    %27 = vector.load %arg8[%c0_21, %c0_22] : memref<1x128xf32, #tpu.memory_space<vmem>>, vector<1x128xf32>
    %28 = arith.addf %26, %27 : vector<1x128xf32>
    %cst_23 = arith.constant 0.000000e+00 : f32
    %29 = vector.broadcast %cst_23 : f32 to vector<1x128xf32>
    %30 = arith.maximumf %28, %29 : vector<1x128xf32>
    %c0_24 = arith.constant 0 : index
    %c0_25 = arith.constant 0 : index
    %31 = vector.load %arg9[%c0_24, %c0_25] : memref<128x128xf32, #tpu.memory_space<vmem>>, vector<128x128xf32>
    %cst_26 = arith.constant dense<0.000000e+00> : vector<1x128xf32>
    %32 = tpu.matmul %30, %31, %cst_26 {dimension_numbers = #tpu.dot_dimension_numbers<[1], [0], [0], [1], [0, 0, 1, 1], [], []>} : vector<1x128xf32>, vector<128x128xf32>, vector<1x128xf32> -> vector<1x128xf32>
    %c0_27 = arith.constant 0 : index
    %c0_28 = arith.constant 0 : index
    %33 = vector.load %arg10[%c0_27, %c0_28] : memref<1x128xf32, #tpu.memory_space<vmem>>, vector<1x128xf32>
    %34 = arith.addf %32, %33 : vector<1x128xf32>
    %cst_29 = arith.constant 0.000000e+00 : f32
    %35 = vector.broadcast %cst_29 : f32 to vector<1x128xf32>
    %36 = arith.subf %35, %34 : vector<1x128xf32>
    %37 = math.exp %36 : vector<1x128xf32>
    %cst_30 = arith.constant 1.000000e+00 : f32
    %38 = vector.broadcast %cst_30 : f32 to vector<1x128xf32>
    %39 = arith.addf %38, %37 : vector<1x128xf32>
    %cst_31 = arith.constant 1.000000e+00 : f32
    %40 = vector.broadcast %cst_31 : f32 to vector<1x128xf32>
    %41 = arith.divf %40, %39 : vector<1x128xf32>
    %c0_32 = arith.constant 0 : index
    %c0_33 = arith.constant 0 : index
    %42 = vector.load %arg11[%c0_32, %c0_33] : memref<1x128xf32, #tpu.memory_space<vmem>>, vector<1x128xf32>
    %43 = vector.broadcast %42 : vector<1x128xf32> to vector<64x128xf32>
    %44 = arith.mulf %22, %43 : vector<64x128xf32>
    %cst_34 = arith.constant dense<0.000000e+00> : vector<64xf32>
    %45 = vector.multi_reduction <add>, %44, %cst_34 [1] : vector<64x128xf32> to vector<64xf32>
    %46 = vector.shape_cast %45 : vector<64xf32> to vector<64x1xf32>
    %c0_35 = arith.constant 0 : index
    %c0_36 = arith.constant 0 : index
    %47 = vector.load %arg12[%c0_35, %c0_36] : memref<1x1xf32, #tpu.memory_space<vmem>>, vector<1x1xf32>
    %48 = vector.broadcast %47 : vector<1x1xf32> to vector<64x1xf32>
    %49 = arith.addf %46, %48 : vector<64x1xf32>
    %cst_37 = arith.constant 0.000000e+00 : f32
    %50 = vector.broadcast %cst_37 : f32 to vector<64x1xf32>
    %51 = arith.subf %50, %49 : vector<64x1xf32>
    %52 = math.exp %51 : vector<64x1xf32>
    %cst_38 = arith.constant 1.000000e+00 : f32
    %53 = vector.broadcast %cst_38 : f32 to vector<64x1xf32>
    %54 = arith.addf %53, %52 : vector<64x1xf32>
    %cst_39 = arith.constant 1.000000e+00 : f32
    %55 = vector.broadcast %cst_39 : f32 to vector<64x1xf32>
    %56 = arith.divf %55, %54 : vector<64x1xf32>
    %57 = vector.broadcast %41 : vector<1x128xf32> to vector<64x128xf32>
    %58 = arith.mulf %22, %57 : vector<64x128xf32>
    %59 = vector.broadcast %56 : vector<64x1xf32> to vector<64x128xf32>
    %60 = arith.mulf %22, %59 : vector<64x128xf32>
    %61 = arith.maximumf %58, %60 : vector<64x128xf32>
    %c0_40 = arith.constant 0 : index
    %c0_41 = arith.constant 0 : index
    %c0_42 = arith.constant 0 : index
    %c0_43 = arith.constant 0 : index
    %62 = vector.load %arg13[%c0_40, %c0_41, %c0_42, %c0_43] : memref<1x1x64x128xf32, #tpu.memory_space<vmem>>, vector<1x1x64x128xf32>
    %63 = vector.shape_cast %62 : vector<1x1x64x128xf32> to vector<64x128xf32>
    %64 = vector.shape_cast %61 : vector<64x128xf32> to vector<1x1x64x128xf32>
    tpu.vector_store %arg13[%c0_40, %c0_41, %c0_42, %c0_43], %64 {strides = array<i32>} : memref<1x1x64x128xf32, #tpu.memory_space<vmem>>, vector<1x1x64x128xf32>,
    return
  }
  func.func @transform_0(%arg0: i32, %arg1: i32) -> (i32, i32, i32, i32) {
    %c0_i32 = arith.constant 0 : i32
    %c0_i32_0 = arith.constant 0 : i32
    %c0_i32_1 = arith.constant 0 : i32
    return %arg0, %arg1, %c0_i32, %c0_i32_0 : i32, i32, i32, i32
  }
  func.func @transform_1(%arg0: i32, %arg1: i32) -> (i32, i32, i32, i32) {
    %c0_i32 = arith.constant 0 : i32
    %c0_i32_0 = arith.constant 0 : i32
    %c0_i32_1 = arith.constant 0 : i32
    return %arg0, %arg1, %c0_i32, %c0_i32_0 : i32, i32, i32, i32
  }
  func.func @transform_2(%arg0: i32, %arg1: i32) -> (i32, i32, i32) {
    %c0_i32 = arith.constant 0 : i32
    %c0_i32_0 = arith.constant 0 : i32
    %c0_i32_1 = arith.constant 0 : i32
    return %arg0, %c0_i32, %c0_i32_0 : i32, i32, i32
  }
  func.func @transform_3(%arg0: i32, %arg1: i32) -> (i32, i32, i32) {
    %c0_i32 = arith.constant 0 : i32
    %c0_i32_0 = arith.constant 0 : i32
    %c0_i32_1 = arith.constant 0 : i32
    return %arg0, %c0_i32, %c0_i32_0 : i32, i32, i32
  }
  func.func @transform_4(%arg0: i32, %arg1: i32) -> (i32, i32, i32) {
    %c0_i32 = arith.constant 0 : i32
    %c0_i32_0 = arith.constant 0 : i32
    %c0_i32_1 = arith.constant 0 : i32
    return %arg0, %c0_i32, %c0_i32_0 : i32, i32, i32
  }
  func.func @transform_5(%arg0: i32, %arg1: i32) -> (i32, i32) {
    %c0_i32 = arith.constant 0 : i32
    %c0_i32_0 = arith.constant 0 : i32
    %c0_i32_1 = arith.constant 0 : i32
    return %c0_i32, %c0_i32_0 : i32, i32
  }
  func.func @transform_6(%arg0: i32, %arg1: i32) -> (i32, i32) {
    %c0_i32 = arith.constant 0 : i32
    %c0_i32_0 = arith.constant 0 : i32
    %c0_i32_1 = arith.constant 0 : i32
    return %c0_i32, %c0_i32_0 : i32, i32
  }
  func.func @transform_7(%arg0: i32, %arg1: i32) -> (i32, i32) {
    %c0_i32 = arith.constant 0 : i32
    %c0_i32_0 = arith.constant 0 : i32
    %c0_i32_1 = arith.constant 0 : i32
    return %c0_i32, %c0_i32_0 : i32, i32
  }
  func.func @transform_8(%arg0: i32, %arg1: i32) -> (i32, i32) {
    %c0_i32 = arith.constant 0 : i32
    %c0_i32_0 = arith.constant 0 : i32
    %c0_i32_1 = arith.constant 0 : i32
    return %c0_i32, %c0_i32_0 : i32, i32
  }
  func.func @transform_9(%arg0: i32, %arg1: i32) -> (i32, i32) {
    %c0_i32 = arith.constant 0 : i32
    %c0_i32_0 = arith.constant 0 : i32
    %c0_i32_1 = arith.constant 0 : i32
    return %c0_i32, %c0_i32_0 : i32, i32
  }
  func.func @transform_10(%arg0: i32, %arg1: i32) -> (i32, i32) {
    %c0_i32 = arith.constant 0 : i32
    %c0_i32_0 = arith.constant 0 : i32
    %c0_i32_1 = arith.constant 0 : i32
    return %c0_i32, %c0_i32_0 : i32, i32
  }
  func.func @transform_11(%arg0: i32, %arg1: i32) -> (i32, i32, i32, i32) {
    %c0_i32 = arith.constant 0 : i32
    %c0_i32_0 = arith.constant 0 : i32
    %c0_i32_1 = arith.constant 0 : i32
    return %arg0, %arg1, %c0_i32, %c0_i32_0 : i32, i32, i32, i32
  }
}

</mosaic_0001>

<llo_original>
// kernel: resnet_block_se_forward.6
$region0: #{resnet_block_se_forward.6}
  #allocation0 [shape = 'u32[]', space=smem, size = 0x4, offset = 0x4, fixed_abs, tag = 'smem constant byte address 0x4 - core index']
  #allocation1 [shape = 'u32[144,128]{1,0:T(1,128)}', space=vmem, size = 0x12000, scoped, tag = 'internal scratch']
  %s0 = inlined_call_operand.vmem [shape: bf16[2,8,64,4], index: 0, kind: input, shape index: {}]
  %s1 = inlined_call_operand.vmem [shape: bf16[4,128], index: 1, kind: input, shape index: {}]
  %s2 = inlined_call_operand.vmem [shape: f32[1,128], index: 2, kind: input, shape index: {}]
  %s3 = inlined_call_operand.vmem [shape: bf16[2,8,64,128], index: 3, kind: output, shape index: {}]
  %s4 = sld [smem:[#allocation0]]
  $region45: #{resnet_block_se_forward.6} parent=0
    _
  %s6 = ssub.s32 1, %s4
  %s7 = scalar_select 0, %s6, %s4
  loop: start=0, step=1, limit=18
  $region2: #{resnet_block_se_forward.6} parent=0 // loop_pre_header
    _
  $region3: #{resnet_block_se_forward.6} parent=0 // loop_header
    %s9 = sphi 0, %s13
    %p10 = scmp.ge.s32.totalorder %s9, 18
    %s16 = sphi 0, %s28
    %s17 = sphi 0, %s24
    %s18 = sphi 0, %s16
    %s19 = sphi 0, %s17
    %s20 = sphi 0, %s18
    %s21 = sphi 0, %s19
    %s33 = sphi 0, %s35
    %s36 = sphi 0, %s33
    %s37 = sphi 0, %s36
    %s53 = sphi 0, %s37
    %s57 = sphi 0, %s57
    %s59 = sphi 0, %s57
    %s60 = sphi 0, %s59
    %s74 = sphi 0, %s60
    %s78 = sphi 0, %s78
    %s80 = sphi 0, %s78
    %s81 = sphi 0, %s80
    %s95 = sphi 0, %s81
    %s103 = sphi 0, %s105
    %s106 = sphi 0, %s103
    %s107 = sphi 0, %s106
    %s123 = sphi 0, %s107
  $region4: #{resnet_block_se_forward.6} parent=0 // loop_header_branch
    %12 = sbr.rel (%p10) target = $region8
  $region5: #{resnet_block_se_forward.6} parent=0 // loop_body
    %s14 = ssub.s32 %s9, 1
    %s15 = ssub.s32 %s9, 2
    %s22 = sadd.s32 1, %s17
    %p23 = scmp.ge.s32.totalorder %s22, 8
    %s24 = scalar_select %p23, 0, %s22
    %s25 = sadd.s32 1, %s16
    %s26 = scalar_select %p23, %s25, %s16
    %p27 = scmp.ge.s32.totalorder %s26, 2
    %s28 = scalar_select %p27, 0, %s26
    %s29 = ssub.s32 %s16, %s28
    %s30 = ssub.s32 %s17, %s24
    %s31 = sor.u32 %s29, %s30
    %p32 = scmp.eq.s32.totalorder %s31, 0
    %s34 = sadd.s32 %s33, 1
    %s35 = scalar_select %p32, %s33, %s34
    %p38 = pneg %p32
    %p39 = scmp.eq.s32.totalorder %s9, 15
    %p40 = por %p38, %p39
    %p41 = scmp.ne.s32.totalorder %s33, %s36
    %p42 = scmp.eq.s32.totalorder %s9, 0
    %p43 = por %p41, %p42
    %p44 = scmp.ne.s32.totalorder %s33, %s36
    %p45 = scmp.eq.s32.totalorder %s14, 15
    %p46 = por %p44, %p45
    %p47 = scmp.ne.s32.totalorder %s36, %s37
    %p48 = scmp.eq.s32.totalorder %s14, 0
    %p49 = por %p47, %p48
    %p50 = scmp.ne.s32.totalorder %s36, %s37
    %p51 = scmp.eq.s32.totalorder %s15, 15
    %p52 = por %p50, %p51
    %p54 = scmp.ne.s32.totalorder %s37, %s53
    %p55 = scmp.eq.s32.totalorder %s15, 0
    %p56 = por %p54, %p55
    %s58 = sadd.s32 %s57, 1
    %p61 = scmp.eq.s32.totalorder %s9, 15
    %p62 = scmp.ne.s32.totalorder %s57, %s59
    %p63 = scmp.eq.s32.totalorder %s9, 0
    %p64 = por %p62, %p63
    %p65 = scmp.ne.s32.totalorder %s57, %s59
    %p66 = scmp.eq.s32.totalorder %s14, 15
    %p67 = por %p65, %p66
    %p68 = scmp.ne.s32.totalorder %s59, %s60
    %p69 = scmp.eq.s32.totalorder %s14, 0
    %p70 = por %p68, %p69
    %p71 = scmp.ne.s32.totalorder %s59, %s60
    %p72 = scmp.eq.s32.totalorder %s15, 15
    %p73 = por %p71, %p72
    %p75 = scmp.ne.s32.totalorder %s60, %s74
    %p76 = scmp.eq.s32.totalorder %s15, 0
    %p77 = por %p75, %p76
    %s79 = sadd.s32 %s78, 1
    %p82 = scmp.eq.s32.totalorder %s9, 15
    %p83 = scmp.ne.s32.totalorder %s78, %s80
    %p84 = scmp.eq.s32.totalorder %s9, 0
    %p85 = por %p83, %p84
    %p86 = scmp.ne.s32.totalorder %s78, %s80
    %p87 = scmp.eq.s32.totalorder %s14, 15
    %p88 = por %p86, %p87
    %p89 = scmp.ne.s32.totalorder %s80, %s81
    %p90 = scmp.eq.s32.totalorder %s14, 0
    %p91 = por %p89, %p90
    %p92 = scmp.ne.s32.totalorder %s80, %s81
    %p93 = scmp.eq.s32.totalorder %s15, 15
    %p94 = por %p92, %p93
    %p96 = scmp.ne.s32.totalorder %s81, %s95
    %p97 = scmp.eq.s32.totalorder %s15, 0
    %p98 = por %p96, %p97
    %s99 = ssub.s32 %s16, %s28
    %s100 = ssub.s32 %s17, %s24
    %s101 = sor.u32 %s99, %s100
    %p102 = scmp.eq.s32.totalorder %s101, 0
    %s104 = sadd.s32 %s103, 1
    %s105 = scalar_select %p102, %s103, %s104
    %p108 = pneg %p102
    %p109 = scmp.eq.s32.totalorder %s9, 15
    %p110 = por %p108, %p109
    %p111 = scmp.ne.s32.totalorder %s103, %s106
    %p112 = scmp.eq.s32.totalorder %s9, 0
    %p113 = por %p111, %p112
    %p114 = scmp.ne.s32.totalorder %s103, %s106
    %p115 = scmp.eq.s32.totalorder %s14, 15
    %p116 = por %p114, %p115
    %p117 = scmp.ne.s32.totalorder %s106, %s107
    %p118 = scmp.eq.s32.totalorder %s14, 0
    %p119 = por %p117, %p118
    %p120 = scmp.ne.s32.totalorder %s106, %s107
    %p121 = scmp.eq.s32.totalorder %s15, 15
    %p122 = por %p120, %p121
    %p124 = scmp.ne.s32.totalorder %s107, %s123
    %p125 = scmp.eq.s32.totalorder %s15, 0
    %p126 = por %p124, %p125
    %p127 = scmp.le.s32.totalorder 1, %s9
    %p128 = scmp.lt.s32.totalorder %s9, 17
    %p129 = pnand %p127, %p128
    %p130 = pneg %p129
    // Predicated region
    $region9: #{resnet_block_se_forward.6} parent=5 // pred_check
      _
    $region10: #{resnet_block_se_forward.6} parent=5 // pred_check_branch
      %132 = sbr.rel (%p129) target = $region12
    $region11: #{resnet_block_se_forward.6} parent=5 // pred_region
      %s133 = ssub.s32 %s9, 1
      // Predicated region
      $region13: #{resnet_block_se_forward.6} parent=11 // pred_check
        %p134 = pneg %p70
      $region14: #{resnet_block_se_forward.6} parent=11 // pred_check_branch
        %136 = sbr.rel (%p134) target = $region16
      $region15: #{resnet_block_se_forward.6} parent=11 // pred_region
        _
      $region16: #{resnet_block_se_forward.6} parent=11 // pred_fallthru
        _
      // Predicated region
      $region17: #{resnet_block_se_forward.6} parent=11 // pred_check
        %p137 = pneg %p91
      $region18: #{resnet_block_se_forward.6} parent=11 // pred_check_branch
        %139 = sbr.rel (%p137) target = $region20
      $region19: #{resnet_block_se_forward.6} parent=11 // pred_region
        _
      $region20: #{resnet_block_se_forward.6} parent=11 // pred_fallthru
        _
    $region12: #{resnet_block_se_forward.6} parent=5 // pred_fallthru
      _
    %p140 = scmp.lt.s32.totalorder %s9, 16
    // Predicated region
    $region21: #{resnet_block_se_forward.6} parent=5 // pred_check
      %p141 = pneg %p140
    $region22: #{resnet_block_se_forward.6} parent=5 // pred_check_branch
      %143 = sbr.rel (%p141) target = $region24
    $region23: #{resnet_block_se_forward.6} parent=5 // pred_region
      // Predicated region
      $region25: #{resnet_block_se_forward.6} parent=23 // pred_check
        %p144 = pneg %p43
      $region26: #{resnet_block_se_forward.6} parent=23 // pred_check_branch
        %146 = sbr.rel (%p144) target = $region28
      $region27: #{resnet_block_se_forward.6} parent=23 // pred_region
        %p147 = scmp.lt.s32.totalorder %s16, 1
        %s148 = scalar_select %p147, %s16, 1
        %p149 = scmp.lt.s32.totalorder %s17, 7
        %s150 = scalar_select %p149, %s17, 7
        %s151 = smul.addr %s150, 8
        %s152 = smul.addr %s148, 64
        %s153 = sadd.s32 %s151, %s152
        %s154 = smul.addr %s153, 4
        %s155 = scalar_lea.vmem %s0, %s154
      $region28: #{resnet_block_se_forward.6} parent=23 // pred_fallthru
        _
    $region24: #{resnet_block_se_forward.6} parent=5 // pred_fallthru
      _
    %p156 = scmp.le.s32.totalorder 1, %s9
    %p157 = scmp.lt.s32.totalorder %s9, 17
    %p158 = pnand %p156, %p157
    %p159 = pneg %p158
    // Predicated region
    $region29: #{resnet_block_se_forward.6} parent=5 // pred_check
      _
    $region30: #{resnet_block_se_forward.6} parent=5 // pred_check_branch
      %161 = sbr.rel (%p158) target = $region32
    $region31: #{resnet_block_se_forward.6} parent=5 // pred_region
      %s162 = ssub.s32 %s9, 1
      %p163 = scmp.lt.s32.totalorder %s18, 1
      %s164 = scalar_select %p163, %s18, 1
      %p165 = scmp.lt.s32.totalorder %s19, 7
      %s166 = scalar_select %p165, %s19, 7
      %s167 = smul.addr %s166, 8
      %s168 = smul.addr %s164, 64
      %s169 = sadd.s32 %s167, %s168
      %s170 = smul.addr %s169, 4
      %s171 = scalar_lea.vmem %s0, %s170
      %p172 = pneg %p49
      %p173 = pneg %p46
      %p174 = pneg %p70
      %p175 = pneg %p67
      %p176 = pneg %p91
      %p177 = pneg %p88
      %p178 = pneg %p119
      %p179 = pneg %p116
      %p180 = scmp.lt.s32.totalorder %s18, 1
      %s181 = scalar_select %p180, %s18, 1
      %p182 = scmp.lt.s32.totalorder %s19, 7
      %s183 = scalar_select %p182, %s19, 7
      %s184 = smul.addr %s183, 8
      %s185 = smul.addr %s181, 64
      %s186 = sadd.s32 %s184, %s185
      %s187 = smul.addr %s186, 4
      %s188 = scalar_lea.vmem %s3, %s187
      %p189 = scmp.lt.s32.totalorder %s18, 1
      %s190 = scalar_select %p189, %s18, 1
      %p191 = scmp.lt.s32.totalorder %s19, 7
      %s192 = scalar_select %p191, %s19, 7
      %s193 = smul.addr %s192, 8
      %s194 = smul.addr %s190, 64
      %s195 = sadd.s32 %s193, %s194
      %s196 = smul.addr %s195, 4
      %s197 = scalar_lea.vmem %s0, %s196
      %p198 = scmp.lt.s32.totalorder %s18, 1
      %s199 = scalar_select %p198, %s18, 1
      %p200 = scmp.lt.s32.totalorder %s19, 7
      %s201 = scalar_select %p200, %s19, 7
      %s202 = smul.addr %s201, 8
      %s203 = smul.addr %s199, 64
      %s204 = sadd.s32 %s202, %s203
      %s205 = smul.addr %s204, 4
      %s206 = scalar_lea.vmem %s3, %s205
      %v208 = vld [vmem:[%s197] sm:$0xf]
      %v209 = vld [vmem:[%s197 + $0x4] sm:$0xf]
      %v210 = vld [vmem:[%s197 + $0x8] sm:$0xf]
      %v211 = vld [vmem:[%s197 + $0xc] sm:$0xf]
      %v212 = vld [vmem:[%s197 + $0x10] sm:$0xf]
      %v213 = vld [vmem:[%s197 + $0x14] sm:$0xf]
      %v214 = vld [vmem:[%s197 + $0x18] sm:$0xf]
      %v215 = vld [vmem:[%s197 + $0x1c] sm:$0xf]
      %v216 = vld [vmem:[%s1] sm:$0x3]
      %v217 = vld [vmem:[%s2] sm:$0x1]
      %v219 = vlaneseq
      %v220 = vshrl.u32 %v219, 7
      %v221 = vsub.s32 0, %v220
      %v222 = vrot.slane %v217, %v221
      %v232 = vunpack.c.l.b16 %v208
      %v233 = vunpack.c.l.b16 %v209
      %v234 = vunpack.c.l.b16 %v210
      %v235 = vunpack.c.l.b16 %v211
      %v236 = vunpack.c.l.b16 %v212
      %v237 = vunpack.c.l.b16 %v213
      %v238 = vunpack.c.l.b16 %v214
      %v239 = vunpack.c.l.b16 %v215
      %v240 = vpack.c.b16 %v233, %v232
      %v241 = vpack.c.b16 %v235, %v234
      %v242 = vpack.c.b16 %v237, %v236
      %v243 = vpack.c.b16 %v239, %v238
      %vm244 = vcmask 31744
      %v246 = vsel %vm244, %v240, 0
      %v249 = vsel %vm244, %v241, 0
      %v252 = vsel %vm244, %v242, 0
      %v255 = vsel %vm244, %v243, 0
      %vm257 = vcmask 1041408
      %v259 = vsel %vm257, %v216, 0
      %261 = vmatprep.subr.bf16.mxu0 0
      %262 = vmatpush1.bf16.msra.mxu0 %v259
      %263 = vmatprep.subr.bf16.mxu0 0
      %264 = vmatpush1.bf16.msra.mxu0 0
      %265 = vmatprep.subr.bf16.mxu0 0
      %266 = vmatpush1.bf16.msra.mxu0 0
      %267 = vmatprep.subr.bf16.mxu0 0
      %268 = vmatpush1.bf16.msra.mxu0 0
      %269 = vmatprep.subr.bf16.mxu0 0
      %270 = vmatpush1.bf16.msra.mxu0 0
      %271 = vmatprep.subr.bf16.mxu0 0
      %272 = vmatpush1.bf16.msra.mxu0 0
      %273 = vmatprep.subr.bf16.mxu0 0
      %274 = vmatpush1.bf16.msra.mxu0 0
      %275 = vmatprep.subr.bf16.mxu0 0
      %276 = vmatpush1.bf16.msra.mxu0 0
      %277 = vmatprep.subr.bf16.mxu0 0
      %278 = vmatpush1.bf16.msra.mxu0 0
      %279 = vmatprep.subr.bf16.mxu0 0
      %280 = vmatpush1.bf16.msra.mxu0 0
      %281 = vmatprep.subr.bf16.mxu0 0
      %282 = vmatpush1.bf16.msra.mxu0 0
      %283 = vmatprep.subr.bf16.mxu0 0
      %284 = vmatpush1.bf16.msra.mxu0 0
      %285 = vmatprep.subr.bf16.mxu0 0
      %286 = vmatpush1.bf16.msra.mxu0 0
      %287 = vmatprep.subr.bf16.mxu0 0
      %288 = vmatpush1.bf16.msra.mxu0 0
      %289 = vmatprep.subr.bf16.mxu0 0
      %290 = vmatpush1.bf16.msra.mxu0 0
      %291 = vmatprep.subr.bf16.mxu0 0
      %292 = vmatpush1.bf16.msra.mxu0 0
      %293 = vmatprep.mubr.bf16.mxu0 0
      %294 = vmatmul.mubr.bf16.gmra.mrb[0].mxu0 %v246
      %v295 = vpop.f32.mrb[0].mxu0
      %v296 = vadd.f32 %v222, %v295
      %v297 = vpop.f32.mrb[0].mxu0
      %v298 = vpop.f32.mrb[0].mxu0
      %v299 = vadd.f32 %v222, %v298
      %v300 = vpop.f32.mrb[0].mxu0
      %301 = vmatprep.mubr.bf16.mxu0 0
      %302 = vmatmul.mubr.bf16.gmra.mrb[0].mxu0 %v249
      %v303 = vpop.f32.mrb[0].mxu0
      %v304 = vadd.f32 %v222, %v303
      %v305 = vpop.f32.mrb[0].mxu0
      %v306 = vpop.f32.mrb[0].mxu0
      %v307 = vadd.f32 %v222, %v306
      %v308 = vpop.f32.mrb[0].mxu0
      %309 = vmatprep.mubr.bf16.mxu0 0
      %310 = vmatmul.mubr.bf16.gmra.mrb[0].mxu0 %v252
      %v311 = vpop.f32.mrb[0].mxu0
      %v312 = vadd.f32 %v222, %v311
      %v313 = vpop.f32.mrb[0].mxu0
      %v314 = vpop.f32.mrb[0].mxu0
      %v315 = vadd.f32 %v222, %v314
      %v316 = vpop.f32.mrb[0].mxu0
      %317 = vmatprep.mubr.bf16.mxu0 0
      %318 = vmatmul.mubr.bf16.gmra.mrb[0].mxu0 %v255
      %v319 = vpop.f32.mrb[0].mxu0
      %v320 = vadd.f32 %v222, %v319
      %v321 = vpop.f32.mrb[0].mxu0
      %v322 = vpop.f32.mrb[0].mxu0
      %v323 = vadd.f32 %v222, %v322
      %v324 = vpop.f32.mrb[0].mxu0
      %325 = vdwg.mxu0
      %v326 = vpack.c.bf16 %v299, %v296
      %v327 = vpack.c.bf16 %v307, %v304
      %v328 = vpack.c.bf16 %v315, %v312
      %v329 = vpack.c.bf16 %v323, %v320
      %v334 = vunpack.c.l.b16 %v326
      %v335 = vunpack.c.h.b16 %v326
      %v336 = vunpack.c.l.b16 %v327
      %v337 = vunpack.c.h.b16 %v327
      %v338 = vunpack.c.l.b16 %v328
      %v339 = vunpack.c.h.b16 %v328
      %v340 = vunpack.c.l.b16 %v329
      %v341 = vunpack.c.h.b16 %v329
      %v342 = vpack.c.b16 %v334, %v334
      %v343 = vpack.c.b16 %v335, %v335
      %v344 = vpack.c.b16 %v336, %v336
      %v345 = vpack.c.b16 %v337, %v337
      %v346 = vpack.c.b16 %v338, %v338
      %v347 = vpack.c.b16 %v339, %v339
      %v348 = vpack.c.b16 %v340, %v340
      %v349 = vpack.c.b16 %v341, %v341
      %358 = vst [vmem:[%s206] sm:$0xf] %v342
      %359 = vst [vmem:[%s206 + $0x4] sm:$0xf] %v343
      %360 = vst [vmem:[%s206 + $0x8] sm:$0xf] %v344
      %361 = vst [vmem:[%s206 + $0xc] sm:$0xf] %v345
      %362 = vst [vmem:[%s206 + $0x10] sm:$0xf] %v346
      %363 = vst [vmem:[%s206 + $0x14] sm:$0xf] %v347
      %364 = vst [vmem:[%s206 + $0x18] sm:$0xf] %v348
      %365 = vst [vmem:[%s206 + $0x1c] sm:$0xf] %v349
      %p366 = scmp.lt.s32.totalorder %s18, 1
      %s367 = scalar_select %p366, %s18, 1
      %p368 = scmp.lt.s32.totalorder %s19, 7
      %s369 = scalar_select %p368, %s19, 7
      %s370 = smul.addr %s369, 8
      %s371 = smul.addr %s367, 64
      %s372 = sadd.s32 %s370, %s371
      %s373 = smul.addr %s372, 4
      %s374 = scalar_lea.vmem %s3, %s373
      // Predicated region
      $region33: #{resnet_block_se_forward.6} parent=31 // pred_check
        %p375 = pneg %p116
      $region34: #{resnet_block_se_forward.6} parent=31 // pred_check_branch
        %377 = sbr.rel (%p375) target = $region36
      $region35: #{resnet_block_se_forward.6} parent=31 // pred_region
        _
      $region36: #{resnet_block_se_forward.6} parent=31 // pred_fallthru
        _
    $region32: #{resnet_block_se_forward.6} parent=5 // pred_fallthru
      _
    %p378 = scmp.le.s32.totalorder 2, %s9
    // Predicated region
    $region37: #{resnet_block_se_forward.6} parent=5 // pred_check
      %p379 = pneg %p378
    $region38: #{resnet_block_se_forward.6} parent=5 // pred_check_branch
      %381 = sbr.rel (%p379) target = $region40
    $region39: #{resnet_block_se_forward.6} parent=5 // pred_region
      %s382 = ssub.s32 %s9, 2
      // Predicated region
      $region41: #{resnet_block_se_forward.6} parent=39 // pred_check
        %p383 = pneg %p122
      $region42: #{resnet_block_se_forward.6} parent=39 // pred_check_branch
        %385 = sbr.rel (%p383) target = $region44
      $region43: #{resnet_block_se_forward.6} parent=39 // pred_region
        %p386 = scmp.lt.s32.totalorder %s20, 1
        %s387 = scalar_select %p386, %s20, 1
        %p388 = scmp.lt.s32.totalorder %s21, 7
        %s389 = scalar_select %p388, %s21, 7
        %s390 = smul.addr %s389, 8
        %s391 = smul.addr %s387, 64
        %s392 = sadd.s32 %s390, %s391
        %s393 = smul.addr %s392, 4
        %s394 = scalar_lea.vmem %s3, %s393
      $region44: #{resnet_block_se_forward.6} parent=39 // pred_fallthru
        _
    $region40: #{resnet_block_se_forward.6} parent=5 // pred_fallthru
      _
  $region6: #{resnet_block_se_forward.6} parent=0 // loop_footer
    %s13 = sadd.s32 1, %s9
  $region7: #{resnet_block_se_forward.6} parent=0 // loop_footer_branch
    %8 = sbr.rel target = $region3
  $region8: #{resnet_block_se_forward.6} parent=0 // loop_exit
    _

// kernel: resnet_block_se_forward.8
$region0: #{resnet_block_se_forward.8}
  #allocation0 [shape = 'u32[]', space=smem, size = 0x4, offset = 0x4, fixed_abs, tag = 'smem constant byte address 0x4 - core index']
  #allocation1 [shape = 'u32[144,128]{1,0:T(1,128)}', space=vmem, size = 0x12000, scoped, tag = 'internal scratch']
  %s0 = inlined_call_operand.vmem [shape: bf16[2,8,64,128], index: 0, kind: input, shape index: {}]
  %s1 = inlined_call_operand.vmem [shape: f32[2,1,128], index: 1, kind: input, shape index: {}]
  %s2 = inlined_call_operand.vmem [shape: f32[2,1,128], index: 2, kind: input, shape index: {}]
  %s3 = inlined_call_operand.vmem [shape: bf16[2,8,64,128], index: 3, kind: output, shape index: {}]
  %s4 = sld [smem:[#allocation0]]
  $region45: #{resnet_block_se_forward.8} parent=0
    _
  %s6 = ssub.s32 1, %s4
  %s7 = scalar_select 0, %s6, %s4
  loop: start=0, step=1, limit=18
  $region2: #{resnet_block_se_forward.8} parent=0 // loop_pre_header
    _
  $region3: #{resnet_block_se_forward.8} parent=0 // loop_header
    %s9 = sphi 0, %s13
    %p10 = scmp.ge.s32.totalorder %s9, 18
    %s16 = sphi 0, %s28
    %s17 = sphi 0, %s24
    %s18 = sphi 0, %s16
    %s19 = sphi 0, %s17
    %s20 = sphi 0, %s18
    %s21 = sphi 0, %s19
    %s33 = sphi 0, %s35
    %s36 = sphi 0, %s33
    %s37 = sphi 0, %s36
    %s53 = sphi 0, %s37
    %s59 = sphi 0, %s61
    %s62 = sphi 0, %s59
    %s63 = sphi 0, %s62
    %s79 = sphi 0, %s63
    %s85 = sphi 0, %s87
    %s88 = sphi 0, %s85
    %s89 = sphi 0, %s88
    %s105 = sphi 0, %s89
    %s113 = sphi 0, %s115
    %s116 = sphi 0, %s113
    %s117 = sphi 0, %s116
    %s133 = sphi 0, %s117
  $region4: #{resnet_block_se_forward.8} parent=0 // loop_header_branch
    %12 = sbr.rel (%p10) target = $region8
  $region5: #{resnet_block_se_forward.8} parent=0 // loop_body
    %s14 = ssub.s32 %s9, 1
    %s15 = ssub.s32 %s9, 2
    %s22 = sadd.s32 1, %s17
    %p23 = scmp.ge.s32.totalorder %s22, 8
    %s24 = scalar_select %p23, 0, %s22
    %s25 = sadd.s32 1, %s16
    %s26 = scalar_select %p23, %s25, %s16
    %p27 = scmp.ge.s32.totalorder %s26, 2
    %s28 = scalar_select %p27, 0, %s26
    %s29 = ssub.s32 %s16, %s28
    %s30 = ssub.s32 %s17, %s24
    %s31 = sor.u32 %s29, %s30
    %p32 = scmp.eq.s32.totalorder %s31, 0
    %s34 = sadd.s32 %s33, 1
    %s35 = scalar_select %p32, %s33, %s34
    %p38 = pneg %p32
    %p39 = scmp.eq.s32.totalorder %s9, 15
    %p40 = por %p38, %p39
    %p41 = scmp.ne.s32.totalorder %s33, %s36
    %p42 = scmp.eq.s32.totalorder %s9, 0
    %p43 = por %p41, %p42
    %p44 = scmp.ne.s32.totalorder %s33, %s36
    %p45 = scmp.eq.s32.totalorder %s14, 15
    %p46 = por %p44, %p45
    %p47 = scmp.ne.s32.totalorder %s36, %s37
    %p48 = scmp.eq.s32.totalorder %s14, 0
    %p49 = por %p47, %p48
    %p50 = scmp.ne.s32.totalorder %s36, %s37
    %p51 = scmp.eq.s32.totalorder %s15, 15
    %p52 = por %p50, %p51
    %p54 = scmp.ne.s32.totalorder %s37, %s53
    %p55 = scmp.eq.s32.totalorder %s15, 0
    %p56 = por %p54, %p55
    %s57 = ssub.s32 %s16, %s28
    %p58 = scmp.eq.s32.totalorder %s57, 0
    %s60 = sadd.s32 %s59, 1
    %s61 = scalar_select %p58, %s59, %s60
    %p64 = pneg %p58
    %p65 = scmp.eq.s32.totalorder %s9, 15
    %p66 = por %p64, %p65
    %p67 = scmp.ne.s32.totalorder %s59, %s62
    %p68 = scmp.eq.s32.totalorder %s9, 0
    %p69 = por %p67, %p68
    %p70 = scmp.ne.s32.totalorder %s59, %s62
    %p71 = scmp.eq.s32.totalorder %s14, 15
    %p72 = por %p70, %p71
    %p73 = scmp.ne.s32.totalorder %s62, %s63
    %p74 = scmp.eq.s32.totalorder %s14, 0
    %p75 = por %p73, %p74
    %p76 = scmp.ne.s32.totalorder %s62, %s63
    %p77 = scmp.eq.s32.totalorder %s15, 15
    %p78 = por %p76, %p77
    %p80 = scmp.ne.s32.totalorder %s63, %s79
    %p81 = scmp.eq.s32.totalorder %s15, 0
    %p82 = por %p80, %p81
    %s83 = ssub.s32 %s16, %s28
    %p84 = scmp.eq.s32.totalorder %s83, 0
    %s86 = sadd.s32 %s85, 1
    %s87 = scalar_select %p84, %s85, %s86
    %p90 = pneg %p84
    %p91 = scmp.eq.s32.totalorder %s9, 15
    %p92 = por %p90, %p91
    %p93 = scmp.ne.s32.totalorder %s85, %s88
    %p94 = scmp.eq.s32.totalorder %s9, 0
    %p95 = por %p93, %p94
    %p96 = scmp.ne.s32.totalorder %s85, %s88
    %p97 = scmp.eq.s32.totalorder %s14, 15
    %p98 = por %p96, %p97
    %p99 = scmp.ne.s32.totalorder %s88, %s89
    %p100 = scmp.eq.s32.totalorder %s14, 0
    %p101 = por %p99, %p100
    %p102 = scmp.ne.s32.totalorder %s88, %s89
    %p103 = scmp.eq.s32.totalorder %s15, 15
    %p104 = por %p102, %p103
    %p106 = scmp.ne.s32.totalorder %s89, %s105
    %p107 = scmp.eq.s32.totalorder %s15, 0
    %p108 = por %p106, %p107
    %s109 = ssub.s32 %s16, %s28
    %s110 = ssub.s32 %s17, %s24
    %s111 = sor.u32 %s109, %s110
    %p112 = scmp.eq.s32.totalorder %s111, 0
    %s114 = sadd.s32 %s113, 1
    %s115 = scalar_select %p112, %s113, %s114
    %p118 = pneg %p112
    %p119 = scmp.eq.s32.totalorder %s9, 15
    %p120 = por %p118, %p119
    %p121 = scmp.ne.s32.totalorder %s113, %s116
    %p122 = scmp.eq.s32.totalorder %s9, 0
    %p123 = por %p121, %p122
    %p124 = scmp.ne.s32.totalorder %s113, %s116
    %p125 = scmp.eq.s32.totalorder %s14, 15
    %p126 = por %p124, %p125
    %p127 = scmp.ne.s32.totalorder %s116, %s117
    %p128 = scmp.eq.s32.totalorder %s14, 0
    %p129 = por %p127, %p128
    %p130 = scmp.ne.s32.totalorder %s116, %s117
    %p131 = scmp.eq.s32.totalorder %s15, 15
    %p132 = por %p130, %p131
    %p134 = scmp.ne.s32.totalorder %s117, %s133
    %p135 = scmp.eq.s32.totalorder %s15, 0
    %p136 = por %p134, %p135
    %p137 = scmp.le.s32.totalorder 1, %s9
    %p138 = scmp.lt.s32.totalorder %s9, 17
    %p139 = pnand %p137, %p138
    %p140 = pneg %p139
    // Predicated region
    $region9: #{resnet_block_se_forward.8} parent=5 // pred_check
      _
    $region10: #{resnet_block_se_forward.8} parent=5 // pred_check_branch
      %142 = sbr.rel (%p139) target = $region12
    $region11: #{resnet_block_se_forward.8} parent=5 // pred_region
      %s143 = ssub.s32 %s9, 1
    $region12: #{resnet_block_se_forward.8} parent=5 // pred_fallthru
      _
    %p144 = scmp.lt.s32.totalorder %s9, 16
    // Predicated region
    $region13: #{resnet_block_se_forward.8} parent=5 // pred_check
      %p145 = pneg %p144
    $region14: #{resnet_block_se_forward.8} parent=5 // pred_check_branch
      %147 = sbr.rel (%p145) target = $region16
    $region15: #{resnet_block_se_forward.8} parent=5 // pred_region
      // Predicated region
      $region17: #{resnet_block_se_forward.8} parent=15 // pred_check
        %p148 = pneg %p43
      $region18: #{resnet_block_se_forward.8} parent=15 // pred_check_branch
        %150 = sbr.rel (%p148) target = $region20
      $region19: #{resnet_block_se_forward.8} parent=15 // pred_region
        %p151 = scmp.lt.s32.totalorder %s16, 1
        %s152 = scalar_select %p151, %s16, 1
        %p153 = scmp.lt.s32.totalorder %s17, 7
        %s154 = scalar_select %p153, %s17, 7
        %s155 = smul.addr %s154, 8
        %s156 = smul.addr %s152, 64
        %s157 = sadd.s32 %s155, %s156
        %s158 = smul.addr %s157, 4
        %s159 = scalar_lea.vmem %s0, %s158
      $region20: #{resnet_block_se_forward.8} parent=15 // pred_fallthru
        _
      // Predicated region
      $region21: #{resnet_block_se_forward.8} parent=15 // pred_check
        %p160 = pneg %p69
      $region22: #{resnet_block_se_forward.8} parent=15 // pred_check_branch
        %162 = sbr.rel (%p160) target = $region24
      $region23: #{resnet_block_se_forward.8} parent=15 // pred_region
        %p163 = scmp.lt.s32.totalorder %s16, 1
        %s164 = scalar_select %p163, %s16, 1
        %s165 = scalar_lea.vmem %s1, %s164
      $region24: #{resnet_block_se_forward.8} parent=15 // pred_fallthru
        _
      // Predicated region
      $region25: #{resnet_block_se_forward.8} parent=15 // pred_check
        %p166 = pneg %p95
      $region26: #{resnet_block_se_forward.8} parent=15 // pred_check_branch
        %168 = sbr.rel (%p166) target = $region28
      $region27: #{resnet_block_se_forward.8} parent=15 // pred_region
        %p169 = scmp.lt.s32.totalorder %s16, 1
        %s170 = scalar_select %p169, %s16, 1
        %s171 = scalar_lea.vmem %s2, %s170
      $region28: #{resnet_block_se_forward.8} parent=15 // pred_fallthru
        _
    $region16: #{resnet_block_se_forward.8} parent=5 // pred_fallthru
      _
    %p172 = scmp.le.s32.totalorder 1, %s9
    %p173 = scmp.lt.s32.totalorder %s9, 17
    %p174 = pnand %p172, %p173
    %p175 = pneg %p174
    // Predicated region
    $region29: #{resnet_block_se_forward.8} parent=5 // pred_check
      _
    $region30: #{resnet_block_se_forward.8} parent=5 // pred_check_branch
      %177 = sbr.rel (%p174) target = $region32
    $region31: #{resnet_block_se_forward.8} parent=5 // pred_region
      %s178 = ssub.s32 %s9, 1
      %p179 = scmp.lt.s32.totalorder %s18, 1
      %s180 = scalar_select %p179, %s18, 1
      %p181 = scmp.lt.s32.totalorder %s19, 7
      %s182 = scalar_select %p181, %s19, 7
      %s183 = smul.addr %s182, 8
      %s184 = smul.addr %s180, 64
      %s185 = sadd.s32 %s183, %s184
      %s186 = smul.addr %s185, 4
      %s187 = scalar_lea.vmem %s0, %s186
      %p188 = pneg %p49
      %p189 = pneg %p46
      %p190 = scmp.lt.s32.totalorder %s18, 1
      %s191 = scalar_select %p190, %s18, 1
      %s192 = scalar_lea.vmem %s1, %s191
      %p193 = pneg %p75
      %p194 = pneg %p72
      %p195 = scmp.lt.s32.totalorder %s18, 1
      %s196 = scalar_select %p195, %s18, 1
      %s197 = scalar_lea.vmem %s2, %s196
      %p198 = pneg %p101
      %p199 = pneg %p98
      %p200 = pneg %p129
      %p201 = pneg %p126
      %p202 = scmp.lt.s32.totalorder %s18, 1
      %s203 = scalar_select %p202, %s18, 1
      %p204 = scmp.lt.s32.totalorder %s19, 7
      %s205 = scalar_select %p204, %s19, 7
      %s206 = smul.addr %s205, 8
      %s207 = smul.addr %s203, 64
      %s208 = sadd.s32 %s206, %s207
      %s209 = smul.addr %s208, 4
      %s210 = scalar_lea.vmem %s3, %s209
      %p211 = scmp.lt.s32.totalorder %s18, 1
      %s212 = scalar_select %p211, %s18, 1
      %p213 = scmp.lt.s32.totalorder %s19, 7
      %s214 = scalar_select %p213, %s19, 7
      %s215 = smul.addr %s214, 8
      %s216 = smul.addr %s212, 64
      %s217 = sadd.s32 %s215, %s216
      %s218 = smul.addr %s217, 4
      %s219 = scalar_lea.vmem %s0, %s218
      %p220 = scmp.lt.s32.totalorder %s18, 1
      %s221 = scalar_select %p220, %s18, 1
      %s222 = scalar_lea.vmem %s1, %s221
      %p223 = scmp.lt.s32.totalorder %s18, 1
      %s224 = scalar_select %p223, %s18, 1
      %s225 = scalar_lea.vmem %s2, %s224
      %p226 = scmp.lt.s32.totalorder %s18, 1
      %s227 = scalar_select %p226, %s18, 1
      %p228 = scmp.lt.s32.totalorder %s19, 7
      %s229 = scalar_select %p228, %s19, 7
      %s230 = smul.addr %s229, 8
      %s231 = smul.addr %s227, 64
      %s232 = sadd.s32 %s230, %s231
      %s233 = smul.addr %s232, 4
      %s234 = scalar_lea.vmem %s3, %s233
      %v235 = vld [vmem:[%s219] sm:$0xf]
      %v236 = vld [vmem:[%s219 + $0x4] sm:$0xf]
      %v237 = vld [vmem:[%s219 + $0x8] sm:$0xf]
      %v238 = vld [vmem:[%s219 + $0xc] sm:$0xf]
      %v239 = vld [vmem:[%s219 + $0x10] sm:$0xf]
      %v240 = vld [vmem:[%s219 + $0x14] sm:$0xf]
      %v241 = vld [vmem:[%s219 + $0x18] sm:$0xf]
      %v242 = vld [vmem:[%s219 + $0x1c] sm:$0xf]
      %v243 = vunpack.c.l.bf16 %v235
      %v244 = vunpack.c.l.bf16 %v236
      %v245 = vunpack.c.l.bf16 %v237
      %v246 = vunpack.c.l.bf16 %v238
      %v247 = vunpack.c.l.bf16 %v239
      %v248 = vunpack.c.l.bf16 %v240
      %v249 = vunpack.c.l.bf16 %v241
      %v250 = vunpack.c.l.bf16 %v242
      %v251 = vld [vmem:[%s222] sm:$0x1]
      %v253 = vlaneseq
      %v254 = vshrl.u32 %v253, 7
      %v255 = vsub.s32 0, %v254
      %v256 = vrot.slane %v251, %v255
      %v258 = vmul.f32 %v243, %v256
      %v259 = vmul.f32 %v244, %v256
      %v260 = vmul.f32 %v245, %v256
      %v261 = vmul.f32 %v246, %v256
      %v262 = vmul.f32 %v247, %v256
      %v263 = vmul.f32 %v248, %v256
      %v264 = vmul.f32 %v249, %v256
      %v265 = vmul.f32 %v250, %v256
      %v266 = vld [vmem:[%s225] sm:$0x1]
      %v268 = vlaneseq
      %v269 = vshrl.u32 %v268, 7
      %v270 = vsub.s32 0, %v269
      %v271 = vrot.slane %v266, %v270
      %v273 = vadd.f32 %v258, %v271
      %v274 = vadd.f32 %v259, %v271
      %v275 = vadd.f32 %v260, %v271
      %v276 = vadd.f32 %v261, %v271
      %v277 = vadd.f32 %v262, %v271
      %v278 = vadd.f32 %v263, %v271
      %v279 = vadd.f32 %v264, %v271
      %v280 = vadd.f32 %v265, %v271
      %vm281 = vcmp.gt.f32.partialorder %v273, 0.0
      %vm282 = vcmp.gt.f32.partialorder %v274, 0.0
      %vm283 = vcmp.gt.f32.partialorder %v275, 0.0
      %vm284 = vcmp.gt.f32.partialorder %v276, 0.0
      %vm285 = vcmp.gt.f32.partialorder %v277, 0.0
      %vm286 = vcmp.gt.f32.partialorder %v278, 0.0
      %vm287 = vcmp.gt.f32.partialorder %v279, 0.0
      %vm288 = vcmp.gt.f32.partialorder %v280, 0.0
      %v289 = vmin.f32 %v273, 0.0
      %v290 = vmin.f32 %v274, 0.0
      %v291 = vmin.f32 %v275, 0.0
      %v292 = vmin.f32 %v276, 0.0
      %v293 = vmin.f32 %v277, 0.0
      %v294 = vmin.f32 %v278, 0.0
      %v295 = vmin.f32 %v279, 0.0
      %v296 = vmin.f32 %v280, 0.0
      %v297 = vmul.f32 %v289, 1.442695
      %v298 = vpow.pop %v297
      %v299 = vmul.f32 %v290, 1.442695
      %v300 = vpow.pop %v299
      %v301 = vmul.f32 %v291, 1.442695
      %v302 = vpow.pop %v301
      %v303 = vmul.f32 %v292, 1.442695
      %v304 = vpow.pop %v303
      %v305 = vmul.f32 %v293, 1.442695
      %v306 = vpow.pop %v305
      %v307 = vmul.f32 %v294, 1.442695
      %v308 = vpow.pop %v307
      %v309 = vmul.f32 %v295, 1.442695
      %v310 = vpow.pop %v309
      %v311 = vmul.f32 %v296, 1.442695
      %v312 = vpow.pop %v311
      %v313 = vsub.f32 %v298, 1.0
      %v314 = vsub.f32 %v300, 1.0
      %v315 = vsub.f32 %v302, 1.0
      %v316 = vsub.f32 %v304, 1.0
      %v317 = vsub.f32 %v306, 1.0
      %v318 = vsub.f32 %v308, 1.0
      %v319 = vsub.f32 %v310, 1.0
      %v320 = vsub.f32 %v312, 1.0
      %v321 = vsel %vm281, %v273, %v313
      %v322 = vsel %vm282, %v274, %v314
      %v323 = vsel %vm283, %v275, %v315
      %v324 = vsel %vm284, %v276, %v316
      %v325 = vsel %vm285, %v277, %v317
      %v326 = vsel %vm286, %v278, %v318
      %v327 = vsel %vm287, %v279, %v319
      %v328 = vsel %vm288, %v280, %v320
      %v329 = vpack.c.bf16 %v322, %v321
      %v330 = vpack.c.bf16 %v324, %v323
      %v331 = vpack.c.bf16 %v326, %v325
      %v332 = vpack.c.bf16 %v328, %v327
      %v337 = vunpack.c.l.b16 %v329
      %v338 = vunpack.c.h.b16 %v329
      %v339 = vunpack.c.l.b16 %v330
      %v340 = vunpack.c.h.b16 %v330
      %v341 = vunpack.c.l.b16 %v331
      %v342 = vunpack.c.h.b16 %v331
      %v343 = vunpack.c.l.b16 %v332
      %v344 = vunpack.c.h.b16 %v332
      %v345 = vpack.c.b16 %v337, %v337
      %v346 = vpack.c.b16 %v338, %v338
      %v347 = vpack.c.b16 %v339, %v339
      %v348 = vpack.c.b16 %v340, %v340
      %v349 = vpack.c.b16 %v341, %v341
      %v350 = vpack.c.b16 %v342, %v342
      %v351 = vpack.c.b16 %v343, %v343
      %v352 = vpack.c.b16 %v344, %v344
      %361 = vst [vmem:[%s234] sm:$0xf] %v345
      %362 = vst [vmem:[%s234 + $0x4] sm:$0xf] %v346
      %363 = vst [vmem:[%s234 + $0x8] sm:$0xf] %v347
      %364 = vst [vmem:[%s234 + $0xc] sm:$0xf] %v348
      %365 = vst [vmem:[%s234 + $0x10] sm:$0xf] %v349
      %366 = vst [vmem:[%s234 + $0x14] sm:$0xf] %v350
      %367 = vst [vmem:[%s234 + $0x18] sm:$0xf] %v351
      %368 = vst [vmem:[%s234 + $0x1c] sm:$0xf] %v352
      %p369 = scmp.lt.s32.totalorder %s18, 1
      %s370 = scalar_select %p369, %s18, 1
      %p371 = scmp.lt.s32.totalorder %s19, 7
      %s372 = scalar_select %p371, %s19, 7
      %s373 = smul.addr %s372, 8
      %s374 = smul.addr %s370, 64
      %s375 = sadd.s32 %s373, %s374
      %s376 = smul.addr %s375, 4
      %s377 = scalar_lea.vmem %s3, %s376
      // Predicated region
      $region33: #{resnet_block_se_forward.8} parent=31 // pred_check
        %p378 = pneg %p126
      $region34: #{resnet_block_se_forward.8} parent=31 // pred_check_branch
        %380 = sbr.rel (%p378) target = $region36
      $region35: #{resnet_block_se_forward.8} parent=31 // pred_region
        _
      $region36: #{resnet_block_se_forward.8} parent=31 // pred_fallthru
        _
    $region32: #{resnet_block_se_forward.8} parent=5 // pred_fallthru
      _
    %p381 = scmp.le.s32.totalorder 2, %s9
    // Predicated region
    $region37: #{resnet_block_se_forward.8} parent=5 // pred_check
      %p382 = pneg %p381
    $region38: #{resnet_block_se_forward.8} parent=5 // pred_check_branch
      %384 = sbr.rel (%p382) target = $region40
    $region39: #{resnet_block_se_forward.8} parent=5 // pred_region
      %s385 = ssub.s32 %s9, 2
      // Predicated region
      $region41: #{resnet_block_se_forward.8} parent=39 // pred_check
        %p386 = pneg %p132
      $region42: #{resnet_block_se_forward.8} parent=39 // pred_check_branch
        %388 = sbr.rel (%p386) target = $region44
      $region43: #{resnet_block_se_forward.8} parent=39 // pred_region
        %p389 = scmp.lt.s32.totalorder %s20, 1
        %s390 = scalar_select %p389, %s20, 1
        %p391 = scmp.lt.s32.totalorder %s21, 7
        %s392 = scalar_select %p391, %s21, 7
        %s393 = smul.addr %s392, 8
        %s394 = smul.addr %s390, 64
        %s395 = sadd.s32 %s393, %s394
        %s396 = smul.addr %s395, 4
        %s397 = scalar_lea.vmem %s3, %s396
      $region44: #{resnet_block_se_forward.8} parent=39 // pred_fallthru
        _
    $region40: #{resnet_block_se_forward.8} parent=5 // pred_fallthru
      _
  $region6: #{resnet_block_se_forward.8} parent=0 // loop_footer
    %s13 = sadd.s32 1, %s9
  $region7: #{resnet_block_se_forward.8} parent=0 // loop_footer_branch
    %8 = sbr.rel target = $region3
  $region8: #{resnet_block_se_forward.8} parent=0 // loop_exit
    _

// kernel: resnet_block_se_forward.10
$region0: #{resnet_block_se_forward.10}
  #allocation0 [shape = 'u32[]', space=smem, size = 0x4, offset = 0x4, fixed_abs, tag = 'smem constant byte address 0x4 - core index']
  #allocation1 [shape = 'u32[144,128]{1,0:T(1,128)}', space=vmem, size = 0x12000, scoped, tag = 'internal scratch']
  %s0 = inlined_call_operand.vmem [shape: bf16[2,8,64,128], index: 0, kind: input, shape index: {}]
  %s1 = inlined_call_operand.vmem [shape: bf16[2,8,64,128], index: 1, kind: input, shape index: {}]
  %s2 = inlined_call_operand.vmem [shape: f32[2,1,128], index: 2, kind: input, shape index: {}]
  %s3 = inlined_call_operand.vmem [shape: f32[2,1,128], index: 3, kind: input, shape index: {}]
  %s4 = inlined_call_operand.vmem [shape: f32[2,8,1,128], index: 4, kind: output, shape index: {}]
  %s5 = sld [smem:[#allocation0]]
  $region49: #{resnet_block_se_forward.10} parent=0
    _
  %s7 = ssub.s32 1, %s5
  %s8 = scalar_select 0, %s7, %s5
  loop: start=0, step=1, limit=18
  $region2: #{resnet_block_se_forward.10} parent=0 // loop_pre_header
    _
  $region3: #{resnet_block_se_forward.10} parent=0 // loop_header
    %s10 = sphi 0, %s14
    %p11 = scmp.ge.s32.totalorder %s10, 18
    %s17 = sphi 0, %s29
    %s18 = sphi 0, %s25
    %s19 = sphi 0, %s17
    %s20 = sphi 0, %s18
    %s21 = sphi 0, %s19
    %s22 = sphi 0, %s20
    %s34 = sphi 0, %s36
    %s37 = sphi 0, %s34
    %s38 = sphi 0, %s37
    %s54 = sphi 0, %s38
    %s62 = sphi 0, %s64
    %s65 = sphi 0, %s62
    %s66 = sphi 0, %s65
    %s82 = sphi 0, %s66
    %s88 = sphi 0, %s90
    %s91 = sphi 0, %s88
    %s92 = sphi 0, %s91
    %s108 = sphi 0, %s92
    %s114 = sphi 0, %s116
    %s117 = sphi 0, %s114
    %s118 = sphi 0, %s117
    %s134 = sphi 0, %s118
    %s142 = sphi 0, %s144
    %s145 = sphi 0, %s142
    %s146 = sphi 0, %s145
    %s162 = sphi 0, %s146
  $region4: #{resnet_block_se_forward.10} parent=0 // loop_header_branch
    %13 = sbr.rel (%p11) target = $region8
  $region5: #{resnet_block_se_forward.10} parent=0 // loop_body
    %s15 = ssub.s32 %s10, 1
    %s16 = ssub.s32 %s10, 2
    %s23 = sadd.s32 1, %s18
    %p24 = scmp.ge.s32.totalorder %s23, 8
    %s25 = scalar_select %p24, 0, %s23
    %s26 = sadd.s32 1, %s17
    %s27 = scalar_select %p24, %s26, %s17
    %p28 = scmp.ge.s32.totalorder %s27, 2
    %s29 = scalar_select %p28, 0, %s27
    %s30 = ssub.s32 %s17, %s29
    %s31 = ssub.s32 %s18, %s25
    %s32 = sor.u32 %s30, %s31
    %p33 = scmp.eq.s32.totalorder %s32, 0
    %s35 = sadd.s32 %s34, 1
    %s36 = scalar_select %p33, %s34, %s35
    %p39 = pneg %p33
    %p40 = scmp.eq.s32.totalorder %s10, 15
    %p41 = por %p39, %p40
    %p42 = scmp.ne.s32.totalorder %s34, %s37
    %p43 = scmp.eq.s32.totalorder %s10, 0
    %p44 = por %p42, %p43
    %p45 = scmp.ne.s32.totalorder %s34, %s37
    %p46 = scmp.eq.s32.totalorder %s15, 15
    %p47 = por %p45, %p46
    %p48 = scmp.ne.s32.totalorder %s37, %s38
    %p49 = scmp.eq.s32.totalorder %s15, 0
    %p50 = por %p48, %p49
    %p51 = scmp.ne.s32.totalorder %s37, %s38
    %p52 = scmp.eq.s32.totalorder %s16, 15
    %p53 = por %p51, %p52
    %p55 = scmp.ne.s32.totalorder %s38, %s54
    %p56 = scmp.eq.s32.totalorder %s16, 0
    %p57 = por %p55, %p56
    %s58 = ssub.s32 %s17, %s29
    %s59 = ssub.s32 %s18, %s25
    %s60 = sor.u32 %s58, %s59
    %p61 = scmp.eq.s32.totalorder %s60, 0
    %s63 = sadd.s32 %s62, 1
    %s64 = scalar_select %p61, %s62, %s63
    %p67 = pneg %p61
    %p68 = scmp.eq.s32.totalorder %s10, 15
    %p69 = por %p67, %p68
    %p70 = scmp.ne.s32.totalorder %s62, %s65
    %p71 = scmp.eq.s32.totalorder %s10, 0
    %p72 = por %p70, %p71
    %p73 = scmp.ne.s32.totalorder %s62, %s65
    %p74 = scmp.eq.s32.totalorder %s15, 15
    %p75 = por %p73, %p74
    %p76 = scmp.ne.s32.totalorder %s65, %s66
    %p77 = scmp.eq.s32.totalorder %s15, 0
    %p78 = por %p76, %p77
    %p79 = scmp.ne.s32.totalorder %s65, %s66
    %p80 = scmp.eq.s32.totalorder %s16, 15
    %p81 = por %p79, %p80
    %p83 = scmp.ne.s32.totalorder %s66, %s82
    %p84 = scmp.eq.s32.totalorder %s16, 0
    %p85 = por %p83, %p84
    %s86 = ssub.s32 %s17, %s29
    %p87 = scmp.eq.s32.totalorder %s86, 0
    %s89 = sadd.s32 %s88, 1
    %s90 = scalar_select %p87, %s88, %s89
    %p93 = pneg %p87
    %p94 = scmp.eq.s32.totalorder %s10, 15
    %p95 = por %p93, %p94
    %p96 = scmp.ne.s32.totalorder %s88, %s91
    %p97 = scmp.eq.s32.totalorder %s10, 0
    %p98 = por %p96, %p97
    %p99 = scmp.ne.s32.totalorder %s88, %s91
    %p100 = scmp.eq.s32.totalorder %s15, 15
    %p101 = por %p99, %p100
    %p102 = scmp.ne.s32.totalorder %s91, %s92
    %p103 = scmp.eq.s32.totalorder %s15, 0
    %p104 = por %p102, %p103
    %p105 = scmp.ne.s32.totalorder %s91, %s92
    %p106 = scmp.eq.s32.totalorder %s16, 15
    %p107 = por %p105, %p106
    %p109 = scmp.ne.s32.totalorder %s92, %s108
    %p110 = scmp.eq.s32.totalorder %s16, 0
    %p111 = por %p109, %p110
    %s112 = ssub.s32 %s17, %s29
    %p113 = scmp.eq.s32.totalorder %s112, 0
    %s115 = sadd.s32 %s114, 1
    %s116 = scalar_select %p113, %s114, %s115
    %p119 = pneg %p113
    %p120 = scmp.eq.s32.totalorder %s10, 15
    %p121 = por %p119, %p120
    %p122 = scmp.ne.s32.totalorder %s114, %s117
    %p123 = scmp.eq.s32.totalorder %s10, 0
    %p124 = por %p122, %p123
    %p125 = scmp.ne.s32.totalorder %s114, %s117
    %p126 = scmp.eq.s32.totalorder %s15, 15
    %p127 = por %p125, %p126
    %p128 = scmp.ne.s32.totalorder %s117, %s118
    %p129 = scmp.eq.s32.totalorder %s15, 0
    %p130 = por %p128, %p129
    %p131 = scmp.ne.s32.totalorder %s117, %s118
    %p132 = scmp.eq.s32.totalorder %s16, 15
    %p133 = por %p131, %p132
    %p135 = scmp.ne.s32.totalorder %s118, %s134
    %p136 = scmp.eq.s32.totalorder %s16, 0
    %p137 = por %p135, %p136
    %s138 = ssub.s32 %s17, %s29
    %s139 = ssub.s32 %s18, %s25
    %s140 = sor.u32 %s138, %s139
    %p141 = scmp.eq.s32.totalorder %s140, 0
    %s143 = sadd.s32 %s142, 1
    %s144 = scalar_select %p141, %s142, %s143
    %p147 = pneg %p141
    %p148 = scmp.eq.s32.totalorder %s10, 15
    %p149 = por %p147, %p148
    %p150 = scmp.ne.s32.totalorder %s142, %s145
    %p151 = scmp.eq.s32.totalorder %s10, 0
    %p152 = por %p150, %p151
    %p153 = scmp.ne.s32.totalorder %s142, %s145
    %p154 = scmp.eq.s32.totalorder %s15, 15
    %p155 = por %p153, %p154
    %p156 = scmp.ne.s32.totalorder %s145, %s146
    %p157 = scmp.eq.s32.totalorder %s15, 0
    %p158 = por %p156, %p157
    %p159 = scmp.ne.s32.totalorder %s145, %s146
    %p160 = scmp.eq.s32.totalorder %s16, 15
    %p161 = por %p159, %p160
    %p163 = scmp.ne.s32.totalorder %s146, %s162
    %p164 = scmp.eq.s32.totalorder %s16, 0
    %p165 = por %p163, %p164
    %p166 = scmp.le.s32.totalorder 1, %s10
    %p167 = scmp.lt.s32.totalorder %s10, 17
    %p168 = pnand %p166, %p167
    %p169 = pneg %p168
    // Predicated region
    $region9: #{resnet_block_se_forward.10} parent=5 // pred_check
      _
    $region10: #{resnet_block_se_forward.10} parent=5 // pred_check_branch
      %171 = sbr.rel (%p168) target = $region12
    $region11: #{resnet_block_se_forward.10} parent=5 // pred_region
      %s172 = ssub.s32 %s10, 1
    $region12: #{resnet_block_se_forward.10} parent=5 // pred_fallthru
      _
    %p173 = scmp.lt.s32.totalorder %s10, 16
    // Predicated region
    $region13: #{resnet_block_se_forward.10} parent=5 // pred_check
      %p174 = pneg %p173
    $region14: #{resnet_block_se_forward.10} parent=5 // pred_check_branch
      %176 = sbr.rel (%p174) target = $region16
    $region15: #{resnet_block_se_forward.10} parent=5 // pred_region
      // Predicated region
      $region17: #{resnet_block_se_forward.10} parent=15 // pred_check
        %p177 = pneg %p44
      $region18: #{resnet_block_se_forward.10} parent=15 // pred_check_branch
        %179 = sbr.rel (%p177) target = $region20
      $region19: #{resnet_block_se_forward.10} parent=15 // pred_region
        %p180 = scmp.lt.s32.totalorder %s17, 1
        %s181 = scalar_select %p180, %s17, 1
        %p182 = scmp.lt.s32.totalorder %s18, 7
        %s183 = scalar_select %p182, %s18, 7
        %s184 = smul.addr %s183, 8
        %s185 = smul.addr %s181, 64
        %s186 = sadd.s32 %s184, %s185
        %s187 = smul.addr %s186, 4
        %s188 = scalar_lea.vmem %s0, %s187
      $region20: #{resnet_block_se_forward.10} parent=15 // pred_fallthru
        _
      // Predicated region
      $region21: #{resnet_block_se_forward.10} parent=15 // pred_check
        %p189 = pneg %p72
      $region22: #{resnet_block_se_forward.10} parent=15 // pred_check_branch
        %191 = sbr.rel (%p189) target = $region24
      $region23: #{resnet_block_se_forward.10} parent=15 // pred_region
        %p192 = scmp.lt.s32.totalorder %s17, 1
        %s193 = scalar_select %p192, %s17, 1
        %p194 = scmp.lt.s32.totalorder %s18, 7
        %s195 = scalar_select %p194, %s18, 7
        %s196 = smul.addr %s195, 8
        %s197 = smul.addr %s193, 64
        %s198 = sadd.s32 %s196, %s197
        %s199 = smul.addr %s198, 4
        %s200 = scalar_lea.vmem %s1, %s199
      $region24: #{resnet_block_se_forward.10} parent=15 // pred_fallthru
        _
      // Predicated region
      $region25: #{resnet_block_se_forward.10} parent=15 // pred_check
        %p201 = pneg %p98
      $region26: #{resnet_block_se_forward.10} parent=15 // pred_check_branch
        %203 = sbr.rel (%p201) target = $region28
      $region27: #{resnet_block_se_forward.10} parent=15 // pred_region
        %p204 = scmp.lt.s32.totalorder %s17, 1
        %s205 = scalar_select %p204, %s17, 1
        %s206 = scalar_lea.vmem %s2, %s205
      $region28: #{resnet_block_se_forward.10} parent=15 // pred_fallthru
        _
      // Predicated region
      $region29: #{resnet_block_se_forward.10} parent=15 // pred_check
        %p207 = pneg %p124
      $region30: #{resnet_block_se_forward.10} parent=15 // pred_check_branch
        %209 = sbr.rel (%p207) target = $region32
      $region31: #{resnet_block_se_forward.10} parent=15 // pred_region
        %p210 = scmp.lt.s32.totalorder %s17, 1
        %s211 = scalar_select %p210, %s17, 1
        %s212 = scalar_lea.vmem %s3, %s211
      $region32: #{resnet_block_se_forward.10} parent=15 // pred_fallthru
        _
    $region16: #{resnet_block_se_forward.10} parent=5 // pred_fallthru
      _
    %p213 = scmp.le.s32.totalorder 1, %s10
    %p214 = scmp.lt.s32.totalorder %s10, 17
    %p215 = pnand %p213, %p214
    %p216 = pneg %p215
    // Predicated region
    $region33: #{resnet_block_se_forward.10} parent=5 // pred_check
      _
    $region34: #{resnet_block_se_forward.10} parent=5 // pred_check_branch
      %218 = sbr.rel (%p215) target = $region36
    $region35: #{resnet_block_se_forward.10} parent=5 // pred_region
      %s219 = ssub.s32 %s10, 1
      %p220 = scmp.lt.s32.totalorder %s19, 1
      %s221 = scalar_select %p220, %s19, 1
      %p222 = scmp.lt.s32.totalorder %s20, 7
      %s223 = scalar_select %p222, %s20, 7
      %s224 = smul.addr %s223, 8
      %s225 = smul.addr %s221, 64
      %s226 = sadd.s32 %s224, %s225
      %s227 = smul.addr %s226, 4
      %s228 = scalar_lea.vmem %s0, %s227
      %p229 = pneg %p50
      %p230 = pneg %p47
      %p231 = scmp.lt.s32.totalorder %s19, 1
      %s232 = scalar_select %p231, %s19, 1
      %p233 = scmp.lt.s32.totalorder %s20, 7
      %s234 = scalar_select %p233, %s20, 7
      %s235 = smul.addr %s234, 8
      %s236 = smul.addr %s232, 64
      %s237 = sadd.s32 %s235, %s236
      %s238 = smul.addr %s237, 4
      %s239 = scalar_lea.vmem %s1, %s238
      %p240 = pneg %p78
      %p241 = pneg %p75
      %p242 = scmp.lt.s32.totalorder %s19, 1
      %s243 = scalar_select %p242, %s19, 1
      %s244 = scalar_lea.vmem %s2, %s243
      %p245 = pneg %p104
      %p246 = pneg %p101
      %p247 = scmp.lt.s32.totalorder %s19, 1
      %s248 = scalar_select %p247, %s19, 1
      %s249 = scalar_lea.vmem %s3, %s248
      %p250 = pneg %p130
      %p251 = pneg %p127
      %p252 = pneg %p158
      %p253 = pneg %p155
      %p254 = scmp.lt.s32.totalorder %s19, 1
      %s255 = scalar_select %p254, %s19, 1
      %p256 = scmp.lt.s32.totalorder %s20, 7
      %s257 = scalar_select %p256, %s20, 7
      %s258 = smul.addr %s255, 8
      %s259 = sadd.s32 %s257, %s258
      %s260 = scalar_lea.vmem %s4, %s259
      %p261 = scmp.lt.s32.totalorder %s19, 1
      %s262 = scalar_select %p261, %s19, 1
      %p263 = scmp.lt.s32.totalorder %s20, 7
      %s264 = scalar_select %p263, %s20, 7
      %s265 = smul.addr %s264, 8
      %s266 = smul.addr %s262, 64
      %s267 = sadd.s32 %s265, %s266
      %s268 = smul.addr %s267, 4
      %s269 = scalar_lea.vmem %s0, %s268
      %p270 = scmp.lt.s32.totalorder %s19, 1
      %s271 = scalar_select %p270, %s19, 1
      %p272 = scmp.lt.s32.totalorder %s20, 7
      %s273 = scalar_select %p272, %s20, 7
      %s274 = smul.addr %s273, 8
      %s275 = smul.addr %s271, 64
      %s276 = sadd.s32 %s274, %s275
      %s277 = smul.addr %s276, 4
      %s278 = scalar_lea.vmem %s1, %s277
      %p279 = scmp.lt.s32.totalorder %s19, 1
      %s280 = scalar_select %p279, %s19, 1
      %s281 = scalar_lea.vmem %s2, %s280
      %p282 = scmp.lt.s32.totalorder %s19, 1
      %s283 = scalar_select %p282, %s19, 1
      %s284 = scalar_lea.vmem %s3, %s283
      %p285 = scmp.lt.s32.totalorder %s19, 1
      %s286 = scalar_select %p285, %s19, 1
      %p287 = scmp.lt.s32.totalorder %s20, 7
      %s288 = scalar_select %p287, %s20, 7
      %s289 = smul.addr %s286, 8
      %s290 = sadd.s32 %s288, %s289
      %s291 = scalar_lea.vmem %s4, %s290
      %v292 = vld [vmem:[%s269] sm:$0xf]
      %v293 = vld [vmem:[%s269 + $0x4] sm:$0xf]
      %v294 = vld [vmem:[%s269 + $0x8] sm:$0xf]
      %v295 = vld [vmem:[%s269 + $0xc] sm:$0xf]
      %v296 = vld [vmem:[%s269 + $0x10] sm:$0xf]
      %v297 = vld [vmem:[%s269 + $0x14] sm:$0xf]
      %v298 = vld [vmem:[%s269 + $0x18] sm:$0xf]
      %v299 = vld [vmem:[%s269 + $0x1c] sm:$0xf]
      %v300 = vunpack.c.l.bf16 %v292
      %v301 = vunpack.c.l.bf16 %v293
      %v302 = vunpack.c.l.bf16 %v294
      %v303 = vunpack.c.l.bf16 %v295
      %v304 = vunpack.c.l.bf16 %v296
      %v305 = vunpack.c.l.bf16 %v297
      %v306 = vunpack.c.l.bf16 %v298
      %v307 = vunpack.c.l.bf16 %v299
      %v308 = vld [vmem:[%s281] sm:$0x1]
      %v310 = vlaneseq
      %v311 = vshrl.u32 %v310, 7
      %v312 = vsub.s32 0, %v311
      %v313 = vrot.slane %v308, %v312
      %v315 = vmul.f32 %v300, %v313
      %v316 = vmul.f32 %v301, %v313
      %v317 = vmul.f32 %v302, %v313
      %v318 = vmul.f32 %v303, %v313
      %v319 = vmul.f32 %v304, %v313
      %v320 = vmul.f32 %v305, %v313
      %v321 = vmul.f32 %v306, %v313
      %v322 = vmul.f32 %v307, %v313
      %v323 = vld [vmem:[%s284] sm:$0x1]
      %v325 = vlaneseq
      %v326 = vshrl.u32 %v325, 7
      %v327 = vsub.s32 0, %v326
      %v328 = vrot.slane %v323, %v327
      %v330 = vadd.f32 %v315, %v328
      %v331 = vadd.f32 %v316, %v328
      %v332 = vadd.f32 %v317, %v328
      %v333 = vadd.f32 %v318, %v328
      %v334 = vadd.f32 %v319, %v328
      %v335 = vadd.f32 %v320, %v328
      %v336 = vadd.f32 %v321, %v328
      %v337 = vadd.f32 %v322, %v328
      %v338 = vld [vmem:[%s278] sm:$0xf]
      %v339 = vld [vmem:[%s278 + $0x4] sm:$0xf]
      %v340 = vld [vmem:[%s278 + $0x8] sm:$0xf]
      %v341 = vld [vmem:[%s278 + $0xc] sm:$0xf]
      %v342 = vld [vmem:[%s278 + $0x10] sm:$0xf]
      %v343 = vld [vmem:[%s278 + $0x14] sm:$0xf]
      %v344 = vld [vmem:[%s278 + $0x18] sm:$0xf]
      %v345 = vld [vmem:[%s278 + $0x1c] sm:$0xf]
      %v346 = vunpack.c.l.bf16 %v338
      %v347 = vunpack.c.l.bf16 %v339
      %v348 = vunpack.c.l.bf16 %v340
      %v349 = vunpack.c.l.bf16 %v341
      %v350 = vunpack.c.l.bf16 %v342
      %v351 = vunpack.c.l.bf16 %v343
      %v352 = vunpack.c.l.bf16 %v344
      %v353 = vunpack.c.l.bf16 %v345
      %v354 = vadd.f32 %v330, %v346
      %v355 = vadd.f32 %v331, %v347
      %v356 = vadd.f32 %v332, %v348
      %v357 = vadd.f32 %v333, %v349
      %v358 = vadd.f32 %v334, %v350
      %v359 = vadd.f32 %v335, %v351
      %v360 = vadd.f32 %v336, %v352
      %v361 = vadd.f32 %v337, %v353
      %vm362 = vcmp.gt.f32.partialorder %v354, 0.0
      %vm363 = vcmp.gt.f32.partialorder %v355, 0.0
      %vm364 = vcmp.gt.f32.partialorder %v356, 0.0
      %vm365 = vcmp.gt.f32.partialorder %v357, 0.0
      %vm366 = vcmp.gt.f32.partialorder %v358, 0.0
      %vm367 = vcmp.gt.f32.partialorder %v359, 0.0
      %vm368 = vcmp.gt.f32.partialorder %v360, 0.0
      %vm369 = vcmp.gt.f32.partialorder %v361, 0.0
      %v370 = vmin.f32 %v354, 0.0
      %v371 = vmin.f32 %v355, 0.0
      %v372 = vmin.f32 %v356, 0.0
      %v373 = vmin.f32 %v357, 0.0
      %v374 = vmin.f32 %v358, 0.0
      %v375 = vmin.f32 %v359, 0.0
      %v376 = vmin.f32 %v360, 0.0
      %v377 = vmin.f32 %v361, 0.0
      %v378 = vmul.f32 %v370, 1.442695
      %v379 = vpow.pop %v378
      %v380 = vmul.f32 %v371, 1.442695
      %v381 = vpow.pop %v380
      %v382 = vmul.f32 %v372, 1.442695
      %v383 = vpow.pop %v382
      %v384 = vmul.f32 %v373, 1.442695
      %v385 = vpow.pop %v384
      %v386 = vmul.f32 %v374, 1.442695
      %v387 = vpow.pop %v386
      %v388 = vmul.f32 %v375, 1.442695
      %v389 = vpow.pop %v388
      %v390 = vmul.f32 %v376, 1.442695
      %v391 = vpow.pop %v390
      %v392 = vmul.f32 %v377, 1.442695
      %v393 = vpow.pop %v392
      %v394 = vsub.f32 %v379, 1.0
      %v395 = vsub.f32 %v381, 1.0
      %v396 = vsub.f32 %v383, 1.0
      %v397 = vsub.f32 %v385, 1.0
      %v398 = vsub.f32 %v387, 1.0
      %v399 = vsub.f32 %v389, 1.0
      %v400 = vsub.f32 %v391, 1.0
      %v401 = vsub.f32 %v393, 1.0
      %v402 = vsel %vm362, %v354, %v394
      %v403 = vsel %vm363, %v355, %v395
      %v404 = vsel %vm364, %v356, %v396
      %v405 = vsel %vm365, %v357, %v397
      %v406 = vsel %vm366, %v358, %v398
      %v407 = vsel %vm367, %v359, %v399
      %v408 = vsel %vm368, %v360, %v400
      %v409 = vsel %vm369, %v361, %v401
      %v410 = vadd.f32 %v402, %v403
      %v411 = vadd.f32 %v410, %v404
      %v412 = vadd.f32 %v411, %v405
      %v413 = vadd.f32 %v412, %v406
      %v414 = vadd.f32 %v413, %v407
      %v415 = vadd.f32 %v414, %v408
      %v416 = vadd.f32 %v415, %v409
      %v417 = vrot.slane %v416, 4
      %v418 = vadd.f32 %v416, %v417
      %v419 = vrot.slane %v418, 2
      %v420 = vadd.f32 %v418, %v419
      %v421 = vrot.slane %v420, 1
      %v422 = vadd.f32 %v420, %v421
      %423 = vst [vmem:[%s291] sm:$0x1] %v422
      %p424 = scmp.lt.s32.totalorder %s19, 1
      %s425 = scalar_select %p424, %s19, 1
      %p426 = scmp.lt.s32.totalorder %s20, 7
      %s427 = scalar_select %p426, %s20, 7
      %s428 = smul.addr %s425, 8
      %s429 = sadd.s32 %s427, %s428
      %s430 = scalar_lea.vmem %s4, %s429
      // Predicated region
      $region37: #{resnet_block_se_forward.10} parent=35 // pred_check
        %p431 = pneg %p155
      $region38: #{resnet_block_se_forward.10} parent=35 // pred_check_branch
        %433 = sbr.rel (%p431) target = $region40
      $region39: #{resnet_block_se_forward.10} parent=35 // pred_region
        _
      $region40: #{resnet_block_se_forward.10} parent=35 // pred_fallthru
        _
    $region36: #{resnet_block_se_forward.10} parent=5 // pred_fallthru
      _
    %p434 = scmp.le.s32.totalorder 2, %s10
    // Predicated region
    $region41: #{resnet_block_se_forward.10} parent=5 // pred_check
      %p435 = pneg %p434
    $region42: #{resnet_block_se_forward.10} parent=5 // pred_check_branch
      %437 = sbr.rel (%p435) target = $region44
    $region43: #{resnet_block_se_forward.10} parent=5 // pred_region
      %s438 = ssub.s32 %s10, 2
      // Predicated region
      $region45: #{resnet_block_se_forward.10} parent=43 // pred_check
        %p439 = pneg %p161
      $region46: #{resnet_block_se_forward.10} parent=43 // pred_check_branch
        %441 = sbr.rel (%p439) target = $region48
      $region47: #{resnet_block_se_forward.10} parent=43 // pred_region
        %p442 = scmp.lt.s32.totalorder %s21, 1
        %s443 = scalar_select %p442, %s21, 1
        %p444 = scmp.lt.s32.totalorder %s22, 7
        %s445 = scalar_select %p444, %s22, 7
        %s446 = smul.addr %s443, 8
        %s447 = sadd.s32 %s445, %s446
        %s448 = scalar_lea.vmem %s4, %s447
      $region48: #{resnet_block_se_forward.10} parent=43 // pred_fallthru
        _
    $region44: #{resnet_block_se_forward.10} parent=5 // pred_fallthru
      _
  $region6: #{resnet_block_se_forward.10} parent=0 // loop_footer
    %s14 = sadd.s32 1, %s10
  $region7: #{resnet_block_se_forward.10} parent=0 // loop_footer_branch
    %9 = sbr.rel target = $region3
  $region8: #{resnet_block_se_forward.10} parent=0 // loop_exit
    _

// kernel: resnet_block_se_forward.11
$region0: #{resnet_block_se_forward.11}
  #allocation0 [shape = 'u32[]', space=smem, size = 0x4, offset = 0x4, fixed_abs, tag = 'smem constant byte address 0x4 - core index']
  #allocation1 [shape = 'u32[144,128]{1,0:T(1,128)}', space=vmem, size = 0x12000, scoped, tag = 'internal scratch']
  #allocation2 [shape = 'f32[1,1]{1,0:T(1,128)S(1)}', space=vmem, size = 0x200, scoped, tag = 'scoped memory for resnet_block_se_forward.11']
  %s0 = inlined_call_operand.vmem [shape: bf16[2,8,64,128], index: 0, kind: input, shape index: {}]
  %s1 = inlined_call_operand.vmem [shape: bf16[2,8,64,128], index: 1, kind: input, shape index: {}]
  %s2 = inlined_call_operand.vmem [shape: f32[2,1,128], index: 2, kind: input, shape index: {}]
  %s3 = inlined_call_operand.vmem [shape: f32[2,1,128], index: 3, kind: input, shape index: {}]
  %s4 = inlined_call_operand.vmem [shape: f32[2,1,128], index: 4, kind: input, shape index: {}]
  %s5 = inlined_call_operand.vmem [shape: f32[128,128], index: 5, kind: input, shape index: {}]
  %s6 = inlined_call_operand.vmem [shape: f32[1,128], index: 6, kind: input, shape index: {}]
  %s7 = inlined_call_operand.vmem [shape: f32[128,128], index: 7, kind: input, shape index: {}]
  %s8 = inlined_call_operand.vmem [shape: f32[1,128], index: 8, kind: input, shape index: {}]
  %s9 = inlined_call_operand.vmem [shape: f32[1,128], index: 9, kind: input, shape index: {}]
  %s10 = inlined_call_operand.<no memory space> [shape: f32[1,1], index: 10, kind: input, shape index: {}]
  %s11 = inlined_call_operand.vmem [shape: f32[2,8,64,128], index: 11, kind: output, shape index: {}]
  %s12 = sld [smem:[#allocation0]]
  $region77: #{resnet_block_se_forward.11} parent=0
    _
  %s14 = ssub.s32 1, %s12
  %s15 = scalar_select 0, %s14, %s12
  %v16 = vstv %s10
  %17 = vst [vmem:[#allocation2] sm:$0x1] %v16
  loop: start=0, step=1, limit=18
  $region2: #{resnet_block_se_forward.11} parent=0 // loop_pre_header
    _
  $region3: #{resnet_block_se_forward.11} parent=0 // loop_header
    %s19 = sphi 0, %s23
    %p20 = scmp.ge.s32.totalorder %s19, 18
    %s26 = sphi 0, %s38
    %s27 = sphi 0, %s34
    %s28 = sphi 0, %s26
    %s29 = sphi 0, %s27
    %s30 = sphi 0, %s28
    %s31 = sphi 0, %s29
    %s43 = sphi 0, %s45
    %s46 = sphi 0, %s43
    %s47 = sphi 0, %s46
    %s63 = sphi 0, %s47
    %s71 = sphi 0, %s73
    %s74 = sphi 0, %s71
    %s75 = sphi 0, %s74
    %s91 = sphi 0, %s75
    %s97 = sphi 0, %s99
    %s100 = sphi 0, %s97
    %s101 = sphi 0, %s100
    %s117 = sphi 0, %s101
    %s123 = sphi 0, %s125
    %s126 = sphi 0, %s123
    %s127 = sphi 0, %s126
    %s143 = sphi 0, %s127
    %s149 = sphi 0, %s151
    %s152 = sphi 0, %s149
    %s153 = sphi 0, %s152
    %s169 = sphi 0, %s153
    %s173 = sphi 0, %s173
    %s175 = sphi 0, %s173
    %s176 = sphi 0, %s175
    %s190 = sphi 0, %s176
    %s194 = sphi 0, %s194
    %s196 = sphi 0, %s194
    %s197 = sphi 0, %s196
    %s211 = sphi 0, %s197
    %s215 = sphi 0, %s215
    %s217 = sphi 0, %s215
    %s218 = sphi 0, %s217
    %s232 = sphi 0, %s218
    %s236 = sphi 0, %s236
    %s238 = sphi 0, %s236
    %s239 = sphi 0, %s238
    %s253 = sphi 0, %s239
    %s257 = sphi 0, %s257
    %s259 = sphi 0, %s257
    %s260 = sphi 0, %s259
    %s274 = sphi 0, %s260
    %s278 = sphi 0, %s278
    %s280 = sphi 0, %s278
    %s281 = sphi 0, %s280
    %s295 = sphi 0, %s281
    %s303 = sphi 0, %s305
    %s306 = sphi 0, %s303
    %s307 = sphi 0, %s306
    %s323 = sphi 0, %s307
  $region4: #{resnet_block_se_forward.11} parent=0 // loop_header_branch
    %22 = sbr.rel (%p20) target = $region8
  $region5: #{resnet_block_se_forward.11} parent=0 // loop_body
    %s24 = ssub.s32 %s19, 1
    %s25 = ssub.s32 %s19, 2
    %s32 = sadd.s32 1, %s27
    %p33 = scmp.ge.s32.totalorder %s32, 8
    %s34 = scalar_select %p33, 0, %s32
    %s35 = sadd.s32 1, %s26
    %s36 = scalar_select %p33, %s35, %s26
    %p37 = scmp.ge.s32.totalorder %s36, 2
    %s38 = scalar_select %p37, 0, %s36
    %s39 = ssub.s32 %s26, %s38
    %s40 = ssub.s32 %s27, %s34
    %s41 = sor.u32 %s39, %s40
    %p42 = scmp.eq.s32.totalorder %s41, 0
    %s44 = sadd.s32 %s43, 1
    %s45 = scalar_select %p42, %s43, %s44
    %p48 = pneg %p42
    %p49 = scmp.eq.s32.totalorder %s19, 15
    %p50 = por %p48, %p49
    %p51 = scmp.ne.s32.totalorder %s43, %s46
    %p52 = scmp.eq.s32.totalorder %s19, 0
    %p53 = por %p51, %p52
    %p54 = scmp.ne.s32.totalorder %s43, %s46
    %p55 = scmp.eq.s32.totalorder %s24, 15
    %p56 = por %p54, %p55
    %p57 = scmp.ne.s32.totalorder %s46, %s47
    %p58 = scmp.eq.s32.totalorder %s24, 0
    %p59 = por %p57, %p58
    %p60 = scmp.ne.s32.totalorder %s46, %s47
    %p61 = scmp.eq.s32.totalorder %s25, 15
    %p62 = por %p60, %p61
    %p64 = scmp.ne.s32.totalorder %s47, %s63
    %p65 = scmp.eq.s32.totalorder %s25, 0
    %p66 = por %p64, %p65
    %s67 = ssub.s32 %s26, %s38
    %s68 = ssub.s32 %s27, %s34
    %s69 = sor.u32 %s67, %s68
    %p70 = scmp.eq.s32.totalorder %s69, 0
    %s72 = sadd.s32 %s71, 1
    %s73 = scalar_select %p70, %s71, %s72
    %p76 = pneg %p70
    %p77 = scmp.eq.s32.totalorder %s19, 15
    %p78 = por %p76, %p77
    %p79 = scmp.ne.s32.totalorder %s71, %s74
    %p80 = scmp.eq.s32.totalorder %s19, 0
    %p81 = por %p79, %p80
    %p82 = scmp.ne.s32.totalorder %s71, %s74
    %p83 = scmp.eq.s32.totalorder %s24, 15
    %p84 = por %p82, %p83
    %p85 = scmp.ne.s32.totalorder %s74, %s75
    %p86 = scmp.eq.s32.totalorder %s24, 0
    %p87 = por %p85, %p86
    %p88 = scmp.ne.s32.totalorder %s74, %s75
    %p89 = scmp.eq.s32.totalorder %s25, 15
    %p90 = por %p88, %p89
    %p92 = scmp.ne.s32.totalorder %s75, %s91
    %p93 = scmp.eq.s32.totalorder %s25, 0
    %p94 = por %p92, %p93
    %s95 = ssub.s32 %s26, %s38
    %p96 = scmp.eq.s32.totalorder %s95, 0
    %s98 = sadd.s32 %s97, 1
    %s99 = scalar_select %p96, %s97, %s98
    %p102 = pneg %p96
    %p103 = scmp.eq.s32.totalorder %s19, 15
    %p104 = por %p102, %p103
    %p105 = scmp.ne.s32.totalorder %s97, %s100
    %p106 = scmp.eq.s32.totalorder %s19, 0
    %p107 = por %p105, %p106
    %p108 = scmp.ne.s32.totalorder %s97, %s100
    %p109 = scmp.eq.s32.totalorder %s24, 15
    %p110 = por %p108, %p109
    %p111 = scmp.ne.s32.totalorder %s100, %s101
    %p112 = scmp.eq.s32.totalorder %s24, 0
    %p113 = por %p111, %p112
    %p114 = scmp.ne.s32.totalorder %s100, %s101
    %p115 = scmp.eq.s32.totalorder %s25, 15
    %p116 = por %p114, %p115
    %p118 = scmp.ne.s32.totalorder %s101, %s117
    %p119 = scmp.eq.s32.totalorder %s25, 0
    %p120 = por %p118, %p119
    %s121 = ssub.s32 %s26, %s38
    %p122 = scmp.eq.s32.totalorder %s121, 0
    %s124 = sadd.s32 %s123, 1
    %s125 = scalar_select %p122, %s123, %s124
    %p128 = pneg %p122
    %p129 = scmp.eq.s32.totalorder %s19, 15
    %p130 = por %p128, %p129
    %p131 = scmp.ne.s32.totalorder %s123, %s126
    %p132 = scmp.eq.s32.totalorder %s19, 0
    %p133 = por %p131, %p132
    %p134 = scmp.ne.s32.totalorder %s123, %s126
    %p135 = scmp.eq.s32.totalorder %s24, 15
    %p136 = por %p134, %p135
    %p137 = scmp.ne.s32.totalorder %s126, %s127
    %p138 = scmp.eq.s32.totalorder %s24, 0
    %p139 = por %p137, %p138
    %p140 = scmp.ne.s32.totalorder %s126, %s127
    %p141 = scmp.eq.s32.totalorder %s25, 15
    %p142 = por %p140, %p141
    %p144 = scmp.ne.s32.totalorder %s127, %s143
    %p145 = scmp.eq.s32.totalorder %s25, 0
    %p146 = por %p144, %p145
    %s147 = ssub.s32 %s26, %s38
    %p148 = scmp.eq.s32.totalorder %s147, 0
    %s150 = sadd.s32 %s149, 1
    %s151 = scalar_select %p148, %s149, %s150
    %p154 = pneg %p148
    %p155 = scmp.eq.s32.totalorder %s19, 15
    %p156 = por %p154, %p155
    %p157 = scmp.ne.s32.totalorder %s149, %s152
    %p158 = scmp.eq.s32.totalorder %s19, 0
    %p159 = por %p157, %p158
    %p160 = scmp.ne.s32.totalorder %s149, %s152
    %p161 = scmp.eq.s32.totalorder %s24, 15
    %p162 = por %p160, %p161
    %p163 = scmp.ne.s32.totalorder %s152, %s153
    %p164 = scmp.eq.s32.totalorder %s24, 0
    %p165 = por %p163, %p164
    %p166 = scmp.ne.s32.totalorder %s152, %s153
    %p167 = scmp.eq.s32.totalorder %s25, 15
    %p168 = por %p166, %p167
    %p170 = scmp.ne.s32.totalorder %s153, %s169
    %p171 = scmp.eq.s32.totalorder %s25, 0
    %p172 = por %p170, %p171
    %s174 = sadd.s32 %s173, 1
    %p177 = scmp.eq.s32.totalorder %s19, 15
    %p178 = scmp.ne.s32.totalorder %s173, %s175
    %p179 = scmp.eq.s32.totalorder %s19, 0
    %p180 = por %p178, %p179
    %p181 = scmp.ne.s32.totalorder %s173, %s175
    %p182 = scmp.eq.s32.totalorder %s24, 15
    %p183 = por %p181, %p182
    %p184 = scmp.ne.s32.totalorder %s175, %s176
    %p185 = scmp.eq.s32.totalorder %s24, 0
    %p186 = por %p184, %p185
    %p187 = scmp.ne.s32.totalorder %s175, %s176
    %p188 = scmp.eq.s32.totalorder %s25, 15
    %p189 = por %p187, %p188
    %p191 = scmp.ne.s32.totalorder %s176, %s190
    %p192 = scmp.eq.s32.totalorder %s25, 0
    %p193 = por %p191, %p192
    %s195 = sadd.s32 %s194, 1
    %p198 = scmp.eq.s32.totalorder %s19, 15
    %p199 = scmp.ne.s32.totalorder %s194, %s196
    %p200 = scmp.eq.s32.totalorder %s19, 0
    %p201 = por %p199, %p200
    %p202 = scmp.ne.s32.totalorder %s194, %s196
    %p203 = scmp.eq.s32.totalorder %s24, 15
    %p204 = por %p202, %p203
    %p205 = scmp.ne.s32.totalorder %s196, %s197
    %p206 = scmp.eq.s32.totalorder %s24, 0
    %p207 = por %p205, %p206
    %p208 = scmp.ne.s32.totalorder %s196, %s197
    %p209 = scmp.eq.s32.totalorder %s25, 15
    %p210 = por %p208, %p209
    %p212 = scmp.ne.s32.totalorder %s197, %s211
    %p213 = scmp.eq.s32.totalorder %s25, 0
    %p214 = por %p212, %p213
    %s216 = sadd.s32 %s215, 1
    %p219 = scmp.eq.s32.totalorder %s19, 15
    %p220 = scmp.ne.s32.totalorder %s215, %s217
    %p221 = scmp.eq.s32.totalorder %s19, 0
    %p222 = por %p220, %p221
    %p223 = scmp.ne.s32.totalorder %s215, %s217
    %p224 = scmp.eq.s32.totalorder %s24, 15
    %p225 = por %p223, %p224
    %p226 = scmp.ne.s32.totalorder %s217, %s218
    %p227 = scmp.eq.s32.totalorder %s24, 0
    %p228 = por %p226, %p227
    %p229 = scmp.ne.s32.totalorder %s217, %s218
    %p230 = scmp.eq.s32.totalorder %s25, 15
    %p231 = por %p229, %p230
    %p233 = scmp.ne.s32.totalorder %s218, %s232
    %p234 = scmp.eq.s32.totalorder %s25, 0
    %p235 = por %p233, %p234
    %s237 = sadd.s32 %s236, 1
    %p240 = scmp.eq.s32.totalorder %s19, 15
    %p241 = scmp.ne.s32.totalorder %s236, %s238
    %p242 = scmp.eq.s32.totalorder %s19, 0
    %p243 = por %p241, %p242
    %p244 = scmp.ne.s32.totalorder %s236, %s238
    %p245 = scmp.eq.s32.totalorder %s24, 15
    %p246 = por %p244, %p245
    %p247 = scmp.ne.s32.totalorder %s238, %s239
    %p248 = scmp.eq.s32.totalorder %s24, 0
    %p249 = por %p247, %p248
    %p250 = scmp.ne.s32.totalorder %s238, %s239
    %p251 = scmp.eq.s32.totalorder %s25, 15
    %p252 = por %p250, %p251
    %p254 = scmp.ne.s32.totalorder %s239, %s253
    %p255 = scmp.eq.s32.totalorder %s25, 0
    %p256 = por %p254, %p255
    %s258 = sadd.s32 %s257, 1
    %p261 = scmp.eq.s32.totalorder %s19, 15
    %p262 = scmp.ne.s32.totalorder %s257, %s259
    %p263 = scmp.eq.s32.totalorder %s19, 0
    %p264 = por %p262, %p263
    %p265 = scmp.ne.s32.totalorder %s257, %s259
    %p266 = scmp.eq.s32.totalorder %s24, 15
    %p267 = por %p265, %p266
    %p268 = scmp.ne.s32.totalorder %s259, %s260
    %p269 = scmp.eq.s32.totalorder %s24, 0
    %p270 = por %p268, %p269
    %p271 = scmp.ne.s32.totalorder %s259, %s260
    %p272 = scmp.eq.s32.totalorder %s25, 15
    %p273 = por %p271, %p272
    %p275 = scmp.ne.s32.totalorder %s260, %s274
    %p276 = scmp.eq.s32.totalorder %s25, 0
    %p277 = por %p275, %p276
    %s279 = sadd.s32 %s278, 1
    %p282 = scmp.eq.s32.totalorder %s19, 15
    %p283 = scmp.ne.s32.totalorder %s278, %s280
    %p284 = scmp.eq.s32.totalorder %s19, 0
    %p285 = por %p283, %p284
    %p286 = scmp.ne.s32.totalorder %s278, %s280
    %p287 = scmp.eq.s32.totalorder %s24, 15
    %p288 = por %p286, %p287
    %p289 = scmp.ne.s32.totalorder %s280, %s281
    %p290 = scmp.eq.s32.totalorder %s24, 0
    %p291 = por %p289, %p290
    %p292 = scmp.ne.s32.totalorder %s280, %s281
    %p293 = scmp.eq.s32.totalorder %s25, 15
    %p294 = por %p292, %p293
    %p296 = scmp.ne.s32.totalorder %s281, %s295
    %p297 = scmp.eq.s32.totalorder %s25, 0
    %p298 = por %p296, %p297
    %s299 = ssub.s32 %s26, %s38
    %s300 = ssub.s32 %s27, %s34
    %s301 = sor.u32 %s299, %s300
    %p302 = scmp.eq.s32.totalorder %s301, 0
    %s304 = sadd.s32 %s303, 1
    %s305 = scalar_select %p302, %s303, %s304
    %p308 = pneg %p302
    %p309 = scmp.eq.s32.totalorder %s19, 15
    %p310 = por %p308, %p309
    %p311 = scmp.ne.s32.totalorder %s303, %s306
    %p312 = scmp.eq.s32.totalorder %s19, 0
    %p313 = por %p311, %p312
    %p314 = scmp.ne.s32.totalorder %s303, %s306
    %p315 = scmp.eq.s32.totalorder %s24, 15
    %p316 = por %p314, %p315
    %p317 = scmp.ne.s32.totalorder %s306, %s307
    %p318 = scmp.eq.s32.totalorder %s24, 0
    %p319 = por %p317, %p318
    %p320 = scmp.ne.s32.totalorder %s306, %s307
    %p321 = scmp.eq.s32.totalorder %s25, 15
    %p322 = por %p320, %p321
    %p324 = scmp.ne.s32.totalorder %s307, %s323
    %p325 = scmp.eq.s32.totalorder %s25, 0
    %p326 = por %p324, %p325
    %p327 = scmp.le.s32.totalorder 1, %s19
    %p328 = scmp.lt.s32.totalorder %s19, 17
    %p329 = pnand %p327, %p328
    %p330 = pneg %p329
    // Predicated region
    $region9: #{resnet_block_se_forward.11} parent=5 // pred_check
      _
    $region10: #{resnet_block_se_forward.11} parent=5 // pred_check_branch
      %332 = sbr.rel (%p329) target = $region12
    $region11: #{resnet_block_se_forward.11} parent=5 // pred_region
      %s333 = ssub.s32 %s19, 1
      // Predicated region
      $region13: #{resnet_block_se_forward.11} parent=11 // pred_check
        %p334 = pneg %p186
      $region14: #{resnet_block_se_forward.11} parent=11 // pred_check_branch
        %336 = sbr.rel (%p334) target = $region16
      $region15: #{resnet_block_se_forward.11} parent=11 // pred_region
        _
      $region16: #{resnet_block_se_forward.11} parent=11 // pred_fallthru
        _
      // Predicated region
      $region17: #{resnet_block_se_forward.11} parent=11 // pred_check
        %p337 = pneg %p207
      $region18: #{resnet_block_se_forward.11} parent=11 // pred_check_branch
        %339 = sbr.rel (%p337) target = $region20
      $region19: #{resnet_block_se_forward.11} parent=11 // pred_region
        _
      $region20: #{resnet_block_se_forward.11} parent=11 // pred_fallthru
        _
      // Predicated region
      $region21: #{resnet_block_se_forward.11} parent=11 // pred_check
        %p340 = pneg %p228
      $region22: #{resnet_block_se_forward.11} parent=11 // pred_check_branch
        %342 = sbr.rel (%p340) target = $region24
      $region23: #{resnet_block_se_forward.11} parent=11 // pred_region
        _
      $region24: #{resnet_block_se_forward.11} parent=11 // pred_fallthru
        _
      // Predicated region
      $region25: #{resnet_block_se_forward.11} parent=11 // pred_check
        %p343 = pneg %p249
      $region26: #{resnet_block_se_forward.11} parent=11 // pred_check_branch
        %345 = sbr.rel (%p343) target = $region28
      $region27: #{resnet_block_se_forward.11} parent=11 // pred_region
        _
      $region28: #{resnet_block_se_forward.11} parent=11 // pred_fallthru
        _
      // Predicated region
      $region29: #{resnet_block_se_forward.11} parent=11 // pred_check
        %p346 = pneg %p270
      $region30: #{resnet_block_se_forward.11} parent=11 // pred_check_branch
        %348 = sbr.rel (%p346) target = $region32
      $region31: #{resnet_block_se_forward.11} parent=11 // pred_region
        _
      $region32: #{resnet_block_se_forward.11} parent=11 // pred_fallthru
        _
      // Predicated region
      $region33: #{resnet_block_se_forward.11} parent=11 // pred_check
        %p349 = pneg %p291
      $region34: #{resnet_block_se_forward.11} parent=11 // pred_check_branch
        %351 = sbr.rel (%p349) target = $region36
      $region35: #{resnet_block_se_forward.11} parent=11 // pred_region
        _
      $region36: #{resnet_block_se_forward.11} parent=11 // pred_fallthru
        _
    $region12: #{resnet_block_se_forward.11} parent=5 // pred_fallthru
      _
    %p352 = scmp.lt.s32.totalorder %s19, 16
    // Predicated region
    $region37: #{resnet_block_se_forward.11} parent=5 // pred_check
      %p353 = pneg %p352
    $region38: #{resnet_block_se_forward.11} parent=5 // pred_check_branch
      %355 = sbr.rel (%p353) target = $region40
    $region39: #{resnet_block_se_forward.11} parent=5 // pred_region
      // Predicated region
      $region41: #{resnet_block_se_forward.11} parent=39 // pred_check
        %p356 = pneg %p53
      $region42: #{resnet_block_se_forward.11} parent=39 // pred_check_branch
        %358 = sbr.rel (%p356) target = $region44
      $region43: #{resnet_block_se_forward.11} parent=39 // pred_region
        %p359 = scmp.lt.s32.totalorder %s26, 1
        %s360 = scalar_select %p359, %s26, 1
        %p361 = scmp.lt.s32.totalorder %s27, 7
        %s362 = scalar_select %p361, %s27, 7
        %s363 = smul.addr %s362, 8
        %s364 = smul.addr %s360, 64
        %s365 = sadd.s32 %s363, %s364
        %s366 = smul.addr %s365, 4
        %s367 = scalar_lea.vmem %s0, %s366
      $region44: #{resnet_block_se_forward.11} parent=39 // pred_fallthru
        _
      // Predicated region
      $region45: #{resnet_block_se_forward.11} parent=39 // pred_check
        %p368 = pneg %p81
      $region46: #{resnet_block_se_forward.11} parent=39 // pred_check_branch
        %370 = sbr.rel (%p368) target = $region48
      $region47: #{resnet_block_se_forward.11} parent=39 // pred_region
        %p371 = scmp.lt.s32.totalorder %s26, 1
        %s372 = scalar_select %p371, %s26, 1
        %p373 = scmp.lt.s32.totalorder %s27, 7
        %s374 = scalar_select %p373, %s27, 7
        %s375 = smul.addr %s374, 8
        %s376 = smul.addr %s372, 64
        %s377 = sadd.s32 %s375, %s376
        %s378 = smul.addr %s377, 4
        %s379 = scalar_lea.vmem %s1, %s378
      $region48: #{resnet_block_se_forward.11} parent=39 // pred_fallthru
        _
      // Predicated region
      $region49: #{resnet_block_se_forward.11} parent=39 // pred_check
        %p380 = pneg %p107
      $region50: #{resnet_block_se_forward.11} parent=39 // pred_check_branch
        %382 = sbr.rel (%p380) target = $region52
      $region51: #{resnet_block_se_forward.11} parent=39 // pred_region
        %p383 = scmp.lt.s32.totalorder %s26, 1
        %s384 = scalar_select %p383, %s26, 1
        %s385 = scalar_lea.vmem %s2, %s384
      $region52: #{resnet_block_se_forward.11} parent=39 // pred_fallthru
        _
      // Predicated region
      $region53: #{resnet_block_se_forward.11} parent=39 // pred_check
        %p386 = pneg %p133
      $region54: #{resnet_block_se_forward.11} parent=39 // pred_check_branch
        %388 = sbr.rel (%p386) target = $region56
      $region55: #{resnet_block_se_forward.11} parent=39 // pred_region
        %p389 = scmp.lt.s32.totalorder %s26, 1
        %s390 = scalar_select %p389, %s26, 1
        %s391 = scalar_lea.vmem %s3, %s390
      $region56: #{resnet_block_se_forward.11} parent=39 // pred_fallthru
        _
      // Predicated region
      $region57: #{resnet_block_se_forward.11} parent=39 // pred_check
        %p392 = pneg %p159
      $region58: #{resnet_block_se_forward.11} parent=39 // pred_check_branch
        %394 = sbr.rel (%p392) target = $region60
      $region59: #{resnet_block_se_forward.11} parent=39 // pred_region
        %p395 = scmp.lt.s32.totalorder %s26, 1
        %s396 = scalar_select %p395, %s26, 1
        %s397 = scalar_lea.vmem %s4, %s396
      $region60: #{resnet_block_se_forward.11} parent=39 // pred_fallthru
        _
    $region40: #{resnet_block_se_forward.11} parent=5 // pred_fallthru
      _
    %p398 = scmp.le.s32.totalorder 1, %s19
    %p399 = scmp.lt.s32.totalorder %s19, 17
    %p400 = pnand %p398, %p399
    %p401 = pneg %p400
    // Predicated region
    $region61: #{resnet_block_se_forward.11} parent=5 // pred_check
      _
    $region62: #{resnet_block_se_forward.11} parent=5 // pred_check_branch
      %403 = sbr.rel (%p400) target = $region64
    $region63: #{resnet_block_se_forward.11} parent=5 // pred_region
      %s404 = ssub.s32 %s19, 1
      %p405 = scmp.lt.s32.totalorder %s28, 1
      %s406 = scalar_select %p405, %s28, 1
      %p407 = scmp.lt.s32.totalorder %s29, 7
      %s408 = scalar_select %p407, %s29, 7
      %s409 = smul.addr %s408, 8
      %s410 = smul.addr %s406, 64
      %s411 = sadd.s32 %s409, %s410
      %s412 = smul.addr %s411, 4
      %s413 = scalar_lea.vmem %s0, %s412
      %p414 = pneg %p59
      %p415 = pneg %p56
      %p416 = scmp.lt.s32.totalorder %s28, 1
      %s417 = scalar_select %p416, %s28, 1
      %p418 = scmp.lt.s32.totalorder %s29, 7
      %s419 = scalar_select %p418, %s29, 7
      %s420 = smul.addr %s419, 8
      %s421 = smul.addr %s417, 64
      %s422 = sadd.s32 %s420, %s421
      %s423 = smul.addr %s422, 4
      %s424 = scalar_lea.vmem %s1, %s423
      %p425 = pneg %p87
      %p426 = pneg %p84
      %p427 = scmp.lt.s32.totalorder %s28, 1
      %s428 = scalar_select %p427, %s28, 1
      %s429 = scalar_lea.vmem %s2, %s428
      %p430 = pneg %p113
      %p431 = pneg %p110
      %p432 = scmp.lt.s32.totalorder %s28, 1
      %s433 = scalar_select %p432, %s28, 1
      %s434 = scalar_lea.vmem %s3, %s433
      %p435 = pneg %p139
      %p436 = pneg %p136
      %p437 = scmp.lt.s32.totalorder %s28, 1
      %s438 = scalar_select %p437, %s28, 1
      %s439 = scalar_lea.vmem %s4, %s438
      %p440 = pneg %p165
      %p441 = pneg %p162
      %p442 = pneg %p186
      %p443 = pneg %p183
      %p444 = pneg %p207
      %p445 = pneg %p204
      %p446 = pneg %p228
      %p447 = pneg %p225
      %p448 = pneg %p249
      %p449 = pneg %p246
      %p450 = pneg %p270
      %p451 = pneg %p267
      %p452 = pneg %p291
      %p453 = pneg %p288
      %p454 = pneg %p319
      %p455 = pneg %p316
      %p456 = scmp.lt.s32.totalorder %s28, 1
      %s457 = scalar_select %p456, %s28, 1
      %p458 = scmp.lt.s32.totalorder %s29, 7
      %s459 = scalar_select %p458, %s29, 7
      %s460 = smul.addr %s459, 8
      %s461 = smul.addr %s457, 64
      %s462 = sadd.s32 %s460, %s461
      %s463 = smul.addr %s462, 8
      %s464 = scalar_lea.vmem %s11, %s463
      %p465 = scmp.lt.s32.totalorder %s28, 1
      %s466 = scalar_select %p465, %s28, 1
      %p467 = scmp.lt.s32.totalorder %s29, 7
      %s468 = scalar_select %p467, %s29, 7
      %s469 = smul.addr %s468, 8
      %s470 = smul.addr %s466, 64
      %s471 = sadd.s32 %s469, %s470
      %s472 = smul.addr %s471, 4
      %s473 = scalar_lea.vmem %s0, %s472
      %p474 = scmp.lt.s32.totalorder %s28, 1
      %s475 = scalar_select %p474, %s28, 1
      %p476 = scmp.lt.s32.totalorder %s29, 7
      %s477 = scalar_select %p476, %s29, 7
      %s478 = smul.addr %s477, 8
      %s479 = smul.addr %s475, 64
      %s480 = sadd.s32 %s478, %s479
      %s481 = smul.addr %s480, 4
      %s482 = scalar_lea.vmem %s1, %s481
      %p483 = scmp.lt.s32.totalorder %s28, 1
      %s484 = scalar_select %p483, %s28, 1
      %s485 = scalar_lea.vmem %s2, %s484
      %p486 = scmp.lt.s32.totalorder %s28, 1
      %s487 = scalar_select %p486, %s28, 1
      %s488 = scalar_lea.vmem %s3, %s487
      %p489 = scmp.lt.s32.totalorder %s28, 1
      %s490 = scalar_select %p489, %s28, 1
      %s491 = scalar_lea.vmem %s4, %s490
      %p492 = scmp.lt.s32.totalorder %s28, 1
      %s493 = scalar_select %p492, %s28, 1
      %p494 = scmp.lt.s32.totalorder %s29, 7
      %s495 = scalar_select %p494, %s29, 7
      %s496 = smul.addr %s495, 8
      %s497 = smul.addr %s493, 64
      %s498 = sadd.s32 %s496, %s497
      %s499 = smul.addr %s498, 8
      %s500 = scalar_lea.vmem %s11, %s499
      %v501 = vld [vmem:[%s473] sm:$0xf]
      %v502 = vld [vmem:[%s473 + $0x4] sm:$0xf]
      %v503 = vld [vmem:[%s473 + $0x8] sm:$0xf]
      %v504 = vld [vmem:[%s473 + $0xc] sm:$0xf]
      %v505 = vld [vmem:[%s473 + $0x10] sm:$0xf]
      %v506 = vld [vmem:[%s473 + $0x14] sm:$0xf]
      %v507 = vld [vmem:[%s473 + $0x18] sm:$0xf]
      %v508 = vld [vmem:[%s473 + $0x1c] sm:$0xf]
      %v509 = vunpack.c.l.bf16 %v501
      %v510 = vunpack.c.l.bf16 %v502
      %v511 = vunpack.c.l.bf16 %v503
      %v512 = vunpack.c.l.bf16 %v504
      %v513 = vunpack.c.l.bf16 %v505
      %v514 = vunpack.c.l.bf16 %v506
      %v515 = vunpack.c.l.bf16 %v507
      %v516 = vunpack.c.l.bf16 %v508
      %v517 = vld [vmem:[%s485] sm:$0x1]
      %v519 = vlaneseq
      %v520 = vshrl.u32 %v519, 7
      %v521 = vsub.s32 0, %v520
      %v522 = vrot.slane %v517, %v521
      %v524 = vmul.f32 %v509, %v522
      %v525 = vmul.f32 %v510, %v522
      %v526 = vmul.f32 %v511, %v522
      %v527 = vmul.f32 %v512, %v522
      %v528 = vmul.f32 %v513, %v522
      %v529 = vmul.f32 %v514, %v522
      %v530 = vmul.f32 %v515, %v522
      %v531 = vmul.f32 %v516, %v522
      %v532 = vld [vmem:[%s488] sm:$0x1]
      %v534 = vlaneseq
      %v535 = vshrl.u32 %v534, 7
      %v536 = vsub.s32 0, %v535
      %v537 = vrot.slane %v532, %v536
      %v539 = vadd.f32 %v524, %v537
      %v540 = vadd.f32 %v525, %v537
      %v541 = vadd.f32 %v526, %v537
      %v542 = vadd.f32 %v527, %v537
      %v543 = vadd.f32 %v528, %v537
      %v544 = vadd.f32 %v529, %v537
      %v545 = vadd.f32 %v530, %v537
      %v546 = vadd.f32 %v531, %v537
      %v547 = vld [vmem:[%s482] sm:$0xf]
      %v548 = vld [vmem:[%s482 + $0x4] sm:$0xf]
      %v549 = vld [vmem:[%s482 + $0x8] sm:$0xf]
      %v550 = vld [vmem:[%s482 + $0xc] sm:$0xf]
      %v551 = vld [vmem:[%s482 + $0x10] sm:$0xf]
      %v552 = vld [vmem:[%s482 + $0x14] sm:$0xf]
      %v553 = vld [vmem:[%s482 + $0x18] sm:$0xf]
      %v554 = vld [vmem:[%s482 + $0x1c] sm:$0xf]
      %v555 = vunpack.c.l.bf16 %v547
      %v556 = vunpack.c.l.bf16 %v548
      %v557 = vunpack.c.l.bf16 %v549
      %v558 = vunpack.c.l.bf16 %v550
      %v559 = vunpack.c.l.bf16 %v551
      %v560 = vunpack.c.l.bf16 %v552
      %v561 = vunpack.c.l.bf16 %v553
      %v562 = vunpack.c.l.bf16 %v554
      %v563 = vadd.f32 %v539, %v555
      %v564 = vadd.f32 %v540, %v556
      %v565 = vadd.f32 %v541, %v557
      %v566 = vadd.f32 %v542, %v558
      %v567 = vadd.f32 %v543, %v559
      %v568 = vadd.f32 %v544, %v560
      %v569 = vadd.f32 %v545, %v561
      %v570 = vadd.f32 %v546, %v562
      %vm571 = vcmp.gt.f32.partialorder %v563, 0.0
      %vm572 = vcmp.gt.f32.partialorder %v564, 0.0
      %vm573 = vcmp.gt.f32.partialorder %v565, 0.0
      %vm574 = vcmp.gt.f32.partialorder %v566, 0.0
      %vm575 = vcmp.gt.f32.partialorder %v567, 0.0
      %vm576 = vcmp.gt.f32.partialorder %v568, 0.0
      %vm577 = vcmp.gt.f32.partialorder %v569, 0.0
      %vm578 = vcmp.gt.f32.partialorder %v570, 0.0
      %v579 = vmin.f32 %v563, 0.0
      %v580 = vmin.f32 %v564, 0.0
      %v581 = vmin.f32 %v565, 0.0
      %v582 = vmin.f32 %v566, 0.0
      %v583 = vmin.f32 %v567, 0.0
      %v584 = vmin.f32 %v568, 0.0
      %v585 = vmin.f32 %v569, 0.0
      %v586 = vmin.f32 %v570, 0.0
      %v587 = vmul.f32 %v579, 1.442695
      %v588 = vpow.pop %v587
      %v589 = vmul.f32 %v580, 1.442695
      %v590 = vpow.pop %v589
      %v591 = vmul.f32 %v581, 1.442695
      %v592 = vpow.pop %v591
      %v593 = vmul.f32 %v582, 1.442695
      %v594 = vpow.pop %v593
      %v595 = vmul.f32 %v583, 1.442695
      %v596 = vpow.pop %v595
      %v597 = vmul.f32 %v584, 1.442695
      %v598 = vpow.pop %v597
      %v599 = vmul.f32 %v585, 1.442695
      %v600 = vpow.pop %v599
      %v601 = vmul.f32 %v586, 1.442695
      %v602 = vpow.pop %v601
      %v603 = vsub.f32 %v588, 1.0
      %v604 = vsub.f32 %v590, 1.0
      %v605 = vsub.f32 %v592, 1.0
      %v606 = vsub.f32 %v594, 1.0
      %v607 = vsub.f32 %v596, 1.0
      %v608 = vsub.f32 %v598, 1.0
      %v609 = vsub.f32 %v600, 1.0
      %v610 = vsub.f32 %v602, 1.0
      %v611 = vsel %vm571, %v563, %v603
      %v612 = vsel %vm572, %v564, %v604
      %v613 = vsel %vm573, %v565, %v605
      %v614 = vsel %vm574, %v566, %v606
      %v615 = vsel %vm575, %v567, %v607
      %v616 = vsel %vm576, %v568, %v608
      %v617 = vsel %vm577, %v569, %v609
      %v618 = vsel %vm578, %v570, %v610
      %v619 = vld [vmem:[%s491] sm:$0x1]
      %v620 = vld [vmem:[%s5] sm:$0xff]
      %v621 = vld [vmem:[%s5 + $0x8] sm:$0xff]
      %v622 = vld [vmem:[%s5 + $0x10] sm:$0xff]
      %v623 = vld [vmem:[%s5 + $0x18] sm:$0xff]
      %v624 = vld [vmem:[%s5 + $0x20] sm:$0xff]
      %v625 = vld [vmem:[%s5 + $0x28] sm:$0xff]
      %v626 = vld [vmem:[%s5 + $0x30] sm:$0xff]
      %v627 = vld [vmem:[%s5 + $0x38] sm:$0xff]
      %v628 = vld [vmem:[%s5 + $0x40] sm:$0xff]
      %v629 = vld [vmem:[%s5 + $0x48] sm:$0xff]
      %v630 = vld [vmem:[%s5 + $0x50] sm:$0xff]
      %v631 = vld [vmem:[%s5 + $0x58] sm:$0xff]
      %v632 = vld [vmem:[%s5 + $0x60] sm:$0xff]
      %v633 = vld [vmem:[%s5 + $0x68] sm:$0xff]
      %v634 = vld [vmem:[%s5 + $0x70] sm:$0xff]
      %v635 = vld [vmem:[%s5 + $0x78] sm:$0xff]
      %v636 = vld [vmem:[%s6] sm:$0x1]
      %637 = vmatprep.subr.mxu0 0.0
      %638 = vmatpush1.msra.mxu0 %v620
      %639 = vmatprep.subr.mxu0 0.0
      %640 = vmatpush1.msra.mxu0 %v621
      %641 = vmatprep.subr.mxu0 0.0
      %642 = vmatpush1.msra.mxu0 %v622
      %643 = vmatprep.subr.mxu0 0.0
      %644 = vmatpush1.msra.mxu0 %v623
      %645 = vmatprep.subr.mxu0 0.0
      %646 = vmatpush1.msra.mxu0 %v624
      %647 = vmatprep.subr.mxu0 0.0
      %648 = vmatpush1.msra.mxu0 %v625
      %649 = vmatprep.subr.mxu0 0.0
      %650 = vmatpush1.msra.mxu0 %v626
      %651 = vmatprep.subr.mxu0 0.0
      %652 = vmatpush1.msra.mxu0 %v627
      %653 = vmatprep.subr.mxu0 0.0
      %654 = vmatpush1.msra.mxu0 %v628
      %655 = vmatprep.subr.mxu0 0.0
      %656 = vmatpush1.msra.mxu0 %v629
      %657 = vmatprep.subr.mxu0 0.0
      %658 = vmatpush1.msra.mxu0 %v630
      %659 = vmatprep.subr.mxu0 0.0
      %660 = vmatpush1.msra.mxu0 %v631
      %661 = vmatprep.subr.mxu0 0.0
      %662 = vmatpush1.msra.mxu0 %v632
      %663 = vmatprep.subr.mxu0 0.0
      %664 = vmatpush1.msra.mxu0 %v633
      %665 = vmatprep.subr.mxu0 0.0
      %666 = vmatpush1.msra.mxu0 %v634
      %667 = vmatprep.subr.mxu0 0.0
      %668 = vmatpush1.msra.mxu0 %v635
      %669 = vmatprep.subr.mxu0 0.0
      %670 = vmatpush1.msra.mxu0 0.0
      %671 = vmatprep.subr.mxu0 0.0
      %672 = vmatpush1.msra.mxu0 0.0
      %673 = vmatprep.subr.mxu0 0.0
      %674 = vmatpush1.msra.mxu0 0.0
      %675 = vmatprep.subr.mxu0 0.0
      %676 = vmatpush1.msra.mxu0 0.0
      %677 = vmatprep.subr.mxu0 0.0
      %678 = vmatpush1.msra.mxu0 0.0
      %679 = vmatprep.subr.mxu0 0.0
      %680 = vmatpush1.msra.mxu0 0.0
      %681 = vmatprep.subr.mxu0 0.0
      %682 = vmatpush1.msra.mxu0 0.0
      %683 = vmatprep.subr.mxu0 0.0
      %684 = vmatpush1.msra.mxu0 0.0
      %685 = vmatprep.subr.mxu0 0.0
      %686 = vmatpush1.msra.mxu0 0.0
      %687 = vmatprep.subr.mxu0 0.0
      %688 = vmatpush1.msra.mxu0 0.0
      %689 = vmatprep.subr.mxu0 0.0
      %690 = vmatpush1.msra.mxu0 0.0
      %691 = vmatprep.subr.mxu0 0.0
      %692 = vmatpush1.msra.mxu0 0.0
      %693 = vmatprep.subr.mxu0 0.0
      %694 = vmatpush1.msra.mxu0 0.0
      %695 = vmatprep.subr.mxu0 0.0
      %696 = vmatpush1.msra.mxu0 0.0
      %697 = vmatprep.subr.mxu0 0.0
      %698 = vmatpush1.msra.mxu0 0.0
      %699 = vmatprep.subr.mxu0 0.0
      %700 = vmatpush1.msra.mxu0 0.0
      %701 = vmatprep.mubr.f32.mxu0 0.0
      %702 = vmatmul.mubr.f32.gmra.mrb[0].mxu0 %v619
      %v703 = vpop.f32.mrb[0].mxu0
      %v704 = vadd.f32 %v636, %v703
      %v705 = vpop.f32.mrb[0].mxu0
      %706 = vdwg.mxu0
      %v707 = vmax.f32 %v704, 0.0
      %v708 = vld [vmem:[%s7] sm:$0xff]
      %v709 = vld [vmem:[%s7 + $0x8] sm:$0xff]
      %v710 = vld [vmem:[%s7 + $0x10] sm:$0xff]
      %v711 = vld [vmem:[%s7 + $0x18] sm:$0xff]
      %v712 = vld [vmem:[%s7 + $0x20] sm:$0xff]
      %v713 = vld [vmem:[%s7 + $0x28] sm:$0xff]
      %v714 = vld [vmem:[%s7 + $0x30] sm:$0xff]
      %v715 = vld [vmem:[%s7 + $0x38] sm:$0xff]
      %v716 = vld [vmem:[%s7 + $0x40] sm:$0xff]
      %v717 = vld [vmem:[%s7 + $0x48] sm:$0xff]
      %v718 = vld [vmem:[%s7 + $0x50] sm:$0xff]
      %v719 = vld [vmem:[%s7 + $0x58] sm:$0xff]
      %v720 = vld [vmem:[%s7 + $0x60] sm:$0xff]
      %v721 = vld [vmem:[%s7 + $0x68] sm:$0xff]
      %v722 = vld [vmem:[%s7 + $0x70] sm:$0xff]
      %v723 = vld [vmem:[%s7 + $0x78] sm:$0xff]
      %v724 = vld [vmem:[%s8] sm:$0x1]
      %725 = vmatprep.subr.mxu0 0.0
      %726 = vmatpush1.msra.mxu0 %v708
      %727 = vmatprep.subr.mxu0 0.0
      %728 = vmatpush1.msra.mxu0 %v709
      %729 = vmatprep.subr.mxu0 0.0
      %730 = vmatpush1.msra.mxu0 %v710
      %731 = vmatprep.subr.mxu0 0.0
      %732 = vmatpush1.msra.mxu0 %v711
      %733 = vmatprep.subr.mxu0 0.0
      %734 = vmatpush1.msra.mxu0 %v712
      %735 = vmatprep.subr.mxu0 0.0
      %736 = vmatpush1.msra.mxu0 %v713
      %737 = vmatprep.subr.mxu0 0.0
      %738 = vmatpush1.msra.mxu0 %v714
      %739 = vmatprep.subr.mxu0 0.0
      %740 = vmatpush1.msra.mxu0 %v715
      %741 = vmatprep.subr.mxu0 0.0
      %742 = vmatpush1.msra.mxu0 %v716
      %743 = vmatprep.subr.mxu0 0.0
      %744 = vmatpush1.msra.mxu0 %v717
      %745 = vmatprep.subr.mxu0 0.0
      %746 = vmatpush1.msra.mxu0 %v718
      %747 = vmatprep.subr.mxu0 0.0
      %748 = vmatpush1.msra.mxu0 %v719
      %749 = vmatprep.subr.mxu0 0.0
      %750 = vmatpush1.msra.mxu0 %v720
      %751 = vmatprep.subr.mxu0 0.0
      %752 = vmatpush1.msra.mxu0 %v721
      %753 = vmatprep.subr.mxu0 0.0
      %754 = vmatpush1.msra.mxu0 %v722
      %755 = vmatprep.subr.mxu0 0.0
      %756 = vmatpush1.msra.mxu0 %v723
      %757 = vmatprep.subr.mxu0 0.0
      %758 = vmatpush1.msra.mxu0 0.0
      %759 = vmatprep.subr.mxu0 0.0
      %760 = vmatpush1.msra.mxu0 0.0
      %761 = vmatprep.subr.mxu0 0.0
      %762 = vmatpush1.msra.mxu0 0.0
      %763 = vmatprep.subr.mxu0 0.0
      %764 = vmatpush1.msra.mxu0 0.0
      %765 = vmatprep.subr.mxu0 0.0
      %766 = vmatpush1.msra.mxu0 0.0
      %767 = vmatprep.subr.mxu0 0.0
      %768 = vmatpush1.msra.mxu0 0.0
      %769 = vmatprep.subr.mxu0 0.0
      %770 = vmatpush1.msra.mxu0 0.0
      %771 = vmatprep.subr.mxu0 0.0
      %772 = vmatpush1.msra.mxu0 0.0
      %773 = vmatprep.subr.mxu0 0.0
      %774 = vmatpush1.msra.mxu0 0.0
      %775 = vmatprep.subr.mxu0 0.0
      %776 = vmatpush1.msra.mxu0 0.0
      %777 = vmatprep.subr.mxu0 0.0
      %778 = vmatpush1.msra.mxu0 0.0
      %779 = vmatprep.subr.mxu0 0.0
      %780 = vmatpush1.msra.mxu0 0.0
      %781 = vmatprep.subr.mxu0 0.0
      %782 = vmatpush1.msra.mxu0 0.0
      %783 = vmatprep.subr.mxu0 0.0
      %784 = vmatpush1.msra.mxu0 0.0
      %785 = vmatprep.subr.mxu0 0.0
      %786 = vmatpush1.msra.mxu0 0.0
      %787 = vmatprep.subr.mxu0 0.0
      %788 = vmatpush1.msra.mxu0 0.0
      %789 = vmatprep.mubr.f32.mxu0 0.0
      %790 = vmatmul.mubr.f32.gmra.mrb[0].mxu0 %v707
      %v791 = vpop.f32.mrb[0].mxu0
      %v792 = vadd.f32 %v724, %v791
      %v793 = vpop.f32.mrb[0].mxu0
      %794 = vdwg.mxu0
      %v795 = vsub.f32 0.0, %v792
      %v796 = vmul.f32 %v795, 1.442695
      %v797 = vpow.pop %v796
      %v798 = vadd.f32 %v797, 1.0
      %v799 = vrcp.pop %v798
      %v800 = vmul.f32 1.0, %v799
      %v801 = vld [vmem:[%s9] sm:$0x1]
      %v803 = vlaneseq
      %v804 = vshrl.u32 %v803, 7
      %v805 = vsub.s32 0, %v804
      %v806 = vrot.slane %v801, %v805
      %v808 = vmul.f32 %v611, %v806
      %v809 = vmul.f32 %v612, %v806
      %v810 = vmul.f32 %v613, %v806
      %v811 = vmul.f32 %v614, %v806
      %v812 = vmul.f32 %v615, %v806
      %v813 = vmul.f32 %v616, %v806
      %v814 = vmul.f32 %v617, %v806
      %v815 = vmul.f32 %v618, %v806
      %816 = vadd.xlane.f32.xlu0 %v808
      %v817 = vpop.xlane.xlu0 %816
      %818 = vadd.xlane.f32.xlu0 %v809
      %v819 = vpop.xlane.xlu0 %818
      %820 = vadd.xlane.f32.xlu0 %v810
      %v821 = vpop.xlane.xlu0 %820
      %822 = vadd.xlane.f32.xlu0 %v811
      %v823 = vpop.xlane.xlu0 %822
      %824 = vadd.xlane.f32.xlu0 %v812
      %v825 = vpop.xlane.xlu0 %824
      %826 = vadd.xlane.f32.xlu0 %v813
      %v827 = vpop.xlane.xlu0 %826
      %828 = vadd.xlane.f32.xlu0 %v814
      %v829 = vpop.xlane.xlu0 %828
      %830 = vadd.xlane.f32.xlu0 %v815
      %v831 = vpop.xlane.xlu0 %830
      %v832 = vld [vmem:[#allocation2] sm:$0x1]
      %v834 = vlaneseq
      %v835 = vshrl.u32 %v834, 7
      %v836 = vsub.s32 0, %v835
      %v837 = vrot.slane %v832, %v836
      %v839 = vadd.f32 %v817, %v837
      %v840 = vadd.f32 %v819, %v837
      %v841 = vadd.f32 %v821, %v837
      %v842 = vadd.f32 %v823, %v837
      %v843 = vadd.f32 %v825, %v837
      %v844 = vadd.f32 %v827, %v837
      %v845 = vadd.f32 %v829, %v837
      %v846 = vadd.f32 %v831, %v837
      %v847 = vsub.f32 0.0, %v839
      %v848 = vsub.f32 0.0, %v840
      %v849 = vsub.f32 0.0, %v841
      %v850 = vsub.f32 0.0, %v842
      %v851 = vsub.f32 0.0, %v843
      %v852 = vsub.f32 0.0, %v844
      %v853 = vsub.f32 0.0, %v845
      %v854 = vsub.f32 0.0, %v846
      %v855 = vmul.f32 %v847, 1.442695
      %v856 = vpow.pop %v855
      %v857 = vmul.f32 %v848, 1.442695
      %v858 = vpow.pop %v857
      %v859 = vmul.f32 %v849, 1.442695
      %v860 = vpow.pop %v859
      %v861 = vmul.f32 %v850, 1.442695
      %v862 = vpow.pop %v861
      %v863 = vmul.f32 %v851, 1.442695
      %v864 = vpow.pop %v863
      %v865 = vmul.f32 %v852, 1.442695
      %v866 = vpow.pop %v865
      %v867 = vmul.f32 %v853, 1.442695
      %v868 = vpow.pop %v867
      %v869 = vmul.f32 %v854, 1.442695
      %v870 = vpow.pop %v869
      %v871 = vadd.f32 %v856, 1.0
      %v872 = vadd.f32 %v858, 1.0
      %v873 = vadd.f32 %v860, 1.0
      %v874 = vadd.f32 %v862, 1.0
      %v875 = vadd.f32 %v864, 1.0
      %v876 = vadd.f32 %v866, 1.0
      %v877 = vadd.f32 %v868, 1.0
      %v878 = vadd.f32 %v870, 1.0
      %v879 = vrcp.pop %v871
      %v880 = vmul.f32 1.0, %v879
      %v881 = vrcp.pop %v872
      %v882 = vmul.f32 1.0, %v881
      %v883 = vrcp.pop %v873
      %v884 = vmul.f32 1.0, %v883
      %v885 = vrcp.pop %v874
      %v886 = vmul.f32 1.0, %v885
      %v887 = vrcp.pop %v875
      %v888 = vmul.f32 1.0, %v887
      %v889 = vrcp.pop %v876
      %v890 = vmul.f32 1.0, %v889
      %v891 = vrcp.pop %v877
      %v892 = vmul.f32 1.0, %v891
      %v893 = vrcp.pop %v878
      %v894 = vmul.f32 1.0, %v893
      %v895 = vlaneseq
      %v896 = vshrl.u32 %v895, 7
      %v897 = vsub.s32 0, %v896
      %v898 = vrot.slane %v800, %v897
      %v899 = vmul.f32 %v611, %v898
      %v900 = vmul.f32 %v612, %v898
      %v901 = vmul.f32 %v613, %v898
      %v902 = vmul.f32 %v614, %v898
      %v903 = vmul.f32 %v615, %v898
      %v904 = vmul.f32 %v616, %v898
      %v905 = vmul.f32 %v617, %v898
      %v906 = vmul.f32 %v618, %v898
      %908 = vset.pattern.permute.xlu0 0
      %909 = vperm.xlu0 %908, %v880
      %v910 = vpop.permute.xlu0 %909
      %913 = vset.pattern.permute.xlu0 0
      %914 = vperm.xlu0 %913, %v882
      %v915 = vpop.permute.xlu0 %914
      %918 = vset.pattern.permute.xlu0 0
      %919 = vperm.xlu0 %918, %v884
      %v920 = vpop.permute.xlu0 %919
      %923 = vset.pattern.permute.xlu0 0
      %924 = vperm.xlu0 %923, %v886
      %v925 = vpop.permute.xlu0 %924
      %928 = vset.pattern.permute.xlu0 0
      %929 = vperm.xlu0 %928, %v888
      %v930 = vpop.permute.xlu0 %929
      %933 = vset.pattern.permute.xlu0 0
      %934 = vperm.xlu0 %933, %v890
      %v935 = vpop.permute.xlu0 %934
      %938 = vset.pattern.permute.xlu0 0
      %939 = vperm.xlu0 %938, %v892
      %v940 = vpop.permute.xlu0 %939
      %943 = vset.pattern.permute.xlu0 0
      %944 = vperm.xlu0 %943, %v894
      %v945 = vpop.permute.xlu0 %944
      %v947 = vmul.f32 %v611, %v910
      %v948 = vmul.f32 %v612, %v915
      %v949 = vmul.f32 %v613, %v920
      %v950 = vmul.f32 %v614, %v925
      %v951 = vmul.f32 %v615, %v930
      %v952 = vmul.f32 %v616, %v935
      %v953 = vmul.f32 %v617, %v940
      %v954 = vmul.f32 %v618, %v945
      %v955 = vmax.f32 %v899, %v947
      %v956 = vmax.f32 %v900, %v948
      %v957 = vmax.f32 %v901, %v949
      %v958 = vmax.f32 %v902, %v950
      %v959 = vmax.f32 %v903, %v951
      %v960 = vmax.f32 %v904, %v952
      %v961 = vmax.f32 %v905, %v953
      %v962 = vmax.f32 %v906, %v954
      %963 = vst [vmem:[%s500] sm:$0xff] %v955
      %964 = vst [vmem:[%s500 + $0x8] sm:$0xff] %v956
      %965 = vst [vmem:[%s500 + $0x10] sm:$0xff] %v957
      %966 = vst [vmem:[%s500 + $0x18] sm:$0xff] %v958
      %967 = vst [vmem:[%s500 + $0x20] sm:$0xff] %v959
      %968 = vst [vmem:[%s500 + $0x28] sm:$0xff] %v960
      %969 = vst [vmem:[%s500 + $0x30] sm:$0xff] %v961
      %970 = vst [vmem:[%s500 + $0x38] sm:$0xff] %v962
      %p971 = scmp.lt.s32.totalorder %s28, 1
      %s972 = scalar_select %p971, %s28, 1
      %p973 = scmp.lt.s32.totalorder %s29, 7
      %s974 = scalar_select %p973, %s29, 7
      %s975 = smul.addr %s974, 8
      %s976 = smul.addr %s972, 64
      %s977 = sadd.s32 %s975, %s976
      %s978 = smul.addr %s977, 8
      %s979 = scalar_lea.vmem %s11, %s978
      // Predicated region
      $region65: #{resnet_block_se_forward.11} parent=63 // pred_check
        %p980 = pneg %p316
      $region66: #{resnet_block_se_forward.11} parent=63 // pred_check_branch
        %982 = sbr.rel (%p980) target = $region68
      $region67: #{resnet_block_se_forward.11} parent=63 // pred_region
        _
      $region68: #{resnet_block_se_forward.11} parent=63 // pred_fallthru
        _
    $region64: #{resnet_block_se_forward.11} parent=5 // pred_fallthru
      _
    %p983 = scmp.le.s32.totalorder 2, %s19
    // Predicated region
    $region69: #{resnet_block_se_forward.11} parent=5 // pred_check
      %p984 = pneg %p983
    $region70: #{resnet_block_se_forward.11} parent=5 // pred_check_branch
      %986 = sbr.rel (%p984) target = $region72
    $region71: #{resnet_block_se_forward.11} parent=5 // pred_region
      %s987 = ssub.s32 %s19, 2
      // Predicated region
      $region73: #{resnet_block_se_forward.11} parent=71 // pred_check
        %p988 = pneg %p322
      $region74: #{resnet_block_se_forward.11} parent=71 // pred_check_branch
        %990 = sbr.rel (%p988) target = $region76
      $region75: #{resnet_block_se_forward.11} parent=71 // pred_region
        %p991 = scmp.lt.s32.totalorder %s30, 1
        %s992 = scalar_select %p991, %s30, 1
        %p993 = scmp.lt.s32.totalorder %s31, 7
        %s994 = scalar_select %p993, %s31, 7
        %s995 = smul.addr %s994, 8
        %s996 = smul.addr %s992, 64
        %s997 = sadd.s32 %s995, %s996
        %s998 = smul.addr %s997, 8
        %s999 = scalar_lea.vmem %s11, %s998
      $region76: #{resnet_block_se_forward.11} parent=71 // pred_fallthru
        _
    $region72: #{resnet_block_se_forward.11} parent=5 // pred_fallthru
      _
  $region6: #{resnet_block_se_forward.11} parent=0 // loop_footer
    %s23 = sadd.s32 1, %s19
  $region7: #{resnet_block_se_forward.11} parent=0 // loop_footer_branch
    %18 = sbr.rel target = $region3
  $region8: #{resnet_block_se_forward.11} parent=0 // loop_exit
    _

// kernel: resnet_block_se_forward.7
$region0: #{resnet_block_se_forward.7}
  #allocation0 [shape = 'u32[]', space=smem, size = 0x4, offset = 0x4, fixed_abs, tag = 'smem constant byte address 0x4 - core index']
  #allocation1 [shape = 'u32[144,128]{1,0:T(1,128)}', space=vmem, size = 0x12000, scoped, tag = 'internal scratch']
  %s0 = inlined_call_operand.vmem [shape: bf16[2,10,110,128], index: 0, kind: input, shape index: {}, may-alias: {0,1,2}]
  %s1 = inlined_call_operand.vmem [shape: bf16[2,10,110,128], index: 1, kind: input, shape index: {}, may-alias: {0,1,2}]
  %s2 = inlined_call_operand.vmem [shape: bf16[2,10,110,128], index: 2, kind: input, shape index: {}, may-alias: {0,1,2}]
  %s3 = inlined_call_operand.vmem [shape: bf16[27,128,128], index: 3, kind: input, shape index: {}]
  %s4 = inlined_call_operand.vmem [shape: bf16[2,8,64,128], index: 4, kind: output, shape index: {0}]
  %s5 = inlined_call_operand.vmem [shape: f32[2,8,2,128], index: 5, kind: output, shape index: {1}]
  %6 = xla_tuple %s4, %s5
  %s7 = sld [smem:[#allocation0]]
  $region57: #{resnet_block_se_forward.7} parent=0
    _
  %s9 = ssub.s32 1, %s7
  %s10 = scalar_select 0, %s9, %s7
  loop: start=0, step=1, limit=18
  $region2: #{resnet_block_se_forward.7} parent=0 // loop_pre_header
    _
  $region3: #{resnet_block_se_forward.7} parent=0 // loop_header
    %s12 = sphi 0, %s16
    %p13 = scmp.ge.s32.totalorder %s12, 18
    %s19 = sphi 0, %s31
    %s20 = sphi 0, %s27
    %s21 = sphi 0, %s19
    %s22 = sphi 0, %s20
    %s23 = sphi 0, %s21
    %s24 = sphi 0, %s22
    %s36 = sphi 0, %s38
    %s39 = sphi 0, %s36
    %s40 = sphi 0, %s39
    %s56 = sphi 0, %s40
    %s66 = sphi 0, %s68
    %s69 = sphi 0, %s66
    %s70 = sphi 0, %s69
    %s86 = sphi 0, %s70
    %s96 = sphi 0, %s98
    %s99 = sphi 0, %s96
    %s100 = sphi 0, %s99
    %s116 = sphi 0, %s100
    %s120 = sphi 0, %s120
    %s122 = sphi 0, %s120
    %s123 = sphi 0, %s122
    %s137 = sphi 0, %s123
    %s145 = sphi 0, %s147
    %s148 = sphi 0, %s145
    %s149 = sphi 0, %s148
    %s165 = sphi 0, %s149
    %s173 = sphi 0, %s175
    %s176 = sphi 0, %s173
    %s177 = sphi 0, %s176
    %s193 = sphi 0, %s177
  $region4: #{resnet_block_se_forward.7} parent=0 // loop_header_branch
    %15 = sbr.rel (%p13) target = $region8
  $region5: #{resnet_block_se_forward.7} parent=0 // loop_body
    %s17 = ssub.s32 %s12, 1
    %s18 = ssub.s32 %s12, 2
    %s25 = sadd.s32 1, %s20
    %p26 = scmp.ge.s32.totalorder %s25, 8
    %s27 = scalar_select %p26, 0, %s25
    %s28 = sadd.s32 1, %s19
    %s29 = scalar_select %p26, %s28, %s19
    %p30 = scmp.ge.s32.totalorder %s29, 2
    %s31 = scalar_select %p30, 0, %s29
    %s32 = ssub.s32 %s19, %s31
    %s33 = ssub.s32 %s20, %s27
    %s34 = sor.u32 %s32, %s33
    %p35 = scmp.eq.s32.totalorder %s34, 0
    %s37 = sadd.s32 %s36, 1
    %s38 = scalar_select %p35, %s36, %s37
    %p41 = pneg %p35
    %p42 = scmp.eq.s32.totalorder %s12, 15
    %p43 = por %p41, %p42
    %p44 = scmp.ne.s32.totalorder %s36, %s39
    %p45 = scmp.eq.s32.totalorder %s12, 0
    %p46 = por %p44, %p45
    %p47 = scmp.ne.s32.totalorder %s36, %s39
    %p48 = scmp.eq.s32.totalorder %s17, 15
    %p49 = por %p47, %p48
    %p50 = scmp.ne.s32.totalorder %s39, %s40
    %p51 = scmp.eq.s32.totalorder %s17, 0
    %p52 = por %p50, %p51
    %p53 = scmp.ne.s32.totalorder %s39, %s40
    %p54 = scmp.eq.s32.totalorder %s18, 15
    %p55 = por %p53, %p54
    %p57 = scmp.ne.s32.totalorder %s40, %s56
    %p58 = scmp.eq.s32.totalorder %s18, 0
    %p59 = por %p57, %p58
    %s60 = sadd.s32 %s20, 1
    %s61 = sadd.s32 %s27, 1
    %s62 = ssub.s32 %s19, %s31
    %s63 = ssub.s32 %s60, %s61
    %s64 = sor.u32 %s62, %s63
    %p65 = scmp.eq.s32.totalorder %s64, 0
    %s67 = sadd.s32 %s66, 1
    %s68 = scalar_select %p65, %s66, %s67
    %p71 = pneg %p65
    %p72 = scmp.eq.s32.totalorder %s12, 15
    %p73 = por %p71, %p72
    %p74 = scmp.ne.s32.totalorder %s66, %s69
    %p75 = scmp.eq.s32.totalorder %s12, 0
    %p76 = por %p74, %p75
    %p77 = scmp.ne.s32.totalorder %s66, %s69
    %p78 = scmp.eq.s32.totalorder %s17, 15
    %p79 = por %p77, %p78
    %p80 = scmp.ne.s32.totalorder %s69, %s70
    %p81 = scmp.eq.s32.totalorder %s17, 0
    %p82 = por %p80, %p81
    %p83 = scmp.ne.s32.totalorder %s69, %s70
    %p84 = scmp.eq.s32.totalorder %s18, 15
    %p85 = por %p83, %p84
    %p87 = scmp.ne.s32.totalorder %s70, %s86
    %p88 = scmp.eq.s32.totalorder %s18, 0
    %p89 = por %p87, %p88
    %s90 = sadd.s32 %s20, 2
    %s91 = sadd.s32 %s27, 2
    %s92 = ssub.s32 %s19, %s31
    %s93 = ssub.s32 %s90, %s91
    %s94 = sor.u32 %s92, %s93
    %p95 = scmp.eq.s32.totalorder %s94, 0
    %s97 = sadd.s32 %s96, 1
    %s98 = scalar_select %p95, %s96, %s97
    %p101 = pneg %p95
    %p102 = scmp.eq.s32.totalorder %s12, 15
    %p103 = por %p101, %p102
    %p104 = scmp.ne.s32.totalorder %s96, %s99
    %p105 = scmp.eq.s32.totalorder %s12, 0
    %p106 = por %p104, %p105
    %p107 = scmp.ne.s32.totalorder %s96, %s99
    %p108 = scmp.eq.s32.totalorder %s17, 15
    %p109 = por %p107, %p108
    %p110 = scmp.ne.s32.totalorder %s99, %s100
    %p111 = scmp.eq.s32.totalorder %s17, 0
    %p112 = por %p110, %p111
    %p113 = scmp.ne.s32.totalorder %s99, %s100
    %p114 = scmp.eq.s32.totalorder %s18, 15
    %p115 = por %p113, %p114
    %p117 = scmp.ne.s32.totalorder %s100, %s116
    %p118 = scmp.eq.s32.totalorder %s18, 0
    %p119 = por %p117, %p118
    %s121 = sadd.s32 %s120, 1
    %p124 = scmp.eq.s32.totalorder %s12, 15
    %p125 = scmp.ne.s32.totalorder %s120, %s122
    %p126 = scmp.eq.s32.totalorder %s12, 0
    %p127 = por %p125, %p126
    %p128 = scmp.ne.s32.totalorder %s120, %s122
    %p129 = scmp.eq.s32.totalorder %s17, 15
    %p130 = por %p128, %p129
    %p131 = scmp.ne.s32.totalorder %s122, %s123
    %p132 = scmp.eq.s32.totalorder %s17, 0
    %p133 = por %p131, %p132
    %p134 = scmp.ne.s32.totalorder %s122, %s123
    %p135 = scmp.eq.s32.totalorder %s18, 15
    %p136 = por %p134, %p135
    %p138 = scmp.ne.s32.totalorder %s123, %s137
    %p139 = scmp.eq.s32.totalorder %s18, 0
    %p140 = por %p138, %p139
    %s141 = ssub.s32 %s19, %s31
    %s142 = ssub.s32 %s20, %s27
    %s143 = sor.u32 %s141, %s142
    %p144 = scmp.eq.s32.totalorder %s143, 0
    %s146 = sadd.s32 %s145, 1
    %s147 = scalar_select %p144, %s145, %s146
    %p150 = pneg %p144
    %p151 = scmp.eq.s32.totalorder %s12, 15
    %p152 = por %p150, %p151
    %p153 = scmp.ne.s32.totalorder %s145, %s148
    %p154 = scmp.eq.s32.totalorder %s12, 0
    %p155 = por %p153, %p154
    %p156 = scmp.ne.s32.totalorder %s145, %s148
    %p157 = scmp.eq.s32.totalorder %s17, 15
    %p158 = por %p156, %p157
    %p159 = scmp.ne.s32.totalorder %s148, %s149
    %p160 = scmp.eq.s32.totalorder %s17, 0
    %p161 = por %p159, %p160
    %p162 = scmp.ne.s32.totalorder %s148, %s149
    %p163 = scmp.eq.s32.totalorder %s18, 15
    %p164 = por %p162, %p163
    %p166 = scmp.ne.s32.totalorder %s149, %s165
    %p167 = scmp.eq.s32.totalorder %s18, 0
    %p168 = por %p166, %p167
    %s169 = ssub.s32 %s19, %s31
    %s170 = ssub.s32 %s20, %s27
    %s171 = sor.u32 %s169, %s170
    %p172 = scmp.eq.s32.totalorder %s171, 0
    %s174 = sadd.s32 %s173, 1
    %s175 = scalar_select %p172, %s173, %s174
    %p178 = pneg %p172
    %p179 = scmp.eq.s32.totalorder %s12, 15
    %p180 = por %p178, %p179
    %p181 = scmp.ne.s32.totalorder %s173, %s176
    %p182 = scmp.eq.s32.totalorder %s12, 0
    %p183 = por %p181, %p182
    %p184 = scmp.ne.s32.totalorder %s173, %s176
    %p185 = scmp.eq.s32.totalorder %s17, 15
    %p186 = por %p184, %p185
    %p187 = scmp.ne.s32.totalorder %s176, %s177
    %p188 = scmp.eq.s32.totalorder %s17, 0
    %p189 = por %p187, %p188
    %p190 = scmp.ne.s32.totalorder %s176, %s177
    %p191 = scmp.eq.s32.totalorder %s18, 15
    %p192 = por %p190, %p191
    %p194 = scmp.ne.s32.totalorder %s177, %s193
    %p195 = scmp.eq.s32.totalorder %s18, 0
    %p196 = por %p194, %p195
    %p197 = scmp.le.s32.totalorder 1, %s12
    %p198 = scmp.lt.s32.totalorder %s12, 17
    %p199 = pnand %p197, %p198
    %p200 = pneg %p199
    // Predicated region
    $region9: #{resnet_block_se_forward.7} parent=5 // pred_check
      _
    $region10: #{resnet_block_se_forward.7} parent=5 // pred_check_branch
      %202 = sbr.rel (%p199) target = $region12
    $region11: #{resnet_block_se_forward.7} parent=5 // pred_region
      %s203 = ssub.s32 %s12, 1
      // Predicated region
      $region13: #{resnet_block_se_forward.7} parent=11 // pred_check
        %p204 = pneg %p133
      $region14: #{resnet_block_se_forward.7} parent=11 // pred_check_branch
        %206 = sbr.rel (%p204) target = $region16
      $region15: #{resnet_block_se_forward.7} parent=11 // pred_region
        _
      $region16: #{resnet_block_se_forward.7} parent=11 // pred_fallthru
        _
    $region12: #{resnet_block_se_forward.7} parent=5 // pred_fallthru
      _
    %p207 = scmp.lt.s32.totalorder %s12, 16
    // Predicated region
    $region17: #{resnet_block_se_forward.7} parent=5 // pred_check
      %p208 = pneg %p207
    $region18: #{resnet_block_se_forward.7} parent=5 // pred_check_branch
      %210 = sbr.rel (%p208) target = $region20
    $region19: #{resnet_block_se_forward.7} parent=5 // pred_region
      // Predicated region
      $region21: #{resnet_block_se_forward.7} parent=19 // pred_check
        %p211 = pneg %p46
      $region22: #{resnet_block_se_forward.7} parent=19 // pred_check_branch
        %213 = sbr.rel (%p211) target = $region24
      $region23: #{resnet_block_se_forward.7} parent=19 // pred_region
        %p214 = scmp.lt.s32.totalorder %s19, 1
        %s215 = scalar_select %p214, %s19, 1
        %p216 = scmp.lt.s32.totalorder %s20, 9
        %s217 = scalar_select %p216, %s20, 9
        %s218 = smul.addr %s217, 14
        %s219 = smul.addr %s215, 140
        %s220 = sadd.s32 %s218, %s219
        %s221 = smul.addr %s220, 4
        %s222 = scalar_lea.vmem %s0, %s221
      $region24: #{resnet_block_se_forward.7} parent=19 // pred_fallthru
        _
      // Predicated region
      $region25: #{resnet_block_se_forward.7} parent=19 // pred_check
        %p223 = pneg %p76
      $region26: #{resnet_block_se_forward.7} parent=19 // pred_check_branch
        %225 = sbr.rel (%p223) target = $region28
      $region27: #{resnet_block_se_forward.7} parent=19 // pred_region
        %s226 = sadd.s32 %s20, 1
        %p227 = scmp.lt.s32.totalorder %s19, 1
        %s228 = scalar_select %p227, %s19, 1
        %p229 = scmp.lt.s32.totalorder %s226, 9
        %s230 = scalar_select %p229, %s226, 9
        %s231 = smul.addr %s230, 14
        %s232 = smul.addr %s228, 140
        %s233 = sadd.s32 %s231, %s232
        %s234 = smul.addr %s233, 4
        %s235 = scalar_lea.vmem %s1, %s234
        %s236 = sadd.s32 %s20, 1
      $region28: #{resnet_block_se_forward.7} parent=19 // pred_fallthru
        _
      // Predicated region
      $region29: #{resnet_block_se_forward.7} parent=19 // pred_check
        %p237 = pneg %p106
      $region30: #{resnet_block_se_forward.7} parent=19 // pred_check_branch
        %239 = sbr.rel (%p237) target = $region32
      $region31: #{resnet_block_se_forward.7} parent=19 // pred_region
        %s240 = sadd.s32 %s20, 2
        %p241 = scmp.lt.s32.totalorder %s19, 1
        %s242 = scalar_select %p241, %s19, 1
        %p243 = scmp.lt.s32.totalorder %s240, 9
        %s244 = scalar_select %p243, %s240, 9
        %s245 = smul.addr %s244, 14
        %s246 = smul.addr %s242, 140
        %s247 = sadd.s32 %s245, %s246
        %s248 = smul.addr %s247, 4
        %s249 = scalar_lea.vmem %s2, %s248
        %s250 = sadd.s32 %s20, 2
      $region32: #{resnet_block_se_forward.7} parent=19 // pred_fallthru
        _
    $region20: #{resnet_block_se_forward.7} parent=5 // pred_fallthru
      _
    %p251 = scmp.le.s32.totalorder 1, %s12
    %p252 = scmp.lt.s32.totalorder %s12, 17
    %p253 = pnand %p251, %p252
    %p254 = pneg %p253
    // Predicated region
    $region33: #{resnet_block_se_forward.7} parent=5 // pred_check
      _
    $region34: #{resnet_block_se_forward.7} parent=5 // pred_check_branch
      %256 = sbr.rel (%p253) target = $region36
    $region35: #{resnet_block_se_forward.7} parent=5 // pred_region
      %s257 = ssub.s32 %s12, 1
      %p258 = scmp.lt.s32.totalorder %s21, 1
      %s259 = scalar_select %p258, %s21, 1
      %p260 = scmp.lt.s32.totalorder %s22, 9
      %s261 = scalar_select %p260, %s22, 9
      %s262 = smul.addr %s261, 14
      %s263 = smul.addr %s259, 140
      %s264 = sadd.s32 %s262, %s263
      %s265 = smul.addr %s264, 4
      %s266 = scalar_lea.vmem %s0, %s265
      %p267 = pneg %p52
      %p268 = pneg %p49
      %s269 = sadd.s32 %s22, 1
      %p270 = scmp.lt.s32.totalorder %s21, 1
      %s271 = scalar_select %p270, %s21, 1
      %p272 = scmp.lt.s32.totalorder %s269, 9
      %s273 = scalar_select %p272, %s269, 9
      %s274 = smul.addr %s273, 14
      %s275 = smul.addr %s271, 140
      %s276 = sadd.s32 %s274, %s275
      %s277 = smul.addr %s276, 4
      %s278 = scalar_lea.vmem %s1, %s277
      %p279 = pneg %p82
      %p280 = pneg %p79
      %s281 = sadd.s32 %s22, 2
      %p282 = scmp.lt.s32.totalorder %s21, 1
      %s283 = scalar_select %p282, %s21, 1
      %p284 = scmp.lt.s32.totalorder %s281, 9
      %s285 = scalar_select %p284, %s281, 9
      %s286 = smul.addr %s285, 14
      %s287 = smul.addr %s283, 140
      %s288 = sadd.s32 %s286, %s287
      %s289 = smul.addr %s288, 4
      %s290 = scalar_lea.vmem %s2, %s289
      %p291 = pneg %p112
      %p292 = pneg %p109
      %p293 = pneg %p133
      %p294 = pneg %p130
      %p295 = pneg %p161
      %p296 = pneg %p158
      %p297 = scmp.lt.s32.totalorder %s21, 1
      %s298 = scalar_select %p297, %s21, 1
      %p299 = scmp.lt.s32.totalorder %s22, 7
      %s300 = scalar_select %p299, %s22, 7
      %s301 = smul.addr %s300, 8
      %s302 = smul.addr %s298, 64
      %s303 = sadd.s32 %s301, %s302
      %s304 = smul.addr %s303, 4
      %s305 = scalar_lea.vmem %s4, %s304
      %p306 = pneg %p189
      %p307 = pneg %p186
      %p308 = scmp.lt.s32.totalorder %s21, 1
      %s309 = scalar_select %p308, %s21, 1
      %p310 = scmp.lt.s32.totalorder %s22, 7
      %s311 = scalar_select %p310, %s22, 7
      %s312 = smul.addr %s309, 8
      %s313 = sadd.s32 %s311, %s312
      %s314 = smul.addr %s313, 2
      %s315 = scalar_lea.vmem %s5, %s314
      %p316 = scmp.lt.s32.totalorder %s21, 1
      %s317 = scalar_select %p316, %s21, 1
      %p318 = scmp.lt.s32.totalorder %s22, 9
      %s319 = scalar_select %p318, %s22, 9
      %s320 = smul.addr %s319, 14
      %s321 = smul.addr %s317, 140
      %s322 = sadd.s32 %s320, %s321
      %s323 = smul.addr %s322, 4
      %s324 = scalar_lea.vmem %s0, %s323
      %s325 = sadd.s32 %s22, 1
      %p326 = scmp.lt.s32.totalorder %s21, 1
      %s327 = scalar_select %p326, %s21, 1
      %p328 = scmp.lt.s32.totalorder %s325, 9
      %s329 = scalar_select %p328, %s325, 9
      %s330 = smul.addr %s329, 14
      %s331 = smul.addr %s327, 140
      %s332 = sadd.s32 %s330, %s331
      %s333 = smul.addr %s332, 4
      %s334 = scalar_lea.vmem %s1, %s333
      %s335 = sadd.s32 %s22, 1
      %s336 = sadd.s32 %s22, 2
      %p337 = scmp.lt.s32.totalorder %s21, 1
      %s338 = scalar_select %p337, %s21, 1
      %p339 = scmp.lt.s32.totalorder %s336, 9
      %s340 = scalar_select %p339, %s336, 9
      %s341 = smul.addr %s340, 14
      %s342 = smul.addr %s338, 140
      %s343 = sadd.s32 %s341, %s342
      %s344 = smul.addr %s343, 4
      %s345 = scalar_lea.vmem %s2, %s344
      %s346 = sadd.s32 %s22, 2
      %p347 = scmp.lt.s32.totalorder %s21, 1
      %s348 = scalar_select %p347, %s21, 1
      %p349 = scmp.lt.s32.totalorder %s22, 7
      %s350 = scalar_select %p349, %s22, 7
      %s351 = smul.addr %s350, 8
      %s352 = smul.addr %s348, 64
      %s353 = sadd.s32 %s351, %s352
      %s354 = smul.addr %s353, 4
      %s355 = scalar_lea.vmem %s4, %s354
      %p356 = scmp.lt.s32.totalorder %s21, 1
      %s357 = scalar_select %p356, %s21, 1
      %p358 = scmp.lt.s32.totalorder %s22, 7
      %s359 = scalar_select %p358, %s22, 7
      %s360 = smul.addr %s357, 8
      %s361 = sadd.s32 %s359, %s360
      %s362 = smul.addr %s361, 2
      %s363 = scalar_lea.vmem %s5, %s362
      %v365 = vld [vmem:[%s324] sm:$0xf]
      %v366 = vld [vmem:[%s324 + $0x4] sm:$0xf]
      %v367 = vld [vmem:[%s324 + $0x8] sm:$0xf]
      %v368 = vld [vmem:[%s324 + $0xc] sm:$0xf]
      %v369 = vld [vmem:[%s324 + $0x10] sm:$0xf]
      %v370 = vld [vmem:[%s324 + $0x14] sm:$0xf]
      %v371 = vld [vmem:[%s324 + $0x18] sm:$0xf]
      %v372 = vld [vmem:[%s324 + $0x1c] sm:$0xf]
      %v373 = vld [vmem:[%s324 + $0x20] sm:$0xf]
      %v374 = vld [vmem:[%s324 + $0x24] sm:$0xf]
      %v375 = vld [vmem:[%s3] sm:$0xf]
      %v376 = vld [vmem:[%s3 + $0x4] sm:$0xf]
      %v377 = vld [vmem:[%s3 + $0x8] sm:$0xf]
      %v378 = vld [vmem:[%s3 + $0xc] sm:$0xf]
      %v379 = vld [vmem:[%s3 + $0x10] sm:$0xf]
      %v380 = vld [vmem:[%s3 + $0x14] sm:$0xf]
      %v381 = vld [vmem:[%s3 + $0x18] sm:$0xf]
      %v382 = vld [vmem:[%s3 + $0x1c] sm:$0xf]
      %v383 = vld [vmem:[%s3 + $0x20] sm:$0xf]
      %v384 = vld [vmem:[%s3 + $0x24] sm:$0xf]
      %v385 = vld [vmem:[%s3 + $0x28] sm:$0xf]
      %v386 = vld [vmem:[%s3 + $0x2c] sm:$0xf]
      %v387 = vld [vmem:[%s3 + $0x30] sm:$0xf]
      %v388 = vld [vmem:[%s3 + $0x34] sm:$0xf]
      %v389 = vld [vmem:[%s3 + $0x38] sm:$0xf]
      %v390 = vld [vmem:[%s3 + $0x3c] sm:$0xf]
      %v391 = vld [vmem:[%s324 + $0x28] sm:$0x1]
      %s392 = scalar_lea.vmem %s3, 64
      %v393 = vld [vmem:[%s392] sm:$0xf]
      %v394 = vld [vmem:[%s392 + $0x4] sm:$0xf]
      %v395 = vld [vmem:[%s392 + $0x8] sm:$0xf]
      %v396 = vld [vmem:[%s392 + $0xc] sm:$0xf]
      %v397 = vld [vmem:[%s392 + $0x10] sm:$0xf]
      %v398 = vld [vmem:[%s392 + $0x14] sm:$0xf]
      %v399 = vld [vmem:[%s392 + $0x18] sm:$0xf]
      %v400 = vld [vmem:[%s392 + $0x1c] sm:$0xf]
      %v401 = vld [vmem:[%s392 + $0x20] sm:$0xf]
      %v402 = vld [vmem:[%s392 + $0x24] sm:$0xf]
      %v403 = vld [vmem:[%s392 + $0x28] sm:$0xf]
      %v404 = vld [vmem:[%s392 + $0x2c] sm:$0xf]
      %v405 = vld [vmem:[%s392 + $0x30] sm:$0xf]
      %v406 = vld [vmem:[%s392 + $0x34] sm:$0xf]
      %v407 = vld [vmem:[%s392 + $0x38] sm:$0xf]
      %v408 = vld [vmem:[%s392 + $0x3c] sm:$0xf]
      %v420 = vunpack.c.l.b16 %v365
      %v421 = vunpack.c.l.b16 %v366
      %v422 = vunpack.c.l.b16 %v367
      %v423 = vunpack.c.l.b16 %v368
      %v424 = vunpack.c.l.b16 %v369
      %v425 = vunpack.c.l.b16 %v370
      %v426 = vunpack.c.l.b16 %v371
      %v427 = vunpack.c.l.b16 %v372
      %v428 = vunpack.c.l.b16 %v373
      %v429 = vunpack.c.l.b16 %v374
      %v430 = vunpack.c.l.b16 %v391
      %v431 = vpack.c.b16 %v421, %v420
      %v432 = vpack.c.b16 %v423, %v422
      %v433 = vpack.c.b16 %v425, %v424
      %v434 = vpack.c.b16 %v427, %v426
      %v435 = vpack.c.b16 %v429, %v428
      %v436 = vpack.c.b16 %v430, %v430
      %vm437 = vsmask.f32 7424
      %v439 = vshrl.u32 %v431, 16
      %v441 = vshll.u32 %v431, 16
      %v443 = vrot.slane %v441, 1
      %v444 = vor.u32 %v439, %v443
      %v446 = vshll.u32 %v432, 16
      %v448 = vrot.slane %v446, 1
      %v449 = vsel %vm437, %v444, %v448
      %v450 = vshrl.u32 %v432, 16
      %v452 = vor.u32 %v450, %v448
      %v454 = vshll.u32 %v433, 16
      %v456 = vrot.slane %v454, 1
      %v457 = vsel %vm437, %v452, %v456
      %v458 = vshrl.u32 %v433, 16
      %v460 = vor.u32 %v458, %v456
      %v462 = vshll.u32 %v434, 16
      %v464 = vrot.slane %v462, 1
      %v465 = vsel %vm437, %v460, %v464
      %v466 = vshrl.u32 %v434, 16
      %v468 = vor.u32 %v466, %v464
      %v470 = vshll.u32 %v435, 16
      %v472 = vrot.slane %v470, 1
      %v473 = vsel %vm437, %v468, %v472
      %v474 = vshrl.u32 %v435, 16
      %v476 = vor.u32 %v474, %v472
      %v478 = vshll.u32 %v436, 16
      %v480 = vrot.slane %v478, 1
      %v481 = vsel %vm437, %v476, %v480
      %v503 = vunpack.c.l.b16 %v393
      %v504 = vunpack.c.l.b16 %v394
      %v505 = vunpack.c.l.b16 %v395
      %v506 = vunpack.c.l.b16 %v396
      %v507 = vunpack.c.l.b16 %v397
      %v508 = vunpack.c.l.b16 %v398
      %v509 = vunpack.c.l.b16 %v399
      %v510 = vunpack.c.l.b16 %v400
      %v511 = vunpack.c.l.b16 %v401
      %v512 = vunpack.c.l.b16 %v402
      %v513 = vunpack.c.l.b16 %v403
      %v514 = vunpack.c.l.b16 %v404
      %v515 = vunpack.c.l.b16 %v405
      %v516 = vunpack.c.l.b16 %v406
      %v517 = vunpack.c.l.b16 %v407
      %v518 = vunpack.c.l.b16 %v408
      %v519 = vpack.c.b16 %v504, %v503
      %v520 = vpack.c.b16 %v506, %v505
      %v521 = vpack.c.b16 %v508, %v507
      %v522 = vpack.c.b16 %v510, %v509
      %v523 = vpack.c.b16 %v512, %v511
      %v524 = vpack.c.b16 %v514, %v513
      %v525 = vpack.c.b16 %v516, %v515
      %v526 = vpack.c.b16 %v518, %v517
      %535 = vmatprep.subr.bf16.mxu0 0
      %536 = vmatpush1.bf16.msra.mxu0 %v519
      %537 = vmatprep.subr.bf16.mxu0 0
      %538 = vmatpush1.bf16.msra.mxu0 %v520
      %539 = vmatprep.subr.bf16.mxu0 0
      %540 = vmatpush1.bf16.msra.mxu0 %v521
      %541 = vmatprep.subr.bf16.mxu0 0
      %542 = vmatpush1.bf16.msra.mxu0 %v522
      %543 = vmatprep.subr.bf16.mxu0 0
      %544 = vmatpush1.bf16.msra.mxu0 %v523
      %545 = vmatprep.subr.bf16.mxu0 0
      %546 = vmatpush1.bf16.msra.mxu0 %v524
      %547 = vmatprep.subr.bf16.mxu0 0
      %548 = vmatpush1.bf16.msra.mxu0 %v525
      %549 = vmatprep.subr.bf16.mxu0 0
      %550 = vmatpush1.bf16.msra.mxu0 %v526
      %551 = vmatprep.subr.bf16.mxu0 0
      %552 = vmatpush1.bf16.msra.mxu0 0
      %553 = vmatprep.subr.bf16.mxu0 0
      %554 = vmatpush1.bf16.msra.mxu0 0
      %555 = vmatprep.subr.bf16.mxu0 0
      %556 = vmatpush1.bf16.msra.mxu0 0
      %557 = vmatprep.subr.bf16.mxu0 0
      %558 = vmatpush1.bf16.msra.mxu0 0
      %559 = vmatprep.subr.bf16.mxu0 0
      %560 = vmatpush1.bf16.msra.mxu0 0
      %561 = vmatprep.subr.bf16.mxu0 0
      %562 = vmatpush1.bf16.msra.mxu0 0
      %563 = vmatprep.subr.bf16.mxu0 0
      %564 = vmatpush1.bf16.msra.mxu0 0
      %565 = vmatprep.subr.bf16.mxu0 0
      %566 = vmatpush1.bf16.msra.mxu0 0
      %567 = vmatprep.mubr.bf16.mxu0 0
      %568 = vmatmul.mubr.bf16.gmra.mrb[0].mxu0 %v449
      %v569 = vpop.f32.mrb[0].mxu0
      %v570 = vadd.f32 0.0, %v569
      %v571 = vpop.f32.mrb[0].mxu0
      %v572 = vpop.f32.mrb[0].mxu0
      %v573 = vadd.f32 0.0, %v572
      %v574 = vpop.f32.mrb[0].mxu0
      %575 = vmatprep.mubr.bf16.mxu0 0
      %576 = vmatmul.mubr.bf16.gmra.mrb[0].mxu0 %v457
      %v577 = vpop.f32.mrb[0].mxu0
      %v578 = vadd.f32 0.0, %v577
      %v579 = vpop.f32.mrb[0].mxu0
      %v580 = vpop.f32.mrb[0].mxu0
      %v581 = vadd.f32 0.0, %v580
      %v582 = vpop.f32.mrb[0].mxu0
      %583 = vmatprep.mubr.bf16.mxu0 0
      %584 = vmatmul.mubr.bf16.gmra.mrb[0].mxu0 %v465
      %v585 = vpop.f32.mrb[0].mxu0
      %v586 = vadd.f32 0.0, %v585
      %v587 = vpop.f32.mrb[0].mxu0
      %v588 = vpop.f32.mrb[0].mxu0
      %v589 = vadd.f32 0.0, %v588
      %v590 = vpop.f32.mrb[0].mxu0
      %591 = vmatprep.mubr.bf16.mxu0 0
      %592 = vmatmul.mubr.bf16.gmra.mrb[0].mxu0 %v473
      %v593 = vpop.f32.mrb[0].mxu0
      %v594 = vadd.f32 0.0, %v593
      %v595 = vpop.f32.mrb[0].mxu0
      %v596 = vpop.f32.mrb[0].mxu0
      %v597 = vadd.f32 0.0, %v596
      %v598 = vpop.f32.mrb[0].mxu0
      %599 = vmatprep.mubr.bf16.mxu0 0
      %600 = vmatmul.mubr.bf16.gmra.mrb[0].mxu0 %v481
      %v601 = vpop.f32.mrb[0].mxu0
      %v602 = vadd.f32 0.0, %v601
      %v603 = vpop.f32.mrb[0].mxu0
      %v604 = vpop.f32.mrb[0].mxu0
      %v605 = vadd.f32 0.0, %v604
      %v606 = vpop.f32.mrb[0].mxu0
      %607 = vdwg.mxu0
      %v629 = vunpack.c.l.b16 %v375
      %v630 = vunpack.c.l.b16 %v376
      %v631 = vunpack.c.l.b16 %v377
      %v632 = vunpack.c.l.b16 %v378
      %v633 = vunpack.c.l.b16 %v379
      %v634 = vunpack.c.l.b16 %v380
      %v635 = vunpack.c.l.b16 %v381
      %v636 = vunpack.c.l.b16 %v382
      %v637 = vunpack.c.l.b16 %v383
      %v638 = vunpack.c.l.b16 %v384
      %v639 = vunpack.c.l.b16 %v385
      %v640 = vunpack.c.l.b16 %v386
      %v641 = vunpack.c.l.b16 %v387
      %v642 = vunpack.c.l.b16 %v388
      %v643 = vunpack.c.l.b16 %v389
      %v644 = vunpack.c.l.b16 %v390
      %v645 = vpack.c.b16 %v630, %v629
      %v646 = vpack.c.b16 %v632, %v631
      %v647 = vpack.c.b16 %v634, %v633
      %v648 = vpack.c.b16 %v636, %v635
      %v649 = vpack.c.b16 %v638, %v637
      %v650 = vpack.c.b16 %v640, %v639
      %v651 = vpack.c.b16 %v642, %v641
      %v652 = vpack.c.b16 %v644, %v643
      %661 = vmatprep.subr.bf16.mxu0 0
      %662 = vmatpush1.bf16.msra.mxu0 %v645
      %663 = vmatprep.subr.bf16.mxu0 0
      %664 = vmatpush1.bf16.msra.mxu0 %v646
      %665 = vmatprep.subr.bf16.mxu0 0
      %666 = vmatpush1.bf16.msra.mxu0 %v647
      %667 = vmatprep.subr.bf16.mxu0 0
      %668 = vmatpush1.bf16.msra.mxu0 %v648
      %669 = vmatprep.subr.bf16.mxu0 0
      %670 = vmatpush1.bf16.msra.mxu0 %v649
      %671 = vmatprep.subr.bf16.mxu0 0
      %672 = vmatpush1.bf16.msra.mxu0 %v650
      %673 = vmatprep.subr.bf16.mxu0 0
      %674 = vmatpush1.bf16.msra.mxu0 %v651
      %675 = vmatprep.subr.bf16.mxu0 0
      %676 = vmatpush1.bf16.msra.mxu0 %v652
      %677 = vmatprep.subr.bf16.mxu0 0
      %678 = vmatpush1.bf16.msra.mxu0 0
      %679 = vmatprep.subr.bf16.mxu0 0
      %680 = vmatpush1.bf16.msra.mxu0 0
      %681 = vmatprep.subr.bf16.mxu0 0
      %682 = vmatpush1.bf16.msra.mxu0 0
      %683 = vmatprep.subr.bf16.mxu0 0
      %684 = vmatpush1.bf16.msra.mxu0 0
      %685 = vmatprep.subr.bf16.mxu0 0
      %686 = vmatpush1.bf16.msra.mxu0 0
      %687 = vmatprep.subr.bf16.mxu0 0
      %688 = vmatpush1.bf16.msra.mxu0 0
      %689 = vmatprep.subr.bf16.mxu0 0
      %690 = vmatpush1.bf16.msra.mxu0 0
      %691 = vmatprep.subr.bf16.mxu0 0
      %692 = vmatpush1.bf16.msra.mxu0 0
      %693 = vmatprep.mubr.bf16.mxu0 0
      %694 = vmatmul.mubr.bf16.gmra.mrb[0].mxu0 %v431
      %v695 = vpop.f32.mrb[0].mxu0
      %v696 = vadd.f32 %v570, %v695
      %v697 = vpop.f32.mrb[0].mxu0
      %v698 = vpop.f32.mrb[0].mxu0
      %v699 = vadd.f32 %v573, %v698
      %v700 = vpop.f32.mrb[0].mxu0
      %701 = vmatprep.mubr.bf16.mxu0 0
      %702 = vmatmul.mubr.bf16.gmra.mrb[0].mxu0 %v432
      %v703 = vpop.f32.mrb[0].mxu0
      %v704 = vadd.f32 %v578, %v703
      %v705 = vpop.f32.mrb[0].mxu0
      %v706 = vpop.f32.mrb[0].mxu0
      %v707 = vadd.f32 %v581, %v706
      %v708 = vpop.f32.mrb[0].mxu0
      %709 = vmatprep.mubr.bf16.mxu0 0
      %710 = vmatmul.mubr.bf16.gmra.mrb[0].mxu0 %v433
      %v711 = vpop.f32.mrb[0].mxu0
      %v712 = vadd.f32 %v586, %v711
      %v713 = vpop.f32.mrb[0].mxu0
      %v714 = vpop.f32.mrb[0].mxu0
      %v715 = vadd.f32 %v589, %v714
      %v716 = vpop.f32.mrb[0].mxu0
      %717 = vmatprep.mubr.bf16.mxu0 0
      %718 = vmatmul.mubr.bf16.gmra.mrb[0].mxu0 %v434
      %v719 = vpop.f32.mrb[0].mxu0
      %v720 = vadd.f32 %v594, %v719
      %v721 = vpop.f32.mrb[0].mxu0
      %v722 = vpop.f32.mrb[0].mxu0
      %v723 = vadd.f32 %v597, %v722
      %v724 = vpop.f32.mrb[0].mxu0
      %725 = vmatprep.mubr.bf16.mxu0 0
      %726 = vmatmul.mubr.bf16.gmra.mrb[0].mxu0 %v435
      %v727 = vpop.f32.mrb[0].mxu0
      %v728 = vadd.f32 %v602, %v727
      %v729 = vpop.f32.mrb[0].mxu0
      %v730 = vpop.f32.mrb[0].mxu0
      %v731 = vadd.f32 %v605, %v730
      %v732 = vpop.f32.mrb[0].mxu0
      %733 = vdwg.mxu0
      %v734 = vld [vmem:[%s324] sm:$0xe]
      %s735 = scalar_lea.vmem %s3, 128
      %v736 = vld [vmem:[%s735] sm:$0xf]
      %v737 = vld [vmem:[%s735 + $0x4] sm:$0xf]
      %v738 = vld [vmem:[%s735 + $0x8] sm:$0xf]
      %v739 = vld [vmem:[%s735 + $0xc] sm:$0xf]
      %v740 = vld [vmem:[%s735 + $0x10] sm:$0xf]
      %v741 = vld [vmem:[%s735 + $0x14] sm:$0xf]
      %v742 = vld [vmem:[%s735 + $0x18] sm:$0xf]
      %v743 = vld [vmem:[%s735 + $0x1c] sm:$0xf]
      %v744 = vld [vmem:[%s735 + $0x20] sm:$0xf]
      %v745 = vld [vmem:[%s735 + $0x24] sm:$0xf]
      %v746 = vld [vmem:[%s735 + $0x28] sm:$0xf]
      %v747 = vld [vmem:[%s735 + $0x2c] sm:$0xf]
      %v748 = vld [vmem:[%s735 + $0x30] sm:$0xf]
      %v749 = vld [vmem:[%s735 + $0x34] sm:$0xf]
      %v750 = vld [vmem:[%s735 + $0x38] sm:$0xf]
      %v751 = vld [vmem:[%s735 + $0x3c] sm:$0xf]
      %v753 = vunpack.c.l.b16 %v734
      %v754 = vpack.c.b16 %v421, %v753
      %vm755 = vcmask 1046528
      %v756 = vrot.slane %v754, 1
      %v757 = vrot.slane %v432, 1
      %v758 = vsel %vm755, %v756, %v757
      %v759 = vrot.slane %v433, 1
      %v760 = vsel %vm755, %v757, %v759
      %v761 = vrot.slane %v434, 1
      %v762 = vsel %vm755, %v759, %v761
      %v763 = vrot.slane %v435, 1
      %v764 = vsel %vm755, %v761, %v763
      %v765 = vrot.slane %v436, 1
      %v766 = vsel %vm755, %v763, %v765
      %v788 = vunpack.c.l.b16 %v736
      %v789 = vunpack.c.l.b16 %v737
      %v790 = vunpack.c.l.b16 %v738
      %v791 = vunpack.c.l.b16 %v739
      %v792 = vunpack.c.l.b16 %v740
      %v793 = vunpack.c.l.b16 %v741
      %v794 = vunpack.c.l.b16 %v742
      %v795 = vunpack.c.l.b16 %v743
      %v796 = vunpack.c.l.b16 %v744
      %v797 = vunpack.c.l.b16 %v745
      %v798 = vunpack.c.l.b16 %v746
      %v799 = vunpack.c.l.b16 %v747
      %v800 = vunpack.c.l.b16 %v748
      %v801 = vunpack.c.l.b16 %v749
      %v802 = vunpack.c.l.b16 %v750
      %v803 = vunpack.c.l.b16 %v751
      %v804 = vpack.c.b16 %v789, %v788
      %v805 = vpack.c.b16 %v791, %v790
      %v806 = vpack.c.b16 %v793, %v792
      %v807 = vpack.c.b16 %v795, %v794
      %v808 = vpack.c.b16 %v797, %v796
      %v809 = vpack.c.b16 %v799, %v798
      %v810 = vpack.c.b16 %v801, %v800
      %v811 = vpack.c.b16 %v803, %v802
      %820 = vmatprep.subr.bf16.mxu0 0
      %821 = vmatpush1.bf16.msra.mxu0 %v804
      %822 = vmatprep.subr.bf16.mxu0 0
      %823 = vmatpush1.bf16.msra.mxu0 %v805
      %824 = vmatprep.subr.bf16.mxu0 0
      %825 = vmatpush1.bf16.msra.mxu0 %v806
      %826 = vmatprep.subr.bf16.mxu0 0
      %827 = vmatpush1.bf16.msra.mxu0 %v807
      %828 = vmatprep.subr.bf16.mxu0 0
      %829 = vmatpush1.bf16.msra.mxu0 %v808
      %830 = vmatprep.subr.bf16.mxu0 0
      %831 = vmatpush1.bf16.msra.mxu0 %v809
      %832 = vmatprep.subr.bf16.mxu0 0
      %833 = vmatpush1.bf16.msra.mxu0 %v810
      %834 = vmatprep.subr.bf16.mxu0 0
      %835 = vmatpush1.bf16.msra.mxu0 %v811
      %836 = vmatprep.subr.bf16.mxu0 0
      %837 = vmatpush1.bf16.msra.mxu0 0
      %838 = vmatprep.subr.bf16.mxu0 0
      %839 = vmatpush1.bf16.msra.mxu0 0
      %840 = vmatprep.subr.bf16.mxu0 0
      %841 = vmatpush1.bf16.msra.mxu0 0
      %842 = vmatprep.subr.bf16.mxu0 0
      %843 = vmatpush1.bf16.msra.mxu0 0
      %844 = vmatprep.subr.bf16.mxu0 0
      %845 = vmatpush1.bf16.msra.mxu0 0
      %846 = vmatprep.subr.bf16.mxu0 0
      %847 = vmatpush1.bf16.msra.mxu0 0
      %848 = vmatprep.subr.bf16.mxu0 0
      %849 = vmatpush1.bf16.msra.mxu0 0
      %850 = vmatprep.subr.bf16.mxu0 0
      %851 = vmatpush1.bf16.msra.mxu0 0
      %852 = vmatprep.mubr.bf16.mxu0 0
      %853 = vmatmul.mubr.bf16.gmra.mrb[0].mxu0 %v758
      %v854 = vpop.f32.mrb[0].mxu0
      %v855 = vadd.f32 0.0, %v854
      %v856 = vpop.f32.mrb[0].mxu0
      %v857 = vpop.f32.mrb[0].mxu0
      %v858 = vadd.f32 0.0, %v857
      %v859 = vpop.f32.mrb[0].mxu0
      %860 = vmatprep.mubr.bf16.mxu0 0
      %861 = vmatmul.mubr.bf16.gmra.mrb[0].mxu0 %v760
      %v862 = vpop.f32.mrb[0].mxu0
      %v863 = vadd.f32 0.0, %v862
      %v864 = vpop.f32.mrb[0].mxu0
      %v865 = vpop.f32.mrb[0].mxu0
      %v866 = vadd.f32 0.0, %v865
      %v867 = vpop.f32.mrb[0].mxu0
      %868 = vmatprep.mubr.bf16.mxu0 0
      %869 = vmatmul.mubr.bf16.gmra.mrb[0].mxu0 %v762
      %v870 = vpop.f32.mrb[0].mxu0
      %v871 = vadd.f32 0.0, %v870
      %v872 = vpop.f32.mrb[0].mxu0
      %v873 = vpop.f32.mrb[0].mxu0
      %v874 = vadd.f32 0.0, %v873
      %v875 = vpop.f32.mrb[0].mxu0
      %876 = vmatprep.mubr.bf16.mxu0 0
      %877 = vmatmul.mubr.bf16.gmra.mrb[0].mxu0 %v764
      %v878 = vpop.f32.mrb[0].mxu0
      %v879 = vadd.f32 0.0, %v878
      %v880 = vpop.f32.mrb[0].mxu0
      %v881 = vpop.f32.mrb[0].mxu0
      %v882 = vadd.f32 0.0, %v881
      %v883 = vpop.f32.mrb[0].mxu0
      %884 = vmatprep.mubr.bf16.mxu0 0
      %885 = vmatmul.mubr.bf16.gmra.mrb[0].mxu0 %v766
      %v886 = vpop.f32.mrb[0].mxu0
      %v887 = vadd.f32 0.0, %v886
      %v888 = vpop.f32.mrb[0].mxu0
      %v889 = vpop.f32.mrb[0].mxu0
      %v890 = vadd.f32 0.0, %v889
      %v891 = vpop.f32.mrb[0].mxu0
      %892 = vdwg.mxu0
      %v893 = vadd.f32 %v696, %v855
      %v894 = vadd.f32 %v699, %v858
      %v895 = vadd.f32 %v704, %v863
      %v896 = vadd.f32 %v707, %v866
      %v897 = vadd.f32 %v712, %v871
      %v898 = vadd.f32 %v715, %v874
      %v899 = vadd.f32 %v720, %v879
      %v900 = vadd.f32 %v723, %v882
      %v901 = vadd.f32 %v728, %v887
      %v902 = vadd.f32 %v731, %v890
      %v903 = vld [vmem:[%s324 + $0x4] sm:$0xe]
      %v904 = vld [vmem:[%s324 + $0x8] sm:$0xf]
      %v905 = vld [vmem:[%s324 + $0xc] sm:$0xf]
      %v906 = vld [vmem:[%s324 + $0x10] sm:$0xf]
      %v907 = vld [vmem:[%s324 + $0x14] sm:$0xf]
      %v908 = vld [vmem:[%s324 + $0x18] sm:$0xf]
      %v909 = vld [vmem:[%s324 + $0x1c] sm:$0xf]
      %v910 = vld [vmem:[%s324 + $0x20] sm:$0xf]
      %v911 = vld [vmem:[%s324 + $0x24] sm:$0xf]
      %v912 = vld [vmem:[%s324 + $0x28] sm:$0xf]
      %v913 = vld [vmem:[%s324 + $0x2c] sm:$0x1]
      %s914 = scalar_lea.vmem %s3, 192
      %v915 = vld [vmem:[%s914] sm:$0xf]
      %v916 = vld [vmem:[%s914 + $0x4] sm:$0xf]
      %v917 = vld [vmem:[%s914 + $0x8] sm:$0xf]
      %v918 = vld [vmem:[%s914 + $0xc] sm:$0xf]
      %v919 = vld [vmem:[%s914 + $0x10] sm:$0xf]
      %v920 = vld [vmem:[%s914 + $0x14] sm:$0xf]
      %v921 = vld [vmem:[%s914 + $0x18] sm:$0xf]
      %v922 = vld [vmem:[%s914 + $0x1c] sm:$0xf]
      %v923 = vld [vmem:[%s914 + $0x20] sm:$0xf]
      %v924 = vld [vmem:[%s914 + $0x24] sm:$0xf]
      %v925 = vld [vmem:[%s914 + $0x28] sm:$0xf]
      %v926 = vld [vmem:[%s914 + $0x2c] sm:$0xf]
      %v927 = vld [vmem:[%s914 + $0x30] sm:$0xf]
      %v928 = vld [vmem:[%s914 + $0x34] sm:$0xf]
      %v929 = vld [vmem:[%s914 + $0x38] sm:$0xf]
      %v930 = vld [vmem:[%s914 + $0x3c] sm:$0xf]
      %v942 = vunpack.c.l.b16 %v903
      %v943 = vunpack.c.l.b16 %v904
      %v944 = vunpack.c.l.b16 %v905
      %v945 = vunpack.c.l.b16 %v906
      %v946 = vunpack.c.l.b16 %v907
      %v947 = vunpack.c.l.b16 %v908
      %v948 = vunpack.c.l.b16 %v909
      %v949 = vunpack.c.l.b16 %v910
      %v950 = vunpack.c.l.b16 %v911
      %v951 = vunpack.c.l.b16 %v912
      %v952 = vunpack.c.l.b16 %v913
      %v953 = vpack.c.b16 %v943, %v942
      %v954 = vpack.c.b16 %v945, %v944
      %v955 = vpack.c.b16 %v947, %v946
      %v956 = vpack.c.b16 %v949, %v948
      %v957 = vpack.c.b16 %v951, %v950
      %v958 = vpack.c.b16 %v952, %v952
      %v959 = vrot.slane %v953, 1
      %v960 = vrot.slane %v954, 1
      %v961 = vsel %vm755, %v959, %v960
      %v962 = vrot.slane %v955, 1
      %v963 = vsel %vm755, %v960, %v962
      %v964 = vrot.slane %v956, 1
      %v965 = vsel %vm755, %v962, %v964
      %v966 = vrot.slane %v957, 1
      %v967 = vsel %vm755, %v964, %v966
      %v968 = vrot.slane %v958, 1
      %v969 = vsel %vm755, %v966, %v968
      %v991 = vunpack.c.l.b16 %v915
      %v992 = vunpack.c.l.b16 %v916
      %v993 = vunpack.c.l.b16 %v917
      %v994 = vunpack.c.l.b16 %v918
      %v995 = vunpack.c.l.b16 %v919
      %v996 = vunpack.c.l.b16 %v920
      %v997 = vunpack.c.l.b16 %v921
      %v998 = vunpack.c.l.b16 %v922
      %v999 = vunpack.c.l.b16 %v923
      %v1000 = vunpack.c.l.b16 %v924
      %v1001 = vunpack.c.l.b16 %v925
      %v1002 = vunpack.c.l.b16 %v926
      %v1003 = vunpack.c.l.b16 %v927
      %v1004 = vunpack.c.l.b16 %v928
      %v1005 = vunpack.c.l.b16 %v929
      %v1006 = vunpack.c.l.b16 %v930
      %v1007 = vpack.c.b16 %v992, %v991
      %v1008 = vpack.c.b16 %v994, %v993
      %v1009 = vpack.c.b16 %v996, %v995
      %v1010 = vpack.c.b16 %v998, %v997
      %v1011 = vpack.c.b16 %v1000, %v999
      %v1012 = vpack.c.b16 %v1002, %v1001
      %v1013 = vpack.c.b16 %v1004, %v1003
      %v1014 = vpack.c.b16 %v1006, %v1005
      %1023 = vmatprep.subr.bf16.mxu0 0
      %1024 = vmatpush1.bf16.msra.mxu0 %v1007
      %1025 = vmatprep.subr.bf16.mxu0 0
      %1026 = vmatpush1.bf16.msra.mxu0 %v1008
      %1027 = vmatprep.subr.bf16.mxu0 0
      %1028 = vmatpush1.bf16.msra.mxu0 %v1009
      %1029 = vmatprep.subr.bf16.mxu0 0
      %1030 = vmatpush1.bf16.msra.mxu0 %v1010
      %1031 = vmatprep.subr.bf16.mxu0 0
      %1032 = vmatpush1.bf16.msra.mxu0 %v1011
      %1033 = vmatprep.subr.bf16.mxu0 0
      %1034 = vmatpush1.bf16.msra.mxu0 %v1012
      %1035 = vmatprep.subr.bf16.mxu0 0
      %1036 = vmatpush1.bf16.msra.mxu0 %v1013
      %1037 = vmatprep.subr.bf16.mxu0 0
      %1038 = vmatpush1.bf16.msra.mxu0 %v1014
      %1039 = vmatprep.subr.bf16.mxu0 0
      %1040 = vmatpush1.bf16.msra.mxu0 0
      %1041 = vmatprep.subr.bf16.mxu0 0
      %1042 = vmatpush1.bf16.msra.mxu0 0
      %1043 = vmatprep.subr.bf16.mxu0 0
      %1044 = vmatpush1.bf16.msra.mxu0 0
      %1045 = vmatprep.subr.bf16.mxu0 0
      %1046 = vmatpush1.bf16.msra.mxu0 0
      %1047 = vmatprep.subr.bf16.mxu0 0
      %1048 = vmatpush1.bf16.msra.mxu0 0
      %1049 = vmatprep.subr.bf16.mxu0 0
      %1050 = vmatpush1.bf16.msra.mxu0 0
      %1051 = vmatprep.subr.bf16.mxu0 0
      %1052 = vmatpush1.bf16.msra.mxu0 0
      %1053 = vmatprep.subr.bf16.mxu0 0
      %1054 = vmatpush1.bf16.msra.mxu0 0
      %1055 = vmatprep.mubr.bf16.mxu0 0
      %1056 = vmatmul.mubr.bf16.gmra.mrb[0].mxu0 %v961
      %v1057 = vpop.f32.mrb[0].mxu0
      %v1058 = vadd.f32 0.0, %v1057
      %v1059 = vpop.f32.mrb[0].mxu0
      %v1060 = vpop.f32.mrb[0].mxu0
      %v1061 = vadd.f32 0.0, %v1060
      %v1062 = vpop.f32.mrb[0].mxu0
      %1063 = vmatprep.mubr.bf16.mxu0 0
      %1064 = vmatmul.mubr.bf16.gmra.mrb[0].mxu0 %v963
      %v1065 = vpop.f32.mrb[0].mxu0
      %v1066 = vadd.f32 0.0, %v1065
      %v1067 = vpop.f32.mrb[0].mxu0
      %v1068 = vpop.f32.mrb[0].mxu0
      %v1069 = vadd.f32 0.0, %v1068
      %v1070 = vpop.f32.mrb[0].mxu0
      %1071 = vmatprep.mubr.bf16.mxu0 0
      %1072 = vmatmul.mubr.bf16.gmra.mrb[0].mxu0 %v965
      %v1073 = vpop.f32.mrb[0].mxu0
      %v1074 = vadd.f32 0.0, %v1073
      %v1075 = vpop.f32.mrb[0].mxu0
      %v1076 = vpop.f32.mrb[0].mxu0
      %v1077 = vadd.f32 0.0, %v1076
      %v1078 = vpop.f32.mrb[0].mxu0
      %1079 = vmatprep.mubr.bf16.mxu0 0
      %1080 = vmatmul.mubr.bf16.gmra.mrb[0].mxu0 %v967
      %v1081 = vpop.f32.mrb[0].mxu0
      %v1082 = vadd.f32 0.0, %v1081
      %v1083 = vpop.f32.mrb[0].mxu0
      %v1084 = vpop.f32.mrb[0].mxu0
      %v1085 = vadd.f32 0.0, %v1084
      %v1086 = vpop.f32.mrb[0].mxu0
      %1087 = vmatprep.mubr.bf16.mxu0 0
      %1088 = vmatmul.mubr.bf16.gmra.mrb[0].mxu0 %v969
      %v1089 = vpop.f32.mrb[0].mxu0
      %v1090 = vadd.f32 0.0, %v1089
      %v1091 = vpop.f32.mrb[0].mxu0
      %v1092 = vpop.f32.mrb[0].mxu0
      %v1093 = vadd.f32 0.0, %v1092
      %v1094 = vpop.f32.mrb[0].mxu0
      %1095 = vdwg.mxu0
      %v1096 = vadd.f32 %v893, %v1058
      %v1097 = vadd.f32 %v894, %v1061
      %v1098 = vadd.f32 %v895, %v1066
      %v1099 = vadd.f32 %v896, %v1069
      %v1100 = vadd.f32 %v897, %v1074
      %v1101 = vadd.f32 %v898, %v1077
      %v1102 = vadd.f32 %v899, %v1082
      %v1103 = vadd.f32 %v900, %v1085
      %v1104 = vadd.f32 %v901, %v1090
      %v1105 = vadd.f32 %v902, %v1093
      %v1106 = vld [vmem:[%s324 + $0x2c] sm:$0x3]
      %s1107 = scalar_lea.vmem %s3, 256
      %v1108 = vld [vmem:[%s1107] sm:$0xf]
      %v1109 = vld [vmem:[%s1107 + $0x4] sm:$0xf]
      %v1110 = vld [vmem:[%s1107 + $0x8] sm:$0xf]
      %v1111 = vld [vmem:[%s1107 + $0xc] sm:$0xf]
      %v1112 = vld [vmem:[%s1107 + $0x10] sm:$0xf]
      %v1113 = vld [vmem:[%s1107 + $0x14] sm:$0xf]
      %v1114 = vld [vmem:[%s1107 + $0x18] sm:$0xf]
      %v1115 = vld [vmem:[%s1107 + $0x1c] sm:$0xf]
      %v1116 = vld [vmem:[%s1107 + $0x20] sm:$0xf]
      %v1117 = vld [vmem:[%s1107 + $0x24] sm:$0xf]
      %v1118 = vld [vmem:[%s1107 + $0x28] sm:$0xf]
      %v1119 = vld [vmem:[%s1107 + $0x2c] sm:$0xf]
      %v1120 = vld [vmem:[%s1107 + $0x30] sm:$0xf]
      %v1121 = vld [vmem:[%s1107 + $0x34] sm:$0xf]
      %v1122 = vld [vmem:[%s1107 + $0x38] sm:$0xf]
      %v1123 = vld [vmem:[%s1107 + $0x3c] sm:$0xf]
      %v1125 = vunpack.c.l.b16 %v1106
      %v1126 = vpack.c.b16 %v1125, %v1125
      %vm1127 = vsmask.f32 6400
      %v1129 = vshrl.u32 %v953, 16
      %v1131 = vrot.slane %v1129, 1
      %v1132 = vshll.u32 %v953, 16
      %v1134 = vrot.slane %v1132, 2
      %v1135 = vor.u32 %v1131, %v1134
      %v1137 = vshrl.u32 %v954, 16
      %v1139 = vrot.slane %v1137, 1
      %v1140 = vshll.u32 %v954, 16
      %v1142 = vrot.slane %v1140, 2
      %v1143 = vor.u32 %v1139, %v1142
      %v1144 = vsel %vm1127, %v1135, %v1143
      %v1146 = vshrl.u32 %v955, 16
      %v1148 = vrot.slane %v1146, 1
      %v1149 = vshll.u32 %v955, 16
      %v1151 = vrot.slane %v1149, 2
      %v1152 = vor.u32 %v1148, %v1151
      %v1153 = vsel %vm1127, %v1143, %v1152
      %v1155 = vshrl.u32 %v956, 16
      %v1157 = vrot.slane %v1155, 1
      %v1158 = vshll.u32 %v956, 16
      %v1160 = vrot.slane %v1158, 2
      %v1161 = vor.u32 %v1157, %v1160
      %v1162 = vsel %vm1127, %v1152, %v1161
      %v1164 = vshrl.u32 %v957, 16
      %v1166 = vrot.slane %v1164, 1
      %v1167 = vshll.u32 %v957, 16
      %v1169 = vrot.slane %v1167, 2
      %v1170 = vor.u32 %v1166, %v1169
      %v1171 = vsel %vm1127, %v1161, %v1170
      %v1173 = vshrl.u32 %v1126, 16
      %v1175 = vrot.slane %v1173, 1
      %v1176 = vshll.u32 %v1126, 16
      %v1178 = vrot.slane %v1176, 2
      %v1179 = vor.u32 %v1175, %v1178
      %v1180 = vsel %vm1127, %v1170, %v1179
      %v1202 = vunpack.c.l.b16 %v1108
      %v1203 = vunpack.c.l.b16 %v1109
      %v1204 = vunpack.c.l.b16 %v1110
      %v1205 = vunpack.c.l.b16 %v1111
      %v1206 = vunpack.c.l.b16 %v1112
      %v1207 = vunpack.c.l.b16 %v1113
      %v1208 = vunpack.c.l.b16 %v1114
      %v1209 = vunpack.c.l.b16 %v1115
      %v1210 = vunpack.c.l.b16 %v1116
      %v1211 = vunpack.c.l.b16 %v1117
      %v1212 = vunpack.c.l.b16 %v1118
      %v1213 = vunpack.c.l.b16 %v1119
      %v1214 = vunpack.c.l.b16 %v1120
      %v1215 = vunpack.c.l.b16 %v1121
      %v1216 = vunpack.c.l.b16 %v1122
      %v1217 = vunpack.c.l.b16 %v1123
      %v1218 = vpack.c.b16 %v1203, %v1202
      %v1219 = vpack.c.b16 %v1205, %v1204
      %v1220 = vpack.c.b16 %v1207, %v1206
      %v1221 = vpack.c.b16 %v1209, %v1208
      %v1222 = vpack.c.b16 %v1211, %v1210
      %v1223 = vpack.c.b16 %v1213, %v1212
      %v1224 = vpack.c.b16 %v1215, %v1214
      %v1225 = vpack.c.b16 %v1217, %v1216
      %1234 = vmatprep.subr.bf16.mxu0 0
      %1235 = vmatpush1.bf16.msra.mxu0 %v1218
      %1236 = vmatprep.subr.bf16.mxu0 0
      %1237 = vmatpush1.bf16.msra.mxu0 %v1219
      %1238 = vmatprep.subr.bf16.mxu0 0
      %1239 = vmatpush1.bf16.msra.mxu0 %v1220
      %1240 = vmatprep.subr.bf16.mxu0 0
      %1241 = vmatpush1.bf16.msra.mxu0 %v1221
      %1242 = vmatprep.subr.bf16.mxu0 0
      %1243 = vmatpush1.bf16.msra.mxu0 %v1222
      %1244 = vmatprep.subr.bf16.mxu0 0
      %1245 = vmatpush1.bf16.msra.mxu0 %v1223
      %1246 = vmatprep.subr.bf16.mxu0 0
      %1247 = vmatpush1.bf16.msra.mxu0 %v1224
      %1248 = vmatprep.subr.bf16.mxu0 0
      %1249 = vmatpush1.bf16.msra.mxu0 %v1225
      %1250 = vmatprep.subr.bf16.mxu0 0
      %1251 = vmatpush1.bf16.msra.mxu0 0
      %1252 = vmatprep.subr.bf16.mxu0 0
      %1253 = vmatpush1.bf16.msra.mxu0 0
      %1254 = vmatprep.subr.bf16.mxu0 0
      %1255 = vmatpush1.bf16.msra.mxu0 0
      %1256 = vmatprep.subr.bf16.mxu0 0
      %1257 = vmatpush1.bf16.msra.mxu0 0
      %1258 = vmatprep.subr.bf16.mxu0 0
      %1259 = vmatpush1.bf16.msra.mxu0 0
      %1260 = vmatprep.subr.bf16.mxu0 0
      %1261 = vmatpush1.bf16.msra.mxu0 0
      %1262 = vmatprep.subr.bf16.mxu0 0
      %1263 = vmatpush1.bf16.msra.mxu0 0
      %1264 = vmatprep.subr.bf16.mxu0 0
      %1265 = vmatpush1.bf16.msra.mxu0 0
      %1266 = vmatprep.mubr.bf16.mxu0 0
      %1267 = vmatmul.mubr.bf16.gmra.mrb[0].mxu0 %v1144
      %v1268 = vpop.f32.mrb[0].mxu0
      %v1269 = vadd.f32 0.0, %v1268
      %v1270 = vpop.f32.mrb[0].mxu0
      %v1271 = vpop.f32.mrb[0].mxu0
      %v1272 = vadd.f32 0.0, %v1271
      %v1273 = vpop.f32.mrb[0].mxu0
      %1274 = vmatprep.mubr.bf16.mxu0 0
      %1275 = vmatmul.mubr.bf16.gmra.mrb[0].mxu0 %v1153
      %v1276 = vpop.f32.mrb[0].mxu0
      %v1277 = vadd.f32 0.0, %v1276
      %v1278 = vpop.f32.mrb[0].mxu0
      %v1279 = vpop.f32.mrb[0].mxu0
      %v1280 = vadd.f32 0.0, %v1279
      %v1281 = vpop.f32.mrb[0].mxu0
      %1282 = vmatprep.mubr.bf16.mxu0 0
      %1283 = vmatmul.mubr.bf16.gmra.mrb[0].mxu0 %v1162
      %v1284 = vpop.f32.mrb[0].mxu0
      %v1285 = vadd.f32 0.0, %v1284
      %v1286 = vpop.f32.mrb[0].mxu0
      %v1287 = vpop.f32.mrb[0].mxu0
      %v1288 = vadd.f32 0.0, %v1287
      %v1289 = vpop.f32.mrb[0].mxu0
      %1290 = vmatprep.mubr.bf16.mxu0 0
      %1291 = vmatmul.mubr.bf16.gmra.mrb[0].mxu0 %v1171
      %v1292 = vpop.f32.mrb[0].mxu0
      %v1293 = vadd.f32 0.0, %v1292
      %v1294 = vpop.f32.mrb[0].mxu0
      %v1295 = vpop.f32.mrb[0].mxu0
      %v1296 = vadd.f32 0.0, %v1295
      %v1297 = vpop.f32.mrb[0].mxu0
      %1298 = vmatprep.mubr.bf16.mxu0 0
      %1299 = vmatmul.mubr.bf16.gmra.mrb[0].mxu0 %v1180
      %v1300 = vpop.f32.mrb[0].mxu0
      %v1301 = vadd.f32 0.0, %v1300
      %v1302 = vpop.f32.mrb[0].mxu0
      %v1303 = vpop.f32.mrb[0].mxu0
      %v1304 = vadd.f32 0.0, %v1303
      %v1305 = vpop.f32.mrb[0].mxu0
      %1306 = vdwg.mxu0
      %v1307 = vadd.f32 %v1096, %v1269
      %v1308 = vadd.f32 %v1097, %v1272
      %v1309 = vadd.f32 %v1098, %v1277
      %v1310 = vadd.f32 %v1099, %v1280
      %v1311 = vadd.f32 %v1100, %v1285
      %v1312 = vadd.f32 %v1101, %v1288
      %v1313 = vadd.f32 %v1102, %v1293
      %v1314 = vadd.f32 %v1103, %v1296
      %v1315 = vadd.f32 %v1104, %v1301
      %v1316 = vadd.f32 %v1105, %v1304
      %v1317 = vld [vmem:[%s324 + $0x4] sm:$0xc]
      %s1318 = scalar_lea.vmem %s3, 320
      %v1319 = vld [vmem:[%s1318] sm:$0xf]
      %v1320 = vld [vmem:[%s1318 + $0x4] sm:$0xf]
      %v1321 = vld [vmem:[%s1318 + $0x8] sm:$0xf]
      %v1322 = vld [vmem:[%s1318 + $0xc] sm:$0xf]
      %v1323 = vld [vmem:[%s1318 + $0x10] sm:$0xf]
      %v1324 = vld [vmem:[%s1318 + $0x14] sm:$0xf]
      %v1325 = vld [vmem:[%s1318 + $0x18] sm:$0xf]
      %v1326 = vld [vmem:[%s1318 + $0x1c] sm:$0xf]
      %v1327 = vld [vmem:[%s1318 + $0x20] sm:$0xf]
      %v1328 = vld [vmem:[%s1318 + $0x24] sm:$0xf]
      %v1329 = vld [vmem:[%s1318 + $0x28] sm:$0xf]
      %v1330 = vld [vmem:[%s1318 + $0x2c] sm:$0xf]
      %v1331 = vld [vmem:[%s1318 + $0x30] sm:$0xf]
      %v1332 = vld [vmem:[%s1318 + $0x34] sm:$0xf]
      %v1333 = vld [vmem:[%s1318 + $0x38] sm:$0xf]
      %v1334 = vld [vmem:[%s1318 + $0x3c] sm:$0xf]
      %v1336 = vunpack.c.l.b16 %v1317
      %v1337 = vpack.c.b16 %v943, %v1336
      %vm1338 = vcmask 1045504
      %v1339 = vrot.slane %v1337, 2
      %v1340 = vrot.slane %v954, 2
      %v1341 = vsel %vm1338, %v1339, %v1340
      %v1342 = vrot.slane %v955, 2
      %v1343 = vsel %vm1338, %v1340, %v1342
      %v1344 = vrot.slane %v956, 2
      %v1345 = vsel %vm1338, %v1342, %v1344
      %v1346 = vrot.slane %v957, 2
      %v1347 = vsel %vm1338, %v1344, %v1346
      %v1348 = vrot.slane %v1126, 2
      %v1349 = vsel %vm1338, %v1346, %v1348
      %v1371 = vunpack.c.l.b16 %v1319
      %v1372 = vunpack.c.l.b16 %v1320
      %v1373 = vunpack.c.l.b16 %v1321
      %v1374 = vunpack.c.l.b16 %v1322
      %v1375 = vunpack.c.l.b16 %v1323
      %v1376 = vunpack.c.l.b16 %v1324
      %v1377 = vunpack.c.l.b16 %v1325
      %v1378 = vunpack.c.l.b16 %v1326
      %v1379 = vunpack.c.l.b16 %v1327
      %v1380 = vunpack.c.l.b16 %v1328
      %v1381 = vunpack.c.l.b16 %v1329
      %v1382 = vunpack.c.l.b16 %v1330
      %v1383 = vunpack.c.l.b16 %v1331
      %v1384 = vunpack.c.l.b16 %v1332
      %v1385 = vunpack.c.l.b16 %v1333
      %v1386 = vunpack.c.l.b16 %v1334
      %v1387 = vpack.c.b16 %v1372, %v1371
      %v1388 = vpack.c.b16 %v1374, %v1373
      %v1389 = vpack.c.b16 %v1376, %v1375
      %v1390 = vpack.c.b16 %v1378, %v1377
      %v1391 = vpack.c.b16 %v1380, %v1379
      %v1392 = vpack.c.b16 %v1382, %v1381
      %v1393 = vpack.c.b16 %v1384, %v1383
      %v1394 = vpack.c.b16 %v1386, %v1385
      %1403 = vmatprep.subr.bf16.mxu0 0
      %1404 = vmatpush1.bf16.msra.mxu0 %v1387
      %1405 = vmatprep.subr.bf16.mxu0 0
      %1406 = vmatpush1.bf16.msra.mxu0 %v1388
      %1407 = vmatprep.subr.bf16.mxu0 0
      %1408 = vmatpush1.bf16.msra.mxu0 %v1389
      %1409 = vmatprep.subr.bf16.mxu0 0
      %1410 = vmatpush1.bf16.msra.mxu0 %v1390
      %1411 = vmatprep.subr.bf16.mxu0 0
      %1412 = vmatpush1.bf16.msra.mxu0 %v1391
      %1413 = vmatprep.subr.bf16.mxu0 0
      %1414 = vmatpush1.bf16.msra.mxu0 %v1392
      %1415 = vmatprep.subr.bf16.mxu0 0
      %1416 = vmatpush1.bf16.msra.mxu0 %v1393
      %1417 = vmatprep.subr.bf16.mxu0 0
      %1418 = vmatpush1.bf16.msra.mxu0 %v1394
      %1419 = vmatprep.subr.bf16.mxu0 0
      %1420 = vmatpush1.bf16.msra.mxu0 0
      %1421 = vmatprep.subr.bf16.mxu0 0
      %1422 = vmatpush1.bf16.msra.mxu0 0
      %1423 = vmatprep.subr.bf16.mxu0 0
      %1424 = vmatpush1.bf16.msra.mxu0 0
      %1425 = vmatprep.subr.bf16.mxu0 0
      %1426 = vmatpush1.bf16.msra.mxu0 0
      %1427 = vmatprep.subr.bf16.mxu0 0
      %1428 = vmatpush1.bf16.msra.mxu0 0
      %1429 = vmatprep.subr.bf16.mxu0 0
      %1430 = vmatpush1.bf16.msra.mxu0 0
      %1431 = vmatprep.subr.bf16.mxu0 0
      %1432 = vmatpush1.bf16.msra.mxu0 0
      %1433 = vmatprep.subr.bf16.mxu0 0
      %1434 = vmatpush1.bf16.msra.mxu0 0
      %1435 = vmatprep.mubr.bf16.mxu0 0
      %1436 = vmatmul.mubr.bf16.gmra.mrb[0].mxu0 %v1341
      %v1437 = vpop.f32.mrb[0].mxu0
      %v1438 = vadd.f32 0.0, %v1437
      %v1439 = vpop.f32.mrb[0].mxu0
      %v1440 = vpop.f32.mrb[0].mxu0
      %v1441 = vadd.f32 0.0, %v1440
      %v1442 = vpop.f32.mrb[0].mxu0
      %1443 = vmatprep.mubr.bf16.mxu0 0
      %1444 = vmatmul.mubr.bf16.gmra.mrb[0].mxu0 %v1343
      %v1445 = vpop.f32.mrb[0].mxu0
      %v1446 = vadd.f32 0.0, %v1445
      %v1447 = vpop.f32.mrb[0].mxu0
      %v1448 = vpop.f32.mrb[0].mxu0
      %v1449 = vadd.f32 0.0, %v1448
      %v1450 = vpop.f32.mrb[0].mxu0
      %1451 = vmatprep.mubr.bf16.mxu0 0
      %1452 = vmatmul.mubr.bf16.gmra.mrb[0].mxu0 %v1345
      %v1453 = vpop.f32.mrb[0].mxu0
      %v1454 = vadd.f32 0.0, %v1453
      %v1455 = vpop.f32.mrb[0].mxu0
      %v1456 = vpop.f32.mrb[0].mxu0
      %v1457 = vadd.f32 0.0, %v1456
      %v1458 = vpop.f32.mrb[0].mxu0
      %1459 = vmatprep.mubr.bf16.mxu0 0
      %1460 = vmatmul.mubr.bf16.gmra.mrb[0].mxu0 %v1347
      %v1461 = vpop.f32.mrb[0].mxu0
      %v1462 = vadd.f32 0.0, %v1461
      %v1463 = vpop.f32.mrb[0].mxu0
      %v1464 = vpop.f32.mrb[0].mxu0
      %v1465 = vadd.f32 0.0, %v1464
      %v1466 = vpop.f32.mrb[0].mxu0
      %1467 = vmatprep.mubr.bf16.mxu0 0
      %1468 = vmatmul.mubr.bf16.gmra.mrb[0].mxu0 %v1349
      %v1469 = vpop.f32.mrb[0].mxu0
      %v1470 = vadd.f32 0.0, %v1469
      %v1471 = vpop.f32.mrb[0].mxu0
      %v1472 = vpop.f32.mrb[0].mxu0
      %v1473 = vadd.f32 0.0, %v1472
      %v1474 = vpop.f32.mrb[0].mxu0
      %1475 = vdwg.mxu0
      %v1476 = vadd.f32 %v1307, %v1438
      %v1477 = vadd.f32 %v1308, %v1441
      %v1478 = vadd.f32 %v1309, %v1446
      %v1479 = vadd.f32 %v1310, %v1449
      %v1480 = vadd.f32 %v1311, %v1454
      %v1481 = vadd.f32 %v1312, %v1457
      %v1482 = vadd.f32 %v1313, %v1462
      %v1483 = vadd.f32 %v1314, %v1465
      %v1484 = vadd.f32 %v1315, %v1470
      %v1485 = vadd.f32 %v1316, %v1473
      %v1486 = vld [vmem:[%s324 + $0x8] sm:$0xc]
      %v1487 = vld [vmem:[%s324 + $0xc] sm:$0xf]
      %v1488 = vld [vmem:[%s324 + $0x10] sm:$0xf]
      %v1489 = vld [vmem:[%s324 + $0x14] sm:$0xf]
      %v1490 = vld [vmem:[%s324 + $0x18] sm:$0xf]
      %v1491 = vld [vmem:[%s324 + $0x1c] sm:$0xf]
      %v1492 = vld [vmem:[%s324 + $0x20] sm:$0xf]
      %v1493 = vld [vmem:[%s324 + $0x24] sm:$0xf]
      %v1494 = vld [vmem:[%s324 + $0x28] sm:$0xf]
      %v1495 = vld [vmem:[%s324 + $0x2c] sm:$0xf]
      %v1496 = vld [vmem:[%s324 + $0x30] sm:$0x3]
      %s1497 = scalar_lea.vmem %s3, 384
      %v1498 = vld [vmem:[%s1497] sm:$0xf]
      %v1499 = vld [vmem:[%s1497 + $0x4] sm:$0xf]
      %v1500 = vld [vmem:[%s1497 + $0x8] sm:$0xf]
      %v1501 = vld [vmem:[%s1497 + $0xc] sm:$0xf]
      %v1502 = vld [vmem:[%s1497 + $0x10] sm:$0xf]
      %v1503 = vld [vmem:[%s1497 + $0x14] sm:$0xf]
      %v1504 = vld [vmem:[%s1497 + $0x18] sm:$0xf]
      %v1505 = vld [vmem:[%s1497 + $0x1c] sm:$0xf]
      %v1506 = vld [vmem:[%s1497 + $0x20] sm:$0xf]
      %v1507 = vld [vmem:[%s1497 + $0x24] sm:$0xf]
      %v1508 = vld [vmem:[%s1497 + $0x28] sm:$0xf]
      %v1509 = vld [vmem:[%s1497 + $0x2c] sm:$0xf]
      %v1510 = vld [vmem:[%s1497 + $0x30] sm:$0xf]
      %v1511 = vld [vmem:[%s1497 + $0x34] sm:$0xf]
      %v1512 = vld [vmem:[%s1497 + $0x38] sm:$0xf]
      %v1513 = vld [vmem:[%s1497 + $0x3c] sm:$0xf]
      %v1525 = vunpack.c.l.b16 %v1486
      %v1526 = vunpack.c.l.b16 %v1487
      %v1527 = vunpack.c.l.b16 %v1488
      %v1528 = vunpack.c.l.b16 %v1489
      %v1529 = vunpack.c.l.b16 %v1490
      %v1530 = vunpack.c.l.b16 %v1491
      %v1531 = vunpack.c.l.b16 %v1492
      %v1532 = vunpack.c.l.b16 %v1493
      %v1533 = vunpack.c.l.b16 %v1494
      %v1534 = vunpack.c.l.b16 %v1495
      %v1535 = vunpack.c.l.b16 %v1496
      %v1536 = vpack.c.b16 %v1526, %v1525
      %v1537 = vpack.c.b16 %v1528, %v1527
      %v1538 = vpack.c.b16 %v1530, %v1529
      %v1539 = vpack.c.b16 %v1532, %v1531
      %v1540 = vpack.c.b16 %v1534, %v1533
      %v1541 = vpack.c.b16 %v1535, %v1535
      %v1542 = vrot.slane %v1536, 2
      %v1543 = vrot.slane %v1537, 2
      %v1544 = vsel %vm1338, %v1542, %v1543
      %v1545 = vrot.slane %v1538, 2
      %v1546 = vsel %vm1338, %v1543, %v1545
      %v1547 = vrot.slane %v1539, 2
      %v1548 = vsel %vm1338, %v1545, %v1547
      %v1549 = vrot.slane %v1540, 2
      %v1550 = vsel %vm1338, %v1547, %v1549
      %v1551 = vrot.slane %v1541, 2
      %v1552 = vsel %vm1338, %v1549, %v1551
      %v1574 = vunpack.c.l.b16 %v1498
      %v1575 = vunpack.c.l.b16 %v1499
      %v1576 = vunpack.c.l.b16 %v1500
      %v1577 = vunpack.c.l.b16 %v1501
      %v1578 = vunpack.c.l.b16 %v1502
      %v1579 = vunpack.c.l.b16 %v1503
      %v1580 = vunpack.c.l.b16 %v1504
      %v1581 = vunpack.c.l.b16 %v1505
      %v1582 = vunpack.c.l.b16 %v1506
      %v1583 = vunpack.c.l.b16 %v1507
      %v1584 = vunpack.c.l.b16 %v1508
      %v1585 = vunpack.c.l.b16 %v1509
      %v1586 = vunpack.c.l.b16 %v1510
      %v1587 = vunpack.c.l.b16 %v1511
      %v1588 = vunpack.c.l.b16 %v1512
      %v1589 = vunpack.c.l.b16 %v1513
      %v1590 = vpack.c.b16 %v1575, %v1574
      %v1591 = vpack.c.b16 %v1577, %v1576
      %v1592 = vpack.c.b16 %v1579, %v1578
      %v1593 = vpack.c.b16 %v1581, %v1580
      %v1594 = vpack.c.b16 %v1583, %v1582
      %v1595 = vpack.c.b16 %v1585, %v1584
      %v1596 = vpack.c.b16 %v1587, %v1586
      %v1597 = vpack.c.b16 %v1589, %v1588
      %1606 = vmatprep.subr.bf16.mxu0 0
      %1607 = vmatpush1.bf16.msra.mxu0 %v1590
      %1608 = vmatprep.subr.bf16.mxu0 0
      %1609 = vmatpush1.bf16.msra.mxu0 %v1591
      %1610 = vmatprep.subr.bf16.mxu0 0
      %1611 = vmatpush1.bf16.msra.mxu0 %v1592
      %1612 = vmatprep.subr.bf16.mxu0 0
      %1613 = vmatpush1.bf16.msra.mxu0 %v1593
      %1614 = vmatprep.subr.bf16.mxu0 0
      %1615 = vmatpush1.bf16.msra.mxu0 %v1594
      %1616 = vmatprep.subr.bf16.mxu0 0
      %1617 = vmatpush1.bf16.msra.mxu0 %v1595
      %1618 = vmatprep.subr.bf16.mxu0 0
      %1619 = vmatpush1.bf16.msra.mxu0 %v1596
      %1620 = vmatprep.subr.bf16.mxu0 0
      %1621 = vmatpush1.bf16.msra.mxu0 %v1597
      %1622 = vmatprep.subr.bf16.mxu0 0
      %1623 = vmatpush1.bf16.msra.mxu0 0
      %1624 = vmatprep.subr.bf16.mxu0 0
      %1625 = vmatpush1.bf16.msra.mxu0 0
      %1626 = vmatprep.subr.bf16.mxu0 0
      %1627 = vmatpush1.bf16.msra.mxu0 0
      %1628 = vmatprep.subr.bf16.mxu0 0
      %1629 = vmatpush1.bf16.msra.mxu0 0
      %1630 = vmatprep.subr.bf16.mxu0 0
      %1631 = vmatpush1.bf16.msra.mxu0 0
      %1632 = vmatprep.subr.bf16.mxu0 0
      %1633 = vmatpush1.bf16.msra.mxu0 0
      %1634 = vmatprep.subr.bf16.mxu0 0
      %1635 = vmatpush1.bf16.msra.mxu0 0
      %1636 = vmatprep.subr.bf16.mxu0 0
      %1637 = vmatpush1.bf16.msra.mxu0 0
      %1638 = vmatprep.mubr.bf16.mxu0 0
      %1639 = vmatmul.mubr.bf16.gmra.mrb[0].mxu0 %v1544
      %v1640 = vpop.f32.mrb[0].mxu0
      %v1641 = vadd.f32 0.0, %v1640
      %v1642 = vpop.f32.mrb[0].mxu0
      %v1643 = vpop.f32.mrb[0].mxu0
      %v1644 = vadd.f32 0.0, %v1643
      %v1645 = vpop.f32.mrb[0].mxu0
      %1646 = vmatprep.mubr.bf16.mxu0 0
      %1647 = vmatmul.mubr.bf16.gmra.mrb[0].mxu0 %v1546
      %v1648 = vpop.f32.mrb[0].mxu0
      %v1649 = vadd.f32 0.0, %v1648
      %v1650 = vpop.f32.mrb[0].mxu0
      %v1651 = vpop.f32.mrb[0].mxu0
      %v1652 = vadd.f32 0.0, %v1651
      %v1653 = vpop.f32.mrb[0].mxu0
      %1654 = vmatprep.mubr.bf16.mxu0 0
      %1655 = vmatmul.mubr.bf16.gmra.mrb[0].mxu0 %v1548
      %v1656 = vpop.f32.mrb[0].mxu0
      %v1657 = vadd.f32 0.0, %v1656
      %v1658 = vpop.f32.mrb[0].mxu0
      %v1659 = vpop.f32.mrb[0].mxu0
      %v1660 = vadd.f32 0.0, %v1659
      %v1661 = vpop.f32.mrb[0].mxu0
      %1662 = vmatprep.mubr.bf16.mxu0 0
      %1663 = vmatmul.mubr.bf16.gmra.mrb[0].mxu0 %v1550
      %v1664 = vpop.f32.mrb[0].mxu0
      %v1665 = vadd.f32 0.0, %v1664
      %v1666 = vpop.f32.mrb[0].mxu0
      %v1667 = vpop.f32.mrb[0].mxu0
      %v1668 = vadd.f32 0.0, %v1667
      %v1669 = vpop.f32.mrb[0].mxu0
      %1670 = vmatprep.mubr.bf16.mxu0 0
      %1671 = vmatmul.mubr.bf16.gmra.mrb[0].mxu0 %v1552
      %v1672 = vpop.f32.mrb[0].mxu0
      %v1673 = vadd.f32 0.0, %v1672
      %v1674 = vpop.f32.mrb[0].mxu0
      %v1675 = vpop.f32.mrb[0].mxu0
      %v1676 = vadd.f32 0.0, %v1675
      %v1677 = vpop.f32.mrb[0].mxu0
      %1678 = vdwg.mxu0
      %v1679 = vadd.f32 %v1476, %v1641
      %v1680 = vadd.f32 %v1477, %v1644
      %v1681 = vadd.f32 %v1478, %v1649
      %v1682 = vadd.f32 %v1479, %v1652
      %v1683 = vadd.f32 %v1480, %v1657
      %v1684 = vadd.f32 %v1481, %v1660
      %v1685 = vadd.f32 %v1482, %v1665
      %v1686 = vadd.f32 %v1483, %v1668
      %v1687 = vadd.f32 %v1484, %v1673
      %v1688 = vadd.f32 %v1485, %v1676
      %v1689 = vld [vmem:[%s324 + $0x30] sm:$0x7]
      %s1690 = scalar_lea.vmem %s3, 448
      %v1691 = vld [vmem:[%s1690] sm:$0xf]
      %v1692 = vld [vmem:[%s1690 + $0x4] sm:$0xf]
      %v1693 = vld [vmem:[%s1690 + $0x8] sm:$0xf]
      %v1694 = vld [vmem:[%s1690 + $0xc] sm:$0xf]
      %v1695 = vld [vmem:[%s1690 + $0x10] sm:$0xf]
      %v1696 = vld [vmem:[%s1690 + $0x14] sm:$0xf]
      %v1697 = vld [vmem:[%s1690 + $0x18] sm:$0xf]
      %v1698 = vld [vmem:[%s1690 + $0x1c] sm:$0xf]
      %v1699 = vld [vmem:[%s1690 + $0x20] sm:$0xf]
      %v1700 = vld [vmem:[%s1690 + $0x24] sm:$0xf]
      %v1701 = vld [vmem:[%s1690 + $0x28] sm:$0xf]
      %v1702 = vld [vmem:[%s1690 + $0x2c] sm:$0xf]
      %v1703 = vld [vmem:[%s1690 + $0x30] sm:$0xf]
      %v1704 = vld [vmem:[%s1690 + $0x34] sm:$0xf]
      %v1705 = vld [vmem:[%s1690 + $0x38] sm:$0xf]
      %v1706 = vld [vmem:[%s1690 + $0x3c] sm:$0xf]
      %v1708 = vunpack.c.l.b16 %v1689
      %v1709 = vpack.c.b16 %v1708, %v1708
      %vm1710 = vsmask.f32 5376
      %v1712 = vshrl.u32 %v1536, 16
      %v1714 = vrot.slane %v1712, 2
      %v1715 = vshll.u32 %v1536, 16
      %v1717 = vrot.slane %v1715, 3
      %v1718 = vor.u32 %v1714, %v1717
      %v1720 = vshrl.u32 %v1537, 16
      %v1722 = vrot.slane %v1720, 2
      %v1723 = vshll.u32 %v1537, 16
      %v1725 = vrot.slane %v1723, 3
      %v1726 = vor.u32 %v1722, %v1725
      %v1727 = vsel %vm1710, %v1718, %v1726
      %v1729 = vshrl.u32 %v1538, 16
      %v1731 = vrot.slane %v1729, 2
      %v1732 = vshll.u32 %v1538, 16
      %v1734 = vrot.slane %v1732, 3
      %v1735 = vor.u32 %v1731, %v1734
      %v1736 = vsel %vm1710, %v1726, %v1735
      %v1738 = vshrl.u32 %v1539, 16
      %v1740 = vrot.slane %v1738, 2
      %v1741 = vshll.u32 %v1539, 16
      %v1743 = vrot.slane %v1741, 3
      %v1744 = vor.u32 %v1740, %v1743
      %v1745 = vsel %vm1710, %v1735, %v1744
      %v1747 = vshrl.u32 %v1540, 16
      %v1749 = vrot.slane %v1747, 2
      %v1750 = vshll.u32 %v1540, 16
      %v1752 = vrot.slane %v1750, 3
      %v1753 = vor.u32 %v1749, %v1752
      %v1754 = vsel %vm1710, %v1744, %v1753
      %v1756 = vshrl.u32 %v1709, 16
      %v1758 = vrot.slane %v1756, 2
      %v1759 = vshll.u32 %v1709, 16
      %v1761 = vrot.slane %v1759, 3
      %v1762 = vor.u32 %v1758, %v1761
      %v1763 = vsel %vm1710, %v1753, %v1762
      %v1785 = vunpack.c.l.b16 %v1691
      %v1786 = vunpack.c.l.b16 %v1692
      %v1787 = vunpack.c.l.b16 %v1693
      %v1788 = vunpack.c.l.b16 %v1694
      %v1789 = vunpack.c.l.b16 %v1695
      %v1790 = vunpack.c.l.b16 %v1696
      %v1791 = vunpack.c.l.b16 %v1697
      %v1792 = vunpack.c.l.b16 %v1698
      %v1793 = vunpack.c.l.b16 %v1699
      %v1794 = vunpack.c.l.b16 %v1700
      %v1795 = vunpack.c.l.b16 %v1701
      %v1796 = vunpack.c.l.b16 %v1702
      %v1797 = vunpack.c.l.b16 %v1703
      %v1798 = vunpack.c.l.b16 %v1704
      %v1799 = vunpack.c.l.b16 %v1705
      %v1800 = vunpack.c.l.b16 %v1706
      %v1801 = vpack.c.b16 %v1786, %v1785
      %v1802 = vpack.c.b16 %v1788, %v1787
      %v1803 = vpack.c.b16 %v1790, %v1789
      %v1804 = vpack.c.b16 %v1792, %v1791
      %v1805 = vpack.c.b16 %v1794, %v1793
      %v1806 = vpack.c.b16 %v1796, %v1795
      %v1807 = vpack.c.b16 %v1798, %v1797
      %v1808 = vpack.c.b16 %v1800, %v1799
      %1817 = vmatprep.subr.bf16.mxu0 0
      %1818 = vmatpush1.bf16.msra.mxu0 %v1801
      %1819 = vmatprep.subr.bf16.mxu0 0
      %1820 = vmatpush1.bf16.msra.mxu0 %v1802
      %1821 = vmatprep.subr.bf16.mxu0 0
      %1822 = vmatpush1.bf16.msra.mxu0 %v1803
      %1823 = vmatprep.subr.bf16.mxu0 0
      %1824 = vmatpush1.bf16.msra.mxu0 %v1804
      %1825 = vmatprep.subr.bf16.mxu0 0
      %1826 = vmatpush1.bf16.msra.mxu0 %v1805
      %1827 = vmatprep.subr.bf16.mxu0 0
      %1828 = vmatpush1.bf16.msra.mxu0 %v1806
      %1829 = vmatprep.subr.bf16.mxu0 0
      %1830 = vmatpush1.bf16.msra.mxu0 %v1807
      %1831 = vmatprep.subr.bf16.mxu0 0
      %1832 = vmatpush1.bf16.msra.mxu0 %v1808
      %1833 = vmatprep.subr.bf16.mxu0 0
      %1834 = vmatpush1.bf16.msra.mxu0 0
      %1835 = vmatprep.subr.bf16.mxu0 0
      %1836 = vmatpush1.bf16.msra.mxu0 0
      %1837 = vmatprep.subr.bf16.mxu0 0
      %1838 = vmatpush1.bf16.msra.mxu0 0
      %1839 = vmatprep.subr.bf16.mxu0 0
      %1840 = vmatpush1.bf16.msra.mxu0 0
      %1841 = vmatprep.subr.bf16.mxu0 0
      %1842 = vmatpush1.bf16.msra.mxu0 0
      %1843 = vmatprep.subr.bf16.mxu0 0
      %1844 = vmatpush1.bf16.msra.mxu0 0
      %1845 = vmatprep.subr.bf16.mxu0 0
      %1846 = vmatpush1.bf16.msra.mxu0 0
      %1847 = vmatprep.subr.bf16.mxu0 0
      %1848 = vmatpush1.bf16.msra.mxu0 0
      %1849 = vmatprep.mubr.bf16.mxu0 0
      %1850 = vmatmul.mubr.bf16.gmra.mrb[0].mxu0 %v1727
      %v1851 = vpop.f32.mrb[0].mxu0
      %v1852 = vadd.f32 0.0, %v1851
      %v1853 = vpop.f32.mrb[0].mxu0
      %v1854 = vpop.f32.mrb[0].mxu0
      %v1855 = vadd.f32 0.0, %v1854
      %v1856 = vpop.f32.mrb[0].mxu0
      %1857 = vmatprep.mubr.bf16.mxu0 0
      %1858 = vmatmul.mubr.bf16.gmra.mrb[0].mxu0 %v1736
      %v1859 = vpop.f32.mrb[0].mxu0
      %v1860 = vadd.f32 0.0, %v1859
      %v1861 = vpop.f32.mrb[0].mxu0
      %v1862 = vpop.f32.mrb[0].mxu0
      %v1863 = vadd.f32 0.0, %v1862
      %v1864 = vpop.f32.mrb[0].mxu0
      %1865 = vmatprep.mubr.bf16.mxu0 0
      %1866 = vmatmul.mubr.bf16.gmra.mrb[0].mxu0 %v1745
      %v1867 = vpop.f32.mrb[0].mxu0
      %v1868 = vadd.f32 0.0, %v1867
      %v1869 = vpop.f32.mrb[0].mxu0
      %v1870 = vpop.f32.mrb[0].mxu0
      %v1871 = vadd.f32 0.0, %v1870
      %v1872 = vpop.f32.mrb[0].mxu0
      %1873 = vmatprep.mubr.bf16.mxu0 0
      %1874 = vmatmul.mubr.bf16.gmra.mrb[0].mxu0 %v1754
      %v1875 = vpop.f32.mrb[0].mxu0
      %v1876 = vadd.f32 0.0, %v1875
      %v1877 = vpop.f32.mrb[0].mxu0
      %v1878 = vpop.f32.mrb[0].mxu0
      %v1879 = vadd.f32 0.0, %v1878
      %v1880 = vpop.f32.mrb[0].mxu0
      %1881 = vmatprep.mubr.bf16.mxu0 0
      %1882 = vmatmul.mubr.bf16.gmra.mrb[0].mxu0 %v1763
      %v1883 = vpop.f32.mrb[0].mxu0
      %v1884 = vadd.f32 0.0, %v1883
      %v1885 = vpop.f32.mrb[0].mxu0
      %v1886 = vpop.f32.mrb[0].mxu0
      %v1887 = vadd.f32 0.0, %v1886
      %v1888 = vpop.f32.mrb[0].mxu0
      %1889 = vdwg.mxu0
      %v1890 = vadd.f32 %v1679, %v1852
      %v1891 = vadd.f32 %v1680, %v1855
      %v1892 = vadd.f32 %v1681, %v1860
      %v1893 = vadd.f32 %v1682, %v1863
      %v1894 = vadd.f32 %v1683, %v1868
      %v1895 = vadd.f32 %v1684, %v1871
      %v1896 = vadd.f32 %v1685, %v1876
      %v1897 = vadd.f32 %v1686, %v1879
      %v1898 = vadd.f32 %v1687, %v1884
      %v1899 = vadd.f32 %v1688, %v1887
      %v1900 = vld [vmem:[%s324 + $0x8] sm:$0x8]
      %s1901 = scalar_lea.vmem %s3, 512
      %v1902 = vld [vmem:[%s1901] sm:$0xf]
      %v1903 = vld [vmem:[%s1901 + $0x4] sm:$0xf]
      %v1904 = vld [vmem:[%s1901 + $0x8] sm:$0xf]
      %v1905 = vld [vmem:[%s1901 + $0xc] sm:$0xf]
      %v1906 = vld [vmem:[%s1901 + $0x10] sm:$0xf]
      %v1907 = vld [vmem:[%s1901 + $0x14] sm:$0xf]
      %v1908 = vld [vmem:[%s1901 + $0x18] sm:$0xf]
      %v1909 = vld [vmem:[%s1901 + $0x1c] sm:$0xf]
      %v1910 = vld [vmem:[%s1901 + $0x20] sm:$0xf]
      %v1911 = vld [vmem:[%s1901 + $0x24] sm:$0xf]
      %v1912 = vld [vmem:[%s1901 + $0x28] sm:$0xf]
      %v1913 = vld [vmem:[%s1901 + $0x2c] sm:$0xf]
      %v1914 = vld [vmem:[%s1901 + $0x30] sm:$0xf]
      %v1915 = vld [vmem:[%s1901 + $0x34] sm:$0xf]
      %v1916 = vld [vmem:[%s1901 + $0x38] sm:$0xf]
      %v1917 = vld [vmem:[%s1901 + $0x3c] sm:$0xf]
      %v1919 = vunpack.c.l.b16 %v1900
      %v1920 = vpack.c.b16 %v1526, %v1919
      %vm1921 = vcmask 1044480
      %v1922 = vrot.slane %v1920, 3
      %v1923 = vrot.slane %v1537, 3
      %v1924 = vsel %vm1921, %v1922, %v1923
      %v1925 = vrot.slane %v1538, 3
      %v1926 = vsel %vm1921, %v1923, %v1925
      %v1927 = vrot.slane %v1539, 3
      %v1928 = vsel %vm1921, %v1925, %v1927
      %v1929 = vrot.slane %v1540, 3
      %v1930 = vsel %vm1921, %v1927, %v1929
      %v1931 = vrot.slane %v1709, 3
      %v1932 = vsel %vm1921, %v1929, %v1931
      %v1954 = vunpack.c.l.b16 %v1902
      %v1955 = vunpack.c.l.b16 %v1903
      %v1956 = vunpack.c.l.b16 %v1904
      %v1957 = vunpack.c.l.b16 %v1905
      %v1958 = vunpack.c.l.b16 %v1906
      %v1959 = vunpack.c.l.b16 %v1907
      %v1960 = vunpack.c.l.b16 %v1908
      %v1961 = vunpack.c.l.b16 %v1909
      %v1962 = vunpack.c.l.b16 %v1910
      %v1963 = vunpack.c.l.b16 %v1911
      %v1964 = vunpack.c.l.b16 %v1912
      %v1965 = vunpack.c.l.b16 %v1913
      %v1966 = vunpack.c.l.b16 %v1914
      %v1967 = vunpack.c.l.b16 %v1915
      %v1968 = vunpack.c.l.b16 %v1916
      %v1969 = vunpack.c.l.b16 %v1917
      %v1970 = vpack.c.b16 %v1955, %v1954
      %v1971 = vpack.c.b16 %v1957, %v1956
      %v1972 = vpack.c.b16 %v1959, %v1958
      %v1973 = vpack.c.b16 %v1961, %v1960
      %v1974 = vpack.c.b16 %v1963, %v1962
      %v1975 = vpack.c.b16 %v1965, %v1964
      %v1976 = vpack.c.b16 %v1967, %v1966
      %v1977 = vpack.c.b16 %v1969, %v1968
      %1986 = vmatprep.subr.bf16.mxu0 0
      %1987 = vmatpush1.bf16.msra.mxu0 %v1970
      %1988 = vmatprep.subr.bf16.mxu0 0
      %1989 = vmatpush1.bf16.msra.mxu0 %v1971
      %1990 = vmatprep.subr.bf16.mxu0 0
      %1991 = vmatpush1.bf16.msra.mxu0 %v1972
      %1992 = vmatprep.subr.bf16.mxu0 0
      %1993 = vmatpush1.bf16.msra.mxu0 %v1973
      %1994 = vmatprep.subr.bf16.mxu0 0
      %1995 = vmatpush1.bf16.msra.mxu0 %v1974
      %1996 = vmatprep.subr.bf16.mxu0 0
      %1997 = vmatpush1.bf16.msra.mxu0 %v1975
      %1998 = vmatprep.subr.bf16.mxu0 0
      %1999 = vmatpush1.bf16.msra.mxu0 %v1976
      %2000 = vmatprep.subr.bf16.mxu0 0
      %2001 = vmatpush1.bf16.msra.mxu0 %v1977
      %2002 = vmatprep.subr.bf16.mxu0 0
      %2003 = vmatpush1.bf16.msra.mxu0 0
      %2004 = vmatprep.subr.bf16.mxu0 0
      %2005 = vmatpush1.bf16.msra.mxu0 0
      %2006 = vmatprep.subr.bf16.mxu0 0
      %2007 = vmatpush1.bf16.msra.mxu0 0
      %2008 = vmatprep.subr.bf16.mxu0 0
      %2009 = vmatpush1.bf16.msra.mxu0 0
      %2010 = vmatprep.subr.bf16.mxu0 0
      %2011 = vmatpush1.bf16.msra.mxu0 0
      %2012 = vmatprep.subr.bf16.mxu0 0
      %2013 = vmatpush1.bf16.msra.mxu0 0
      %2014 = vmatprep.subr.bf16.mxu0 0
      %2015 = vmatpush1.bf16.msra.mxu0 0
      %2016 = vmatprep.subr.bf16.mxu0 0
      %2017 = vmatpush1.bf16.msra.mxu0 0
      %2018 = vmatprep.mubr.bf16.mxu0 0
      %2019 = vmatmul.mubr.bf16.gmra.mrb[0].mxu0 %v1924
      %v2020 = vpop.f32.mrb[0].mxu0
      %v2021 = vadd.f32 0.0, %v2020
      %v2022 = vpop.f32.mrb[0].mxu0
      %v2023 = vpop.f32.mrb[0].mxu0
      %v2024 = vadd.f32 0.0, %v2023
      %v2025 = vpop.f32.mrb[0].mxu0
      %2026 = vmatprep.mubr.bf16.mxu0 0
      %2027 = vmatmul.mubr.bf16.gmra.mrb[0].mxu0 %v1926
      %v2028 = vpop.f32.mrb[0].mxu0
      %v2029 = vadd.f32 0.0, %v2028
      %v2030 = vpop.f32.mrb[0].mxu0
      %v2031 = vpop.f32.mrb[0].mxu0
      %v2032 = vadd.f32 0.0, %v2031
      %v2033 = vpop.f32.mrb[0].mxu0
      %2034 = vmatprep.mubr.bf16.mxu0 0
      %2035 = vmatmul.mubr.bf16.gmra.mrb[0].mxu0 %v1928
      %v2036 = vpop.f32.mrb[0].mxu0
      %v2037 = vadd.f32 0.0, %v2036
      %v2038 = vpop.f32.mrb[0].mxu0
      %v2039 = vpop.f32.mrb[0].mxu0
      %v2040 = vadd.f32 0.0, %v2039
      %v2041 = vpop.f32.mrb[0].mxu0
      %2042 = vmatprep.mubr.bf16.mxu0 0
      %2043 = vmatmul.mubr.bf16.gmra.mrb[0].mxu0 %v1930
      %v2044 = vpop.f32.mrb[0].mxu0
      %v2045 = vadd.f32 0.0, %v2044
      %v2046 = vpop.f32.mrb[0].mxu0
      %v2047 = vpop.f32.mrb[0].mxu0
      %v2048 = vadd.f32 0.0, %v2047
      %v2049 = vpop.f32.mrb[0].mxu0
      %2050 = vmatprep.mubr.bf16.mxu0 0
      %2051 = vmatmul.mubr.bf16.gmra.mrb[0].mxu0 %v1932
      %v2052 = vpop.f32.mrb[0].mxu0
      %v2053 = vadd.f32 0.0, %v2052
      %v2054 = vpop.f32.mrb[0].mxu0
      %v2055 = vpop.f32.mrb[0].mxu0
      %v2056 = vadd.f32 0.0, %v2055
      %v2057 = vpop.f32.mrb[0].mxu0
      %2058 = vdwg.mxu0
      %v2059 = vadd.f32 %v1890, %v2021
      %v2060 = vadd.f32 %v1891, %v2024
      %v2061 = vadd.f32 %v1892, %v2029
      %v2062 = vadd.f32 %v1893, %v2032
      %v2063 = vadd.f32 %v1894, %v2037
      %v2064 = vadd.f32 %v1895, %v2040
      %v2065 = vadd.f32 %v1896, %v2045
      %v2066 = vadd.f32 %v1897, %v2048
      %v2067 = vadd.f32 %v1898, %v2053
      %v2068 = vadd.f32 %v1899, %v2056
      %v2069 = vld [vmem:[%s334] sm:$0xf]
      %v2070 = vld [vmem:[%s334 + $0x4] sm:$0xf]
      %v2071 = vld [vmem:[%s334 + $0x8] sm:$0xf]
      %v2072 = vld [vmem:[%s334 + $0xc] sm:$0xf]
      %v2073 = vld [vmem:[%s334 + $0x10] sm:$0xf]
      %v2074 = vld [vmem:[%s334 + $0x14] sm:$0xf]
      %v2075 = vld [vmem:[%s334 + $0x18] sm:$0xf]
      %v2076 = vld [vmem:[%s334 + $0x1c] sm:$0xf]
      %v2077 = vld [vmem:[%s334 + $0x20] sm:$0xf]
      %v2078 = vld [vmem:[%s334 + $0x24] sm:$0xf]
      %s2079 = scalar_lea.vmem %s3, 576
      %v2080 = vld [vmem:[%s2079] sm:$0xf]
      %v2081 = vld [vmem:[%s2079 + $0x4] sm:$0xf]
      %v2082 = vld [vmem:[%s2079 + $0x8] sm:$0xf]
      %v2083 = vld [vmem:[%s2079 + $0xc] sm:$0xf]
      %v2084 = vld [vmem:[%s2079 + $0x10] sm:$0xf]
      %v2085 = vld [vmem:[%s2079 + $0x14] sm:$0xf]
      %v2086 = vld [vmem:[%s2079 + $0x18] sm:$0xf]
      %v2087 = vld [vmem:[%s2079 + $0x1c] sm:$0xf]
      %v2088 = vld [vmem:[%s2079 + $0x20] sm:$0xf]
      %v2089 = vld [vmem:[%s2079 + $0x24] sm:$0xf]
      %v2090 = vld [vmem:[%s2079 + $0x28] sm:$0xf]
      %v2091 = vld [vmem:[%s2079 + $0x2c] sm:$0xf]
      %v2092 = vld [vmem:[%s2079 + $0x30] sm:$0xf]
      %v2093 = vld [vmem:[%s2079 + $0x34] sm:$0xf]
      %v2094 = vld [vmem:[%s2079 + $0x38] sm:$0xf]
      %v2095 = vld [vmem:[%s2079 + $0x3c] sm:$0xf]
      %v2106 = vunpack.c.l.b16 %v2069
      %v2107 = vunpack.c.l.b16 %v2070
      %v2108 = vunpack.c.l.b16 %v2071
      %v2109 = vunpack.c.l.b16 %v2072
      %v2110 = vunpack.c.l.b16 %v2073
      %v2111 = vunpack.c.l.b16 %v2074
      %v2112 = vunpack.c.l.b16 %v2075
      %v2113 = vunpack.c.l.b16 %v2076
      %v2114 = vunpack.c.l.b16 %v2077
      %v2115 = vunpack.c.l.b16 %v2078
      %v2116 = vpack.c.b16 %v2107, %v2106
      %v2117 = vpack.c.b16 %v2109, %v2108
      %v2118 = vpack.c.b16 %v2111, %v2110
      %v2119 = vpack.c.b16 %v2113, %v2112
      %v2120 = vpack.c.b16 %v2115, %v2114
      %v2142 = vunpack.c.l.b16 %v2080
      %v2143 = vunpack.c.l.b16 %v2081
      %v2144 = vunpack.c.l.b16 %v2082
      %v2145 = vunpack.c.l.b16 %v2083
      %v2146 = vunpack.c.l.b16 %v2084
      %v2147 = vunpack.c.l.b16 %v2085
      %v2148 = vunpack.c.l.b16 %v2086
      %v2149 = vunpack.c.l.b16 %v2087
      %v2150 = vunpack.c.l.b16 %v2088
      %v2151 = vunpack.c.l.b16 %v2089
      %v2152 = vunpack.c.l.b16 %v2090
      %v2153 = vunpack.c.l.b16 %v2091
      %v2154 = vunpack.c.l.b16 %v2092
      %v2155 = vunpack.c.l.b16 %v2093
      %v2156 = vunpack.c.l.b16 %v2094
      %v2157 = vunpack.c.l.b16 %v2095
      %v2158 = vpack.c.b16 %v2143, %v2142
      %v2159 = vpack.c.b16 %v2145, %v2144
      %v2160 = vpack.c.b16 %v2147, %v2146
      %v2161 = vpack.c.b16 %v2149, %v2148
      %v2162 = vpack.c.b16 %v2151, %v2150
      %v2163 = vpack.c.b16 %v2153, %v2152
      %v2164 = vpack.c.b16 %v2155, %v2154
      %v2165 = vpack.c.b16 %v2157, %v2156
      %2174 = vmatprep.subr.bf16.mxu0 0
      %2175 = vmatpush1.bf16.msra.mxu0 %v2158
      %2176 = vmatprep.subr.bf16.mxu0 0
      %2177 = vmatpush1.bf16.msra.mxu0 %v2159
      %2178 = vmatprep.subr.bf16.mxu0 0
      %2179 = vmatpush1.bf16.msra.mxu0 %v2160
      %2180 = vmatprep.subr.bf16.mxu0 0
      %2181 = vmatpush1.bf16.msra.mxu0 %v2161
      %2182 = vmatprep.subr.bf16.mxu0 0
      %2183 = vmatpush1.bf16.msra.mxu0 %v2162
      %2184 = vmatprep.subr.bf16.mxu0 0
      %2185 = vmatpush1.bf16.msra.mxu0 %v2163
      %2186 = vmatprep.subr.bf16.mxu0 0
      %2187 = vmatpush1.bf16.msra.mxu0 %v2164
      %2188 = vmatprep.subr.bf16.mxu0 0
      %2189 = vmatpush1.bf16.msra.mxu0 %v2165
      %2190 = vmatprep.subr.bf16.mxu0 0
      %2191 = vmatpush1.bf16.msra.mxu0 0
      %2192 = vmatprep.subr.bf16.mxu0 0
      %2193 = vmatpush1.bf16.msra.mxu0 0
      %2194 = vmatprep.subr.bf16.mxu0 0
      %2195 = vmatpush1.bf16.msra.mxu0 0
      %2196 = vmatprep.subr.bf16.mxu0 0
      %2197 = vmatpush1.bf16.msra.mxu0 0
      %2198 = vmatprep.subr.bf16.mxu0 0
      %2199 = vmatpush1.bf16.msra.mxu0 0
      %2200 = vmatprep.subr.bf16.mxu0 0
      %2201 = vmatpush1.bf16.msra.mxu0 0
      %2202 = vmatprep.subr.bf16.mxu0 0
      %2203 = vmatpush1.bf16.msra.mxu0 0
      %2204 = vmatprep.subr.bf16.mxu0 0
      %2205 = vmatpush1.bf16.msra.mxu0 0
      %2206 = vmatprep.mubr.bf16.mxu0 0
      %2207 = vmatmul.mubr.bf16.gmra.mrb[0].mxu0 %v2116
      %v2208 = vpop.f32.mrb[0].mxu0
      %v2209 = vadd.f32 0.0, %v2208
      %v2210 = vpop.f32.mrb[0].mxu0
      %v2211 = vpop.f32.mrb[0].mxu0
      %v2212 = vadd.f32 0.0, %v2211
      %v2213 = vpop.f32.mrb[0].mxu0
      %2214 = vmatprep.mubr.bf16.mxu0 0
      %2215 = vmatmul.mubr.bf16.gmra.mrb[0].mxu0 %v2117
      %v2216 = vpop.f32.mrb[0].mxu0
      %v2217 = vadd.f32 0.0, %v2216
      %v2218 = vpop.f32.mrb[0].mxu0
      %v2219 = vpop.f32.mrb[0].mxu0
      %v2220 = vadd.f32 0.0, %v2219
      %v2221 = vpop.f32.mrb[0].mxu0
      %2222 = vmatprep.mubr.bf16.mxu0 0
      %2223 = vmatmul.mubr.bf16.gmra.mrb[0].mxu0 %v2118
      %v2224 = vpop.f32.mrb[0].mxu0
      %v2225 = vadd.f32 0.0, %v2224
      %v2226 = vpop.f32.mrb[0].mxu0
      %v2227 = vpop.f32.mrb[0].mxu0
      %v2228 = vadd.f32 0.0, %v2227
      %v2229 = vpop.f32.mrb[0].mxu0
      %2230 = vmatprep.mubr.bf16.mxu0 0
      %2231 = vmatmul.mubr.bf16.gmra.mrb[0].mxu0 %v2119
      %v2232 = vpop.f32.mrb[0].mxu0
      %v2233 = vadd.f32 0.0, %v2232
      %v2234 = vpop.f32.mrb[0].mxu0
      %v2235 = vpop.f32.mrb[0].mxu0
      %v2236 = vadd.f32 0.0, %v2235
      %v2237 = vpop.f32.mrb[0].mxu0
      %2238 = vmatprep.mubr.bf16.mxu0 0
      %2239 = vmatmul.mubr.bf16.gmra.mrb[0].mxu0 %v2120
      %v2240 = vpop.f32.mrb[0].mxu0
      %v2241 = vadd.f32 0.0, %v2240
      %v2242 = vpop.f32.mrb[0].mxu0
      %v2243 = vpop.f32.mrb[0].mxu0
      %v2244 = vadd.f32 0.0, %v2243
      %v2245 = vpop.f32.mrb[0].mxu0
      %2246 = vdwg.mxu0
      %v2247 = vadd.f32 %v2059, %v2209
      %v2248 = vadd.f32 %v2060, %v2212
      %v2249 = vadd.f32 %v2061, %v2217
      %v2250 = vadd.f32 %v2062, %v2220
      %v2251 = vadd.f32 %v2063, %v2225
      %v2252 = vadd.f32 %v2064, %v2228
      %v2253 = vadd.f32 %v2065, %v2233
      %v2254 = vadd.f32 %v2066, %v2236
      %v2255 = vadd.f32 %v2067, %v2241
      %v2256 = vadd.f32 %v2068, %v2244
      %v2257 = vld [vmem:[%s334] sm:$0xf]
      %v2258 = vld [vmem:[%s334 + $0x4] sm:$0xf]
      %v2259 = vld [vmem:[%s334 + $0x8] sm:$0xf]
      %v2260 = vld [vmem:[%s334 + $0xc] sm:$0xf]
      %v2261 = vld [vmem:[%s334 + $0x10] sm:$0xf]
      %v2262 = vld [vmem:[%s334 + $0x14] sm:$0xf]
      %v2263 = vld [vmem:[%s334 + $0x18] sm:$0xf]
      %v2264 = vld [vmem:[%s334 + $0x1c] sm:$0xf]
      %v2265 = vld [vmem:[%s334 + $0x20] sm:$0xf]
      %v2266 = vld [vmem:[%s334 + $0x24] sm:$0xf]
      %v2267 = vld [vmem:[%s334 + $0x28] sm:$0x1]
      %s2268 = scalar_lea.vmem %s3, 640
      %v2269 = vld [vmem:[%s2268] sm:$0xf]
      %v2270 = vld [vmem:[%s2268 + $0x4] sm:$0xf]
      %v2271 = vld [vmem:[%s2268 + $0x8] sm:$0xf]
      %v2272 = vld [vmem:[%s2268 + $0xc] sm:$0xf]
      %v2273 = vld [vmem:[%s2268 + $0x10] sm:$0xf]
      %v2274 = vld [vmem:[%s2268 + $0x14] sm:$0xf]
      %v2275 = vld [vmem:[%s2268 + $0x18] sm:$0xf]
      %v2276 = vld [vmem:[%s2268 + $0x1c] sm:$0xf]
      %v2277 = vld [vmem:[%s2268 + $0x20] sm:$0xf]
      %v2278 = vld [vmem:[%s2268 + $0x24] sm:$0xf]
      %v2279 = vld [vmem:[%s2268 + $0x28] sm:$0xf]
      %v2280 = vld [vmem:[%s2268 + $0x2c] sm:$0xf]
      %v2281 = vld [vmem:[%s2268 + $0x30] sm:$0xf]
      %v2282 = vld [vmem:[%s2268 + $0x34] sm:$0xf]
      %v2283 = vld [vmem:[%s2268 + $0x38] sm:$0xf]
      %v2284 = vld [vmem:[%s2268 + $0x3c] sm:$0xf]
      %v2296 = vunpack.c.l.b16 %v2257
      %v2297 = vunpack.c.l.b16 %v2258
      %v2298 = vunpack.c.l.b16 %v2259
      %v2299 = vunpack.c.l.b16 %v2260
      %v2300 = vunpack.c.l.b16 %v2261
      %v2301 = vunpack.c.l.b16 %v2262
      %v2302 = vunpack.c.l.b16 %v2263
      %v2303 = vunpack.c.l.b16 %v2264
      %v2304 = vunpack.c.l.b16 %v2265
      %v2305 = vunpack.c.l.b16 %v2266
      %v2306 = vunpack.c.l.b16 %v2267
      %v2307 = vpack.c.b16 %v2297, %v2296
      %v2308 = vpack.c.b16 %v2299, %v2298
      %v2309 = vpack.c.b16 %v2301, %v2300
      %v2310 = vpack.c.b16 %v2303, %v2302
      %v2311 = vpack.c.b16 %v2305, %v2304
      %v2312 = vpack.c.b16 %v2306, %v2306
      %v2314 = vshrl.u32 %v2307, 16
      %v2316 = vshll.u32 %v2307, 16
      %v2318 = vrot.slane %v2316, 1
      %v2319 = vor.u32 %v2314, %v2318
      %v2321 = vshll.u32 %v2308, 16
      %v2323 = vrot.slane %v2321, 1
      %v2324 = vsel %vm437, %v2319, %v2323
      %v2325 = vshrl.u32 %v2308, 16
      %v2327 = vor.u32 %v2325, %v2323
      %v2329 = vshll.u32 %v2309, 16
      %v2331 = vrot.slane %v2329, 1
      %v2332 = vsel %vm437, %v2327, %v2331
      %v2333 = vshrl.u32 %v2309, 16
      %v2335 = vor.u32 %v2333, %v2331
      %v2337 = vshll.u32 %v2310, 16
      %v2339 = vrot.slane %v2337, 1
      %v2340 = vsel %vm437, %v2335, %v2339
      %v2341 = vshrl.u32 %v2310, 16
      %v2343 = vor.u32 %v2341, %v2339
      %v2345 = vshll.u32 %v2311, 16
      %v2347 = vrot.slane %v2345, 1
      %v2348 = vsel %vm437, %v2343, %v2347
      %v2349 = vshrl.u32 %v2311, 16
      %v2351 = vor.u32 %v2349, %v2347
      %v2353 = vshll.u32 %v2312, 16
      %v2355 = vrot.slane %v2353, 1
      %v2356 = vsel %vm437, %v2351, %v2355
      %v2378 = vunpack.c.l.b16 %v2269
      %v2379 = vunpack.c.l.b16 %v2270
      %v2380 = vunpack.c.l.b16 %v2271
      %v2381 = vunpack.c.l.b16 %v2272
      %v2382 = vunpack.c.l.b16 %v2273
      %v2383 = vunpack.c.l.b16 %v2274
      %v2384 = vunpack.c.l.b16 %v2275
      %v2385 = vunpack.c.l.b16 %v2276
      %v2386 = vunpack.c.l.b16 %v2277
      %v2387 = vunpack.c.l.b16 %v2278
      %v2388 = vunpack.c.l.b16 %v2279
      %v2389 = vunpack.c.l.b16 %v2280
      %v2390 = vunpack.c.l.b16 %v2281
      %v2391 = vunpack.c.l.b16 %v2282
      %v2392 = vunpack.c.l.b16 %v2283
      %v2393 = vunpack.c.l.b16 %v2284
      %v2394 = vpack.c.b16 %v2379, %v2378
      %v2395 = vpack.c.b16 %v2381, %v2380
      %v2396 = vpack.c.b16 %v2383, %v2382
      %v2397 = vpack.c.b16 %v2385, %v2384
      %v2398 = vpack.c.b16 %v2387, %v2386
      %v2399 = vpack.c.b16 %v2389, %v2388
      %v2400 = vpack.c.b16 %v2391, %v2390
      %v2401 = vpack.c.b16 %v2393, %v2392
      %2410 = vmatprep.subr.bf16.mxu0 0
      %2411 = vmatpush1.bf16.msra.mxu0 %v2394
      %2412 = vmatprep.subr.bf16.mxu0 0
      %2413 = vmatpush1.bf16.msra.mxu0 %v2395
      %2414 = vmatprep.subr.bf16.mxu0 0
      %2415 = vmatpush1.bf16.msra.mxu0 %v2396
      %2416 = vmatprep.subr.bf16.mxu0 0
      %2417 = vmatpush1.bf16.msra.mxu0 %v2397
      %2418 = vmatprep.subr.bf16.mxu0 0
      %2419 = vmatpush1.bf16.msra.mxu0 %v2398
      %2420 = vmatprep.subr.bf16.mxu0 0
      %2421 = vmatpush1.bf16.msra.mxu0 %v2399
      %2422 = vmatprep.subr.bf16.mxu0 0
      %2423 = vmatpush1.bf16.msra.mxu0 %v2400
      %2424 = vmatprep.subr.bf16.mxu0 0
      %2425 = vmatpush1.bf16.msra.mxu0 %v2401
      %2426 = vmatprep.subr.bf16.mxu0 0
      %2427 = vmatpush1.bf16.msra.mxu0 0
      %2428 = vmatprep.subr.bf16.mxu0 0
      %2429 = vmatpush1.bf16.msra.mxu0 0
      %2430 = vmatprep.subr.bf16.mxu0 0
      %2431 = vmatpush1.bf16.msra.mxu0 0
      %2432 = vmatprep.subr.bf16.mxu0 0
      %2433 = vmatpush1.bf16.msra.mxu0 0
      %2434 = vmatprep.subr.bf16.mxu0 0
      %2435 = vmatpush1.bf16.msra.mxu0 0
      %2436 = vmatprep.subr.bf16.mxu0 0
      %2437 = vmatpush1.bf16.msra.mxu0 0
      %2438 = vmatprep.subr.bf16.mxu0 0
      %2439 = vmatpush1.bf16.msra.mxu0 0
      %2440 = vmatprep.subr.bf16.mxu0 0
      %2441 = vmatpush1.bf16.msra.mxu0 0
      %2442 = vmatprep.mubr.bf16.mxu0 0
      %2443 = vmatmul.mubr.bf16.gmra.mrb[0].mxu0 %v2324
      %v2444 = vpop.f32.mrb[0].mxu0
      %v2445 = vadd.f32 0.0, %v2444
      %v2446 = vpop.f32.mrb[0].mxu0
      %v2447 = vpop.f32.mrb[0].mxu0
      %v2448 = vadd.f32 0.0, %v2447
      %v2449 = vpop.f32.mrb[0].mxu0
      %2450 = vmatprep.mubr.bf16.mxu0 0
      %2451 = vmatmul.mubr.bf16.gmra.mrb[0].mxu0 %v2332
      %v2452 = vpop.f32.mrb[0].mxu0
      %v2453 = vadd.f32 0.0, %v2452
      %v2454 = vpop.f32.mrb[0].mxu0
      %v2455 = vpop.f32.mrb[0].mxu0
      %v2456 = vadd.f32 0.0, %v2455
      %v2457 = vpop.f32.mrb[0].mxu0
      %2458 = vmatprep.mubr.bf16.mxu0 0
      %2459 = vmatmul.mubr.bf16.gmra.mrb[0].mxu0 %v2340
      %v2460 = vpop.f32.mrb[0].mxu0
      %v2461 = vadd.f32 0.0, %v2460
      %v2462 = vpop.f32.mrb[0].mxu0
      %v2463 = vpop.f32.mrb[0].mxu0
      %v2464 = vadd.f32 0.0, %v2463
      %v2465 = vpop.f32.mrb[0].mxu0
      %2466 = vmatprep.mubr.bf16.mxu0 0
      %2467 = vmatmul.mubr.bf16.gmra.mrb[0].mxu0 %v2348
      %v2468 = vpop.f32.mrb[0].mxu0
      %v2469 = vadd.f32 0.0, %v2468
      %v2470 = vpop.f32.mrb[0].mxu0
      %v2471 = vpop.f32.mrb[0].mxu0
      %v2472 = vadd.f32 0.0, %v2471
      %v2473 = vpop.f32.mrb[0].mxu0
      %2474 = vmatprep.mubr.bf16.mxu0 0
      %2475 = vmatmul.mubr.bf16.gmra.mrb[0].mxu0 %v2356
      %v2476 = vpop.f32.mrb[0].mxu0
      %v2477 = vadd.f32 0.0, %v2476
      %v2478 = vpop.f32.mrb[0].mxu0
      %v2479 = vpop.f32.mrb[0].mxu0
      %v2480 = vadd.f32 0.0, %v2479
      %v2481 = vpop.f32.mrb[0].mxu0
      %2482 = vdwg.mxu0
      %v2483 = vadd.f32 %v2247, %v2445
      %v2484 = vadd.f32 %v2248, %v2448
      %v2485 = vadd.f32 %v2249, %v2453
      %v2486 = vadd.f32 %v2250, %v2456
      %v2487 = vadd.f32 %v2251, %v2461
      %v2488 = vadd.f32 %v2252, %v2464
      %v2489 = vadd.f32 %v2253, %v2469
      %v2490 = vadd.f32 %v2254, %v2472
      %v2491 = vadd.f32 %v2255, %v2477
      %v2492 = vadd.f32 %v2256, %v2480
      %v2493 = vld [vmem:[%s334] sm:$0xe]
      %s2494 = scalar_lea.vmem %s3, 704
      %v2495 = vld [vmem:[%s2494] sm:$0xf]
      %v2496 = vld [vmem:[%s2494 + $0x4] sm:$0xf]
      %v2497 = vld [vmem:[%s2494 + $0x8] sm:$0xf]
      %v2498 = vld [vmem:[%s2494 + $0xc] sm:$0xf]
      %v2499 = vld [vmem:[%s2494 + $0x10] sm:$0xf]
      %v2500 = vld [vmem:[%s2494 + $0x14] sm:$0xf]
      %v2501 = vld [vmem:[%s2494 + $0x18] sm:$0xf]
      %v2502 = vld [vmem:[%s2494 + $0x1c] sm:$0xf]
      %v2503 = vld [vmem:[%s2494 + $0x20] sm:$0xf]
      %v2504 = vld [vmem:[%s2494 + $0x24] sm:$0xf]
      %v2505 = vld [vmem:[%s2494 + $0x28] sm:$0xf]
      %v2506 = vld [vmem:[%s2494 + $0x2c] sm:$0xf]
      %v2507 = vld [vmem:[%s2494 + $0x30] sm:$0xf]
      %v2508 = vld [vmem:[%s2494 + $0x34] sm:$0xf]
      %v2509 = vld [vmem:[%s2494 + $0x38] sm:$0xf]
      %v2510 = vld [vmem:[%s2494 + $0x3c] sm:$0xf]
      %v2512 = vunpack.c.l.b16 %v2493
      %v2513 = vpack.c.b16 %v2297, %v2512
      %v2514 = vrot.slane %v2513, 1
      %v2515 = vrot.slane %v2308, 1
      %v2516 = vsel %vm755, %v2514, %v2515
      %v2517 = vrot.slane %v2309, 1
      %v2518 = vsel %vm755, %v2515, %v2517
      %v2519 = vrot.slane %v2310, 1
      %v2520 = vsel %vm755, %v2517, %v2519
      %v2521 = vrot.slane %v2311, 1
      %v2522 = vsel %vm755, %v2519, %v2521
      %v2523 = vrot.slane %v2312, 1
      %v2524 = vsel %vm755, %v2521, %v2523
      %v2546 = vunpack.c.l.b16 %v2495
      %v2547 = vunpack.c.l.b16 %v2496
      %v2548 = vunpack.c.l.b16 %v2497
      %v2549 = vunpack.c.l.b16 %v2498
      %v2550 = vunpack.c.l.b16 %v2499
      %v2551 = vunpack.c.l.b16 %v2500
      %v2552 = vunpack.c.l.b16 %v2501
      %v2553 = vunpack.c.l.b16 %v2502
      %v2554 = vunpack.c.l.b16 %v2503
      %v2555 = vunpack.c.l.b16 %v2504
      %v2556 = vunpack.c.l.b16 %v2505
      %v2557 = vunpack.c.l.b16 %v2506
      %v2558 = vunpack.c.l.b16 %v2507
      %v2559 = vunpack.c.l.b16 %v2508
      %v2560 = vunpack.c.l.b16 %v2509
      %v2561 = vunpack.c.l.b16 %v2510
      %v2562 = vpack.c.b16 %v2547, %v2546
      %v2563 = vpack.c.b16 %v2549, %v2548
      %v2564 = vpack.c.b16 %v2551, %v2550
      %v2565 = vpack.c.b16 %v2553, %v2552
      %v2566 = vpack.c.b16 %v2555, %v2554
      %v2567 = vpack.c.b16 %v2557, %v2556
      %v2568 = vpack.c.b16 %v2559, %v2558
      %v2569 = vpack.c.b16 %v2561, %v2560
      %2578 = vmatprep.subr.bf16.mxu0 0
      %2579 = vmatpush1.bf16.msra.mxu0 %v2562
      %2580 = vmatprep.subr.bf16.mxu0 0
      %2581 = vmatpush1.bf16.msra.mxu0 %v2563
      %2582 = vmatprep.subr.bf16.mxu0 0
      %2583 = vmatpush1.bf16.msra.mxu0 %v2564
      %2584 = vmatprep.subr.bf16.mxu0 0
      %2585 = vmatpush1.bf16.msra.mxu0 %v2565
      %2586 = vmatprep.subr.bf16.mxu0 0
      %2587 = vmatpush1.bf16.msra.mxu0 %v2566
      %2588 = vmatprep.subr.bf16.mxu0 0
      %2589 = vmatpush1.bf16.msra.mxu0 %v2567
      %2590 = vmatprep.subr.bf16.mxu0 0
      %2591 = vmatpush1.bf16.msra.mxu0 %v2568
      %2592 = vmatprep.subr.bf16.mxu0 0
      %2593 = vmatpush1.bf16.msra.mxu0 %v2569
      %2594 = vmatprep.subr.bf16.mxu0 0
      %2595 = vmatpush1.bf16.msra.mxu0 0
      %2596 = vmatprep.subr.bf16.mxu0 0
      %2597 = vmatpush1.bf16.msra.mxu0 0
      %2598 = vmatprep.subr.bf16.mxu0 0
      %2599 = vmatpush1.bf16.msra.mxu0 0
      %2600 = vmatprep.subr.bf16.mxu0 0
      %2601 = vmatpush1.bf16.msra.mxu0 0
      %2602 = vmatprep.subr.bf16.mxu0 0
      %2603 = vmatpush1.bf16.msra.mxu0 0
      %2604 = vmatprep.subr.bf16.mxu0 0
      %2605 = vmatpush1.bf16.msra.mxu0 0
      %2606 = vmatprep.subr.bf16.mxu0 0
      %2607 = vmatpush1.bf16.msra.mxu0 0
      %2608 = vmatprep.subr.bf16.mxu0 0
      %2609 = vmatpush1.bf16.msra.mxu0 0
      %2610 = vmatprep.mubr.bf16.mxu0 0
      %2611 = vmatmul.mubr.bf16.gmra.mrb[0].mxu0 %v2516
      %v2612 = vpop.f32.mrb[0].mxu0
      %v2613 = vadd.f32 0.0, %v2612
      %v2614 = vpop.f32.mrb[0].mxu0
      %v2615 = vpop.f32.mrb[0].mxu0
      %v2616 = vadd.f32 0.0, %v2615
      %v2617 = vpop.f32.mrb[0].mxu0
      %2618 = vmatprep.mubr.bf16.mxu0 0
      %2619 = vmatmul.mubr.bf16.gmra.mrb[0].mxu0 %v2518
      %v2620 = vpop.f32.mrb[0].mxu0
      %v2621 = vadd.f32 0.0, %v2620
      %v2622 = vpop.f32.mrb[0].mxu0
      %v2623 = vpop.f32.mrb[0].mxu0
      %v2624 = vadd.f32 0.0, %v2623
      %v2625 = vpop.f32.mrb[0].mxu0
      %2626 = vmatprep.mubr.bf16.mxu0 0
      %2627 = vmatmul.mubr.bf16.gmra.mrb[0].mxu0 %v2520
      %v2628 = vpop.f32.mrb[0].mxu0
      %v2629 = vadd.f32 0.0, %v2628
      %v2630 = vpop.f32.mrb[0].mxu0
      %v2631 = vpop.f32.mrb[0].mxu0
      %v2632 = vadd.f32 0.0, %v2631
      %v2633 = vpop.f32.mrb[0].mxu0
      %2634 = vmatprep.mubr.bf16.mxu0 0
      %2635 = vmatmul.mubr.bf16.gmra.mrb[0].mxu0 %v2522
      %v2636 = vpop.f32.mrb[0].mxu0
      %v2637 = vadd.f32 0.0, %v2636
      %v2638 = vpop.f32.mrb[0].mxu0
      %v2639 = vpop.f32.mrb[0].mxu0
      %v2640 = vadd.f32 0.0, %v2639
      %v2641 = vpop.f32.mrb[0].mxu0
      %2642 = vmatprep.mubr.bf16.mxu0 0
      %2643 = vmatmul.mubr.bf16.gmra.mrb[0].mxu0 %v2524
      %v2644 = vpop.f32.mrb[0].mxu0
      %v2645 = vadd.f32 0.0, %v2644
      %v2646 = vpop.f32.mrb[0].mxu0
      %v2647 = vpop.f32.mrb[0].mxu0
      %v2648 = vadd.f32 0.0, %v2647
      %v2649 = vpop.f32.mrb[0].mxu0
      %2650 = vdwg.mxu0
      %v2651 = vadd.f32 %v2483, %v2613
      %v2652 = vadd.f32 %v2484, %v2616
      %v2653 = vadd.f32 %v2485, %v2621
      %v2654 = vadd.f32 %v2486, %v2624
      %v2655 = vadd.f32 %v2487, %v2629
      %v2656 = vadd.f32 %v2488, %v2632
      %v2657 = vadd.f32 %v2489, %v2637
      %v2658 = vadd.f32 %v2490, %v2640
      %v2659 = vadd.f32 %v2491, %v2645
      %v2660 = vadd.f32 %v2492, %v2648
      %v2661 = vld [vmem:[%s334 + $0x4] sm:$0xe]
      %v2662 = vld [vmem:[%s334 + $0x8] sm:$0xf]
      %v2663 = vld [vmem:[%s334 + $0xc] sm:$0xf]
      %v2664 = vld [vmem:[%s334 + $0x10] sm:$0xf]
      %v2665 = vld [vmem:[%s334 + $0x14] sm:$0xf]
      %v2666 = vld [vmem:[%s334 + $0x18] sm:$0xf]
      %v2667 = vld [vmem:[%s334 + $0x1c] sm:$0xf]
      %v2668 = vld [vmem:[%s334 + $0x20] sm:$0xf]
      %v2669 = vld [vmem:[%s334 + $0x24] sm:$0xf]
      %v2670 = vld [vmem:[%s334 + $0x28] sm:$0xf]
      %v2671 = vld [vmem:[%s334 + $0x2c] sm:$0x1]
      %s2672 = scalar_lea.vmem %s3, 768
      %v2673 = vld [vmem:[%s2672] sm:$0xf]
      %v2674 = vld [vmem:[%s2672 + $0x4] sm:$0xf]
      %v2675 = vld [vmem:[%s2672 + $0x8] sm:$0xf]
      %v2676 = vld [vmem:[%s2672 + $0xc] sm:$0xf]
      %v2677 = vld [vmem:[%s2672 + $0x10] sm:$0xf]
      %v2678 = vld [vmem:[%s2672 + $0x14] sm:$0xf]
      %v2679 = vld [vmem:[%s2672 + $0x18] sm:$0xf]
      %v2680 = vld [vmem:[%s2672 + $0x1c] sm:$0xf]
      %v2681 = vld [vmem:[%s2672 + $0x20] sm:$0xf]
      %v2682 = vld [vmem:[%s2672 + $0x24] sm:$0xf]
      %v2683 = vld [vmem:[%s2672 + $0x28] sm:$0xf]
      %v2684 = vld [vmem:[%s2672 + $0x2c] sm:$0xf]
      %v2685 = vld [vmem:[%s2672 + $0x30] sm:$0xf]
      %v2686 = vld [vmem:[%s2672 + $0x34] sm:$0xf]
      %v2687 = vld [vmem:[%s2672 + $0x38] sm:$0xf]
      %v2688 = vld [vmem:[%s2672 + $0x3c] sm:$0xf]
      %v2700 = vunpack.c.l.b16 %v2661
      %v2701 = vunpack.c.l.b16 %v2662
      %v2702 = vunpack.c.l.b16 %v2663
      %v2703 = vunpack.c.l.b16 %v2664
      %v2704 = vunpack.c.l.b16 %v2665
      %v2705 = vunpack.c.l.b16 %v2666
      %v2706 = vunpack.c.l.b16 %v2667
      %v2707 = vunpack.c.l.b16 %v2668
      %v2708 = vunpack.c.l.b16 %v2669
      %v2709 = vunpack.c.l.b16 %v2670
      %v2710 = vunpack.c.l.b16 %v2671
      %v2711 = vpack.c.b16 %v2701, %v2700
      %v2712 = vpack.c.b16 %v2703, %v2702
      %v2713 = vpack.c.b16 %v2705, %v2704
      %v2714 = vpack.c.b16 %v2707, %v2706
      %v2715 = vpack.c.b16 %v2709, %v2708
      %v2716 = vpack.c.b16 %v2710, %v2710
      %v2717 = vrot.slane %v2711, 1
      %v2718 = vrot.slane %v2712, 1
      %v2719 = vsel %vm755, %v2717, %v2718
      %v2720 = vrot.slane %v2713, 1
      %v2721 = vsel %vm755, %v2718, %v2720
      %v2722 = vrot.slane %v2714, 1
      %v2723 = vsel %vm755, %v2720, %v2722
      %v2724 = vrot.slane %v2715, 1
      %v2725 = vsel %vm755, %v2722, %v2724
      %v2726 = vrot.slane %v2716, 1
      %v2727 = vsel %vm755, %v2724, %v2726
      %v2749 = vunpack.c.l.b16 %v2673
      %v2750 = vunpack.c.l.b16 %v2674
      %v2751 = vunpack.c.l.b16 %v2675
      %v2752 = vunpack.c.l.b16 %v2676
      %v2753 = vunpack.c.l.b16 %v2677
      %v2754 = vunpack.c.l.b16 %v2678
      %v2755 = vunpack.c.l.b16 %v2679
      %v2756 = vunpack.c.l.b16 %v2680
      %v2757 = vunpack.c.l.b16 %v2681
      %v2758 = vunpack.c.l.b16 %v2682
      %v2759 = vunpack.c.l.b16 %v2683
      %v2760 = vunpack.c.l.b16 %v2684
      %v2761 = vunpack.c.l.b16 %v2685
      %v2762 = vunpack.c.l.b16 %v2686
      %v2763 = vunpack.c.l.b16 %v2687
      %v2764 = vunpack.c.l.b16 %v2688
      %v2765 = vpack.c.b16 %v2750, %v2749
      %v2766 = vpack.c.b16 %v2752, %v2751
      %v2767 = vpack.c.b16 %v2754, %v2753
      %v2768 = vpack.c.b16 %v2756, %v2755
      %v2769 = vpack.c.b16 %v2758, %v2757
      %v2770 = vpack.c.b16 %v2760, %v2759
      %v2771 = vpack.c.b16 %v2762, %v2761
      %v2772 = vpack.c.b16 %v2764, %v2763
      %2781 = vmatprep.subr.bf16.mxu0 0
      %2782 = vmatpush1.bf16.msra.mxu0 %v2765
      %2783 = vmatprep.subr.bf16.mxu0 0
      %2784 = vmatpush1.bf16.msra.mxu0 %v2766
      %2785 = vmatprep.subr.bf16.mxu0 0
      %2786 = vmatpush1.bf16.msra.mxu0 %v2767
      %2787 = vmatprep.subr.bf16.mxu0 0
      %2788 = vmatpush1.bf16.msra.mxu0 %v2768
      %2789 = vmatprep.subr.bf16.mxu0 0
      %2790 = vmatpush1.bf16.msra.mxu0 %v2769
      %2791 = vmatprep.subr.bf16.mxu0 0
      %2792 = vmatpush1.bf16.msra.mxu0 %v2770
      %2793 = vmatprep.subr.bf16.mxu0 0
      %2794 = vmatpush1.bf16.msra.mxu0 %v2771
      %2795 = vmatprep.subr.bf16.mxu0 0
      %2796 = vmatpush1.bf16.msra.mxu0 %v2772
      %2797 = vmatprep.subr.bf16.mxu0 0
      %2798 = vmatpush1.bf16.msra.mxu0 0
      %2799 = vmatprep.subr.bf16.mxu0 0
      %2800 = vmatpush1.bf16.msra.mxu0 0
      %2801 = vmatprep.subr.bf16.mxu0 0
      %2802 = vmatpush1.bf16.msra.mxu0 0
      %2803 = vmatprep.subr.bf16.mxu0 0
      %2804 = vmatpush1.bf16.msra.mxu0 0
      %2805 = vmatprep.subr.bf16.mxu0 0
      %2806 = vmatpush1.bf16.msra.mxu0 0
      %2807 = vmatprep.subr.bf16.mxu0 0
      %2808 = vmatpush1.bf16.msra.mxu0 0
      %2809 = vmatprep.subr.bf16.mxu0 0
      %2810 = vmatpush1.bf16.msra.mxu0 0
      %2811 = vmatprep.subr.bf16.mxu0 0
      %2812 = vmatpush1.bf16.msra.mxu0 0
      %2813 = vmatprep.mubr.bf16.mxu0 0
      %2814 = vmatmul.mubr.bf16.gmra.mrb[0].mxu0 %v2719
      %v2815 = vpop.f32.mrb[0].mxu0
      %v2816 = vadd.f32 0.0, %v2815
      %v2817 = vpop.f32.mrb[0].mxu0
      %v2818 = vpop.f32.mrb[0].mxu0
      %v2819 = vadd.f32 0.0, %v2818
      %v2820 = vpop.f32.mrb[0].mxu0
      %2821 = vmatprep.mubr.bf16.mxu0 0
      %2822 = vmatmul.mubr.bf16.gmra.mrb[0].mxu0 %v2721
      %v2823 = vpop.f32.mrb[0].mxu0
      %v2824 = vadd.f32 0.0, %v2823
      %v2825 = vpop.f32.mrb[0].mxu0
      %v2826 = vpop.f32.mrb[0].mxu0
      %v2827 = vadd.f32 0.0, %v2826
      %v2828 = vpop.f32.mrb[0].mxu0
      %2829 = vmatprep.mubr.bf16.mxu0 0
      %2830 = vmatmul.mubr.bf16.gmra.mrb[0].mxu0 %v2723
      %v2831 = vpop.f32.mrb[0].mxu0
      %v2832 = vadd.f32 0.0, %v2831
      %v2833 = vpop.f32.mrb[0].mxu0
      %v2834 = vpop.f32.mrb[0].mxu0
      %v2835 = vadd.f32 0.0, %v2834
      %v2836 = vpop.f32.mrb[0].mxu0
      %2837 = vmatprep.mubr.bf16.mxu0 0
      %2838 = vmatmul.mubr.bf16.gmra.mrb[0].mxu0 %v2725
      %v2839 = vpop.f32.mrb[0].mxu0
      %v2840 = vadd.f32 0.0, %v2839
      %v2841 = vpop.f32.mrb[0].mxu0
      %v2842 = vpop.f32.mrb[0].mxu0
      %v2843 = vadd.f32 0.0, %v2842
      %v2844 = vpop.f32.mrb[0].mxu0
      %2845 = vmatprep.mubr.bf16.mxu0 0
      %2846 = vmatmul.mubr.bf16.gmra.mrb[0].mxu0 %v2727
      %v2847 = vpop.f32.mrb[0].mxu0
      %v2848 = vadd.f32 0.0, %v2847
      %v2849 = vpop.f32.mrb[0].mxu0
      %v2850 = vpop.f32.mrb[0].mxu0
      %v2851 = vadd.f32 0.0, %v2850
      %v2852 = vpop.f32.mrb[0].mxu0
      %2853 = vdwg.mxu0
      %v2854 = vadd.f32 %v2651, %v2816
      %v2855 = vadd.f32 %v2652, %v2819
      %v2856 = vadd.f32 %v2653, %v2824
      %v2857 = vadd.f32 %v2654, %v2827
      %v2858 = vadd.f32 %v2655, %v2832
      %v2859 = vadd.f32 %v2656, %v2835
      %v2860 = vadd.f32 %v2657, %v2840
      %v2861 = vadd.f32 %v2658, %v2843
      %v2862 = vadd.f32 %v2659, %v2848
      %v2863 = vadd.f32 %v2660, %v2851
      %v2864 = vld [vmem:[%s334 + $0x2c] sm:$0x3]
      %s2865 = scalar_lea.vmem %s3, 832
      %v2866 = vld [vmem:[%s2865] sm:$0xf]
      %v2867 = vld [vmem:[%s2865 + $0x4] sm:$0xf]
      %v2868 = vld [vmem:[%s2865 + $0x8] sm:$0xf]
      %v2869 = vld [vmem:[%s2865 + $0xc] sm:$0xf]
      %v2870 = vld [vmem:[%s2865 + $0x10] sm:$0xf]
      %v2871 = vld [vmem:[%s2865 + $0x14] sm:$0xf]
      %v2872 = vld [vmem:[%s2865 + $0x18] sm:$0xf]
      %v2873 = vld [vmem:[%s2865 + $0x1c] sm:$0xf]
      %v2874 = vld [vmem:[%s2865 + $0x20] sm:$0xf]
      %v2875 = vld [vmem:[%s2865 + $0x24] sm:$0xf]
      %v2876 = vld [vmem:[%s2865 + $0x28] sm:$0xf]
      %v2877 = vld [vmem:[%s2865 + $0x2c] sm:$0xf]
      %v2878 = vld [vmem:[%s2865 + $0x30] sm:$0xf]
      %v2879 = vld [vmem:[%s2865 + $0x34] sm:$0xf]
      %v2880 = vld [vmem:[%s2865 + $0x38] sm:$0xf]
      %v2881 = vld [vmem:[%s2865 + $0x3c] sm:$0xf]
      %v2883 = vunpack.c.l.b16 %v2864
      %v2884 = vpack.c.b16 %v2883, %v2883
      %v2886 = vshrl.u32 %v2711, 16
      %v2888 = vrot.slane %v2886, 1
      %v2889 = vshll.u32 %v2711, 16
      %v2891 = vrot.slane %v2889, 2
      %v2892 = vor.u32 %v2888, %v2891
      %v2894 = vshrl.u32 %v2712, 16
      %v2896 = vrot.slane %v2894, 1
      %v2897 = vshll.u32 %v2712, 16
      %v2899 = vrot.slane %v2897, 2
      %v2900 = vor.u32 %v2896, %v2899
      %v2901 = vsel %vm1127, %v2892, %v2900
      %v2903 = vshrl.u32 %v2713, 16
      %v2905 = vrot.slane %v2903, 1
      %v2906 = vshll.u32 %v2713, 16
      %v2908 = vrot.slane %v2906, 2
      %v2909 = vor.u32 %v2905, %v2908
      %v2910 = vsel %vm1127, %v2900, %v2909
      %v2912 = vshrl.u32 %v2714, 16
      %v2914 = vrot.slane %v2912, 1
      %v2915 = vshll.u32 %v2714, 16
      %v2917 = vrot.slane %v2915, 2
      %v2918 = vor.u32 %v2914, %v2917
      %v2919 = vsel %vm1127, %v2909, %v2918
      %v2921 = vshrl.u32 %v2715, 16
      %v2923 = vrot.slane %v2921, 1
      %v2924 = vshll.u32 %v2715, 16
      %v2926 = vrot.slane %v2924, 2
      %v2927 = vor.u32 %v2923, %v2926
      %v2928 = vsel %vm1127, %v2918, %v2927
      %v2930 = vshrl.u32 %v2884, 16
      %v2932 = vrot.slane %v2930, 1
      %v2933 = vshll.u32 %v2884, 16
      %v2935 = vrot.slane %v2933, 2
      %v2936 = vor.u32 %v2932, %v2935
      %v2937 = vsel %vm1127, %v2927, %v2936
      %v2959 = vunpack.c.l.b16 %v2866
      %v2960 = vunpack.c.l.b16 %v2867
      %v2961 = vunpack.c.l.b16 %v2868
      %v2962 = vunpack.c.l.b16 %v2869
      %v2963 = vunpack.c.l.b16 %v2870
      %v2964 = vunpack.c.l.b16 %v2871
      %v2965 = vunpack.c.l.b16 %v2872
      %v2966 = vunpack.c.l.b16 %v2873
      %v2967 = vunpack.c.l.b16 %v2874
      %v2968 = vunpack.c.l.b16 %v2875
      %v2969 = vunpack.c.l.b16 %v2876
      %v2970 = vunpack.c.l.b16 %v2877
      %v2971 = vunpack.c.l.b16 %v2878
      %v2972 = vunpack.c.l.b16 %v2879
      %v2973 = vunpack.c.l.b16 %v2880
      %v2974 = vunpack.c.l.b16 %v2881
      %v2975 = vpack.c.b16 %v2960, %v2959
      %v2976 = vpack.c.b16 %v2962, %v2961
      %v2977 = vpack.c.b16 %v2964, %v2963
      %v2978 = vpack.c.b16 %v2966, %v2965
      %v2979 = vpack.c.b16 %v2968, %v2967
      %v2980 = vpack.c.b16 %v2970, %v2969
      %v2981 = vpack.c.b16 %v2972, %v2971
      %v2982 = vpack.c.b16 %v2974, %v2973
      %2991 = vmatprep.subr.bf16.mxu0 0
      %2992 = vmatpush1.bf16.msra.mxu0 %v2975
      %2993 = vmatprep.subr.bf16.mxu0 0
      %2994 = vmatpush1.bf16.msra.mxu0 %v2976
      %2995 = vmatprep.subr.bf16.mxu0 0
      %2996 = vmatpush1.bf16.msra.mxu0 %v2977
      %2997 = vmatprep.subr.bf16.mxu0 0
      %2998 = vmatpush1.bf16.msra.mxu0 %v2978
      %2999 = vmatprep.subr.bf16.mxu0 0
      %3000 = vmatpush1.bf16.msra.mxu0 %v2979
      %3001 = vmatprep.subr.bf16.mxu0 0
      %3002 = vmatpush1.bf16.msra.mxu0 %v2980
      %3003 = vmatprep.subr.bf16.mxu0 0
      %3004 = vmatpush1.bf16.msra.mxu0 %v2981
      %3005 = vmatprep.subr.bf16.mxu0 0
      %3006 = vmatpush1.bf16.msra.mxu0 %v2982
      %3007 = vmatprep.subr.bf16.mxu0 0
      %3008 = vmatpush1.bf16.msra.mxu0 0
      %3009 = vmatprep.subr.bf16.mxu0 0
      %3010 = vmatpush1.bf16.msra.mxu0 0
      %3011 = vmatprep.subr.bf16.mxu0 0
      %3012 = vmatpush1.bf16.msra.mxu0 0
      %3013 = vmatprep.subr.bf16.mxu0 0
      %3014 = vmatpush1.bf16.msra.mxu0 0
      %3015 = vmatprep.subr.bf16.mxu0 0
      %3016 = vmatpush1.bf16.msra.mxu0 0
      %3017 = vmatprep.subr.bf16.mxu0 0
      %3018 = vmatpush1.bf16.msra.mxu0 0
      %3019 = vmatprep.subr.bf16.mxu0 0
      %3020 = vmatpush1.bf16.msra.mxu0 0
      %3021 = vmatprep.subr.bf16.mxu0 0
      %3022 = vmatpush1.bf16.msra.mxu0 0
      %3023 = vmatprep.mubr.bf16.mxu0 0
      %3024 = vmatmul.mubr.bf16.gmra.mrb[0].mxu0 %v2901
      %v3025 = vpop.f32.mrb[0].mxu0
      %v3026 = vadd.f32 0.0, %v3025
      %v3027 = vpop.f32.mrb[0].mxu0
      %v3028 = vpop.f32.mrb[0].mxu0
      %v3029 = vadd.f32 0.0, %v3028
      %v3030 = vpop.f32.mrb[0].mxu0
      %3031 = vmatprep.mubr.bf16.mxu0 0
      %3032 = vmatmul.mubr.bf16.gmra.mrb[0].mxu0 %v2910
      %v3033 = vpop.f32.mrb[0].mxu0
      %v3034 = vadd.f32 0.0, %v3033
      %v3035 = vpop.f32.mrb[0].mxu0
      %v3036 = vpop.f32.mrb[0].mxu0
      %v3037 = vadd.f32 0.0, %v3036
      %v3038 = vpop.f32.mrb[0].mxu0
      %3039 = vmatprep.mubr.bf16.mxu0 0
      %3040 = vmatmul.mubr.bf16.gmra.mrb[0].mxu0 %v2919
      %v3041 = vpop.f32.mrb[0].mxu0
      %v3042 = vadd.f32 0.0, %v3041
      %v3043 = vpop.f32.mrb[0].mxu0
      %v3044 = vpop.f32.mrb[0].mxu0
      %v3045 = vadd.f32 0.0, %v3044
      %v3046 = vpop.f32.mrb[0].mxu0
      %3047 = vmatprep.mubr.bf16.mxu0 0
      %3048 = vmatmul.mubr.bf16.gmra.mrb[0].mxu0 %v2928
      %v3049 = vpop.f32.mrb[0].mxu0
      %v3050 = vadd.f32 0.0, %v3049
      %v3051 = vpop.f32.mrb[0].mxu0
      %v3052 = vpop.f32.mrb[0].mxu0
      %v3053 = vadd.f32 0.0, %v3052
      %v3054 = vpop.f32.mrb[0].mxu0
      %3055 = vmatprep.mubr.bf16.mxu0 0
      %3056 = vmatmul.mubr.bf16.gmra.mrb[0].mxu0 %v2937
      %v3057 = vpop.f32.mrb[0].mxu0
      %v3058 = vadd.f32 0.0, %v3057
      %v3059 = vpop.f32.mrb[0].mxu0
      %v3060 = vpop.f32.mrb[0].mxu0
      %v3061 = vadd.f32 0.0, %v3060
      %v3062 = vpop.f32.mrb[0].mxu0
      %3063 = vdwg.mxu0
      %v3064 = vadd.f32 %v2854, %v3026
      %v3065 = vadd.f32 %v2855, %v3029
      %v3066 = vadd.f32 %v2856, %v3034
      %v3067 = vadd.f32 %v2857, %v3037
      %v3068 = vadd.f32 %v2858, %v3042
      %v3069 = vadd.f32 %v2859, %v3045
      %v3070 = vadd.f32 %v2860, %v3050
      %v3071 = vadd.f32 %v2861, %v3053
      %v3072 = vadd.f32 %v2862, %v3058
      %v3073 = vadd.f32 %v2863, %v3061
      %v3074 = vld [vmem:[%s334 + $0x4] sm:$0xc]
      %s3075 = scalar_lea.vmem %s3, 896
      %v3076 = vld [vmem:[%s3075] sm:$0xf]
      %v3077 = vld [vmem:[%s3075 + $0x4] sm:$0xf]
      %v3078 = vld [vmem:[%s3075 + $0x8] sm:$0xf]
      %v3079 = vld [vmem:[%s3075 + $0xc] sm:$0xf]
      %v3080 = vld [vmem:[%s3075 + $0x10] sm:$0xf]
      %v3081 = vld [vmem:[%s3075 + $0x14] sm:$0xf]
      %v3082 = vld [vmem:[%s3075 + $0x18] sm:$0xf]
      %v3083 = vld [vmem:[%s3075 + $0x1c] sm:$0xf]
      %v3084 = vld [vmem:[%s3075 + $0x20] sm:$0xf]
      %v3085 = vld [vmem:[%s3075 + $0x24] sm:$0xf]
      %v3086 = vld [vmem:[%s3075 + $0x28] sm:$0xf]
      %v3087 = vld [vmem:[%s3075 + $0x2c] sm:$0xf]
      %v3088 = vld [vmem:[%s3075 + $0x30] sm:$0xf]
      %v3089 = vld [vmem:[%s3075 + $0x34] sm:$0xf]
      %v3090 = vld [vmem:[%s3075 + $0x38] sm:$0xf]
      %v3091 = vld [vmem:[%s3075 + $0x3c] sm:$0xf]
      %v3093 = vunpack.c.l.b16 %v3074
      %v3094 = vpack.c.b16 %v2701, %v3093
      %v3095 = vrot.slane %v3094, 2
      %v3096 = vrot.slane %v2712, 2
      %v3097 = vsel %vm1338, %v3095, %v3096
      %v3098 = vrot.slane %v2713, 2
      %v3099 = vsel %vm1338, %v3096, %v3098
      %v3100 = vrot.slane %v2714, 2
      %v3101 = vsel %vm1338, %v3098, %v3100
      %v3102 = vrot.slane %v2715, 2
      %v3103 = vsel %vm1338, %v3100, %v3102
      %v3104 = vrot.slane %v2884, 2
      %v3105 = vsel %vm1338, %v3102, %v3104
      %v3127 = vunpack.c.l.b16 %v3076
      %v3128 = vunpack.c.l.b16 %v3077
      %v3129 = vunpack.c.l.b16 %v3078
      %v3130 = vunpack.c.l.b16 %v3079
      %v3131 = vunpack.c.l.b16 %v3080
      %v3132 = vunpack.c.l.b16 %v3081
      %v3133 = vunpack.c.l.b16 %v3082
      %v3134 = vunpack.c.l.b16 %v3083
      %v3135 = vunpack.c.l.b16 %v3084
      %v3136 = vunpack.c.l.b16 %v3085
      %v3137 = vunpack.c.l.b16 %v3086
      %v3138 = vunpack.c.l.b16 %v3087
      %v3139 = vunpack.c.l.b16 %v3088
      %v3140 = vunpack.c.l.b16 %v3089
      %v3141 = vunpack.c.l.b16 %v3090
      %v3142 = vunpack.c.l.b16 %v3091
      %v3143 = vpack.c.b16 %v3128, %v3127
      %v3144 = vpack.c.b16 %v3130, %v3129
      %v3145 = vpack.c.b16 %v3132, %v3131
      %v3146 = vpack.c.b16 %v3134, %v3133
      %v3147 = vpack.c.b16 %v3136, %v3135
      %v3148 = vpack.c.b16 %v3138, %v3137
      %v3149 = vpack.c.b16 %v3140, %v3139
      %v3150 = vpack.c.b16 %v3142, %v3141
      %3159 = vmatprep.subr.bf16.mxu0 0
      %3160 = vmatpush1.bf16.msra.mxu0 %v3143
      %3161 = vmatprep.subr.bf16.mxu0 0
      %3162 = vmatpush1.bf16.msra.mxu0 %v3144
      %3163 = vmatprep.subr.bf16.mxu0 0
      %3164 = vmatpush1.bf16.msra.mxu0 %v3145
      %3165 = vmatprep.subr.bf16.mxu0 0
      %3166 = vmatpush1.bf16.msra.mxu0 %v3146
      %3167 = vmatprep.subr.bf16.mxu0 0
      %3168 = vmatpush1.bf16.msra.mxu0 %v3147
      %3169 = vmatprep.subr.bf16.mxu0 0
      %3170 = vmatpush1.bf16.msra.mxu0 %v3148
      %3171 = vmatprep.subr.bf16.mxu0 0
      %3172 = vmatpush1.bf16.msra.mxu0 %v3149
      %3173 = vmatprep.subr.bf16.mxu0 0
      %3174 = vmatpush1.bf16.msra.mxu0 %v3150
      %3175 = vmatprep.subr.bf16.mxu0 0
      %3176 = vmatpush1.bf16.msra.mxu0 0
      %3177 = vmatprep.subr.bf16.mxu0 0
      %3178 = vmatpush1.bf16.msra.mxu0 0
      %3179 = vmatprep.subr.bf16.mxu0 0
      %3180 = vmatpush1.bf16.msra.mxu0 0
      %3181 = vmatprep.subr.bf16.mxu0 0
      %3182 = vmatpush1.bf16.msra.mxu0 0
      %3183 = vmatprep.subr.bf16.mxu0 0
      %3184 = vmatpush1.bf16.msra.mxu0 0
      %3185 = vmatprep.subr.bf16.mxu0 0
      %3186 = vmatpush1.bf16.msra.mxu0 0
      %3187 = vmatprep.subr.bf16.mxu0 0
      %3188 = vmatpush1.bf16.msra.mxu0 0
      %3189 = vmatprep.subr.bf16.mxu0 0
      %3190 = vmatpush1.bf16.msra.mxu0 0
      %3191 = vmatprep.mubr.bf16.mxu0 0
      %3192 = vmatmul.mubr.bf16.gmra.mrb[0].mxu0 %v3097
      %v3193 = vpop.f32.mrb[0].mxu0
      %v3194 = vadd.f32 0.0, %v3193
      %v3195 = vpop.f32.mrb[0].mxu0
      %v3196 = vpop.f32.mrb[0].mxu0
      %v3197 = vadd.f32 0.0, %v3196
      %v3198 = vpop.f32.mrb[0].mxu0
      %3199 = vmatprep.mubr.bf16.mxu0 0
      %3200 = vmatmul.mubr.bf16.gmra.mrb[0].mxu0 %v3099
      %v3201 = vpop.f32.mrb[0].mxu0
      %v3202 = vadd.f32 0.0, %v3201
      %v3203 = vpop.f32.mrb[0].mxu0
      %v3204 = vpop.f32.mrb[0].mxu0
      %v3205 = vadd.f32 0.0, %v3204
      %v3206 = vpop.f32.mrb[0].mxu0
      %3207 = vmatprep.mubr.bf16.mxu0 0
      %3208 = vmatmul.mubr.bf16.gmra.mrb[0].mxu0 %v3101
      %v3209 = vpop.f32.mrb[0].mxu0
      %v3210 = vadd.f32 0.0, %v3209
      %v3211 = vpop.f32.mrb[0].mxu0
      %v3212 = vpop.f32.mrb[0].mxu0
      %v3213 = vadd.f32 0.0, %v3212
      %v3214 = vpop.f32.mrb[0].mxu0
      %3215 = vmatprep.mubr.bf16.mxu0 0
      %3216 = vmatmul.mubr.bf16.gmra.mrb[0].mxu0 %v3103
      %v3217 = vpop.f32.mrb[0].mxu0
      %v3218 = vadd.f32 0.0, %v3217
      %v3219 = vpop.f32.mrb[0].mxu0
      %v3220 = vpop.f32.mrb[0].mxu0
      %v3221 = vadd.f32 0.0, %v3220
      %v3222 = vpop.f32.mrb[0].mxu0
      %3223 = vmatprep.mubr.bf16.mxu0 0
      %3224 = vmatmul.mubr.bf16.gmra.mrb[0].mxu0 %v3105
      %v3225 = vpop.f32.mrb[0].mxu0
      %v3226 = vadd.f32 0.0, %v3225
      %v3227 = vpop.f32.mrb[0].mxu0
      %v3228 = vpop.f32.mrb[0].mxu0
      %v3229 = vadd.f32 0.0, %v3228
      %v3230 = vpop.f32.mrb[0].mxu0
      %3231 = vdwg.mxu0
      %v3232 = vadd.f32 %v3064, %v3194
      %v3233 = vadd.f32 %v3065, %v3197
      %v3234 = vadd.f32 %v3066, %v3202
      %v3235 = vadd.f32 %v3067, %v3205
      %v3236 = vadd.f32 %v3068, %v3210
      %v3237 = vadd.f32 %v3069, %v3213
      %v3238 = vadd.f32 %v3070, %v3218
      %v3239 = vadd.f32 %v3071, %v3221
      %v3240 = vadd.f32 %v3072, %v3226
      %v3241 = vadd.f32 %v3073, %v3229
      %v3242 = vld [vmem:[%s334 + $0x8] sm:$0xc]
      %v3243 = vld [vmem:[%s334 + $0xc] sm:$0xf]
      %v3244 = vld [vmem:[%s334 + $0x10] sm:$0xf]
      %v3245 = vld [vmem:[%s334 + $0x14] sm:$0xf]
      %v3246 = vld [vmem:[%s334 + $0x18] sm:$0xf]
      %v3247 = vld [vmem:[%s334 + $0x1c] sm:$0xf]
      %v3248 = vld [vmem:[%s334 + $0x20] sm:$0xf]
      %v3249 = vld [vmem:[%s334 + $0x24] sm:$0xf]
      %v3250 = vld [vmem:[%s334 + $0x28] sm:$0xf]
      %v3251 = vld [vmem:[%s334 + $0x2c] sm:$0xf]
      %v3252 = vld [vmem:[%s334 + $0x30] sm:$0x3]
      %s3253 = scalar_lea.vmem %s3, 960
      %v3254 = vld [vmem:[%s3253] sm:$0xf]
      %v3255 = vld [vmem:[%s3253 + $0x4] sm:$0xf]
      %v3256 = vld [vmem:[%s3253 + $0x8] sm:$0xf]
      %v3257 = vld [vmem:[%s3253 + $0xc] sm:$0xf]
      %v3258 = vld [vmem:[%s3253 + $0x10] sm:$0xf]
      %v3259 = vld [vmem:[%s3253 + $0x14] sm:$0xf]
      %v3260 = vld [vmem:[%s3253 + $0x18] sm:$0xf]
      %v3261 = vld [vmem:[%s3253 + $0x1c] sm:$0xf]
      %v3262 = vld [vmem:[%s3253 + $0x20] sm:$0xf]
      %v3263 = vld [vmem:[%s3253 + $0x24] sm:$0xf]
      %v3264 = vld [vmem:[%s3253 + $0x28] sm:$0xf]
      %v3265 = vld [vmem:[%s3253 + $0x2c] sm:$0xf]
      %v3266 = vld [vmem:[%s3253 + $0x30] sm:$0xf]
      %v3267 = vld [vmem:[%s3253 + $0x34] sm:$0xf]
      %v3268 = vld [vmem:[%s3253 + $0x38] sm:$0xf]
      %v3269 = vld [vmem:[%s3253 + $0x3c] sm:$0xf]
      %v3281 = vunpack.c.l.b16 %v3242
      %v3282 = vunpack.c.l.b16 %v3243
      %v3283 = vunpack.c.l.b16 %v3244
      %v3284 = vunpack.c.l.b16 %v3245
      %v3285 = vunpack.c.l.b16 %v3246
      %v3286 = vunpack.c.l.b16 %v3247
      %v3287 = vunpack.c.l.b16 %v3248
      %v3288 = vunpack.c.l.b16 %v3249
      %v3289 = vunpack.c.l.b16 %v3250
      %v3290 = vunpack.c.l.b16 %v3251
      %v3291 = vunpack.c.l.b16 %v3252
      %v3292 = vpack.c.b16 %v3282, %v3281
      %v3293 = vpack.c.b16 %v3284, %v3283
      %v3294 = vpack.c.b16 %v3286, %v3285
      %v3295 = vpack.c.b16 %v3288, %v3287
      %v3296 = vpack.c.b16 %v3290, %v3289
      %v3297 = vpack.c.b16 %v3291, %v3291
      %v3298 = vrot.slane %v3292, 2
      %v3299 = vrot.slane %v3293, 2
      %v3300 = vsel %vm1338, %v3298, %v3299
      %v3301 = vrot.slane %v3294, 2
      %v3302 = vsel %vm1338, %v3299, %v3301
      %v3303 = vrot.slane %v3295, 2
      %v3304 = vsel %vm1338, %v3301, %v3303
      %v3305 = vrot.slane %v3296, 2
      %v3306 = vsel %vm1338, %v3303, %v3305
      %v3307 = vrot.slane %v3297, 2
      %v3308 = vsel %vm1338, %v3305, %v3307
      %v3330 = vunpack.c.l.b16 %v3254
      %v3331 = vunpack.c.l.b16 %v3255
      %v3332 = vunpack.c.l.b16 %v3256
      %v3333 = vunpack.c.l.b16 %v3257
      %v3334 = vunpack.c.l.b16 %v3258
      %v3335 = vunpack.c.l.b16 %v3259
      %v3336 = vunpack.c.l.b16 %v3260
      %v3337 = vunpack.c.l.b16 %v3261
      %v3338 = vunpack.c.l.b16 %v3262
      %v3339 = vunpack.c.l.b16 %v3263
      %v3340 = vunpack.c.l.b16 %v3264
      %v3341 = vunpack.c.l.b16 %v3265
      %v3342 = vunpack.c.l.b16 %v3266
      %v3343 = vunpack.c.l.b16 %v3267
      %v3344 = vunpack.c.l.b16 %v3268
      %v3345 = vunpack.c.l.b16 %v3269
      %v3346 = vpack.c.b16 %v3331, %v3330
      %v3347 = vpack.c.b16 %v3333, %v3332
      %v3348 = vpack.c.b16 %v3335, %v3334
      %v3349 = vpack.c.b16 %v3337, %v3336
      %v3350 = vpack.c.b16 %v3339, %v3338
      %v3351 = vpack.c.b16 %v3341, %v3340
      %v3352 = vpack.c.b16 %v3343, %v3342
      %v3353 = vpack.c.b16 %v3345, %v3344
      %3362 = vmatprep.subr.bf16.mxu0 0
      %3363 = vmatpush1.bf16.msra.mxu0 %v3346
      %3364 = vmatprep.subr.bf16.mxu0 0
      %3365 = vmatpush1.bf16.msra.mxu0 %v3347
      %3366 = vmatprep.subr.bf16.mxu0 0
      %3367 = vmatpush1.bf16.msra.mxu0 %v3348
      %3368 = vmatprep.subr.bf16.mxu0 0
      %3369 = vmatpush1.bf16.msra.mxu0 %v3349
      %3370 = vmatprep.subr.bf16.mxu0 0
      %3371 = vmatpush1.bf16.msra.mxu0 %v3350
      %3372 = vmatprep.subr.bf16.mxu0 0
      %3373 = vmatpush1.bf16.msra.mxu0 %v3351
      %3374 = vmatprep.subr.bf16.mxu0 0
      %3375 = vmatpush1.bf16.msra.mxu0 %v3352
      %3376 = vmatprep.subr.bf16.mxu0 0
      %3377 = vmatpush1.bf16.msra.mxu0 %v3353
      %3378 = vmatprep.subr.bf16.mxu0 0
      %3379 = vmatpush1.bf16.msra.mxu0 0
      %3380 = vmatprep.subr.bf16.mxu0 0
      %3381 = vmatpush1.bf16.msra.mxu0 0
      %3382 = vmatprep.subr.bf16.mxu0 0
      %3383 = vmatpush1.bf16.msra.mxu0 0
      %3384 = vmatprep.subr.bf16.mxu0 0
      %3385 = vmatpush1.bf16.msra.mxu0 0
      %3386 = vmatprep.subr.bf16.mxu0 0
      %3387 = vmatpush1.bf16.msra.mxu0 0
      %3388 = vmatprep.subr.bf16.mxu0 0
      %3389 = vmatpush1.bf16.msra.mxu0 0
      %3390 = vmatprep.subr.bf16.mxu0 0
      %3391 = vmatpush1.bf16.msra.mxu0 0
      %3392 = vmatprep.subr.bf16.mxu0 0
      %3393 = vmatpush1.bf16.msra.mxu0 0
      %3394 = vmatprep.mubr.bf16.mxu0 0
      %3395 = vmatmul.mubr.bf16.gmra.mrb[0].mxu0 %v3300
      %v3396 = vpop.f32.mrb[0].mxu0
      %v3397 = vadd.f32 0.0, %v3396
      %v3398 = vpop.f32.mrb[0].mxu0
      %v3399 = vpop.f32.mrb[0].mxu0
      %v3400 = vadd.f32 0.0, %v3399
      %v3401 = vpop.f32.mrb[0].mxu0
      %3402 = vmatprep.mubr.bf16.mxu0 0
      %3403 = vmatmul.mubr.bf16.gmra.mrb[0].mxu0 %v3302
      %v3404 = vpop.f32.mrb[0].mxu0
      %v3405 = vadd.f32 0.0, %v3404
      %v3406 = vpop.f32.mrb[0].mxu0
      %v3407 = vpop.f32.mrb[0].mxu0
      %v3408 = vadd.f32 0.0, %v3407
      %v3409 = vpop.f32.mrb[0].mxu0
      %3410 = vmatprep.mubr.bf16.mxu0 0
      %3411 = vmatmul.mubr.bf16.gmra.mrb[0].mxu0 %v3304
      %v3412 = vpop.f32.mrb[0].mxu0
      %v3413 = vadd.f32 0.0, %v3412
      %v3414 = vpop.f32.mrb[0].mxu0
      %v3415 = vpop.f32.mrb[0].mxu0
      %v3416 = vadd.f32 0.0, %v3415
      %v3417 = vpop.f32.mrb[0].mxu0
      %3418 = vmatprep.mubr.bf16.mxu0 0
      %3419 = vmatmul.mubr.bf16.gmra.mrb[0].mxu0 %v3306
      %v3420 = vpop.f32.mrb[0].mxu0
      %v3421 = vadd.f32 0.0, %v3420
      %v3422 = vpop.f32.mrb[0].mxu0
      %v3423 = vpop.f32.mrb[0].mxu0
      %v3424 = vadd.f32 0.0, %v3423
      %v3425 = vpop.f32.mrb[0].mxu0
      %3426 = vmatprep.mubr.bf16.mxu0 0
      %3427 = vmatmul.mubr.bf16.gmra.mrb[0].mxu0 %v3308
      %v3428 = vpop.f32.mrb[0].mxu0
      %v3429 = vadd.f32 0.0, %v3428
      %v3430 = vpop.f32.mrb[0].mxu0
      %v3431 = vpop.f32.mrb[0].mxu0
      %v3432 = vadd.f32 0.0, %v3431
      %v3433 = vpop.f32.mrb[0].mxu0
      %3434 = vdwg.mxu0
      %v3435 = vadd.f32 %v3232, %v3397
      %v3436 = vadd.f32 %v3233, %v3400
      %v3437 = vadd.f32 %v3234, %v3405
      %v3438 = vadd.f32 %v3235, %v3408
      %v3439 = vadd.f32 %v3236, %v3413
      %v3440 = vadd.f32 %v3237, %v3416
      %v3441 = vadd.f32 %v3238, %v3421
      %v3442 = vadd.f32 %v3239, %v3424
      %v3443 = vadd.f32 %v3240, %v3429
      %v3444 = vadd.f32 %v3241, %v3432
      %v3445 = vld [vmem:[%s334 + $0x30] sm:$0x7]
      %s3446 = scalar_lea.vmem %s3, 1024
      %v3447 = vld [vmem:[%s3446] sm:$0xf]
      %v3448 = vld [vmem:[%s3446 + $0x4] sm:$0xf]
      %v3449 = vld [vmem:[%s3446 + $0x8] sm:$0xf]
      %v3450 = vld [vmem:[%s3446 + $0xc] sm:$0xf]
      %v3451 = vld [vmem:[%s3446 + $0x10] sm:$0xf]
      %v3452 = vld [vmem:[%s3446 + $0x14] sm:$0xf]
      %v3453 = vld [vmem:[%s3446 + $0x18] sm:$0xf]
      %v3454 = vld [vmem:[%s3446 + $0x1c] sm:$0xf]
      %v3455 = vld [vmem:[%s3446 + $0x20] sm:$0xf]
      %v3456 = vld [vmem:[%s3446 + $0x24] sm:$0xf]
      %v3457 = vld [vmem:[%s3446 + $0x28] sm:$0xf]
      %v3458 = vld [vmem:[%s3446 + $0x2c] sm:$0xf]
      %v3459 = vld [vmem:[%s3446 + $0x30] sm:$0xf]
      %v3460 = vld [vmem:[%s3446 + $0x34] sm:$0xf]
      %v3461 = vld [vmem:[%s3446 + $0x38] sm:$0xf]
      %v3462 = vld [vmem:[%s3446 + $0x3c] sm:$0xf]
      %v3464 = vunpack.c.l.b16 %v3445
      %v3465 = vpack.c.b16 %v3464, %v3464
      %v3467 = vshrl.u32 %v3292, 16
      %v3469 = vrot.slane %v3467, 2
      %v3470 = vshll.u32 %v3292, 16
      %v3472 = vrot.slane %v3470, 3
      %v3473 = vor.u32 %v3469, %v3472
      %v3475 = vshrl.u32 %v3293, 16
      %v3477 = vrot.slane %v3475, 2
      %v3478 = vshll.u32 %v3293, 16
      %v3480 = vrot.slane %v3478, 3
      %v3481 = vor.u32 %v3477, %v3480
      %v3482 = vsel %vm1710, %v3473, %v3481
      %v3484 = vshrl.u32 %v3294, 16
      %v3486 = vrot.slane %v3484, 2
      %v3487 = vshll.u32 %v3294, 16
      %v3489 = vrot.slane %v3487, 3
      %v3490 = vor.u32 %v3486, %v3489
      %v3491 = vsel %vm1710, %v3481, %v3490
      %v3493 = vshrl.u32 %v3295, 16
      %v3495 = vrot.slane %v3493, 2
      %v3496 = vshll.u32 %v3295, 16
      %v3498 = vrot.slane %v3496, 3
      %v3499 = vor.u32 %v3495, %v3498
      %v3500 = vsel %vm1710, %v3490, %v3499
      %v3502 = vshrl.u32 %v3296, 16
      %v3504 = vrot.slane %v3502, 2
      %v3505 = vshll.u32 %v3296, 16
      %v3507 = vrot.slane %v3505, 3
      %v3508 = vor.u32 %v3504, %v3507
      %v3509 = vsel %vm1710, %v3499, %v3508
      %v3511 = vshrl.u32 %v3465, 16
      %v3513 = vrot.slane %v3511, 2
      %v3514 = vshll.u32 %v3465, 16
      %v3516 = vrot.slane %v3514, 3
      %v3517 = vor.u32 %v3513, %v3516
      %v3518 = vsel %vm1710, %v3508, %v3517
      %v3540 = vunpack.c.l.b16 %v3447
      %v3541 = vunpack.c.l.b16 %v3448
      %v3542 = vunpack.c.l.b16 %v3449
      %v3543 = vunpack.c.l.b16 %v3450
      %v3544 = vunpack.c.l.b16 %v3451
      %v3545 = vunpack.c.l.b16 %v3452
      %v3546 = vunpack.c.l.b16 %v3453
      %v3547 = vunpack.c.l.b16 %v3454
      %v3548 = vunpack.c.l.b16 %v3455
      %v3549 = vunpack.c.l.b16 %v3456
      %v3550 = vunpack.c.l.b16 %v3457
      %v3551 = vunpack.c.l.b16 %v3458
      %v3552 = vunpack.c.l.b16 %v3459
      %v3553 = vunpack.c.l.b16 %v3460
      %v3554 = vunpack.c.l.b16 %v3461
      %v3555 = vunpack.c.l.b16 %v3462
      %v3556 = vpack.c.b16 %v3541, %v3540
      %v3557 = vpack.c.b16 %v3543, %v3542
      %v3558 = vpack.c.b16 %v3545, %v3544
      %v3559 = vpack.c.b16 %v3547, %v3546
      %v3560 = vpack.c.b16 %v3549, %v3548
      %v3561 = vpack.c.b16 %v3551, %v3550
      %v3562 = vpack.c.b16 %v3553, %v3552
      %v3563 = vpack.c.b16 %v3555, %v3554
      %3572 = vmatprep.subr.bf16.mxu0 0
      %3573 = vmatpush1.bf16.msra.mxu0 %v3556
      %3574 = vmatprep.subr.bf16.mxu0 0
      %3575 = vmatpush1.bf16.msra.mxu0 %v3557
      %3576 = vmatprep.subr.bf16.mxu0 0
      %3577 = vmatpush1.bf16.msra.mxu0 %v3558
      %3578 = vmatprep.subr.bf16.mxu0 0
      %3579 = vmatpush1.bf16.msra.mxu0 %v3559
      %3580 = vmatprep.subr.bf16.mxu0 0
      %3581 = vmatpush1.bf16.msra.mxu0 %v3560
      %3582 = vmatprep.subr.bf16.mxu0 0
      %3583 = vmatpush1.bf16.msra.mxu0 %v3561
      %3584 = vmatprep.subr.bf16.mxu0 0
      %3585 = vmatpush1.bf16.msra.mxu0 %v3562
      %3586 = vmatprep.subr.bf16.mxu0 0
      %3587 = vmatpush1.bf16.msra.mxu0 %v3563
      %3588 = vmatprep.subr.bf16.mxu0 0
      %3589 = vmatpush1.bf16.msra.mxu0 0
      %3590 = vmatprep.subr.bf16.mxu0 0
      %3591 = vmatpush1.bf16.msra.mxu0 0
      %3592 = vmatprep.subr.bf16.mxu0 0
      %3593 = vmatpush1.bf16.msra.mxu0 0
      %3594 = vmatprep.subr.bf16.mxu0 0
      %3595 = vmatpush1.bf16.msra.mxu0 0
      %3596 = vmatprep.subr.bf16.mxu0 0
      %3597 = vmatpush1.bf16.msra.mxu0 0
      %3598 = vmatprep.subr.bf16.mxu0 0
      %3599 = vmatpush1.bf16.msra.mxu0 0
      %3600 = vmatprep.subr.bf16.mxu0 0
      %3601 = vmatpush1.bf16.msra.mxu0 0
      %3602 = vmatprep.subr.bf16.mxu0 0
      %3603 = vmatpush1.bf16.msra.mxu0 0
      %3604 = vmatprep.mubr.bf16.mxu0 0
      %3605 = vmatmul.mubr.bf16.gmra.mrb[0].mxu0 %v3482
      %v3606 = vpop.f32.mrb[0].mxu0
      %v3607 = vadd.f32 0.0, %v3606
      %v3608 = vpop.f32.mrb[0].mxu0
      %v3609 = vpop.f32.mrb[0].mxu0
      %v3610 = vadd.f32 0.0, %v3609
      %v3611 = vpop.f32.mrb[0].mxu0
      %3612 = vmatprep.mubr.bf16.mxu0 0
      %3613 = vmatmul.mubr.bf16.gmra.mrb[0].mxu0 %v3491
      %v3614 = vpop.f32.mrb[0].mxu0
      %v3615 = vadd.f32 0.0, %v3614
      %v3616 = vpop.f32.mrb[0].mxu0
      %v3617 = vpop.f32.mrb[0].mxu0
      %v3618 = vadd.f32 0.0, %v3617
      %v3619 = vpop.f32.mrb[0].mxu0
      %3620 = vmatprep.mubr.bf16.mxu0 0
      %3621 = vmatmul.mubr.bf16.gmra.mrb[0].mxu0 %v3500
      %v3622 = vpop.f32.mrb[0].mxu0
      %v3623 = vadd.f32 0.0, %v3622
      %v3624 = vpop.f32.mrb[0].mxu0
      %v3625 = vpop.f32.mrb[0].mxu0
      %v3626 = vadd.f32 0.0, %v3625
      %v3627 = vpop.f32.mrb[0].mxu0
      %3628 = vmatprep.mubr.bf16.mxu0 0
      %3629 = vmatmul.mubr.bf16.gmra.mrb[0].mxu0 %v3509
      %v3630 = vpop.f32.mrb[0].mxu0
      %v3631 = vadd.f32 0.0, %v3630
      %v3632 = vpop.f32.mrb[0].mxu0
      %v3633 = vpop.f32.mrb[0].mxu0
      %v3634 = vadd.f32 0.0, %v3633
      %v3635 = vpop.f32.mrb[0].mxu0
      %3636 = vmatprep.mubr.bf16.mxu0 0
      %3637 = vmatmul.mubr.bf16.gmra.mrb[0].mxu0 %v3518
      %v3638 = vpop.f32.mrb[0].mxu0
      %v3639 = vadd.f32 0.0, %v3638
      %v3640 = vpop.f32.mrb[0].mxu0
      %v3641 = vpop.f32.mrb[0].mxu0
      %v3642 = vadd.f32 0.0, %v3641
      %v3643 = vpop.f32.mrb[0].mxu0
      %3644 = vdwg.mxu0
      %v3645 = vadd.f32 %v3435, %v3607
      %v3646 = vadd.f32 %v3436, %v3610
      %v3647 = vadd.f32 %v3437, %v3615
      %v3648 = vadd.f32 %v3438, %v3618
      %v3649 = vadd.f32 %v3439, %v3623
      %v3650 = vadd.f32 %v3440, %v3626
      %v3651 = vadd.f32 %v3441, %v3631
      %v3652 = vadd.f32 %v3442, %v3634
      %v3653 = vadd.f32 %v3443, %v3639
      %v3654 = vadd.f32 %v3444, %v3642
      %v3655 = vld [vmem:[%s334 + $0x8] sm:$0x8]
      %s3656 = scalar_lea.vmem %s3, 1088
      %v3657 = vld [vmem:[%s3656] sm:$0xf]
      %v3658 = vld [vmem:[%s3656 + $0x4] sm:$0xf]
      %v3659 = vld [vmem:[%s3656 + $0x8] sm:$0xf]
      %v3660 = vld [vmem:[%s3656 + $0xc] sm:$0xf]
      %v3661 = vld [vmem:[%s3656 + $0x10] sm:$0xf]
      %v3662 = vld [vmem:[%s3656 + $0x14] sm:$0xf]
      %v3663 = vld [vmem:[%s3656 + $0x18] sm:$0xf]
      %v3664 = vld [vmem:[%s3656 + $0x1c] sm:$0xf]
      %v3665 = vld [vmem:[%s3656 + $0x20] sm:$0xf]
      %v3666 = vld [vmem:[%s3656 + $0x24] sm:$0xf]
      %v3667 = vld [vmem:[%s3656 + $0x28] sm:$0xf]
      %v3668 = vld [vmem:[%s3656 + $0x2c] sm:$0xf]
      %v3669 = vld [vmem:[%s3656 + $0x30] sm:$0xf]
      %v3670 = vld [vmem:[%s3656 + $0x34] sm:$0xf]
      %v3671 = vld [vmem:[%s3656 + $0x38] sm:$0xf]
      %v3672 = vld [vmem:[%s3656 + $0x3c] sm:$0xf]
      %v3674 = vunpack.c.l.b16 %v3655
      %v3675 = vpack.c.b16 %v3282, %v3674
      %v3676 = vrot.slane %v3675, 3
      %v3677 = vrot.slane %v3293, 3
      %v3678 = vsel %vm1921, %v3676, %v3677
      %v3679 = vrot.slane %v3294, 3
      %v3680 = vsel %vm1921, %v3677, %v3679
      %v3681 = vrot.slane %v3295, 3
      %v3682 = vsel %vm1921, %v3679, %v3681
      %v3683 = vrot.slane %v3296, 3
      %v3684 = vsel %vm1921, %v3681, %v3683
      %v3685 = vrot.slane %v3465, 3
      %v3686 = vsel %vm1921, %v3683, %v3685
      %v3708 = vunpack.c.l.b16 %v3657
      %v3709 = vunpack.c.l.b16 %v3658
      %v3710 = vunpack.c.l.b16 %v3659
      %v3711 = vunpack.c.l.b16 %v3660
      %v3712 = vunpack.c.l.b16 %v3661
      %v3713 = vunpack.c.l.b16 %v3662
      %v3714 = vunpack.c.l.b16 %v3663
      %v3715 = vunpack.c.l.b16 %v3664
      %v3716 = vunpack.c.l.b16 %v3665
      %v3717 = vunpack.c.l.b16 %v3666
      %v3718 = vunpack.c.l.b16 %v3667
      %v3719 = vunpack.c.l.b16 %v3668
      %v3720 = vunpack.c.l.b16 %v3669
      %v3721 = vunpack.c.l.b16 %v3670
      %v3722 = vunpack.c.l.b16 %v3671
      %v3723 = vunpack.c.l.b16 %v3672
      %v3724 = vpack.c.b16 %v3709, %v3708
      %v3725 = vpack.c.b16 %v3711, %v3710
      %v3726 = vpack.c.b16 %v3713, %v3712
      %v3727 = vpack.c.b16 %v3715, %v3714
      %v3728 = vpack.c.b16 %v3717, %v3716
      %v3729 = vpack.c.b16 %v3719, %v3718
      %v3730 = vpack.c.b16 %v3721, %v3720
      %v3731 = vpack.c.b16 %v3723, %v3722
      %3740 = vmatprep.subr.bf16.mxu0 0
      %3741 = vmatpush1.bf16.msra.mxu0 %v3724
      %3742 = vmatprep.subr.bf16.mxu0 0
      %3743 = vmatpush1.bf16.msra.mxu0 %v3725
      %3744 = vmatprep.subr.bf16.mxu0 0
      %3745 = vmatpush1.bf16.msra.mxu0 %v3726
      %3746 = vmatprep.subr.bf16.mxu0 0
      %3747 = vmatpush1.bf16.msra.mxu0 %v3727
      %3748 = vmatprep.subr.bf16.mxu0 0
      %3749 = vmatpush1.bf16.msra.mxu0 %v3728
      %3750 = vmatprep.subr.bf16.mxu0 0
      %3751 = vmatpush1.bf16.msra.mxu0 %v3729
      %3752 = vmatprep.subr.bf16.mxu0 0
      %3753 = vmatpush1.bf16.msra.mxu0 %v3730
      %3754 = vmatprep.subr.bf16.mxu0 0
      %3755 = vmatpush1.bf16.msra.mxu0 %v3731
      %3756 = vmatprep.subr.bf16.mxu0 0
      %3757 = vmatpush1.bf16.msra.mxu0 0
      %3758 = vmatprep.subr.bf16.mxu0 0
      %3759 = vmatpush1.bf16.msra.mxu0 0
      %3760 = vmatprep.subr.bf16.mxu0 0
      %3761 = vmatpush1.bf16.msra.mxu0 0
      %3762 = vmatprep.subr.bf16.mxu0 0
      %3763 = vmatpush1.bf16.msra.mxu0 0
      %3764 = vmatprep.subr.bf16.mxu0 0
      %3765 = vmatpush1.bf16.msra.mxu0 0
      %3766 = vmatprep.subr.bf16.mxu0 0
      %3767 = vmatpush1.bf16.msra.mxu0 0
      %3768 = vmatprep.subr.bf16.mxu0 0
      %3769 = vmatpush1.bf16.msra.mxu0 0
      %3770 = vmatprep.subr.bf16.mxu0 0
      %3771 = vmatpush1.bf16.msra.mxu0 0
      %3772 = vmatprep.mubr.bf16.mxu0 0
      %3773 = vmatmul.mubr.bf16.gmra.mrb[0].mxu0 %v3678
      %v3774 = vpop.f32.mrb[0].mxu0
      %v3775 = vadd.f32 0.0, %v3774
      %v3776 = vpop.f32.mrb[0].mxu0
      %v3777 = vpop.f32.mrb[0].mxu0
      %v3778 = vadd.f32 0.0, %v3777
      %v3779 = vpop.f32.mrb[0].mxu0
      %3780 = vmatprep.mubr.bf16.mxu0 0
      %3781 = vmatmul.mubr.bf16.gmra.mrb[0].mxu0 %v3680
      %v3782 = vpop.f32.mrb[0].mxu0
      %v3783 = vadd.f32 0.0, %v3782
      %v3784 = vpop.f32.mrb[0].mxu0
      %v3785 = vpop.f32.mrb[0].mxu0
      %v3786 = vadd.f32 0.0, %v3785
      %v3787 = vpop.f32.mrb[0].mxu0
      %3788 = vmatprep.mubr.bf16.mxu0 0
      %3789 = vmatmul.mubr.bf16.gmra.mrb[0].mxu0 %v3682
      %v3790 = vpop.f32.mrb[0].mxu0
      %v3791 = vadd.f32 0.0, %v3790
      %v3792 = vpop.f32.mrb[0].mxu0
      %v3793 = vpop.f32.mrb[0].mxu0
      %v3794 = vadd.f32 0.0, %v3793
      %v3795 = vpop.f32.mrb[0].mxu0
      %3796 = vmatprep.mubr.bf16.mxu0 0
      %3797 = vmatmul.mubr.bf16.gmra.mrb[0].mxu0 %v3684
      %v3798 = vpop.f32.mrb[0].mxu0
      %v3799 = vadd.f32 0.0, %v3798
      %v3800 = vpop.f32.mrb[0].mxu0
      %v3801 = vpop.f32.mrb[0].mxu0
      %v3802 = vadd.f32 0.0, %v3801
      %v3803 = vpop.f32.mrb[0].mxu0
      %3804 = vmatprep.mubr.bf16.mxu0 0
      %3805 = vmatmul.mubr.bf16.gmra.mrb[0].mxu0 %v3686
      %v3806 = vpop.f32.mrb[0].mxu0
      %v3807 = vadd.f32 0.0, %v3806
      %v3808 = vpop.f32.mrb[0].mxu0
      %v3809 = vpop.f32.mrb[0].mxu0
      %v3810 = vadd.f32 0.0, %v3809
      %v3811 = vpop.f32.mrb[0].mxu0
      %3812 = vdwg.mxu0
      %v3813 = vadd.f32 %v3645, %v3775
      %v3814 = vadd.f32 %v3646, %v3778
      %v3815 = vadd.f32 %v3647, %v3783
      %v3816 = vadd.f32 %v3648, %v3786
      %v3817 = vadd.f32 %v3649, %v3791
      %v3818 = vadd.f32 %v3650, %v3794
      %v3819 = vadd.f32 %v3651, %v3799
      %v3820 = vadd.f32 %v3652, %v3802
      %v3821 = vadd.f32 %v3653, %v3807
      %v3822 = vadd.f32 %v3654, %v3810
      %v3823 = vld [vmem:[%s345] sm:$0xf]
      %v3824 = vld [vmem:[%s345 + $0x4] sm:$0xf]
      %v3825 = vld [vmem:[%s345 + $0x8] sm:$0xf]
      %v3826 = vld [vmem:[%s345 + $0xc] sm:$0xf]
      %v3827 = vld [vmem:[%s345 + $0x10] sm:$0xf]
      %v3828 = vld [vmem:[%s345 + $0x14] sm:$0xf]
      %v3829 = vld [vmem:[%s345 + $0x18] sm:$0xf]
      %v3830 = vld [vmem:[%s345 + $0x1c] sm:$0xf]
      %v3831 = vld [vmem:[%s345 + $0x20] sm:$0xf]
      %v3832 = vld [vmem:[%s345 + $0x24] sm:$0xf]
      %s3833 = scalar_lea.vmem %s3, 1152
      %v3834 = vld [vmem:[%s3833] sm:$0xf]
      %v3835 = vld [vmem:[%s3833 + $0x4] sm:$0xf]
      %v3836 = vld [vmem:[%s3833 + $0x8] sm:$0xf]
      %v3837 = vld [vmem:[%s3833 + $0xc] sm:$0xf]
      %v3838 = vld [vmem:[%s3833 + $0x10] sm:$0xf]
      %v3839 = vld [vmem:[%s3833 + $0x14] sm:$0xf]
      %v3840 = vld [vmem:[%s3833 + $0x18] sm:$0xf]
      %v3841 = vld [vmem:[%s3833 + $0x1c] sm:$0xf]
      %v3842 = vld [vmem:[%s3833 + $0x20] sm:$0xf]
      %v3843 = vld [vmem:[%s3833 + $0x24] sm:$0xf]
      %v3844 = vld [vmem:[%s3833 + $0x28] sm:$0xf]
      %v3845 = vld [vmem:[%s3833 + $0x2c] sm:$0xf]
      %v3846 = vld [vmem:[%s3833 + $0x30] sm:$0xf]
      %v3847 = vld [vmem:[%s3833 + $0x34] sm:$0xf]
      %v3848 = vld [vmem:[%s3833 + $0x38] sm:$0xf]
      %v3849 = vld [vmem:[%s3833 + $0x3c] sm:$0xf]
      %v3860 = vunpack.c.l.b16 %v3823
      %v3861 = vunpack.c.l.b16 %v3824
      %v3862 = vunpack.c.l.b16 %v3825
      %v3863 = vunpack.c.l.b16 %v3826
      %v3864 = vunpack.c.l.b16 %v3827
      %v3865 = vunpack.c.l.b16 %v3828
      %v3866 = vunpack.c.l.b16 %v3829
      %v3867 = vunpack.c.l.b16 %v3830
      %v3868 = vunpack.c.l.b16 %v3831
      %v3869 = vunpack.c.l.b16 %v3832
      %v3870 = vpack.c.b16 %v3861, %v3860
      %v3871 = vpack.c.b16 %v3863, %v3862
      %v3872 = vpack.c.b16 %v3865, %v3864
      %v3873 = vpack.c.b16 %v3867, %v3866
      %v3874 = vpack.c.b16 %v3869, %v3868
      %v3896 = vunpack.c.l.b16 %v3834
      %v3897 = vunpack.c.l.b16 %v3835
      %v3898 = vunpack.c.l.b16 %v3836
      %v3899 = vunpack.c.l.b16 %v3837
      %v3900 = vunpack.c.l.b16 %v3838
      %v3901 = vunpack.c.l.b16 %v3839
      %v3902 = vunpack.c.l.b16 %v3840
      %v3903 = vunpack.c.l.b16 %v3841
      %v3904 = vunpack.c.l.b16 %v3842
      %v3905 = vunpack.c.l.b16 %v3843
      %v3906 = vunpack.c.l.b16 %v3844
      %v3907 = vunpack.c.l.b16 %v3845
      %v3908 = vunpack.c.l.b16 %v3846
      %v3909 = vunpack.c.l.b16 %v3847
      %v3910 = vunpack.c.l.b16 %v3848
      %v3911 = vunpack.c.l.b16 %v3849
      %v3912 = vpack.c.b16 %v3897, %v3896
      %v3913 = vpack.c.b16 %v3899, %v3898
      %v3914 = vpack.c.b16 %v3901, %v3900
      %v3915 = vpack.c.b16 %v3903, %v3902
      %v3916 = vpack.c.b16 %v3905, %v3904
      %v3917 = vpack.c.b16 %v3907, %v3906
      %v3918 = vpack.c.b16 %v3909, %v3908
      %v3919 = vpack.c.b16 %v3911, %v3910
      %3928 = vmatprep.subr.bf16.mxu0 0
      %3929 = vmatpush1.bf16.msra.mxu0 %v3912
      %3930 = vmatprep.subr.bf16.mxu0 0
      %3931 = vmatpush1.bf16.msra.mxu0 %v3913
      %3932 = vmatprep.subr.bf16.mxu0 0
      %3933 = vmatpush1.bf16.msra.mxu0 %v3914
      %3934 = vmatprep.subr.bf16.mxu0 0
      %3935 = vmatpush1.bf16.msra.mxu0 %v3915
      %3936 = vmatprep.subr.bf16.mxu0 0
      %3937 = vmatpush1.bf16.msra.mxu0 %v3916
      %3938 = vmatprep.subr.bf16.mxu0 0
      %3939 = vmatpush1.bf16.msra.mxu0 %v3917
      %3940 = vmatprep.subr.bf16.mxu0 0
      %3941 = vmatpush1.bf16.msra.mxu0 %v3918
      %3942 = vmatprep.subr.bf16.mxu0 0
      %3943 = vmatpush1.bf16.msra.mxu0 %v3919
      %3944 = vmatprep.subr.bf16.mxu0 0
      %3945 = vmatpush1.bf16.msra.mxu0 0
      %3946 = vmatprep.subr.bf16.mxu0 0
      %3947 = vmatpush1.bf16.msra.mxu0 0
      %3948 = vmatprep.subr.bf16.mxu0 0
      %3949 = vmatpush1.bf16.msra.mxu0 0
      %3950 = vmatprep.subr.bf16.mxu0 0
      %3951 = vmatpush1.bf16.msra.mxu0 0
      %3952 = vmatprep.subr.bf16.mxu0 0
      %3953 = vmatpush1.bf16.msra.mxu0 0
      %3954 = vmatprep.subr.bf16.mxu0 0
      %3955 = vmatpush1.bf16.msra.mxu0 0
      %3956 = vmatprep.subr.bf16.mxu0 0
      %3957 = vmatpush1.bf16.msra.mxu0 0
      %3958 = vmatprep.subr.bf16.mxu0 0
      %3959 = vmatpush1.bf16.msra.mxu0 0
      %3960 = vmatprep.mubr.bf16.mxu0 0
      %3961 = vmatmul.mubr.bf16.gmra.mrb[0].mxu0 %v3870
      %v3962 = vpop.f32.mrb[0].mxu0
      %v3963 = vadd.f32 0.0, %v3962
      %v3964 = vpop.f32.mrb[0].mxu0
      %v3965 = vpop.f32.mrb[0].mxu0
      %v3966 = vadd.f32 0.0, %v3965
      %v3967 = vpop.f32.mrb[0].mxu0
      %3968 = vmatprep.mubr.bf16.mxu0 0
      %3969 = vmatmul.mubr.bf16.gmra.mrb[0].mxu0 %v3871
      %v3970 = vpop.f32.mrb[0].mxu0
      %v3971 = vadd.f32 0.0, %v3970
      %v3972 = vpop.f32.mrb[0].mxu0
      %v3973 = vpop.f32.mrb[0].mxu0
      %v3974 = vadd.f32 0.0, %v3973
      %v3975 = vpop.f32.mrb[0].mxu0
      %3976 = vmatprep.mubr.bf16.mxu0 0
      %3977 = vmatmul.mubr.bf16.gmra.mrb[0].mxu0 %v3872
      %v3978 = vpop.f32.mrb[0].mxu0
      %v3979 = vadd.f32 0.0, %v3978
      %v3980 = vpop.f32.mrb[0].mxu0
      %v3981 = vpop.f32.mrb[0].mxu0
      %v3982 = vadd.f32 0.0, %v3981
      %v3983 = vpop.f32.mrb[0].mxu0
      %3984 = vmatprep.mubr.bf16.mxu0 0
      %3985 = vmatmul.mubr.bf16.gmra.mrb[0].mxu0 %v3873
      %v3986 = vpop.f32.mrb[0].mxu0
      %v3987 = vadd.f32 0.0, %v3986
      %v3988 = vpop.f32.mrb[0].mxu0
      %v3989 = vpop.f32.mrb[0].mxu0
      %v3990 = vadd.f32 0.0, %v3989
      %v3991 = vpop.f32.mrb[0].mxu0
      %3992 = vmatprep.mubr.bf16.mxu0 0
      %3993 = vmatmul.mubr.bf16.gmra.mrb[0].mxu0 %v3874
      %v3994 = vpop.f32.mrb[0].mxu0
      %v3995 = vadd.f32 0.0, %v3994
      %v3996 = vpop.f32.mrb[0].mxu0
      %v3997 = vpop.f32.mrb[0].mxu0
      %v3998 = vadd.f32 0.0, %v3997
      %v3999 = vpop.f32.mrb[0].mxu0
      %4000 = vdwg.mxu0
      %v4001 = vadd.f32 %v3813, %v3963
      %v4002 = vadd.f32 %v3814, %v3966
      %v4003 = vadd.f32 %v3815, %v3971
      %v4004 = vadd.f32 %v3816, %v3974
      %v4005 = vadd.f32 %v3817, %v3979
      %v4006 = vadd.f32 %v3818, %v3982
      %v4007 = vadd.f32 %v3819, %v3987
      %v4008 = vadd.f32 %v3820, %v3990
      %v4009 = vadd.f32 %v3821, %v3995
      %v4010 = vadd.f32 %v3822, %v3998
      %v4011 = vld [vmem:[%s345] sm:$0xf]
      %v4012 = vld [vmem:[%s345 + $0x4] sm:$0xf]
      %v4013 = vld [vmem:[%s345 + $0x8] sm:$0xf]
      %v4014 = vld [vmem:[%s345 + $0xc] sm:$0xf]
      %v4015 = vld [vmem:[%s345 + $0x10] sm:$0xf]
      %v4016 = vld [vmem:[%s345 + $0x14] sm:$0xf]
      %v4017 = vld [vmem:[%s345 + $0x18] sm:$0xf]
      %v4018 = vld [vmem:[%s345 + $0x1c] sm:$0xf]
      %v4019 = vld [vmem:[%s345 + $0x20] sm:$0xf]
      %v4020 = vld [vmem:[%s345 + $0x24] sm:$0xf]
      %v4021 = vld [vmem:[%s345 + $0x28] sm:$0x1]
      %s4022 = scalar_lea.vmem %s3, 1216
      %v4023 = vld [vmem:[%s4022] sm:$0xf]
      %v4024 = vld [vmem:[%s4022 + $0x4] sm:$0xf]
      %v4025 = vld [vmem:[%s4022 + $0x8] sm:$0xf]
      %v4026 = vld [vmem:[%s4022 + $0xc] sm:$0xf]
      %v4027 = vld [vmem:[%s4022 + $0x10] sm:$0xf]
      %v4028 = vld [vmem:[%s4022 + $0x14] sm:$0xf]
      %v4029 = vld [vmem:[%s4022 + $0x18] sm:$0xf]
      %v4030 = vld [vmem:[%s4022 + $0x1c] sm:$0xf]
      %v4031 = vld [vmem:[%s4022 + $0x20] sm:$0xf]
      %v4032 = vld [vmem:[%s4022 + $0x24] sm:$0xf]
      %v4033 = vld [vmem:[%s4022 + $0x28] sm:$0xf]
      %v4034 = vld [vmem:[%s4022 + $0x2c] sm:$0xf]
      %v4035 = vld [vmem:[%s4022 + $0x30] sm:$0xf]
      %v4036 = vld [vmem:[%s4022 + $0x34] sm:$0xf]
      %v4037 = vld [vmem:[%s4022 + $0x38] sm:$0xf]
      %v4038 = vld [vmem:[%s4022 + $0x3c] sm:$0xf]
      %v4050 = vunpack.c.l.b16 %v4011
      %v4051 = vunpack.c.l.b16 %v4012
      %v4052 = vunpack.c.l.b16 %v4013
      %v4053 = vunpack.c.l.b16 %v4014
      %v4054 = vunpack.c.l.b16 %v4015
      %v4055 = vunpack.c.l.b16 %v4016
      %v4056 = vunpack.c.l.b16 %v4017
      %v4057 = vunpack.c.l.b16 %v4018
      %v4058 = vunpack.c.l.b16 %v4019
      %v4059 = vunpack.c.l.b16 %v4020
      %v4060 = vunpack.c.l.b16 %v4021
      %v4061 = vpack.c.b16 %v4051, %v4050
      %v4062 = vpack.c.b16 %v4053, %v4052
      %v4063 = vpack.c.b16 %v4055, %v4054
      %v4064 = vpack.c.b16 %v4057, %v4056
      %v4065 = vpack.c.b16 %v4059, %v4058
      %v4066 = vpack.c.b16 %v4060, %v4060
      %v4068 = vshrl.u32 %v4061, 16
      %v4070 = vshll.u32 %v4061, 16
      %v4072 = vrot.slane %v4070, 1
      %v4073 = vor.u32 %v4068, %v4072
      %v4075 = vshll.u32 %v4062, 16
      %v4077 = vrot.slane %v4075, 1
      %v4078 = vsel %vm437, %v4073, %v4077
      %v4079 = vshrl.u32 %v4062, 16
      %v4081 = vor.u32 %v4079, %v4077
      %v4083 = vshll.u32 %v4063, 16
      %v4085 = vrot.slane %v4083, 1
      %v4086 = vsel %vm437, %v4081, %v4085
      %v4087 = vshrl.u32 %v4063, 16
      %v4089 = vor.u32 %v4087, %v4085
      %v4091 = vshll.u32 %v4064, 16
      %v4093 = vrot.slane %v4091, 1
      %v4094 = vsel %vm437, %v4089, %v4093
      %v4095 = vshrl.u32 %v4064, 16
      %v4097 = vor.u32 %v4095, %v4093
      %v4099 = vshll.u32 %v4065, 16
      %v4101 = vrot.slane %v4099, 1
      %v4102 = vsel %vm437, %v4097, %v4101
      %v4103 = vshrl.u32 %v4065, 16
      %v4105 = vor.u32 %v4103, %v4101
      %v4107 = vshll.u32 %v4066, 16
      %v4109 = vrot.slane %v4107, 1
      %v4110 = vsel %vm437, %v4105, %v4109
      %v4132 = vunpack.c.l.b16 %v4023
      %v4133 = vunpack.c.l.b16 %v4024
      %v4134 = vunpack.c.l.b16 %v4025
      %v4135 = vunpack.c.l.b16 %v4026
      %v4136 = vunpack.c.l.b16 %v4027
      %v4137 = vunpack.c.l.b16 %v4028
      %v4138 = vunpack.c.l.b16 %v4029
      %v4139 = vunpack.c.l.b16 %v4030
      %v4140 = vunpack.c.l.b16 %v4031
      %v4141 = vunpack.c.l.b16 %v4032
      %v4142 = vunpack.c.l.b16 %v4033
      %v4143 = vunpack.c.l.b16 %v4034
      %v4144 = vunpack.c.l.b16 %v4035
      %v4145 = vunpack.c.l.b16 %v4036
      %v4146 = vunpack.c.l.b16 %v4037
      %v4147 = vunpack.c.l.b16 %v4038
      %v4148 = vpack.c.b16 %v4133, %v4132
      %v4149 = vpack.c.b16 %v4135, %v4134
      %v4150 = vpack.c.b16 %v4137, %v4136
      %v4151 = vpack.c.b16 %v4139, %v4138
      %v4152 = vpack.c.b16 %v4141, %v4140
      %v4153 = vpack.c.b16 %v4143, %v4142
      %v4154 = vpack.c.b16 %v4145, %v4144
      %v4155 = vpack.c.b16 %v4147, %v4146
      %4164 = vmatprep.subr.bf16.mxu0 0
      %4165 = vmatpush1.bf16.msra.mxu0 %v4148
      %4166 = vmatprep.subr.bf16.mxu0 0
      %4167 = vmatpush1.bf16.msra.mxu0 %v4149
      %4168 = vmatprep.subr.bf16.mxu0 0
      %4169 = vmatpush1.bf16.msra.mxu0 %v4150
      %4170 = vmatprep.subr.bf16.mxu0 0
      %4171 = vmatpush1.bf16.msra.mxu0 %v4151
      %4172 = vmatprep.subr.bf16.mxu0 0
      %4173 = vmatpush1.bf16.msra.mxu0 %v4152
      %4174 = vmatprep.subr.bf16.mxu0 0
      %4175 = vmatpush1.bf16.msra.mxu0 %v4153
      %4176 = vmatprep.subr.bf16.mxu0 0
      %4177 = vmatpush1.bf16.msra.mxu0 %v4154
      %4178 = vmatprep.subr.bf16.mxu0 0
      %4179 = vmatpush1.bf16.msra.mxu0 %v4155
      %4180 = vmatprep.subr.bf16.mxu0 0
      %4181 = vmatpush1.bf16.msra.mxu0 0
      %4182 = vmatprep.subr.bf16.mxu0 0
      %4183 = vmatpush1.bf16.msra.mxu0 0
      %4184 = vmatprep.subr.bf16.mxu0 0
      %4185 = vmatpush1.bf16.msra.mxu0 0
      %4186 = vmatprep.subr.bf16.mxu0 0
      %4187 = vmatpush1.bf16.msra.mxu0 0
      %4188 = vmatprep.subr.bf16.mxu0 0
      %4189 = vmatpush1.bf16.msra.mxu0 0
      %4190 = vmatprep.subr.bf16.mxu0 0
      %4191 = vmatpush1.bf16.msra.mxu0 0
      %4192 = vmatprep.subr.bf16.mxu0 0
      %4193 = vmatpush1.bf16.msra.mxu0 0
      %4194 = vmatprep.subr.bf16.mxu0 0
      %4195 = vmatpush1.bf16.msra.mxu0 0
      %4196 = vmatprep.mubr.bf16.mxu0 0
      %4197 = vmatmul.mubr.bf16.gmra.mrb[0].mxu0 %v4078
      %v4198 = vpop.f32.mrb[0].mxu0
      %v4199 = vadd.f32 0.0, %v4198
      %v4200 = vpop.f32.mrb[0].mxu0
      %v4201 = vpop.f32.mrb[0].mxu0
      %v4202 = vadd.f32 0.0, %v4201
      %v4203 = vpop.f32.mrb[0].mxu0
      %4204 = vmatprep.mubr.bf16.mxu0 0
      %4205 = vmatmul.mubr.bf16.gmra.mrb[0].mxu0 %v4086
      %v4206 = vpop.f32.mrb[0].mxu0
      %v4207 = vadd.f32 0.0, %v4206
      %v4208 = vpop.f32.mrb[0].mxu0
      %v4209 = vpop.f32.mrb[0].mxu0
      %v4210 = vadd.f32 0.0, %v4209
      %v4211 = vpop.f32.mrb[0].mxu0
      %4212 = vmatprep.mubr.bf16.mxu0 0
      %4213 = vmatmul.mubr.bf16.gmra.mrb[0].mxu0 %v4094
      %v4214 = vpop.f32.mrb[0].mxu0
      %v4215 = vadd.f32 0.0, %v4214
      %v4216 = vpop.f32.mrb[0].mxu0
      %v4217 = vpop.f32.mrb[0].mxu0
      %v4218 = vadd.f32 0.0, %v4217
      %v4219 = vpop.f32.mrb[0].mxu0
      %4220 = vmatprep.mubr.bf16.mxu0 0
      %4221 = vmatmul.mubr.bf16.gmra.mrb[0].mxu0 %v4102
      %v4222 = vpop.f32.mrb[0].mxu0
      %v4223 = vadd.f32 0.0, %v4222
      %v4224 = vpop.f32.mrb[0].mxu0
      %v4225 = vpop.f32.mrb[0].mxu0
      %v4226 = vadd.f32 0.0, %v4225
      %v4227 = vpop.f32.mrb[0].mxu0
      %4228 = vmatprep.mubr.bf16.mxu0 0
      %4229 = vmatmul.mubr.bf16.gmra.mrb[0].mxu0 %v4110
      %v4230 = vpop.f32.mrb[0].mxu0
      %v4231 = vadd.f32 0.0, %v4230
      %v4232 = vpop.f32.mrb[0].mxu0
      %v4233 = vpop.f32.mrb[0].mxu0
      %v4234 = vadd.f32 0.0, %v4233
      %v4235 = vpop.f32.mrb[0].mxu0
      %4236 = vdwg.mxu0
      %v4237 = vadd.f32 %v4001, %v4199
      %v4238 = vadd.f32 %v4002, %v4202
      %v4239 = vadd.f32 %v4003, %v4207
      %v4240 = vadd.f32 %v4004, %v4210
      %v4241 = vadd.f32 %v4005, %v4215
      %v4242 = vadd.f32 %v4006, %v4218
      %v4243 = vadd.f32 %v4007, %v4223
      %v4244 = vadd.f32 %v4008, %v4226
      %v4245 = vadd.f32 %v4009, %v4231
      %v4246 = vadd.f32 %v4010, %v4234
      %v4247 = vld [vmem:[%s345] sm:$0xe]
      %s4248 = scalar_lea.vmem %s3, 1280
      %v4249 = vld [vmem:[%s4248] sm:$0xf]
      %v4250 = vld [vmem:[%s4248 + $0x4] sm:$0xf]
      %v4251 = vld [vmem:[%s4248 + $0x8] sm:$0xf]
      %v4252 = vld [vmem:[%s4248 + $0xc] sm:$0xf]
      %v4253 = vld [vmem:[%s4248 + $0x10] sm:$0xf]
      %v4254 = vld [vmem:[%s4248 + $0x14] sm:$0xf]
      %v4255 = vld [vmem:[%s4248 + $0x18] sm:$0xf]
      %v4256 = vld [vmem:[%s4248 + $0x1c] sm:$0xf]
      %v4257 = vld [vmem:[%s4248 + $0x20] sm:$0xf]
      %v4258 = vld [vmem:[%s4248 + $0x24] sm:$0xf]
      %v4259 = vld [vmem:[%s4248 + $0x28] sm:$0xf]
      %v4260 = vld [vmem:[%s4248 + $0x2c] sm:$0xf]
      %v4261 = vld [vmem:[%s4248 + $0x30] sm:$0xf]
      %v4262 = vld [vmem:[%s4248 + $0x34] sm:$0xf]
      %v4263 = vld [vmem:[%s4248 + $0x38] sm:$0xf]
      %v4264 = vld [vmem:[%s4248 + $0x3c] sm:$0xf]
      %v4266 = vunpack.c.l.b16 %v4247
      %v4267 = vpack.c.b16 %v4051, %v4266
      %v4268 = vrot.slane %v4267, 1
      %v4269 = vrot.slane %v4062, 1
      %v4270 = vsel %vm755, %v4268, %v4269
      %v4271 = vrot.slane %v4063, 1
      %v4272 = vsel %vm755, %v4269, %v4271
      %v4273 = vrot.slane %v4064, 1
      %v4274 = vsel %vm755, %v4271, %v4273
      %v4275 = vrot.slane %v4065, 1
      %v4276 = vsel %vm755, %v4273, %v4275
      %v4277 = vrot.slane %v4066, 1
      %v4278 = vsel %vm755, %v4275, %v4277
      %v4300 = vunpack.c.l.b16 %v4249
      %v4301 = vunpack.c.l.b16 %v4250
      %v4302 = vunpack.c.l.b16 %v4251
      %v4303 = vunpack.c.l.b16 %v4252
      %v4304 = vunpack.c.l.b16 %v4253
      %v4305 = vunpack.c.l.b16 %v4254
      %v4306 = vunpack.c.l.b16 %v4255
      %v4307 = vunpack.c.l.b16 %v4256
      %v4308 = vunpack.c.l.b16 %v4257
      %v4309 = vunpack.c.l.b16 %v4258
      %v4310 = vunpack.c.l.b16 %v4259
      %v4311 = vunpack.c.l.b16 %v4260
      %v4312 = vunpack.c.l.b16 %v4261
      %v4313 = vunpack.c.l.b16 %v4262
      %v4314 = vunpack.c.l.b16 %v4263
      %v4315 = vunpack.c.l.b16 %v4264
      %v4316 = vpack.c.b16 %v4301, %v4300
      %v4317 = vpack.c.b16 %v4303, %v4302
      %v4318 = vpack.c.b16 %v4305, %v4304
      %v4319 = vpack.c.b16 %v4307, %v4306
      %v4320 = vpack.c.b16 %v4309, %v4308
      %v4321 = vpack.c.b16 %v4311, %v4310
      %v4322 = vpack.c.b16 %v4313, %v4312
      %v4323 = vpack.c.b16 %v4315, %v4314
      %4332 = vmatprep.subr.bf16.mxu0 0
      %4333 = vmatpush1.bf16.msra.mxu0 %v4316
      %4334 = vmatprep.subr.bf16.mxu0 0
      %4335 = vmatpush1.bf16.msra.mxu0 %v4317
      %4336 = vmatprep.subr.bf16.mxu0 0
      %4337 = vmatpush1.bf16.msra.mxu0 %v4318
      %4338 = vmatprep.subr.bf16.mxu0 0
      %4339 = vmatpush1.bf16.msra.mxu0 %v4319
      %4340 = vmatprep.subr.bf16.mxu0 0
      %4341 = vmatpush1.bf16.msra.mxu0 %v4320
      %4342 = vmatprep.subr.bf16.mxu0 0
      %4343 = vmatpush1.bf16.msra.mxu0 %v4321
      %4344 = vmatprep.subr.bf16.mxu0 0
      %4345 = vmatpush1.bf16.msra.mxu0 %v4322
      %4346 = vmatprep.subr.bf16.mxu0 0
      %4347 = vmatpush1.bf16.msra.mxu0 %v4323
      %4348 = vmatprep.subr.bf16.mxu0 0
      %4349 = vmatpush1.bf16.msra.mxu0 0
      %4350 = vmatprep.subr.bf16.mxu0 0
      %4351 = vmatpush1.bf16.msra.mxu0 0
      %4352 = vmatprep.subr.bf16.mxu0 0
      %4353 = vmatpush1.bf16.msra.mxu0 0
      %4354 = vmatprep.subr.bf16.mxu0 0
      %4355 = vmatpush1.bf16.msra.mxu0 0
      %4356 = vmatprep.subr.bf16.mxu0 0
      %4357 = vmatpush1.bf16.msra.mxu0 0
      %4358 = vmatprep.subr.bf16.mxu0 0
      %4359 = vmatpush1.bf16.msra.mxu0 0
      %4360 = vmatprep.subr.bf16.mxu0 0
      %4361 = vmatpush1.bf16.msra.mxu0 0
      %4362 = vmatprep.subr.bf16.mxu0 0
      %4363 = vmatpush1.bf16.msra.mxu0 0
      %4364 = vmatprep.mubr.bf16.mxu0 0
      %4365 = vmatmul.mubr.bf16.gmra.mrb[0].mxu0 %v4270
      %v4366 = vpop.f32.mrb[0].mxu0
      %v4367 = vadd.f32 0.0, %v4366
      %v4368 = vpop.f32.mrb[0].mxu0
      %v4369 = vpop.f32.mrb[0].mxu0
      %v4370 = vadd.f32 0.0, %v4369
      %v4371 = vpop.f32.mrb[0].mxu0
      %4372 = vmatprep.mubr.bf16.mxu0 0
      %4373 = vmatmul.mubr.bf16.gmra.mrb[0].mxu0 %v4272
      %v4374 = vpop.f32.mrb[0].mxu0
      %v4375 = vadd.f32 0.0, %v4374
      %v4376 = vpop.f32.mrb[0].mxu0
      %v4377 = vpop.f32.mrb[0].mxu0
      %v4378 = vadd.f32 0.0, %v4377
      %v4379 = vpop.f32.mrb[0].mxu0
      %4380 = vmatprep.mubr.bf16.mxu0 0
      %4381 = vmatmul.mubr.bf16.gmra.mrb[0].mxu0 %v4274
      %v4382 = vpop.f32.mrb[0].mxu0
      %v4383 = vadd.f32 0.0, %v4382
      %v4384 = vpop.f32.mrb[0].mxu0
      %v4385 = vpop.f32.mrb[0].mxu0
      %v4386 = vadd.f32 0.0, %v4385
      %v4387 = vpop.f32.mrb[0].mxu0
      %4388 = vmatprep.mubr.bf16.mxu0 0
      %4389 = vmatmul.mubr.bf16.gmra.mrb[0].mxu0 %v4276
      %v4390 = vpop.f32.mrb[0].mxu0
      %v4391 = vadd.f32 0.0, %v4390
      %v4392 = vpop.f32.mrb[0].mxu0
      %v4393 = vpop.f32.mrb[0].mxu0
      %v4394 = vadd.f32 0.0, %v4393
      %v4395 = vpop.f32.mrb[0].mxu0
      %4396 = vmatprep.mubr.bf16.mxu0 0
      %4397 = vmatmul.mubr.bf16.gmra.mrb[0].mxu0 %v4278
      %v4398 = vpop.f32.mrb[0].mxu0
      %v4399 = vadd.f32 0.0, %v4398
      %v4400 = vpop.f32.mrb[0].mxu0
      %v4401 = vpop.f32.mrb[0].mxu0
      %v4402 = vadd.f32 0.0, %v4401
      %v4403 = vpop.f32.mrb[0].mxu0
      %4404 = vdwg.mxu0
      %v4405 = vadd.f32 %v4237, %v4367
      %v4406 = vadd.f32 %v4238, %v4370
      %v4407 = vadd.f32 %v4239, %v4375
      %v4408 = vadd.f32 %v4240, %v4378
      %v4409 = vadd.f32 %v4241, %v4383
      %v4410 = vadd.f32 %v4242, %v4386
      %v4411 = vadd.f32 %v4243, %v4391
      %v4412 = vadd.f32 %v4244, %v4394
      %v4413 = vadd.f32 %v4245, %v4399
      %v4414 = vadd.f32 %v4246, %v4402
      %v4415 = vld [vmem:[%s345 + $0x4] sm:$0xe]
      %v4416 = vld [vmem:[%s345 + $0x8] sm:$0xf]
      %v4417 = vld [vmem:[%s345 + $0xc] sm:$0xf]
      %v4418 = vld [vmem:[%s345 + $0x10] sm:$0xf]
      %v4419 = vld [vmem:[%s345 + $0x14] sm:$0xf]
      %v4420 = vld [vmem:[%s345 + $0x18] sm:$0xf]
      %v4421 = vld [vmem:[%s345 + $0x1c] sm:$0xf]
      %v4422 = vld [vmem:[%s345 + $0x20] sm:$0xf]
      %v4423 = vld [vmem:[%s345 + $0x24] sm:$0xf]
      %v4424 = vld [vmem:[%s345 + $0x28] sm:$0xf]
      %v4425 = vld [vmem:[%s345 + $0x2c] sm:$0x1]
      %s4426 = scalar_lea.vmem %s3, 1344
      %v4427 = vld [vmem:[%s4426] sm:$0xf]
      %v4428 = vld [vmem:[%s4426 + $0x4] sm:$0xf]
      %v4429 = vld [vmem:[%s4426 + $0x8] sm:$0xf]
      %v4430 = vld [vmem:[%s4426 + $0xc] sm:$0xf]
      %v4431 = vld [vmem:[%s4426 + $0x10] sm:$0xf]
      %v4432 = vld [vmem:[%s4426 + $0x14] sm:$0xf]
      %v4433 = vld [vmem:[%s4426 + $0x18] sm:$0xf]
      %v4434 = vld [vmem:[%s4426 + $0x1c] sm:$0xf]
      %v4435 = vld [vmem:[%s4426 + $0x20] sm:$0xf]
      %v4436 = vld [vmem:[%s4426 + $0x24] sm:$0xf]
      %v4437 = vld [vmem:[%s4426 + $0x28] sm:$0xf]
      %v4438 = vld [vmem:[%s4426 + $0x2c] sm:$0xf]
      %v4439 = vld [vmem:[%s4426 + $0x30] sm:$0xf]
      %v4440 = vld [vmem:[%s4426 + $0x34] sm:$0xf]
      %v4441 = vld [vmem:[%s4426 + $0x38] sm:$0xf]
      %v4442 = vld [vmem:[%s4426 + $0x3c] sm:$0xf]
      %v4454 = vunpack.c.l.b16 %v4415
      %v4455 = vunpack.c.l.b16 %v4416
      %v4456 = vunpack.c.l.b16 %v4417
      %v4457 = vunpack.c.l.b16 %v4418
      %v4458 = vunpack.c.l.b16 %v4419
      %v4459 = vunpack.c.l.b16 %v4420
      %v4460 = vunpack.c.l.b16 %v4421
      %v4461 = vunpack.c.l.b16 %v4422
      %v4462 = vunpack.c.l.b16 %v4423
      %v4463 = vunpack.c.l.b16 %v4424
      %v4464 = vunpack.c.l.b16 %v4425
      %v4465 = vpack.c.b16 %v4455, %v4454
      %v4466 = vpack.c.b16 %v4457, %v4456
      %v4467 = vpack.c.b16 %v4459, %v4458
      %v4468 = vpack.c.b16 %v4461, %v4460
      %v4469 = vpack.c.b16 %v4463, %v4462
      %v4470 = vpack.c.b16 %v4464, %v4464
      %v4471 = vrot.slane %v4465, 1
      %v4472 = vrot.slane %v4466, 1
      %v4473 = vsel %vm755, %v4471, %v4472
      %v4474 = vrot.slane %v4467, 1
      %v4475 = vsel %vm755, %v4472, %v4474
      %v4476 = vrot.slane %v4468, 1
      %v4477 = vsel %vm755, %v4474, %v4476
      %v4478 = vrot.slane %v4469, 1
      %v4479 = vsel %vm755, %v4476, %v4478
      %v4480 = vrot.slane %v4470, 1
      %v4481 = vsel %vm755, %v4478, %v4480
      %v4503 = vunpack.c.l.b16 %v4427
      %v4504 = vunpack.c.l.b16 %v4428
      %v4505 = vunpack.c.l.b16 %v4429
      %v4506 = vunpack.c.l.b16 %v4430
      %v4507 = vunpack.c.l.b16 %v4431
      %v4508 = vunpack.c.l.b16 %v4432
      %v4509 = vunpack.c.l.b16 %v4433
      %v4510 = vunpack.c.l.b16 %v4434
      %v4511 = vunpack.c.l.b16 %v4435
      %v4512 = vunpack.c.l.b16 %v4436
      %v4513 = vunpack.c.l.b16 %v4437
      %v4514 = vunpack.c.l.b16 %v4438
      %v4515 = vunpack.c.l.b16 %v4439
      %v4516 = vunpack.c.l.b16 %v4440
      %v4517 = vunpack.c.l.b16 %v4441
      %v4518 = vunpack.c.l.b16 %v4442
      %v4519 = vpack.c.b16 %v4504, %v4503
      %v4520 = vpack.c.b16 %v4506, %v4505
      %v4521 = vpack.c.b16 %v4508, %v4507
      %v4522 = vpack.c.b16 %v4510, %v4509
      %v4523 = vpack.c.b16 %v4512, %v4511
      %v4524 = vpack.c.b16 %v4514, %v4513
      %v4525 = vpack.c.b16 %v4516, %v4515
      %v4526 = vpack.c.b16 %v4518, %v4517
      %4535 = vmatprep.subr.bf16.mxu0 0
      %4536 = vmatpush1.bf16.msra.mxu0 %v4519
      %4537 = vmatprep.subr.bf16.mxu0 0
      %4538 = vmatpush1.bf16.msra.mxu0 %v4520
      %4539 = vmatprep.subr.bf16.mxu0 0
      %4540 = vmatpush1.bf16.msra.mxu0 %v4521
      %4541 = vmatprep.subr.bf16.mxu0 0
      %4542 = vmatpush1.bf16.msra.mxu0 %v4522
      %4543 = vmatprep.subr.bf16.mxu0 0
      %4544 = vmatpush1.bf16.msra.mxu0 %v4523
      %4545 = vmatprep.subr.bf16.mxu0 0
      %4546 = vmatpush1.bf16.msra.mxu0 %v4524
      %4547 = vmatprep.subr.bf16.mxu0 0
      %4548 = vmatpush1.bf16.msra.mxu0 %v4525
      %4549 = vmatprep.subr.bf16.mxu0 0
      %4550 = vmatpush1.bf16.msra.mxu0 %v4526
      %4551 = vmatprep.subr.bf16.mxu0 0
      %4552 = vmatpush1.bf16.msra.mxu0 0
      %4553 = vmatprep.subr.bf16.mxu0 0
      %4554 = vmatpush1.bf16.msra.mxu0 0
      %4555 = vmatprep.subr.bf16.mxu0 0
      %4556 = vmatpush1.bf16.msra.mxu0 0
      %4557 = vmatprep.subr.bf16.mxu0 0
      %4558 = vmatpush1.bf16.msra.mxu0 0
      %4559 = vmatprep.subr.bf16.mxu0 0
      %4560 = vmatpush1.bf16.msra.mxu0 0
      %4561 = vmatprep.subr.bf16.mxu0 0
      %4562 = vmatpush1.bf16.msra.mxu0 0
      %4563 = vmatprep.subr.bf16.mxu0 0
      %4564 = vmatpush1.bf16.msra.mxu0 0
      %4565 = vmatprep.subr.bf16.mxu0 0
      %4566 = vmatpush1.bf16.msra.mxu0 0
      %4567 = vmatprep.mubr.bf16.mxu0 0
      %4568 = vmatmul.mubr.bf16.gmra.mrb[0].mxu0 %v4473
      %v4569 = vpop.f32.mrb[0].mxu0
      %v4570 = vadd.f32 0.0, %v4569
      %v4571 = vpop.f32.mrb[0].mxu0
      %v4572 = vpop.f32.mrb[0].mxu0
      %v4573 = vadd.f32 0.0, %v4572
      %v4574 = vpop.f32.mrb[0].mxu0
      %4575 = vmatprep.mubr.bf16.mxu0 0
      %4576 = vmatmul.mubr.bf16.gmra.mrb[0].mxu0 %v4475
      %v4577 = vpop.f32.mrb[0].mxu0
      %v4578 = vadd.f32 0.0, %v4577
      %v4579 = vpop.f32.mrb[0].mxu0
      %v4580 = vpop.f32.mrb[0].mxu0
      %v4581 = vadd.f32 0.0, %v4580
      %v4582 = vpop.f32.mrb[0].mxu0
      %4583 = vmatprep.mubr.bf16.mxu0 0
      %4584 = vmatmul.mubr.bf16.gmra.mrb[0].mxu0 %v4477
      %v4585 = vpop.f32.mrb[0].mxu0
      %v4586 = vadd.f32 0.0, %v4585
      %v4587 = vpop.f32.mrb[0].mxu0
      %v4588 = vpop.f32.mrb[0].mxu0
      %v4589 = vadd.f32 0.0, %v4588
      %v4590 = vpop.f32.mrb[0].mxu0
      %4591 = vmatprep.mubr.bf16.mxu0 0
      %4592 = vmatmul.mubr.bf16.gmra.mrb[0].mxu0 %v4479
      %v4593 = vpop.f32.mrb[0].mxu0
      %v4594 = vadd.f32 0.0, %v4593
      %v4595 = vpop.f32.mrb[0].mxu0
      %v4596 = vpop.f32.mrb[0].mxu0
      %v4597 = vadd.f32 0.0, %v4596
      %v4598 = vpop.f32.mrb[0].mxu0
      %4599 = vmatprep.mubr.bf16.mxu0 0
      %4600 = vmatmul.mubr.bf16.gmra.mrb[0].mxu0 %v4481
      %v4601 = vpop.f32.mrb[0].mxu0
      %v4602 = vadd.f32 0.0, %v4601
      %v4603 = vpop.f32.mrb[0].mxu0
      %v4604 = vpop.f32.mrb[0].mxu0
      %v4605 = vadd.f32 0.0, %v4604
      %v4606 = vpop.f32.mrb[0].mxu0
      %4607 = vdwg.mxu0
      %v4608 = vadd.f32 %v4405, %v4570
      %v4609 = vadd.f32 %v4406, %v4573
      %v4610 = vadd.f32 %v4407, %v4578
      %v4611 = vadd.f32 %v4408, %v4581
      %v4612 = vadd.f32 %v4409, %v4586
      %v4613 = vadd.f32 %v4410, %v4589
      %v4614 = vadd.f32 %v4411, %v4594
      %v4615 = vadd.f32 %v4412, %v4597
      %v4616 = vadd.f32 %v4413, %v4602
      %v4617 = vadd.f32 %v4414, %v4605
      %v4618 = vld [vmem:[%s345 + $0x2c] sm:$0x3]
      %s4619 = scalar_lea.vmem %s3, 1408
      %v4620 = vld [vmem:[%s4619] sm:$0xf]
      %v4621 = vld [vmem:[%s4619 + $0x4] sm:$0xf]
      %v4622 = vld [vmem:[%s4619 + $0x8] sm:$0xf]
      %v4623 = vld [vmem:[%s4619 + $0xc] sm:$0xf]
      %v4624 = vld [vmem:[%s4619 + $0x10] sm:$0xf]
      %v4625 = vld [vmem:[%s4619 + $0x14] sm:$0xf]
      %v4626 = vld [vmem:[%s4619 + $0x18] sm:$0xf]
      %v4627 = vld [vmem:[%s4619 + $0x1c] sm:$0xf]
      %v4628 = vld [vmem:[%s4619 + $0x20] sm:$0xf]
      %v4629 = vld [vmem:[%s4619 + $0x24] sm:$0xf]
      %v4630 = vld [vmem:[%s4619 + $0x28] sm:$0xf]
      %v4631 = vld [vmem:[%s4619 + $0x2c] sm:$0xf]
      %v4632 = vld [vmem:[%s4619 + $0x30] sm:$0xf]
      %v4633 = vld [vmem:[%s4619 + $0x34] sm:$0xf]
      %v4634 = vld [vmem:[%s4619 + $0x38] sm:$0xf]
      %v4635 = vld [vmem:[%s4619 + $0x3c] sm:$0xf]
      %v4637 = vunpack.c.l.b16 %v4618
      %v4638 = vpack.c.b16 %v4637, %v4637
      %v4640 = vshrl.u32 %v4465, 16
      %v4642 = vrot.slane %v4640, 1
      %v4643 = vshll.u32 %v4465, 16
      %v4645 = vrot.slane %v4643, 2
      %v4646 = vor.u32 %v4642, %v4645
      %v4648 = vshrl.u32 %v4466, 16
      %v4650 = vrot.slane %v4648, 1
      %v4651 = vshll.u32 %v4466, 16
      %v4653 = vrot.slane %v4651, 2
      %v4654 = vor.u32 %v4650, %v4653
      %v4655 = vsel %vm1127, %v4646, %v4654
      %v4657 = vshrl.u32 %v4467, 16
      %v4659 = vrot.slane %v4657, 1
      %v4660 = vshll.u32 %v4467, 16
      %v4662 = vrot.slane %v4660, 2
      %v4663 = vor.u32 %v4659, %v4662
      %v4664 = vsel %vm1127, %v4654, %v4663
      %v4666 = vshrl.u32 %v4468, 16
      %v4668 = vrot.slane %v4666, 1
      %v4669 = vshll.u32 %v4468, 16
      %v4671 = vrot.slane %v4669, 2
      %v4672 = vor.u32 %v4668, %v4671
      %v4673 = vsel %vm1127, %v4663, %v4672
      %v4675 = vshrl.u32 %v4469, 16
      %v4677 = vrot.slane %v4675, 1
      %v4678 = vshll.u32 %v4469, 16
      %v4680 = vrot.slane %v4678, 2
      %v4681 = vor.u32 %v4677, %v4680
      %v4682 = vsel %vm1127, %v4672, %v4681
      %v4684 = vshrl.u32 %v4638, 16
      %v4686 = vrot.slane %v4684, 1
      %v4687 = vshll.u32 %v4638, 16
      %v4689 = vrot.slane %v4687, 2
      %v4690 = vor.u32 %v4686, %v4689
      %v4691 = vsel %vm1127, %v4681, %v4690
      %v4713 = vunpack.c.l.b16 %v4620
      %v4714 = vunpack.c.l.b16 %v4621
      %v4715 = vunpack.c.l.b16 %v4622
      %v4716 = vunpack.c.l.b16 %v4623
      %v4717 = vunpack.c.l.b16 %v4624
      %v4718 = vunpack.c.l.b16 %v4625
      %v4719 = vunpack.c.l.b16 %v4626
      %v4720 = vunpack.c.l.b16 %v4627
      %v4721 = vunpack.c.l.b16 %v4628
      %v4722 = vunpack.c.l.b16 %v4629
      %v4723 = vunpack.c.l.b16 %v4630
      %v4724 = vunpack.c.l.b16 %v4631
      %v4725 = vunpack.c.l.b16 %v4632
      %v4726 = vunpack.c.l.b16 %v4633
      %v4727 = vunpack.c.l.b16 %v4634
      %v4728 = vunpack.c.l.b16 %v4635
      %v4729 = vpack.c.b16 %v4714, %v4713
      %v4730 = vpack.c.b16 %v4716, %v4715
      %v4731 = vpack.c.b16 %v4718, %v4717
      %v4732 = vpack.c.b16 %v4720, %v4719
      %v4733 = vpack.c.b16 %v4722, %v4721
      %v4734 = vpack.c.b16 %v4724, %v4723
      %v4735 = vpack.c.b16 %v4726, %v4725
      %v4736 = vpack.c.b16 %v4728, %v4727
      %4745 = vmatprep.subr.bf16.mxu0 0
      %4746 = vmatpush1.bf16.msra.mxu0 %v4729
      %4747 = vmatprep.subr.bf16.mxu0 0
      %4748 = vmatpush1.bf16.msra.mxu0 %v4730
      %4749 = vmatprep.subr.bf16.mxu0 0
      %4750 = vmatpush1.bf16.msra.mxu0 %v4731
      %4751 = vmatprep.subr.bf16.mxu0 0
      %4752 = vmatpush1.bf16.msra.mxu0 %v4732
      %4753 = vmatprep.subr.bf16.mxu0 0
      %4754 = vmatpush1.bf16.msra.mxu0 %v4733
      %4755 = vmatprep.subr.bf16.mxu0 0
      %4756 = vmatpush1.bf16.msra.mxu0 %v4734
      %4757 = vmatprep.subr.bf16.mxu0 0
      %4758 = vmatpush1.bf16.msra.mxu0 %v4735
      %4759 = vmatprep.subr.bf16.mxu0 0
      %4760 = vmatpush1.bf16.msra.mxu0 %v4736
      %4761 = vmatprep.subr.bf16.mxu0 0
      %4762 = vmatpush1.bf16.msra.mxu0 0
      %4763 = vmatprep.subr.bf16.mxu0 0
      %4764 = vmatpush1.bf16.msra.mxu0 0
      %4765 = vmatprep.subr.bf16.mxu0 0
      %4766 = vmatpush1.bf16.msra.mxu0 0
      %4767 = vmatprep.subr.bf16.mxu0 0
      %4768 = vmatpush1.bf16.msra.mxu0 0
      %4769 = vmatprep.subr.bf16.mxu0 0
      %4770 = vmatpush1.bf16.msra.mxu0 0
      %4771 = vmatprep.subr.bf16.mxu0 0
      %4772 = vmatpush1.bf16.msra.mxu0 0
      %4773 = vmatprep.subr.bf16.mxu0 0
      %4774 = vmatpush1.bf16.msra.mxu0 0
      %4775 = vmatprep.subr.bf16.mxu0 0
      %4776 = vmatpush1.bf16.msra.mxu0 0
      %4777 = vmatprep.mubr.bf16.mxu0 0
      %4778 = vmatmul.mubr.bf16.gmra.mrb[0].mxu0 %v4655
      %v4779 = vpop.f32.mrb[0].mxu0
      %v4780 = vadd.f32 0.0, %v4779
      %v4781 = vpop.f32.mrb[0].mxu0
      %v4782 = vpop.f32.mrb[0].mxu0
      %v4783 = vadd.f32 0.0, %v4782
      %v4784 = vpop.f32.mrb[0].mxu0
      %4785 = vmatprep.mubr.bf16.mxu0 0
      %4786 = vmatmul.mubr.bf16.gmra.mrb[0].mxu0 %v4664
      %v4787 = vpop.f32.mrb[0].mxu0
      %v4788 = vadd.f32 0.0, %v4787
      %v4789 = vpop.f32.mrb[0].mxu0
      %v4790 = vpop.f32.mrb[0].mxu0
      %v4791 = vadd.f32 0.0, %v4790
      %v4792 = vpop.f32.mrb[0].mxu0
      %4793 = vmatprep.mubr.bf16.mxu0 0
      %4794 = vmatmul.mubr.bf16.gmra.mrb[0].mxu0 %v4673
      %v4795 = vpop.f32.mrb[0].mxu0
      %v4796 = vadd.f32 0.0, %v4795
      %v4797 = vpop.f32.mrb[0].mxu0
      %v4798 = vpop.f32.mrb[0].mxu0
      %v4799 = vadd.f32 0.0, %v4798
      %v4800 = vpop.f32.mrb[0].mxu0
      %4801 = vmatprep.mubr.bf16.mxu0 0
      %4802 = vmatmul.mubr.bf16.gmra.mrb[0].mxu0 %v4682
      %v4803 = vpop.f32.mrb[0].mxu0
      %v4804 = vadd.f32 0.0, %v4803
      %v4805 = vpop.f32.mrb[0].mxu0
      %v4806 = vpop.f32.mrb[0].mxu0
      %v4807 = vadd.f32 0.0, %v4806
      %v4808 = vpop.f32.mrb[0].mxu0
      %4809 = vmatprep.mubr.bf16.mxu0 0
      %4810 = vmatmul.mubr.bf16.gmra.mrb[0].mxu0 %v4691
      %v4811 = vpop.f32.mrb[0].mxu0
      %v4812 = vadd.f32 0.0, %v4811
      %v4813 = vpop.f32.mrb[0].mxu0
      %v4814 = vpop.f32.mrb[0].mxu0
      %v4815 = vadd.f32 0.0, %v4814
      %v4816 = vpop.f32.mrb[0].mxu0
      %4817 = vdwg.mxu0
      %v4818 = vadd.f32 %v4608, %v4780
      %v4819 = vadd.f32 %v4609, %v4783
      %v4820 = vadd.f32 %v4610, %v4788
      %v4821 = vadd.f32 %v4611, %v4791
      %v4822 = vadd.f32 %v4612, %v4796
      %v4823 = vadd.f32 %v4613, %v4799
      %v4824 = vadd.f32 %v4614, %v4804
      %v4825 = vadd.f32 %v4615, %v4807
      %v4826 = vadd.f32 %v4616, %v4812
      %v4827 = vadd.f32 %v4617, %v4815
      %v4828 = vld [vmem:[%s345 + $0x4] sm:$0xc]
      %s4829 = scalar_lea.vmem %s3, 1472
      %v4830 = vld [vmem:[%s4829] sm:$0xf]
      %v4831 = vld [vmem:[%s4829 + $0x4] sm:$0xf]
      %v4832 = vld [vmem:[%s4829 + $0x8] sm:$0xf]
      %v4833 = vld [vmem:[%s4829 + $0xc] sm:$0xf]
      %v4834 = vld [vmem:[%s4829 + $0x10] sm:$0xf]
      %v4835 = vld [vmem:[%s4829 + $0x14] sm:$0xf]
      %v4836 = vld [vmem:[%s4829 + $0x18] sm:$0xf]
      %v4837 = vld [vmem:[%s4829 + $0x1c] sm:$0xf]
      %v4838 = vld [vmem:[%s4829 + $0x20] sm:$0xf]
      %v4839 = vld [vmem:[%s4829 + $0x24] sm:$0xf]
      %v4840 = vld [vmem:[%s4829 + $0x28] sm:$0xf]
      %v4841 = vld [vmem:[%s4829 + $0x2c] sm:$0xf]
      %v4842 = vld [vmem:[%s4829 + $0x30] sm:$0xf]
      %v4843 = vld [vmem:[%s4829 + $0x34] sm:$0xf]
      %v4844 = vld [vmem:[%s4829 + $0x38] sm:$0xf]
      %v4845 = vld [vmem:[%s4829 + $0x3c] sm:$0xf]
      %v4847 = vunpack.c.l.b16 %v4828
      %v4848 = vpack.c.b16 %v4455, %v4847
      %v4849 = vrot.slane %v4848, 2
      %v4850 = vrot.slane %v4466, 2
      %v4851 = vsel %vm1338, %v4849, %v4850
      %v4852 = vrot.slane %v4467, 2
      %v4853 = vsel %vm1338, %v4850, %v4852
      %v4854 = vrot.slane %v4468, 2
      %v4855 = vsel %vm1338, %v4852, %v4854
      %v4856 = vrot.slane %v4469, 2
      %v4857 = vsel %vm1338, %v4854, %v4856
      %v4858 = vrot.slane %v4638, 2
      %v4859 = vsel %vm1338, %v4856, %v4858
      %v4881 = vunpack.c.l.b16 %v4830
      %v4882 = vunpack.c.l.b16 %v4831
      %v4883 = vunpack.c.l.b16 %v4832
      %v4884 = vunpack.c.l.b16 %v4833
      %v4885 = vunpack.c.l.b16 %v4834
      %v4886 = vunpack.c.l.b16 %v4835
      %v4887 = vunpack.c.l.b16 %v4836
      %v4888 = vunpack.c.l.b16 %v4837
      %v4889 = vunpack.c.l.b16 %v4838
      %v4890 = vunpack.c.l.b16 %v4839
      %v4891 = vunpack.c.l.b16 %v4840
      %v4892 = vunpack.c.l.b16 %v4841
      %v4893 = vunpack.c.l.b16 %v4842
      %v4894 = vunpack.c.l.b16 %v4843
      %v4895 = vunpack.c.l.b16 %v4844
      %v4896 = vunpack.c.l.b16 %v4845
      %v4897 = vpack.c.b16 %v4882, %v4881
      %v4898 = vpack.c.b16 %v4884, %v4883
      %v4899 = vpack.c.b16 %v4886, %v4885
      %v4900 = vpack.c.b16 %v4888, %v4887
      %v4901 = vpack.c.b16 %v4890, %v4889
      %v4902 = vpack.c.b16 %v4892, %v4891
      %v4903 = vpack.c.b16 %v4894, %v4893
      %v4904 = vpack.c.b16 %v4896, %v4895
      %4913 = vmatprep.subr.bf16.mxu0 0
      %4914 = vmatpush1.bf16.msra.mxu0 %v4897
      %4915 = vmatprep.subr.bf16.mxu0 0
      %4916 = vmatpush1.bf16.msra.mxu0 %v4898
      %4917 = vmatprep.subr.bf16.mxu0 0
      %4918 = vmatpush1.bf16.msra.mxu0 %v4899
      %4919 = vmatprep.subr.bf16.mxu0 0
      %4920 = vmatpush1.bf16.msra.mxu0 %v4900
      %4921 = vmatprep.subr.bf16.mxu0 0
      %4922 = vmatpush1.bf16.msra.mxu0 %v4901
      %4923 = vmatprep.subr.bf16.mxu0 0
      %4924 = vmatpush1.bf16.msra.mxu0 %v4902
      %4925 = vmatprep.subr.bf16.mxu0 0
      %4926 = vmatpush1.bf16.msra.mxu0 %v4903
      %4927 = vmatprep.subr.bf16.mxu0 0
      %4928 = vmatpush1.bf16.msra.mxu0 %v4904
      %4929 = vmatprep.subr.bf16.mxu0 0
      %4930 = vmatpush1.bf16.msra.mxu0 0
      %4931 = vmatprep.subr.bf16.mxu0 0
      %4932 = vmatpush1.bf16.msra.mxu0 0
      %4933 = vmatprep.subr.bf16.mxu0 0
      %4934 = vmatpush1.bf16.msra.mxu0 0
      %4935 = vmatprep.subr.bf16.mxu0 0
      %4936 = vmatpush1.bf16.msra.mxu0 0
      %4937 = vmatprep.subr.bf16.mxu0 0
      %4938 = vmatpush1.bf16.msra.mxu0 0
      %4939 = vmatprep.subr.bf16.mxu0 0
      %4940 = vmatpush1.bf16.msra.mxu0 0
      %4941 = vmatprep.subr.bf16.mxu0 0
      %4942 = vmatpush1.bf16.msra.mxu0 0
      %4943 = vmatprep.subr.bf16.mxu0 0
      %4944 = vmatpush1.bf16.msra.mxu0 0
      %4945 = vmatprep.mubr.bf16.mxu0 0
      %4946 = vmatmul.mubr.bf16.gmra.mrb[0].mxu0 %v4851
      %v4947 = vpop.f32.mrb[0].mxu0
      %v4948 = vadd.f32 0.0, %v4947
      %v4949 = vpop.f32.mrb[0].mxu0
      %v4950 = vpop.f32.mrb[0].mxu0
      %v4951 = vadd.f32 0.0, %v4950
      %v4952 = vpop.f32.mrb[0].mxu0
      %4953 = vmatprep.mubr.bf16.mxu0 0
      %4954 = vmatmul.mubr.bf16.gmra.mrb[0].mxu0 %v4853
      %v4955 = vpop.f32.mrb[0].mxu0
      %v4956 = vadd.f32 0.0, %v4955
      %v4957 = vpop.f32.mrb[0].mxu0
      %v4958 = vpop.f32.mrb[0].mxu0
      %v4959 = vadd.f32 0.0, %v4958
      %v4960 = vpop.f32.mrb[0].mxu0
      %4961 = vmatprep.mubr.bf16.mxu0 0
      %4962 = vmatmul.mubr.bf16.gmra.mrb[0].mxu0 %v4855
      %v4963 = vpop.f32.mrb[0].mxu0
      %v4964 = vadd.f32 0.0, %v4963
      %v4965 = vpop.f32.mrb[0].mxu0
      %v4966 = vpop.f32.mrb[0].mxu0
      %v4967 = vadd.f32 0.0, %v4966
      %v4968 = vpop.f32.mrb[0].mxu0
      %4969 = vmatprep.mubr.bf16.mxu0 0
      %4970 = vmatmul.mubr.bf16.gmra.mrb[0].mxu0 %v4857
      %v4971 = vpop.f32.mrb[0].mxu0
      %v4972 = vadd.f32 0.0, %v4971
      %v4973 = vpop.f32.mrb[0].mxu0
      %v4974 = vpop.f32.mrb[0].mxu0
      %v4975 = vadd.f32 0.0, %v4974
      %v4976 = vpop.f32.mrb[0].mxu0
      %4977 = vmatprep.mubr.bf16.mxu0 0
      %4978 = vmatmul.mubr.bf16.gmra.mrb[0].mxu0 %v4859
      %v4979 = vpop.f32.mrb[0].mxu0
      %v4980 = vadd.f32 0.0, %v4979
      %v4981 = vpop.f32.mrb[0].mxu0
      %v4982 = vpop.f32.mrb[0].mxu0
      %v4983 = vadd.f32 0.0, %v4982
      %v4984 = vpop.f32.mrb[0].mxu0
      %4985 = vdwg.mxu0
      %v4986 = vadd.f32 %v4818, %v4948
      %v4987 = vadd.f32 %v4819, %v4951
      %v4988 = vadd.f32 %v4820, %v4956
      %v4989 = vadd.f32 %v4821, %v4959
      %v4990 = vadd.f32 %v4822, %v4964
      %v4991 = vadd.f32 %v4823, %v4967
      %v4992 = vadd.f32 %v4824, %v4972
      %v4993 = vadd.f32 %v4825, %v4975
      %v4994 = vadd.f32 %v4826, %v4980
      %v4995 = vadd.f32 %v4827, %v4983
      %v4996 = vld [vmem:[%s345 + $0x8] sm:$0xc]
      %v4997 = vld [vmem:[%s345 + $0xc] sm:$0xf]
      %v4998 = vld [vmem:[%s345 + $0x10] sm:$0xf]
      %v4999 = vld [vmem:[%s345 + $0x14] sm:$0xf]
      %v5000 = vld [vmem:[%s345 + $0x18] sm:$0xf]
      %v5001 = vld [vmem:[%s345 + $0x1c] sm:$0xf]
      %v5002 = vld [vmem:[%s345 + $0x20] sm:$0xf]
      %v5003 = vld [vmem:[%s345 + $0x24] sm:$0xf]
      %v5004 = vld [vmem:[%s345 + $0x28] sm:$0xf]
      %v5005 = vld [vmem:[%s345 + $0x2c] sm:$0xf]
      %v5006 = vld [vmem:[%s345 + $0x30] sm:$0x3]
      %s5007 = scalar_lea.vmem %s3, 1536
      %v5008 = vld [vmem:[%s5007] sm:$0xf]
      %v5009 = vld [vmem:[%s5007 + $0x4] sm:$0xf]
      %v5010 = vld [vmem:[%s5007 + $0x8] sm:$0xf]
      %v5011 = vld [vmem:[%s5007 + $0xc] sm:$0xf]
      %v5012 = vld [vmem:[%s5007 + $0x10] sm:$0xf]
      %v5013 = vld [vmem:[%s5007 + $0x14] sm:$0xf]
      %v5014 = vld [vmem:[%s5007 + $0x18] sm:$0xf]
      %v5015 = vld [vmem:[%s5007 + $0x1c] sm:$0xf]
      %v5016 = vld [vmem:[%s5007 + $0x20] sm:$0xf]
      %v5017 = vld [vmem:[%s5007 + $0x24] sm:$0xf]
      %v5018 = vld [vmem:[%s5007 + $0x28] sm:$0xf]
      %v5019 = vld [vmem:[%s5007 + $0x2c] sm:$0xf]
      %v5020 = vld [vmem:[%s5007 + $0x30] sm:$0xf]
      %v5021 = vld [vmem:[%s5007 + $0x34] sm:$0xf]
      %v5022 = vld [vmem:[%s5007 + $0x38] sm:$0xf]
      %v5023 = vld [vmem:[%s5007 + $0x3c] sm:$0xf]
      %v5035 = vunpack.c.l.b16 %v4996
      %v5036 = vunpack.c.l.b16 %v4997
      %v5037 = vunpack.c.l.b16 %v4998
      %v5038 = vunpack.c.l.b16 %v4999
      %v5039 = vunpack.c.l.b16 %v5000
      %v5040 = vunpack.c.l.b16 %v5001
      %v5041 = vunpack.c.l.b16 %v5002
      %v5042 = vunpack.c.l.b16 %v5003
      %v5043 = vunpack.c.l.b16 %v5004
      %v5044 = vunpack.c.l.b16 %v5005
      %v5045 = vunpack.c.l.b16 %v5006
      %v5046 = vpack.c.b16 %v5036, %v5035
      %v5047 = vpack.c.b16 %v5038, %v5037
      %v5048 = vpack.c.b16 %v5040, %v5039
      %v5049 = vpack.c.b16 %v5042, %v5041
      %v5050 = vpack.c.b16 %v5044, %v5043
      %v5051 = vpack.c.b16 %v5045, %v5045
      %v5052 = vrot.slane %v5046, 2
      %v5053 = vrot.slane %v5047, 2
      %v5054 = vsel %vm1338, %v5052, %v5053
      %v5055 = vrot.slane %v5048, 2
      %v5056 = vsel %vm1338, %v5053, %v5055
      %v5057 = vrot.slane %v5049, 2
      %v5058 = vsel %vm1338, %v5055, %v5057
      %v5059 = vrot.slane %v5050, 2
      %v5060 = vsel %vm1338, %v5057, %v5059
      %v5061 = vrot.slane %v5051, 2
      %v5062 = vsel %vm1338, %v5059, %v5061
      %v5084 = vunpack.c.l.b16 %v5008
      %v5085 = vunpack.c.l.b16 %v5009
      %v5086 = vunpack.c.l.b16 %v5010
      %v5087 = vunpack.c.l.b16 %v5011
      %v5088 = vunpack.c.l.b16 %v5012
      %v5089 = vunpack.c.l.b16 %v5013
      %v5090 = vunpack.c.l.b16 %v5014
      %v5091 = vunpack.c.l.b16 %v5015
      %v5092 = vunpack.c.l.b16 %v5016
      %v5093 = vunpack.c.l.b16 %v5017
      %v5094 = vunpack.c.l.b16 %v5018
      %v5095 = vunpack.c.l.b16 %v5019
      %v5096 = vunpack.c.l.b16 %v5020
      %v5097 = vunpack.c.l.b16 %v5021
      %v5098 = vunpack.c.l.b16 %v5022
      %v5099 = vunpack.c.l.b16 %v5023
      %v5100 = vpack.c.b16 %v5085, %v5084
      %v5101 = vpack.c.b16 %v5087, %v5086
      %v5102 = vpack.c.b16 %v5089, %v5088
      %v5103 = vpack.c.b16 %v5091, %v5090
      %v5104 = vpack.c.b16 %v5093, %v5092
      %v5105 = vpack.c.b16 %v5095, %v5094
      %v5106 = vpack.c.b16 %v5097, %v5096
      %v5107 = vpack.c.b16 %v5099, %v5098
      %5116 = vmatprep.subr.bf16.mxu0 0
      %5117 = vmatpush1.bf16.msra.mxu0 %v5100
      %5118 = vmatprep.subr.bf16.mxu0 0
      %5119 = vmatpush1.bf16.msra.mxu0 %v5101
      %5120 = vmatprep.subr.bf16.mxu0 0
      %5121 = vmatpush1.bf16.msra.mxu0 %v5102
      %5122 = vmatprep.subr.bf16.mxu0 0
      %5123 = vmatpush1.bf16.msra.mxu0 %v5103
      %5124 = vmatprep.subr.bf16.mxu0 0
      %5125 = vmatpush1.bf16.msra.mxu0 %v5104
      %5126 = vmatprep.subr.bf16.mxu0 0
      %5127 = vmatpush1.bf16.msra.mxu0 %v5105
      %5128 = vmatprep.subr.bf16.mxu0 0
      %5129 = vmatpush1.bf16.msra.mxu0 %v5106
      %5130 = vmatprep.subr.bf16.mxu0 0
      %5131 = vmatpush1.bf16.msra.mxu0 %v5107
      %5132 = vmatprep.subr.bf16.mxu0 0
      %5133 = vmatpush1.bf16.msra.mxu0 0
      %5134 = vmatprep.subr.bf16.mxu0 0
      %5135 = vmatpush1.bf16.msra.mxu0 0
      %5136 = vmatprep.subr.bf16.mxu0 0
      %5137 = vmatpush1.bf16.msra.mxu0 0
      %5138 = vmatprep.subr.bf16.mxu0 0
      %5139 = vmatpush1.bf16.msra.mxu0 0
      %5140 = vmatprep.subr.bf16.mxu0 0
      %5141 = vmatpush1.bf16.msra.mxu0 0
      %5142 = vmatprep.subr.bf16.mxu0 0
      %5143 = vmatpush1.bf16.msra.mxu0 0
      %5144 = vmatprep.subr.bf16.mxu0 0
      %5145 = vmatpush1.bf16.msra.mxu0 0
      %5146 = vmatprep.subr.bf16.mxu0 0
      %5147 = vmatpush1.bf16.msra.mxu0 0
      %5148 = vmatprep.mubr.bf16.mxu0 0
      %5149 = vmatmul.mubr.bf16.gmra.mrb[0].mxu0 %v5054
      %v5150 = vpop.f32.mrb[0].mxu0
      %v5151 = vadd.f32 0.0, %v5150
      %v5152 = vpop.f32.mrb[0].mxu0
      %v5153 = vpop.f32.mrb[0].mxu0
      %v5154 = vadd.f32 0.0, %v5153
      %v5155 = vpop.f32.mrb[0].mxu0
      %5156 = vmatprep.mubr.bf16.mxu0 0
      %5157 = vmatmul.mubr.bf16.gmra.mrb[0].mxu0 %v5056
      %v5158 = vpop.f32.mrb[0].mxu0
      %v5159 = vadd.f32 0.0, %v5158
      %v5160 = vpop.f32.mrb[0].mxu0
      %v5161 = vpop.f32.mrb[0].mxu0
      %v5162 = vadd.f32 0.0, %v5161
      %v5163 = vpop.f32.mrb[0].mxu0
      %5164 = vmatprep.mubr.bf16.mxu0 0
      %5165 = vmatmul.mubr.bf16.gmra.mrb[0].mxu0 %v5058
      %v5166 = vpop.f32.mrb[0].mxu0
      %v5167 = vadd.f32 0.0, %v5166
      %v5168 = vpop.f32.mrb[0].mxu0
      %v5169 = vpop.f32.mrb[0].mxu0
      %v5170 = vadd.f32 0.0, %v5169
      %v5171 = vpop.f32.mrb[0].mxu0
      %5172 = vmatprep.mubr.bf16.mxu0 0
      %5173 = vmatmul.mubr.bf16.gmra.mrb[0].mxu0 %v5060
      %v5174 = vpop.f32.mrb[0].mxu0
      %v5175 = vadd.f32 0.0, %v5174
      %v5176 = vpop.f32.mrb[0].mxu0
      %v5177 = vpop.f32.mrb[0].mxu0
      %v5178 = vadd.f32 0.0, %v5177
      %v5179 = vpop.f32.mrb[0].mxu0
      %5180 = vmatprep.mubr.bf16.mxu0 0
      %5181 = vmatmul.mubr.bf16.gmra.mrb[0].mxu0 %v5062
      %v5182 = vpop.f32.mrb[0].mxu0
      %v5183 = vadd.f32 0.0, %v5182
      %v5184 = vpop.f32.mrb[0].mxu0
      %v5185 = vpop.f32.mrb[0].mxu0
      %v5186 = vadd.f32 0.0, %v5185
      %v5187 = vpop.f32.mrb[0].mxu0
      %5188 = vdwg.mxu0
      %v5189 = vadd.f32 %v4986, %v5151
      %v5190 = vadd.f32 %v4987, %v5154
      %v5191 = vadd.f32 %v4988, %v5159
      %v5192 = vadd.f32 %v4989, %v5162
      %v5193 = vadd.f32 %v4990, %v5167
      %v5194 = vadd.f32 %v4991, %v5170
      %v5195 = vadd.f32 %v4992, %v5175
      %v5196 = vadd.f32 %v4993, %v5178
      %v5197 = vadd.f32 %v4994, %v5183
      %v5198 = vadd.f32 %v4995, %v5186
      %v5199 = vld [vmem:[%s345 + $0x30] sm:$0x7]
      %s5200 = scalar_lea.vmem %s3, 1600
      %v5201 = vld [vmem:[%s5200] sm:$0xf]
      %v5202 = vld [vmem:[%s5200 + $0x4] sm:$0xf]
      %v5203 = vld [vmem:[%s5200 + $0x8] sm:$0xf]
      %v5204 = vld [vmem:[%s5200 + $0xc] sm:$0xf]
      %v5205 = vld [vmem:[%s5200 + $0x10] sm:$0xf]
      %v5206 = vld [vmem:[%s5200 + $0x14] sm:$0xf]
      %v5207 = vld [vmem:[%s5200 + $0x18] sm:$0xf]
      %v5208 = vld [vmem:[%s5200 + $0x1c] sm:$0xf]
      %v5209 = vld [vmem:[%s5200 + $0x20] sm:$0xf]
      %v5210 = vld [vmem:[%s5200 + $0x24] sm:$0xf]
      %v5211 = vld [vmem:[%s5200 + $0x28] sm:$0xf]
      %v5212 = vld [vmem:[%s5200 + $0x2c] sm:$0xf]
      %v5213 = vld [vmem:[%s5200 + $0x30] sm:$0xf]
      %v5214 = vld [vmem:[%s5200 + $0x34] sm:$0xf]
      %v5215 = vld [vmem:[%s5200 + $0x38] sm:$0xf]
      %v5216 = vld [vmem:[%s5200 + $0x3c] sm:$0xf]
      %v5218 = vunpack.c.l.b16 %v5199
      %v5219 = vpack.c.b16 %v5218, %v5218
      %v5221 = vshrl.u32 %v5046, 16
      %v5223 = vrot.slane %v5221, 2
      %v5224 = vshll.u32 %v5046, 16
      %v5226 = vrot.slane %v5224, 3
      %v5227 = vor.u32 %v5223, %v5226
      %v5229 = vshrl.u32 %v5047, 16
      %v5231 = vrot.slane %v5229, 2
      %v5232 = vshll.u32 %v5047, 16
      %v5234 = vrot.slane %v5232, 3
      %v5235 = vor.u32 %v5231, %v5234
      %v5236 = vsel %vm1710, %v5227, %v5235
      %v5238 = vshrl.u32 %v5048, 16
      %v5240 = vrot.slane %v5238, 2
      %v5241 = vshll.u32 %v5048, 16
      %v5243 = vrot.slane %v5241, 3
      %v5244 = vor.u32 %v5240, %v5243
      %v5245 = vsel %vm1710, %v5235, %v5244
      %v5247 = vshrl.u32 %v5049, 16
      %v5249 = vrot.slane %v5247, 2
      %v5250 = vshll.u32 %v5049, 16
      %v5252 = vrot.slane %v5250, 3
      %v5253 = vor.u32 %v5249, %v5252
      %v5254 = vsel %vm1710, %v5244, %v5253
      %v5256 = vshrl.u32 %v5050, 16
      %v5258 = vrot.slane %v5256, 2
      %v5259 = vshll.u32 %v5050, 16
      %v5261 = vrot.slane %v5259, 3
      %v5262 = vor.u32 %v5258, %v5261
      %v5263 = vsel %vm1710, %v5253, %v5262
      %v5265 = vshrl.u32 %v5219, 16
      %v5267 = vrot.slane %v5265, 2
      %v5268 = vshll.u32 %v5219, 16
      %v5270 = vrot.slane %v5268, 3
      %v5271 = vor.u32 %v5267, %v5270
      %v5272 = vsel %vm1710, %v5262, %v5271
      %v5294 = vunpack.c.l.b16 %v5201
      %v5295 = vunpack.c.l.b16 %v5202
      %v5296 = vunpack.c.l.b16 %v5203
      %v5297 = vunpack.c.l.b16 %v5204
      %v5298 = vunpack.c.l.b16 %v5205
      %v5299 = vunpack.c.l.b16 %v5206
      %v5300 = vunpack.c.l.b16 %v5207
      %v5301 = vunpack.c.l.b16 %v5208
      %v5302 = vunpack.c.l.b16 %v5209
      %v5303 = vunpack.c.l.b16 %v5210
      %v5304 = vunpack.c.l.b16 %v5211
      %v5305 = vunpack.c.l.b16 %v5212
      %v5306 = vunpack.c.l.b16 %v5213
      %v5307 = vunpack.c.l.b16 %v5214
      %v5308 = vunpack.c.l.b16 %v5215
      %v5309 = vunpack.c.l.b16 %v5216
      %v5310 = vpack.c.b16 %v5295, %v5294
      %v5311 = vpack.c.b16 %v5297, %v5296
      %v5312 = vpack.c.b16 %v5299, %v5298
      %v5313 = vpack.c.b16 %v5301, %v5300
      %v5314 = vpack.c.b16 %v5303, %v5302
      %v5315 = vpack.c.b16 %v5305, %v5304
      %v5316 = vpack.c.b16 %v5307, %v5306
      %v5317 = vpack.c.b16 %v5309, %v5308
      %5326 = vmatprep.subr.bf16.mxu0 0
      %5327 = vmatpush1.bf16.msra.mxu0 %v5310
      %5328 = vmatprep.subr.bf16.mxu0 0
      %5329 = vmatpush1.bf16.msra.mxu0 %v5311
      %5330 = vmatprep.subr.bf16.mxu0 0
      %5331 = vmatpush1.bf16.msra.mxu0 %v5312
      %5332 = vmatprep.subr.bf16.mxu0 0
      %5333 = vmatpush1.bf16.msra.mxu0 %v5313
      %5334 = vmatprep.subr.bf16.mxu0 0
      %5335 = vmatpush1.bf16.msra.mxu0 %v5314
      %5336 = vmatprep.subr.bf16.mxu0 0
      %5337 = vmatpush1.bf16.msra.mxu0 %v5315
      %5338 = vmatprep.subr.bf16.mxu0 0
      %5339 = vmatpush1.bf16.msra.mxu0 %v5316
      %5340 = vmatprep.subr.bf16.mxu0 0
      %5341 = vmatpush1.bf16.msra.mxu0 %v5317
      %5342 = vmatprep.subr.bf16.mxu0 0
      %5343 = vmatpush1.bf16.msra.mxu0 0
      %5344 = vmatprep.subr.bf16.mxu0 0
      %5345 = vmatpush1.bf16.msra.mxu0 0
      %5346 = vmatprep.subr.bf16.mxu0 0
      %5347 = vmatpush1.bf16.msra.mxu0 0
      %5348 = vmatprep.subr.bf16.mxu0 0
      %5349 = vmatpush1.bf16.msra.mxu0 0
      %5350 = vmatprep.subr.bf16.mxu0 0
      %5351 = vmatpush1.bf16.msra.mxu0 0
      %5352 = vmatprep.subr.bf16.mxu0 0
      %5353 = vmatpush1.bf16.msra.mxu0 0
      %5354 = vmatprep.subr.bf16.mxu0 0
      %5355 = vmatpush1.bf16.msra.mxu0 0
      %5356 = vmatprep.subr.bf16.mxu0 0
      %5357 = vmatpush1.bf16.msra.mxu0 0
      %5358 = vmatprep.mubr.bf16.mxu0 0
      %5359 = vmatmul.mubr.bf16.gmra.mrb[0].mxu0 %v5236
      %v5360 = vpop.f32.mrb[0].mxu0
      %v5361 = vadd.f32 0.0, %v5360
      %v5362 = vpop.f32.mrb[0].mxu0
      %v5363 = vpop.f32.mrb[0].mxu0
      %v5364 = vadd.f32 0.0, %v5363
      %v5365 = vpop.f32.mrb[0].mxu0
      %5366 = vmatprep.mubr.bf16.mxu0 0
      %5367 = vmatmul.mubr.bf16.gmra.mrb[0].mxu0 %v5245
      %v5368 = vpop.f32.mrb[0].mxu0
      %v5369 = vadd.f32 0.0, %v5368
      %v5370 = vpop.f32.mrb[0].mxu0
      %v5371 = vpop.f32.mrb[0].mxu0
      %v5372 = vadd.f32 0.0, %v5371
      %v5373 = vpop.f32.mrb[0].mxu0
      %5374 = vmatprep.mubr.bf16.mxu0 0
      %5375 = vmatmul.mubr.bf16.gmra.mrb[0].mxu0 %v5254
      %v5376 = vpop.f32.mrb[0].mxu0
      %v5377 = vadd.f32 0.0, %v5376
      %v5378 = vpop.f32.mrb[0].mxu0
      %v5379 = vpop.f32.mrb[0].mxu0
      %v5380 = vadd.f32 0.0, %v5379
      %v5381 = vpop.f32.mrb[0].mxu0
      %5382 = vmatprep.mubr.bf16.mxu0 0
      %5383 = vmatmul.mubr.bf16.gmra.mrb[0].mxu0 %v5263
      %v5384 = vpop.f32.mrb[0].mxu0
      %v5385 = vadd.f32 0.0, %v5384
      %v5386 = vpop.f32.mrb[0].mxu0
      %v5387 = vpop.f32.mrb[0].mxu0
      %v5388 = vadd.f32 0.0, %v5387
      %v5389 = vpop.f32.mrb[0].mxu0
      %5390 = vmatprep.mubr.bf16.mxu0 0
      %5391 = vmatmul.mubr.bf16.gmra.mrb[0].mxu0 %v5272
      %v5392 = vpop.f32.mrb[0].mxu0
      %v5393 = vadd.f32 0.0, %v5392
      %v5394 = vpop.f32.mrb[0].mxu0
      %v5395 = vpop.f32.mrb[0].mxu0
      %v5396 = vadd.f32 0.0, %v5395
      %v5397 = vpop.f32.mrb[0].mxu0
      %5398 = vdwg.mxu0
      %v5399 = vadd.f32 %v5189, %v5361
      %v5400 = vadd.f32 %v5190, %v5364
      %v5401 = vadd.f32 %v5191, %v5369
      %v5402 = vadd.f32 %v5192, %v5372
      %v5403 = vadd.f32 %v5193, %v5377
      %v5404 = vadd.f32 %v5194, %v5380
      %v5405 = vadd.f32 %v5195, %v5385
      %v5406 = vadd.f32 %v5196, %v5388
      %v5407 = vadd.f32 %v5197, %v5393
      %v5408 = vadd.f32 %v5198, %v5396
      %v5409 = vld [vmem:[%s345 + $0x8] sm:$0x8]
      %s5410 = scalar_lea.vmem %s3, 1664
      %v5411 = vld [vmem:[%s5410] sm:$0xf]
      %v5412 = vld [vmem:[%s5410 + $0x4] sm:$0xf]
      %v5413 = vld [vmem:[%s5410 + $0x8] sm:$0xf]
      %v5414 = vld [vmem:[%s5410 + $0xc] sm:$0xf]
      %v5415 = vld [vmem:[%s5410 + $0x10] sm:$0xf]
      %v5416 = vld [vmem:[%s5410 + $0x14] sm:$0xf]
      %v5417 = vld [vmem:[%s5410 + $0x18] sm:$0xf]
      %v5418 = vld [vmem:[%s5410 + $0x1c] sm:$0xf]
      %v5419 = vld [vmem:[%s5410 + $0x20] sm:$0xf]
      %v5420 = vld [vmem:[%s5410 + $0x24] sm:$0xf]
      %v5421 = vld [vmem:[%s5410 + $0x28] sm:$0xf]
      %v5422 = vld [vmem:[%s5410 + $0x2c] sm:$0xf]
      %v5423 = vld [vmem:[%s5410 + $0x30] sm:$0xf]
      %v5424 = vld [vmem:[%s5410 + $0x34] sm:$0xf]
      %v5425 = vld [vmem:[%s5410 + $0x38] sm:$0xf]
      %v5426 = vld [vmem:[%s5410 + $0x3c] sm:$0xf]
      %v5428 = vunpack.c.l.b16 %v5409
      %v5429 = vpack.c.b16 %v5036, %v5428
      %v5430 = vrot.slane %v5429, 3
      %v5431 = vrot.slane %v5047, 3
      %v5432 = vsel %vm1921, %v5430, %v5431
      %v5433 = vrot.slane %v5048, 3
      %v5434 = vsel %vm1921, %v5431, %v5433
      %v5435 = vrot.slane %v5049, 3
      %v5436 = vsel %vm1921, %v5433, %v5435
      %v5437 = vrot.slane %v5050, 3
      %v5438 = vsel %vm1921, %v5435, %v5437
      %v5439 = vrot.slane %v5219, 3
      %v5440 = vsel %vm1921, %v5437, %v5439
      %v5462 = vunpack.c.l.b16 %v5411
      %v5463 = vunpack.c.l.b16 %v5412
      %v5464 = vunpack.c.l.b16 %v5413
      %v5465 = vunpack.c.l.b16 %v5414
      %v5466 = vunpack.c.l.b16 %v5415
      %v5467 = vunpack.c.l.b16 %v5416
      %v5468 = vunpack.c.l.b16 %v5417
      %v5469 = vunpack.c.l.b16 %v5418
      %v5470 = vunpack.c.l.b16 %v5419
      %v5471 = vunpack.c.l.b16 %v5420
      %v5472 = vunpack.c.l.b16 %v5421
      %v5473 = vunpack.c.l.b16 %v5422
      %v5474 = vunpack.c.l.b16 %v5423
      %v5475 = vunpack.c.l.b16 %v5424
      %v5476 = vunpack.c.l.b16 %v5425
      %v5477 = vunpack.c.l.b16 %v5426
      %v5478 = vpack.c.b16 %v5463, %v5462
      %v5479 = vpack.c.b16 %v5465, %v5464
      %v5480 = vpack.c.b16 %v5467, %v5466
      %v5481 = vpack.c.b16 %v5469, %v5468
      %v5482 = vpack.c.b16 %v5471, %v5470
      %v5483 = vpack.c.b16 %v5473, %v5472
      %v5484 = vpack.c.b16 %v5475, %v5474
      %v5485 = vpack.c.b16 %v5477, %v5476
      %5494 = vmatprep.subr.bf16.mxu0 0
      %5495 = vmatpush1.bf16.msra.mxu0 %v5478
      %5496 = vmatprep.subr.bf16.mxu0 0
      %5497 = vmatpush1.bf16.msra.mxu0 %v5479
      %5498 = vmatprep.subr.bf16.mxu0 0
      %5499 = vmatpush1.bf16.msra.mxu0 %v5480
      %5500 = vmatprep.subr.bf16.mxu0 0
      %5501 = vmatpush1.bf16.msra.mxu0 %v5481
      %5502 = vmatprep.subr.bf16.mxu0 0
      %5503 = vmatpush1.bf16.msra.mxu0 %v5482
      %5504 = vmatprep.subr.bf16.mxu0 0
      %5505 = vmatpush1.bf16.msra.mxu0 %v5483
      %5506 = vmatprep.subr.bf16.mxu0 0
      %5507 = vmatpush1.bf16.msra.mxu0 %v5484
      %5508 = vmatprep.subr.bf16.mxu0 0
      %5509 = vmatpush1.bf16.msra.mxu0 %v5485
      %5510 = vmatprep.subr.bf16.mxu0 0
      %5511 = vmatpush1.bf16.msra.mxu0 0
      %5512 = vmatprep.subr.bf16.mxu0 0
      %5513 = vmatpush1.bf16.msra.mxu0 0
      %5514 = vmatprep.subr.bf16.mxu0 0
      %5515 = vmatpush1.bf16.msra.mxu0 0
      %5516 = vmatprep.subr.bf16.mxu0 0
      %5517 = vmatpush1.bf16.msra.mxu0 0
      %5518 = vmatprep.subr.bf16.mxu0 0
      %5519 = vmatpush1.bf16.msra.mxu0 0
      %5520 = vmatprep.subr.bf16.mxu0 0
      %5521 = vmatpush1.bf16.msra.mxu0 0
      %5522 = vmatprep.subr.bf16.mxu0 0
      %5523 = vmatpush1.bf16.msra.mxu0 0
      %5524 = vmatprep.subr.bf16.mxu0 0
      %5525 = vmatpush1.bf16.msra.mxu0 0
      %5526 = vmatprep.mubr.bf16.mxu0 0
      %5527 = vmatmul.mubr.bf16.gmra.mrb[0].mxu0 %v5432
      %v5528 = vpop.f32.mrb[0].mxu0
      %v5529 = vadd.f32 0.0, %v5528
      %v5530 = vpop.f32.mrb[0].mxu0
      %v5531 = vpop.f32.mrb[0].mxu0
      %v5532 = vadd.f32 0.0, %v5531
      %v5533 = vpop.f32.mrb[0].mxu0
      %5534 = vmatprep.mubr.bf16.mxu0 0
      %5535 = vmatmul.mubr.bf16.gmra.mrb[0].mxu0 %v5434
      %v5536 = vpop.f32.mrb[0].mxu0
      %v5537 = vadd.f32 0.0, %v5536
      %v5538 = vpop.f32.mrb[0].mxu0
      %v5539 = vpop.f32.mrb[0].mxu0
      %v5540 = vadd.f32 0.0, %v5539
      %v5541 = vpop.f32.mrb[0].mxu0
      %5542 = vmatprep.mubr.bf16.mxu0 0
      %5543 = vmatmul.mubr.bf16.gmra.mrb[0].mxu0 %v5436
      %v5544 = vpop.f32.mrb[0].mxu0
      %v5545 = vadd.f32 0.0, %v5544
      %v5546 = vpop.f32.mrb[0].mxu0
      %v5547 = vpop.f32.mrb[0].mxu0
      %v5548 = vadd.f32 0.0, %v5547
      %v5549 = vpop.f32.mrb[0].mxu0
      %5550 = vmatprep.mubr.bf16.mxu0 0
      %5551 = vmatmul.mubr.bf16.gmra.mrb[0].mxu0 %v5438
      %v5552 = vpop.f32.mrb[0].mxu0
      %v5553 = vadd.f32 0.0, %v5552
      %v5554 = vpop.f32.mrb[0].mxu0
      %v5555 = vpop.f32.mrb[0].mxu0
      %v5556 = vadd.f32 0.0, %v5555
      %v5557 = vpop.f32.mrb[0].mxu0
      %5558 = vmatprep.mubr.bf16.mxu0 0
      %5559 = vmatmul.mubr.bf16.gmra.mrb[0].mxu0 %v5440
      %v5560 = vpop.f32.mrb[0].mxu0
      %v5561 = vadd.f32 0.0, %v5560
      %v5562 = vpop.f32.mrb[0].mxu0
      %v5563 = vpop.f32.mrb[0].mxu0
      %v5564 = vadd.f32 0.0, %v5563
      %v5565 = vpop.f32.mrb[0].mxu0
      %5566 = vdwg.mxu0
      %v5567 = vadd.f32 %v5399, %v5529
      %v5568 = vadd.f32 %v5400, %v5532
      %v5569 = vadd.f32 %v5401, %v5537
      %v5570 = vadd.f32 %v5402, %v5540
      %v5571 = vadd.f32 %v5403, %v5545
      %v5572 = vadd.f32 %v5404, %v5548
      %v5573 = vadd.f32 %v5405, %v5553
      %v5574 = vadd.f32 %v5406, %v5556
      %v5575 = vadd.f32 %v5407, %v5561
      %v5576 = vadd.f32 %v5408, %v5564
      %v5577 = vlaneseq
      %v5578 = vshrl.u32 %v5577, 7
      %v5579 = vadd.s32 %v5578, 8
      %v5580 = vadd.s32 %v5578, 16
      %v5581 = vadd.s32 %v5578, 24
      %v5582 = vadd.s32 %v5578, 32
      %v5583 = vadd.s32 %v5578, 40
      %v5584 = vadd.s32 %v5578, 48
      %v5585 = vadd.s32 %v5578, 56
      %v5586 = vadd.s32 %v5578, 64
      %v5587 = vadd.s32 %v5578, 72
      %vm5588 = vcmp.lt.s32.totalorder %v5578, 0
      %v5589 = vsub.s32 0, %v5578
      %v5590 = vsel %vm5588, %v5589, %v5578
      %v5591 = vmul.u32.u64.compose %v5590, 3435973837
      %v5592 = vextract.low.u32 %v5591
      %v5593 = vextract.high.u32 %v5591
      %v5594 = vshrl.u32 %v5593, 3
      %v5595 = vmul.u32 %v5594, 10
      %v5596 = vsub.s32 %v5590, %v5595
      %v5597 = vsub.s32 0, %v5596
      %v5598 = vsel %vm5588, %v5597, %v5596
      %vm5599 = vcmp.lt.s32.totalorder %v5579, 0
      %v5600 = vsub.s32 0, %v5579
      %v5601 = vsel %vm5599, %v5600, %v5579
      %v5602 = vmul.u32.u64.compose %v5601, 3435973837
      %v5603 = vextract.low.u32 %v5602
      %v5604 = vextract.high.u32 %v5602
      %v5605 = vshrl.u32 %v5604, 3
      %v5606 = vmul.u32 %v5605, 10
      %v5607 = vsub.s32 %v5601, %v5606
      %v5608 = vsub.s32 0, %v5607
      %v5609 = vsel %vm5599, %v5608, %v5607
      %vm5610 = vcmp.lt.s32.totalorder %v5580, 0
      %v5611 = vsub.s32 0, %v5580
      %v5612 = vsel %vm5610, %v5611, %v5580
      %v5613 = vmul.u32.u64.compose %v5612, 3435973837
      %v5614 = vextract.low.u32 %v5613
      %v5615 = vextract.high.u32 %v5613
      %v5616 = vshrl.u32 %v5615, 3
      %v5617 = vmul.u32 %v5616, 10
      %v5618 = vsub.s32 %v5612, %v5617
      %v5619 = vsub.s32 0, %v5618
      %v5620 = vsel %vm5610, %v5619, %v5618
      %vm5621 = vcmp.lt.s32.totalorder %v5581, 0
      %v5622 = vsub.s32 0, %v5581
      %v5623 = vsel %vm5621, %v5622, %v5581
      %v5624 = vmul.u32.u64.compose %v5623, 3435973837
      %v5625 = vextract.low.u32 %v5624
      %v5626 = vextract.high.u32 %v5624
      %v5627 = vshrl.u32 %v5626, 3
      %v5628 = vmul.u32 %v5627, 10
      %v5629 = vsub.s32 %v5623, %v5628
      %v5630 = vsub.s32 0, %v5629
      %v5631 = vsel %vm5621, %v5630, %v5629
      %vm5632 = vcmp.lt.s32.totalorder %v5582, 0
      %v5633 = vsub.s32 0, %v5582
      %v5634 = vsel %vm5632, %v5633, %v5582
      %v5635 = vmul.u32.u64.compose %v5634, 3435973837
      %v5636 = vextract.low.u32 %v5635
      %v5637 = vextract.high.u32 %v5635
      %v5638 = vshrl.u32 %v5637, 3
      %v5639 = vmul.u32 %v5638, 10
      %v5640 = vsub.s32 %v5634, %v5639
      %v5641 = vsub.s32 0, %v5640
      %v5642 = vsel %vm5632, %v5641, %v5640
      %vm5643 = vcmp.lt.s32.totalorder %v5583, 0
      %v5644 = vsub.s32 0, %v5583
      %v5645 = vsel %vm5643, %v5644, %v5583
      %v5646 = vmul.u32.u64.compose %v5645, 3435973837
      %v5647 = vextract.low.u32 %v5646
      %v5648 = vextract.high.u32 %v5646
      %v5649 = vshrl.u32 %v5648, 3
      %v5650 = vmul.u32 %v5649, 10
      %v5651 = vsub.s32 %v5645, %v5650
      %v5652 = vsub.s32 0, %v5651
      %v5653 = vsel %vm5643, %v5652, %v5651
      %vm5654 = vcmp.lt.s32.totalorder %v5584, 0
      %v5655 = vsub.s32 0, %v5584
      %v5656 = vsel %vm5654, %v5655, %v5584
      %v5657 = vmul.u32.u64.compose %v5656, 3435973837
      %v5658 = vextract.low.u32 %v5657
      %v5659 = vextract.high.u32 %v5657
      %v5660 = vshrl.u32 %v5659, 3
      %v5661 = vmul.u32 %v5660, 10
      %v5662 = vsub.s32 %v5656, %v5661
      %v5663 = vsub.s32 0, %v5662
      %v5664 = vsel %vm5654, %v5663, %v5662
      %vm5665 = vcmp.lt.s32.totalorder %v5585, 0
      %v5666 = vsub.s32 0, %v5585
      %v5667 = vsel %vm5665, %v5666, %v5585
      %v5668 = vmul.u32.u64.compose %v5667, 3435973837
      %v5669 = vextract.low.u32 %v5668
      %v5670 = vextract.high.u32 %v5668
      %v5671 = vshrl.u32 %v5670, 3
      %v5672 = vmul.u32 %v5671, 10
      %v5673 = vsub.s32 %v5667, %v5672
      %v5674 = vsub.s32 0, %v5673
      %v5675 = vsel %vm5665, %v5674, %v5673
      %vm5676 = vcmp.lt.s32.totalorder %v5586, 0
      %v5677 = vsub.s32 0, %v5586
      %v5678 = vsel %vm5676, %v5677, %v5586
      %v5679 = vmul.u32.u64.compose %v5678, 3435973837
      %v5680 = vextract.low.u32 %v5679
      %v5681 = vextract.high.u32 %v5679
      %v5682 = vshrl.u32 %v5681, 3
      %v5683 = vmul.u32 %v5682, 10
      %v5684 = vsub.s32 %v5678, %v5683
      %v5685 = vsub.s32 0, %v5684
      %v5686 = vsel %vm5676, %v5685, %v5684
      %vm5687 = vcmp.lt.s32.totalorder %v5587, 0
      %v5688 = vsub.s32 0, %v5587
      %v5689 = vsel %vm5687, %v5688, %v5587
      %v5690 = vmul.u32.u64.compose %v5689, 3435973837
      %v5691 = vextract.low.u32 %v5690
      %v5692 = vextract.high.u32 %v5690
      %v5693 = vshrl.u32 %v5692, 3
      %v5694 = vmul.u32 %v5693, 10
      %v5695 = vsub.s32 %v5689, %v5694
      %v5696 = vsub.s32 0, %v5695
      %v5697 = vsel %vm5687, %v5696, %v5695
      %vm5698 = vcmp.ne.s32.totalorder %v5598, 0
      %vm5699 = vcmp.ne.s32.totalorder %v5609, 0
      %vm5700 = vcmp.ne.s32.totalorder %v5620, 0
      %vm5701 = vcmp.ne.s32.totalorder %v5631, 0
      %vm5702 = vcmp.ne.s32.totalorder %v5642, 0
      %vm5703 = vcmp.ne.s32.totalorder %v5653, 0
      %vm5704 = vcmp.ne.s32.totalorder %v5664, 0
      %vm5705 = vcmp.ne.s32.totalorder %v5675, 0
      %vm5706 = vcmp.ne.s32.totalorder %v5686, 0
      %vm5707 = vcmp.ne.s32.totalorder %v5697, 0
      %vm5708 = vcmp.lt.s32.totalorder %v5598, 0
      %vm5709 = vcmp.lt.s32.totalorder %v5609, 0
      %vm5710 = vcmp.lt.s32.totalorder %v5620, 0
      %vm5711 = vcmp.lt.s32.totalorder %v5631, 0
      %vm5712 = vcmp.lt.s32.totalorder %v5642, 0
      %vm5713 = vcmp.lt.s32.totalorder %v5653, 0
      %vm5714 = vcmp.lt.s32.totalorder %v5664, 0
      %vm5715 = vcmp.lt.s32.totalorder %v5675, 0
      %vm5716 = vcmp.lt.s32.totalorder %v5686, 0
      %vm5717 = vcmp.lt.s32.totalorder %v5697, 0
      %vm5718 = vmand %vm5708, %vm5698
      %vm5719 = vmand %vm5709, %vm5699
      %vm5720 = vmand %vm5710, %vm5700
      %vm5721 = vmand %vm5711, %vm5701
      %vm5722 = vmand %vm5712, %vm5702
      %vm5723 = vmand %vm5713, %vm5703
      %vm5724 = vmand %vm5714, %vm5704
      %vm5725 = vmand %vm5715, %vm5705
      %vm5726 = vmand %vm5716, %vm5706
      %vm5727 = vmand %vm5717, %vm5707
      %v5728 = vadd.s32 %v5598, 10
      %v5729 = vadd.s32 %v5609, 10
      %v5730 = vadd.s32 %v5620, 10
      %v5731 = vadd.s32 %v5631, 10
      %v5732 = vadd.s32 %v5642, 10
      %v5733 = vadd.s32 %v5653, 10
      %v5734 = vadd.s32 %v5664, 10
      %v5735 = vadd.s32 %v5675, 10
      %v5736 = vadd.s32 %v5686, 10
      %v5737 = vadd.s32 %v5697, 10
      %v5738 = vsel %vm5718, %v5728, %v5598
      %v5739 = vsel %vm5719, %v5729, %v5609
      %v5740 = vsel %vm5720, %v5730, %v5620
      %v5741 = vsel %vm5721, %v5731, %v5631
      %v5742 = vsel %vm5722, %v5732, %v5642
      %v5743 = vsel %vm5723, %v5733, %v5653
      %v5744 = vsel %vm5724, %v5734, %v5664
      %v5745 = vsel %vm5725, %v5735, %v5675
      %v5746 = vsel %vm5726, %v5736, %v5686
      %v5747 = vsel %vm5727, %v5737, %v5697
      %vm5748 = vcmp.lt.s32.totalorder %v5738, 8
      %vm5749 = vcmp.lt.s32.totalorder %v5739, 8
      %vm5750 = vcmp.lt.s32.totalorder %v5740, 8
      %vm5751 = vcmp.lt.s32.totalorder %v5741, 8
      %vm5752 = vcmp.lt.s32.totalorder %v5742, 8
      %vm5753 = vcmp.lt.s32.totalorder %v5743, 8
      %vm5754 = vcmp.lt.s32.totalorder %v5744, 8
      %vm5755 = vcmp.lt.s32.totalorder %v5745, 8
      %vm5756 = vcmp.lt.s32.totalorder %v5746, 8
      %vm5757 = vcmp.lt.s32.totalorder %v5747, 8
      %v5758 = vsel %vm5748, 1, 0
      %v5759 = vsel %vm5749, 1, 0
      %v5760 = vsel %vm5750, 1, 0
      %v5761 = vsel %vm5751, 1, 0
      %v5762 = vsel %vm5752, 1, 0
      %v5763 = vsel %vm5753, 1, 0
      %v5764 = vsel %vm5754, 1, 0
      %v5765 = vsel %vm5755, 1, 0
      %v5766 = vsel %vm5756, 1, 0
      %v5767 = vsel %vm5757, 1, 0
      %vm5768 = vcmp.eq.s32.totalorder %v5758, 1
      %vm5769 = vcmp.eq.s32.totalorder %v5759, 1
      %vm5770 = vcmp.eq.s32.totalorder %v5760, 1
      %vm5771 = vcmp.eq.s32.totalorder %v5761, 1
      %vm5772 = vcmp.eq.s32.totalorder %v5762, 1
      %vm5773 = vcmp.eq.s32.totalorder %v5763, 1
      %vm5774 = vcmp.eq.s32.totalorder %v5764, 1
      %vm5775 = vcmp.eq.s32.totalorder %v5765, 1
      %vm5776 = vcmp.eq.s32.totalorder %v5766, 1
      %vm5777 = vcmp.eq.s32.totalorder %v5767, 1
      %v5778 = vsel %vm5768, %v5567, 0.0
      %v5779 = vsel %vm5769, %v5568, 0.0
      %v5780 = vsel %vm5770, %v5569, 0.0
      %v5781 = vsel %vm5771, %v5570, 0.0
      %v5782 = vsel %vm5772, %v5571, 0.0
      %v5783 = vsel %vm5773, %v5572, 0.0
      %v5784 = vsel %vm5774, %v5573, 0.0
      %v5785 = vsel %vm5775, %v5574, 0.0
      %v5786 = vsel %vm5776, %v5575, 0.0
      %v5787 = vsel %vm5777, %v5576, 0.0
      %v5788 = vadd.f32 %v5778, %v5779
      %v5789 = vadd.f32 %v5788, %v5780
      %v5790 = vadd.f32 %v5789, %v5781
      %v5791 = vadd.f32 %v5790, %v5782
      %v5792 = vadd.f32 %v5791, %v5783
      %v5793 = vadd.f32 %v5792, %v5784
      %v5794 = vadd.f32 %v5793, %v5785
      %v5795 = vadd.f32 %v5794, %v5786
      %v5796 = vadd.f32 %v5795, %v5787
      %v5797 = vrot.slane %v5796, 4
      %v5798 = vadd.f32 %v5796, %v5797
      %v5799 = vrot.slane %v5798, 2
      %v5800 = vadd.f32 %v5798, %v5799
      %v5801 = vrot.slane %v5800, 1
      %v5802 = vadd.f32 %v5800, %v5801
      %5803 = vst [vmem:[%s363] sm:$0x1] %v5802
      %v5804 = vmul.f32 %v5778, %v5778
      %v5805 = vmul.f32 %v5779, %v5779
      %v5806 = vmul.f32 %v5780, %v5780
      %v5807 = vmul.f32 %v5781, %v5781
      %v5808 = vmul.f32 %v5782, %v5782
      %v5809 = vmul.f32 %v5783, %v5783
      %v5810 = vmul.f32 %v5784, %v5784
      %v5811 = vmul.f32 %v5785, %v5785
      %v5812 = vmul.f32 %v5786, %v5786
      %v5813 = vmul.f32 %v5787, %v5787
      %v5814 = vadd.f32 %v5804, %v5805
      %v5815 = vadd.f32 %v5814, %v5806
      %v5816 = vadd.f32 %v5815, %v5807
      %v5817 = vadd.f32 %v5816, %v5808
      %v5818 = vadd.f32 %v5817, %v5809
      %v5819 = vadd.f32 %v5818, %v5810
      %v5820 = vadd.f32 %v5819, %v5811
      %v5821 = vadd.f32 %v5820, %v5812
      %v5822 = vadd.f32 %v5821, %v5813
      %v5823 = vrot.slane %v5822, 4
      %v5824 = vadd.f32 %v5822, %v5823
      %v5825 = vrot.slane %v5824, 2
      %v5826 = vadd.f32 %v5824, %v5825
      %v5827 = vrot.slane %v5826, 1
      %v5828 = vadd.f32 %v5826, %v5827
      %5829 = vst [vmem:[%s363 + $0x1] sm:$0x1] %v5828
      %v5830 = vpack.c.bf16 %v5567, %v5567
      %5831 = vst [vmem:[%s355] sm:$0xf] %v5830
      %v5832 = vpack.c.bf16 %v5569, %v5568
      %v5834 = vunpack.c.l.b16 %v5832
      %v5835 = vunpack.c.h.b16 %v5832
      %v5836 = vpack.c.b16 %v5834, %v5834
      %v5837 = vpack.c.b16 %v5835, %v5835
      %vm5838 = vcmask 1042432
      %vm5839 = vcmask 1046532
      %vm5840 = vmor %vm5838, %vm5839
      %v5841 = vrot.slane %v5836, 5
      %v5842 = vrot.slane %v5841, 4
      %v5843 = vrot.slane %v5837, 5
      %v5844 = vsel %vm5840, %v5842, %v5843
      %5846 = vst [vmem:[%s355 + $0x4] sm:$0xf] %v5844
      %v5847 = vpack.c.bf16 %v5570, %v5569
      %v5849 = vunpack.c.l.b16 %v5847
      %v5850 = vunpack.c.h.b16 %v5847
      %v5851 = vpack.c.b16 %v5849, %v5849
      %v5852 = vpack.c.b16 %v5850, %v5850
      %vm5853 = vcmask 1041408
      %vm5854 = vcmask 1045508
      %vm5855 = vmor %vm5853, %vm5854
      %v5856 = vrot.slane %v5851, 6
      %v5857 = vrot.slane %v5856, 4
      %v5858 = vrot.slane %v5852, 6
      %v5859 = vsel %vm5855, %v5857, %v5858
      %5861 = vst [vmem:[%s355 + $0x8] sm:$0xf] %v5859
      %v5862 = vpack.c.bf16 %v5571, %v5570
      %v5864 = vunpack.c.l.b16 %v5862
      %v5865 = vunpack.c.h.b16 %v5862
      %v5866 = vpack.c.b16 %v5864, %v5864
      %v5867 = vpack.c.b16 %v5865, %v5865
      %vm5868 = vcmask 1040384
      %vm5869 = vcmask 1044484
      %vm5870 = vmor %vm5868, %vm5869
      %v5871 = vrot.slane %v5866, 7
      %v5872 = vrot.slane %v5871, 4
      %v5873 = vrot.slane %v5867, 7
      %v5874 = vsel %vm5870, %v5872, %v5873
      %5876 = vst [vmem:[%s355 + $0xc] sm:$0xf] %v5874
      %v5877 = vpack.c.bf16 %v5572, %v5572
      %5878 = vst [vmem:[%s355 + $0x10] sm:$0xf] %v5877
      %v5879 = vpack.c.bf16 %v5574, %v5573
      %v5881 = vunpack.c.l.b16 %v5879
      %v5882 = vunpack.c.h.b16 %v5879
      %v5883 = vpack.c.b16 %v5881, %v5881
      %v5884 = vpack.c.b16 %v5882, %v5882
      %v5885 = vrot.slane %v5883, 5
      %v5886 = vrot.slane %v5885, 4
      %v5887 = vrot.slane %v5884, 5
      %v5888 = vsel %vm5840, %v5886, %v5887
      %5890 = vst [vmem:[%s355 + $0x14] sm:$0xf] %v5888
      %v5891 = vpack.c.bf16 %v5575, %v5574
      %v5893 = vunpack.c.l.b16 %v5891
      %v5894 = vunpack.c.h.b16 %v5891
      %v5895 = vpack.c.b16 %v5893, %v5893
      %v5896 = vpack.c.b16 %v5894, %v5894
      %v5897 = vrot.slane %v5895, 6
      %v5898 = vrot.slane %v5897, 4
      %v5899 = vrot.slane %v5896, 6
      %v5900 = vsel %vm5855, %v5898, %v5899
      %5902 = vst [vmem:[%s355 + $0x18] sm:$0xf] %v5900
      %v5903 = vpack.c.bf16 %v5576, %v5575
      %v5905 = vunpack.c.l.b16 %v5903
      %v5906 = vunpack.c.h.b16 %v5903
      %v5907 = vpack.c.b16 %v5905, %v5905
      %v5908 = vpack.c.b16 %v5906, %v5906
      %v5909 = vrot.slane %v5907, 7
      %v5910 = vrot.slane %v5909, 4
      %v5911 = vrot.slane %v5908, 7
      %v5912 = vsel %vm5870, %v5910, %v5911
      %5914 = vst [vmem:[%s355 + $0x1c] sm:$0xf] %v5912
      %p5915 = scmp.lt.s32.totalorder %s21, 1
      %s5916 = scalar_select %p5915, %s21, 1
      %p5917 = scmp.lt.s32.totalorder %s22, 7
      %s5918 = scalar_select %p5917, %s22, 7
      %s5919 = smul.addr %s5918, 8
      %s5920 = smul.addr %s5916, 64
      %s5921 = sadd.s32 %s5919, %s5920
      %s5922 = smul.addr %s5921, 4
      %s5923 = scalar_lea.vmem %s4, %s5922
      %p5924 = scmp.lt.s32.totalorder %s21, 1
      %s5925 = scalar_select %p5924, %s21, 1
      %p5926 = scmp.lt.s32.totalorder %s22, 7
      %s5927 = scalar_select %p5926, %s22, 7
      %s5928 = smul.addr %s5925, 8
      %s5929 = sadd.s32 %s5927, %s5928
      %s5930 = smul.addr %s5929, 2
      %s5931 = scalar_lea.vmem %s5, %s5930
      // Predicated region
      $region37: #{resnet_block_se_forward.7} parent=35 // pred_check
        %p5932 = pneg %p158
      $region38: #{resnet_block_se_forward.7} parent=35 // pred_check_branch
        %5934 = sbr.rel (%p5932) target = $region40
      $region39: #{resnet_block_se_forward.7} parent=35 // pred_region
        _
      $region40: #{resnet_block_se_forward.7} parent=35 // pred_fallthru
        _
      // Predicated region
      $region41: #{resnet_block_se_forward.7} parent=35 // pred_check
        %p5935 = pneg %p186
      $region42: #{resnet_block_se_forward.7} parent=35 // pred_check_branch
        %5937 = sbr.rel (%p5935) target = $region44
      $region43: #{resnet_block_se_forward.7} parent=35 // pred_region
        _
      $region44: #{resnet_block_se_forward.7} parent=35 // pred_fallthru
        _
    $region36: #{resnet_block_se_forward.7} parent=5 // pred_fallthru
      _
    %p5938 = scmp.le.s32.totalorder 2, %s12
    // Predicated region
    $region45: #{resnet_block_se_forward.7} parent=5 // pred_check
      %p5939 = pneg %p5938
    $region46: #{resnet_block_se_forward.7} parent=5 // pred_check_branch
      %5941 = sbr.rel (%p5939) target = $region48
    $region47: #{resnet_block_se_forward.7} parent=5 // pred_region
      %s5942 = ssub.s32 %s12, 2
      // Predicated region
      $region49: #{resnet_block_se_forward.7} parent=47 // pred_check
        %p5943 = pneg %p164
      $region50: #{resnet_block_se_forward.7} parent=47 // pred_check_branch
        %5945 = sbr.rel (%p5943) target = $region52
      $region51: #{resnet_block_se_forward.7} parent=47 // pred_region
        %p5946 = scmp.lt.s32.totalorder %s23, 1
        %s5947 = scalar_select %p5946, %s23, 1
        %p5948 = scmp.lt.s32.totalorder %s24, 7
        %s5949 = scalar_select %p5948, %s24, 7
        %s5950 = smul.addr %s5949, 8
        %s5951 = smul.addr %s5947, 64
        %s5952 = sadd.s32 %s5950, %s5951
        %s5953 = smul.addr %s5952, 4
        %s5954 = scalar_lea.vmem %s4, %s5953
      $region52: #{resnet_block_se_forward.7} parent=47 // pred_fallthru
        _
      // Predicated region
      $region53: #{resnet_block_se_forward.7} parent=47 // pred_check
        %p5955 = pneg %p192
      $region54: #{resnet_block_se_forward.7} parent=47 // pred_check_branch
        %5957 = sbr.rel (%p5955) target = $region56
      $region55: #{resnet_block_se_forward.7} parent=47 // pred_region
        %p5958 = scmp.lt.s32.totalorder %s23, 1
        %s5959 = scalar_select %p5958, %s23, 1
        %p5960 = scmp.lt.s32.totalorder %s24, 7
        %s5961 = scalar_select %p5960, %s24, 7
        %s5962 = smul.addr %s5959, 8
        %s5963 = sadd.s32 %s5961, %s5962
        %s5964 = smul.addr %s5963, 2
        %s5965 = scalar_lea.vmem %s5, %s5964
      $region56: #{resnet_block_se_forward.7} parent=47 // pred_fallthru
        _
    $region48: #{resnet_block_se_forward.7} parent=5 // pred_fallthru
      _
  $region6: #{resnet_block_se_forward.7} parent=0 // loop_footer
    %s16 = sadd.s32 1, %s12
  $region7: #{resnet_block_se_forward.7} parent=0 // loop_footer_branch
    %11 = sbr.rel target = $region3
  $region8: #{resnet_block_se_forward.7} parent=0 // loop_exit
    _

</llo_original>
